<compile_context>
chip_gen: v5e
topology: v5e:2x2
jax: 0.10.0
libtpu: 0.0.40
codegen_flags: <defaults>
</compile_context>

<pallas_src>
import math

import jax
import jax.numpy as jnp
from jax.experimental import pallas as pl
from jax.experimental.pallas import tpu as pltpu  # noqa: F401  (TPU params if scaled up)

# ---- model hyperparameters (small, consistent with the module) ----
D_MODEL = 32          # d_model
NHEAD = 4             # nhead
DIM_FF = 64           # dim_feedforward (also num_hiddens of the shared MultiHeadAttention)
HEAD_DIM = DIM_FF // NHEAD
EPS = 1e-5

B = 2                 # batch
S_T = 8               # target sequence length (queries)
S_M = 16              # memory sequence length
NUM_LAYERS = 2        # decoder depth

N_T = B * S_T         # flattened target rows
N_M = B * S_M         # flattened memory rows

# rows of the packed small-parameter slab (each row padded to DIM_FF=64 lanes)
_B1, _B2, _G1, _BE1, _G2, _BE2, _G3, _BE3, _GF, _BEF = range(10)


def _ln(x, g, b):
    mu = jnp.mean(x, axis=-1, keepdims=True)
    var = jnp.mean((x - mu) ** 2, axis=-1, keepdims=True)
    return (x - mu) * jax.lax.rsqrt(var + EPS) * g + b


def decoder_stack_kernel(
    tgt_ref, qpos_ref, mem_ref, pos_ref,
    wq_ref, wk_ref, wv_ref, wo_ref, w1_ref, w2_ref, slab_ref,
    out_ref,
):
    x = tgt_ref[...]                 # (N_T, D) running target, batch-major flattened rows
    qpos = qpos_ref[...]             # (N_T, D)
    mem = mem_ref[...]               # (N_M, D)
    kmem = mem + pos_ref[...]        # cross-attention key input (layer-invariant, hoisted)

    def split_heads(X, n):
        # (B*n, NHEAD*HEAD_DIM) -> (B*NHEAD, n, HEAD_DIM)
        Xh = X.reshape(B, n, NHEAD, HEAD_DIM)
        Xh = jnp.transpose(Xh, (0, 2, 1, 3))
        return Xh.reshape(B * NHEAD, n, HEAD_DIM)

    def merge_heads(X, n):
        # (B*NHEAD, n, HEAD_DIM) -> (B*n, NHEAD*HEAD_DIM)
        Xh = X.reshape(B, NHEAD, n, HEAD_DIM)
        Xh = jnp.transpose(Xh, (0, 2, 1, 3))
        return Xh.reshape(B * n, NHEAD * HEAD_DIM)

    def attn(Q, K, V, sq, sk):
        # Q: (B*sq, 64) pre-scaled; K, V: (B*sk, 64).  Batch x heads folded into one
        # leading batch axis -> two batched einsums (doc-endorsed 'bqd,bkd->bqk' pattern).
        Qh = split_heads(Q, sq)
        Kh = split_heads(K, sk)
        Vh = split_heads(V, sk)
        s = jnp.einsum('nqd,nkd->nqk', Qh, Kh, preferred_element_type=jnp.float32)
        s = s - jnp.max(s, axis=-1, keepdims=True)
        p = jnp.exp(s)
        p = p * pl.reciprocal(jnp.sum(p, axis=-1, keepdims=True), approx=True)
        o = jnp.einsum('nqk,nkd->nqd', p, Vh, preferred_element_type=jnp.float32)
        return merge_heads(o, sq)    # (B*sq, 64) lane-concatenated heads

    inters = []
    for l in range(NUM_LAYERS):      # static unroll: whole decoder in one launch
        wq = wq_ref[l]               # (D, 64)  pre-scaled by 1/sqrt(head_dim)
        wk = wk_ref[l]               # (D, 64)
        wv = wv_ref[l]               # (D, 64)
        wo = wo_ref[l]               # (64, D)
        w1 = w1_ref[l]               # (D, FF)
        w2 = w2_ref[l]               # (FF, D)
        sl = slab_ref[l]             # (10, 64) packed small params

        b1 = sl[_B1:_B1 + 1, :DIM_FF]
        b2 = sl[_B2:_B2 + 1, :D_MODEL]
        g1 = sl[_G1:_G1 + 1, :D_MODEL]
        be1 = sl[_BE1:_BE1 + 1, :D_MODEL]
        g2 = sl[_G2:_G2 + 1, :D_MODEL]
        be2 = sl[_BE2:_BE2 + 1, :D_MODEL]
        g3 = sl[_G3:_G3 + 1, :D_MODEL]
        be3 = sl[_BE3:_BE3 + 1, :D_MODEL]
        gf = sl[_GF:_GF + 1, :D_MODEL]
        bef = sl[_BEF:_BEF + 1, :D_MODEL]

        # q = k = tgt + query_pos, held fixed across both attention blocks (DETR variant)
        q = x + qpos

        # --- self attention: full-width projections (single MXU pushes each) ---
        Q = jnp.dot(q, wq, preferred_element_type=jnp.float32)     # (N_T, 64), scaled
        K = jnp.dot(q, wk, preferred_element_type=jnp.float32)     # (N_T, 64)
        V = jnp.dot(x, wv, preferred_element_type=jnp.float32)     # (N_T, 64)
        sa = jnp.dot(attn(Q, K, V, S_T, S_T), wo,
                     preferred_element_type=jnp.float32)           # (N_T, D)
        x = _ln(x + sa, g1, be1)

        # --- cross attention: Q reused (same q, shared weights); keys = mem + pos ---
        Kc = jnp.dot(kmem, wk, preferred_element_type=jnp.float32)  # (N_M, 64)
        Vc = jnp.dot(mem, wv, preferred_element_type=jnp.float32)   # (N_M, 64)
        ca = jnp.dot(attn(Q, Kc, Vc, S_T, S_M), wo,
                     preferred_element_type=jnp.float32)            # (N_T, D)
        x = _ln(x + ca, g2, be2)

        # --- FFN + residual + norm_3 ---
        hdn = jnp.maximum(jnp.dot(x, w1, preferred_element_type=jnp.float32) + b1, 0.0)
        ff = jnp.dot(hdn, w2, preferred_element_type=jnp.float32) + b2
        x = _ln(x + ff, g3, be3)

        inters.append(_ln(x, gf, bef))   # decoder-level norm for the intermediates

    # single lane-dense store: (N_T, NUM_LAYERS*D) packed intermediates
    out_ref[...] = jnp.concatenate(inters, axis=1).astype(out_ref.dtype)


# Single invocation: no grid, whole arrays as single VMEM blocks (everything is tiny,
# total weights ~100 KB << VMEM).  One launch, one output writeback.
_decoder_call = pl.pallas_call(
    decoder_stack_kernel,
    out_shape=jax.ShapeDtypeStruct((N_T, NUM_LAYERS * D_MODEL), jnp.float32),
)


def pack_params(layer_params, final_norm):
    """Stack per-layer weights along a leading L axis, fold the attention scale into
    Wq, and pack all small vectors into one (L, 10, 64) slab.  Done ONCE, outside the
    per-call path."""
    gf, bef = final_norm
    scale = 1.0 / math.sqrt(HEAD_DIM)

    def row(v):
        v = v.reshape(1, -1)
        return jnp.pad(v, ((0, 0), (0, DIM_FF - v.shape[1])))

    wqs, wks, wvs, wos, w1s, w2s, slabs = [], [], [], [], [], [], []
    for (wq, wk, wv, wo, w1, b1, w2, b2, g1, be1, g2, be2, g3, be3) in layer_params:
        wqs.append(wq * scale)          # fold 1/sqrt(head_dim) into the Q projection
        wks.append(wk)
        wvs.append(wv)
        wos.append(wo)
        w1s.append(w1)
        w2s.append(w2)
        slabs.append(jnp.concatenate(
            [row(b1), row(b2), row(g1), row(be1), row(g2),
             row(be2), row(g3), row(be3), row(gf), row(bef)], axis=0))  # (10, 64)

    stack = lambda xs: jnp.stack(xs, axis=0)
    return (stack(wqs), stack(wks), stack(wvs), stack(wos),
            stack(w1s), stack(w2s), stack(slabs))


@jax.jit
def transformer_decoder(tgt, memory, pos, query_pos, params):
    """TransformerDecoder.forward (return_intermediate=True).
    tgt/query_pos: (S_T, B, D); pos: (S_M, B, D); memory: (B, S_M, D).
    params: stacked per-layer weights from pack_params().
    Returns (NUM_LAYERS, S_T, B, D)."""
    wq, wk, wv, wo, w1, w2, slab = params
    tgt_flat = jnp.transpose(tgt, (1, 0, 2)).reshape(N_T, D_MODEL)
    qpos_flat = jnp.transpose(query_pos, (1, 0, 2)).reshape(N_T, D_MODEL)
    pos_flat = jnp.transpose(pos, (1, 0, 2)).reshape(N_M, D_MODEL)
    mem_flat = memory.reshape(N_M, D_MODEL)     # memory already batch-first (as in reference)

    packed = _decoder_call(tgt_flat, qpos_flat, mem_flat, pos_flat,
                           wq, wk, wv, wo, w1, w2, slab)        # (N_T, L*D)

    # unpack lane-packed intermediates: (B*S_T, L*D) -> (L, S_T, B, D)
    out = packed.reshape(B, S_T, NUM_LAYERS, D_MODEL)
    return jnp.transpose(out, (2, 1, 0, 3))


# ---- pure-JAX reference for validation ----
def reference_decoder(tgt, memory, pos, query_pos, layer_params, final_norm):
    gf, bef = final_norm

    def ln(x, g, b):
        mu = jnp.mean(x, axis=-1, keepdims=True)
        var = jnp.mean((x - mu) ** 2, axis=-1, keepdims=True)
        return (x - mu) / jnp.sqrt(var + EPS) * g + b

    def layer(tgt_sb, raw):
        (wq, wk, wv, wo, w1, b1, w2, b2, g1, be1, g2, be2, g3, be3) = raw
        tgt_b = jnp.transpose(tgt_sb, (1, 0, 2))
        qpos_b = jnp.transpose(query_pos, (1, 0, 2))
        pos_b = jnp.transpose(pos, (1, 0, 2))
        mem_b = memory

        def mha(qq, kk, vv):
            Q, K, V = qq @ wq, kk @ wk, vv @ wv

            def split(X):
                Bn, S, H = X.shape
                return jnp.transpose(X.reshape(Bn, S, NHEAD, HEAD_DIM), (0, 2, 1, 3))

            Qh, Kh, Vh = split(Q), split(K), split(V)
            s = jnp.einsum("bhqd,bhkd->bhqk", Qh, Kh) / math.sqrt(HEAD_DIM)
            pmat = jax.nn.softmax(s, axis=-1)
            o = jnp.einsum("bhqk,bhkd->bhqd", pmat, Vh)
            o = jnp.transpose(o, (0, 2, 1, 3)).reshape(Q.shape)
            return o @ wo

        q = tgt_b + qpos_b
        x = ln(tgt_b + mha(q, q, tgt_b), g1, be1)
        x = ln(x + mha(q, mem_b + pos_b, mem_b), g2, be2)
        ff = jnp.maximum(x @ w1 + b1, 0.0) @ w2 + b2
        return ln(x + ff, g3, be3)   # (B, S_T, D)

    x = tgt
    inters = []
    for raw in layer_params:
        out_b = layer(x, raw)
        x = jnp.transpose(out_b, (1, 0, 2))
        inters.append(ln(x, gf, bef))
    return jnp.stack(inters, axis=0)


def init_layer_params(key):
    ks = jax.random.split(key, 14)
    s = 0.05
    wq = s * jax.random.normal(ks[0], (D_MODEL, DIM_FF), jnp.float32)
    wk = s * jax.random.normal(ks[1], (D_MODEL, DIM_FF), jnp.float32)
    wv = s * jax.random.normal(ks[2], (D_MODEL, DIM_FF), jnp.float32)
    wo = s * jax.random.normal(ks[3], (DIM_FF, D_MODEL), jnp.float32)
    w1 = s * jax.random.normal(ks[4], (D_MODEL, DIM_FF), jnp.float32)
    b1 = s * jax.random.normal(ks[5], (1, DIM_FF), jnp.float32)
    w2 = s * jax.random.normal(ks[6], (DIM_FF, D_MODEL), jnp.float32)
    b2 = s * jax.random.normal(ks[7], (1, D_MODEL), jnp.float32)
    g1 = 1.0 + 0.1 * jax.random.normal(ks[8], (1, D_MODEL), jnp.float32)
    be1 = 0.1 * jax.random.normal(ks[9], (1, D_MODEL), jnp.float32)
    g2 = 1.0 + 0.1 * jax.random.normal(ks[10], (1, D_MODEL), jnp.float32)
    be2 = 0.1 * jax.random.normal(ks[11], (1, D_MODEL), jnp.float32)
    g3 = 1.0 + 0.1 * jax.random.normal(ks[12], (1, D_MODEL), jnp.float32)
    be3 = 0.1 * jax.random.normal(ks[13], (1, D_MODEL), jnp.float32)
    return (wq, wk, wv, wo, w1, b1, w2, b2, g1, be1, g2, be2, g3, be3)


if __name__ == "__main__":
    key = jax.random.PRNGKey(0)
    k_in, k_par = jax.random.split(key)
    ki = jax.random.split(k_in, 4)

    tgt = jax.random.normal(ki[0], (S_T, B, D_MODEL), jnp.float32)
    query_pos = jax.random.normal(ki[1], (S_T, B, D_MODEL), jnp.float32)
    pos = jax.random.normal(ki[2], (S_M, B, D_MODEL), jnp.float32)
    memory = jax.random.normal(ki[3], (B, S_M, D_MODEL), jnp.float32)

    kp = jax.random.split(k_par, NUM_LAYERS + 1)
    layer_params = [init_layer_params(kp[i]) for i in range(NUM_LAYERS)]
    kf = jax.random.split(kp[NUM_LAYERS], 2)
    final_norm = (1.0 + 0.1 * jax.random.normal(kf[0], (1, D_MODEL), jnp.float32),
                  0.1 * jax.random.normal(kf[1], (1, D_MODEL), jnp.float32))

    # pack once (scale folding, weight stacking, small-param slab), then call jitted fwd
    params = pack_params(layer_params, final_norm)

    out = transformer_decoder(tgt, memory, pos, query_pos, params)
    out = jax.block_until_ready(out)

    ref = reference_decoder(tgt, memory, pos, query_pos, layer_params, final_norm)
    assert out.shape == (NUM_LAYERS, S_T, B, D_MODEL)
    max_err = float(jnp.max(jnp.abs(out - ref)))
    assert jnp.allclose(out, ref, atol=1e-2, rtol=1e-2), max_err

    print("KERNEL_OK")
</pallas_src>

<mosaic_0001>
module attributes {stable_mosaic.version = 11 : i64} {
  func.func @decoder_stack_kernel(%arg0: memref<16x32xf32, #tpu.memory_space<vmem>>, %arg1: memref<16x32xf32, #tpu.memory_space<vmem>>, %arg2: memref<32x32xf32, #tpu.memory_space<vmem>>, %arg3: memref<32x32xf32, #tpu.memory_space<vmem>>, %arg4: memref<2x32x64xf32, #tpu.memory_space<vmem>>, %arg5: memref<2x32x64xf32, #tpu.memory_space<vmem>>, %arg6: memref<2x32x64xf32, #tpu.memory_space<vmem>>, %arg7: memref<2x64x32xf32, #tpu.memory_space<vmem>>, %arg8: memref<2x32x64xf32, #tpu.memory_space<vmem>>, %arg9: memref<2x64x32xf32, #tpu.memory_space<vmem>>, %arg10: memref<2x10x64xf32, #tpu.memory_space<vmem>>, %arg11: memref<16x64xf32, #tpu.memory_space<vmem>>) attributes {dimension_semantics = [], scalar_prefetch = 0 : i64, scratch_operands = 0 : i64, tpu.core_type = #tpu.core_type<tc>} {
    %c0 = arith.constant 0 : index
    %c0_0 = arith.constant 0 : index
    %0 = vector.load %arg0[%c0, %c0_0] : memref<16x32xf32, #tpu.memory_space<vmem>>, vector<16x32xf32>
    %c0_1 = arith.constant 0 : index
    %c0_2 = arith.constant 0 : index
    %1 = vector.load %arg1[%c0_1, %c0_2] : memref<16x32xf32, #tpu.memory_space<vmem>>, vector<16x32xf32>
    %c0_3 = arith.constant 0 : index
    %c0_4 = arith.constant 0 : index
    %2 = vector.load %arg2[%c0_3, %c0_4] : memref<32x32xf32, #tpu.memory_space<vmem>>, vector<32x32xf32>
    %c0_5 = arith.constant 0 : index
    %c0_6 = arith.constant 0 : index
    %3 = vector.load %arg3[%c0_5, %c0_6] : memref<32x32xf32, #tpu.memory_space<vmem>>, vector<32x32xf32>
    %4 = arith.addf %2, %3 : vector<32x32xf32>
    %c0_7 = arith.constant 0 : index
    %c0_8 = arith.constant 0 : index
    %c0_9 = arith.constant 0 : index
    %5 = vector.load %arg4[%c0_7, %c0_8, %c0_9] : memref<2x32x64xf32, #tpu.memory_space<vmem>>, vector<1x32x64xf32>
    %6 = vector.shape_cast %5 : vector<1x32x64xf32> to vector<32x64xf32>
    %c0_10 = arith.constant 0 : index
    %c0_11 = arith.constant 0 : index
    %c0_12 = arith.constant 0 : index
    %7 = vector.load %arg5[%c0_10, %c0_11, %c0_12] : memref<2x32x64xf32, #tpu.memory_space<vmem>>, vector<1x32x64xf32>
    %8 = vector.shape_cast %7 : vector<1x32x64xf32> to vector<32x64xf32>
    %c0_13 = arith.constant 0 : index
    %c0_14 = arith.constant 0 : index
    %c0_15 = arith.constant 0 : index
    %9 = vector.load %arg6[%c0_13, %c0_14, %c0_15] : memref<2x32x64xf32, #tpu.memory_space<vmem>>, vector<1x32x64xf32>
    %10 = vector.shape_cast %9 : vector<1x32x64xf32> to vector<32x64xf32>
    %c0_16 = arith.constant 0 : index
    %c0_17 = arith.constant 0 : index
    %c0_18 = arith.constant 0 : index
    %11 = vector.load %arg7[%c0_16, %c0_17, %c0_18] : memref<2x64x32xf32, #tpu.memory_space<vmem>>, vector<1x64x32xf32>
    %12 = vector.shape_cast %11 : vector<1x64x32xf32> to vector<64x32xf32>
    %c0_19 = arith.constant 0 : index
    %c0_20 = arith.constant 0 : index
    %c0_21 = arith.constant 0 : index
    %13 = vector.load %arg8[%c0_19, %c0_20, %c0_21] : memref<2x32x64xf32, #tpu.memory_space<vmem>>, vector<1x32x64xf32>
    %14 = vector.shape_cast %13 : vector<1x32x64xf32> to vector<32x64xf32>
    %c0_22 = arith.constant 0 : index
    %c0_23 = arith.constant 0 : index
    %c0_24 = arith.constant 0 : index
    %15 = vector.load %arg9[%c0_22, %c0_23, %c0_24] : memref<2x64x32xf32, #tpu.memory_space<vmem>>, vector<1x64x32xf32>
    %16 = vector.shape_cast %15 : vector<1x64x32xf32> to vector<64x32xf32>
    %c0_25 = arith.constant 0 : index
    %c0_26 = arith.constant 0 : index
    %c0_27 = arith.constant 0 : index
    %17 = vector.load %arg10[%c0_25, %c0_26, %c0_27] : memref<2x10x64xf32, #tpu.memory_space<vmem>>, vector<1x10x64xf32>
    %18 = vector.shape_cast %17 : vector<1x10x64xf32> to vector<10x64xf32>
    %19 = vector.extract_strided_slice %18 {offsets = [0, 0], sizes = [1, 64], strides = [1, 1]} : vector<10x64xf32> to vector<1x64xf32>
    %20 = vector.extract_strided_slice %18 {offsets = [1, 0], sizes = [1, 32], strides = [1, 1]} : vector<10x64xf32> to vector<1x32xf32>
    %21 = vector.extract_strided_slice %18 {offsets = [2, 0], sizes = [1, 32], strides = [1, 1]} : vector<10x64xf32> to vector<1x32xf32>
    %22 = vector.extract_strided_slice %18 {offsets = [3, 0], sizes = [1, 32], strides = [1, 1]} : vector<10x64xf32> to vector<1x32xf32>
    %23 = vector.extract_strided_slice %18 {offsets = [4, 0], sizes = [1, 32], strides = [1, 1]} : vector<10x64xf32> to vector<1x32xf32>
    %24 = vector.extract_strided_slice %18 {offsets = [5, 0], sizes = [1, 32], strides = [1, 1]} : vector<10x64xf32> to vector<1x32xf32>
    %25 = vector.extract_strided_slice %18 {offsets = [6, 0], sizes = [1, 32], strides = [1, 1]} : vector<10x64xf32> to vector<1x32xf32>
    %26 = vector.extract_strided_slice %18 {offsets = [7, 0], sizes = [1, 32], strides = [1, 1]} : vector<10x64xf32> to vector<1x32xf32>
    %27 = vector.extract_strided_slice %18 {offsets = [8, 0], sizes = [1, 32], strides = [1, 1]} : vector<10x64xf32> to vector<1x32xf32>
    %28 = vector.extract_strided_slice %18 {offsets = [9, 0], sizes = [1, 32], strides = [1, 1]} : vector<10x64xf32> to vector<1x32xf32>
    %29 = arith.addf %0, %1 : vector<16x32xf32>
    %cst = arith.constant dense<0.000000e+00> : vector<16x64xf32>
    %30 = tpu.matmul %29, %6, %cst {dimension_numbers = #tpu.dot_dimension_numbers<[1], [0], [0], [1], [0, 0, 1, 1], [], []>} : vector<16x32xf32>, vector<32x64xf32>, vector<16x64xf32> -> vector<16x64xf32>
    %cst_28 = arith.constant dense<0.000000e+00> : vector<16x64xf32>
    %31 = tpu.matmul %29, %8, %cst_28 {dimension_numbers = #tpu.dot_dimension_numbers<[1], [0], [0], [1], [0, 0, 1, 1], [], []>} : vector<16x32xf32>, vector<32x64xf32>, vector<16x64xf32> -> vector<16x64xf32>
    %cst_29 = arith.constant dense<0.000000e+00> : vector<16x64xf32>
    %32 = tpu.matmul %0, %10, %cst_29 {dimension_numbers = #tpu.dot_dimension_numbers<[1], [0], [0], [1], [0, 0, 1, 1], [], []>} : vector<16x32xf32>, vector<32x64xf32>, vector<16x64xf32> -> vector<16x64xf32>
    %33 = vector.shape_cast %30 : vector<16x64xf32> to vector<2x8x4x16xf32>
    %34 = tpu.transpose %33, [0, 2, 1, 3] : vector<2x8x4x16xf32> -> vector<2x4x8x16xf32>
    %35 = vector.shape_cast %34 : vector<2x4x8x16xf32> to vector<8x8x16xf32>
    %36 = vector.shape_cast %31 : vector<16x64xf32> to vector<2x8x4x16xf32>
    %37 = tpu.transpose %36, [0, 2, 1, 3] : vector<2x8x4x16xf32> -> vector<2x4x8x16xf32>
    %38 = vector.shape_cast %37 : vector<2x4x8x16xf32> to vector<8x8x16xf32>
    %39 = vector.shape_cast %32 : vector<16x64xf32> to vector<2x8x4x16xf32>
    %40 = tpu.transpose %39, [0, 2, 1, 3] : vector<2x8x4x16xf32> -> vector<2x4x8x16xf32>
    %41 = vector.shape_cast %40 : vector<2x4x8x16xf32> to vector<8x8x16xf32>
    "tpu.trace_start"() <{level = 10 : i32, message = "nqd,nkd->nqk"}> : () -> ()
    %cst_30 = arith.constant dense<0.000000e+00> : vector<8x8x8xf32>
    %42 = tpu.matmul %35, %38, %cst_30 {dimension_numbers = #tpu.dot_dimension_numbers<[2], [2], [1], [1], [0, 0, 0, 1, 1, 1], [0], [0]>} : vector<8x8x16xf32>, vector<8x8x16xf32>, vector<8x8x8xf32> -> vector<8x8x8xf32>
    "tpu.trace_stop"() : () -> ()
    %cst_31 = arith.constant dense<0xFF800000> : vector<8x8xf32>
    %43 = vector.multi_reduction <maximumf>, %42, %cst_31 [2] : vector<8x8x8xf32> to vector<8x8xf32>
    %44 = vector.shape_cast %43 : vector<8x8xf32> to vector<8x8x1xf32>
    %45 = vector.broadcast %44 : vector<8x8x1xf32> to vector<8x8x8xf32>
    %46 = arith.subf %42, %45 : vector<8x8x8xf32>
    %47 = math.exp %46 : vector<8x8x8xf32>
    %cst_32 = arith.constant dense<0.000000e+00> : vector<8x8xf32>
    %48 = vector.multi_reduction <add>, %47, %cst_32 [2] : vector<8x8x8xf32> to vector<8x8xf32>
    %49 = vector.shape_cast %48 : vector<8x8xf32> to vector<8x8x1xf32>
    %50 = tpu.reciprocal %49 {approx = true} : vector<8x8x1xf32> -> vector<8x8x1xf32>
    %51 = vector.broadcast %50 : vector<8x8x1xf32> to vector<8x8x8xf32>
    %52 = arith.mulf %47, %51 : vector<8x8x8xf32>
    "tpu.trace_start"() <{level = 10 : i32, message = "nqk,nkd->nqd"}> : () -> ()
    %cst_33 = arith.constant dense<0.000000e+00> : vector<8x8x16xf32>
    %53 = tpu.matmul %52, %41, %cst_33 {dimension_numbers = #tpu.dot_dimension_numbers<[2], [1], [1], [2], [0, 0, 0, 1, 1, 2], [0], [0]>} : vector<8x8x8xf32>, vector<8x8x16xf32>, vector<8x8x16xf32> -> vector<8x8x16xf32>
    "tpu.trace_stop"() : () -> ()
    %54 = vector.shape_cast %53 : vector<8x8x16xf32> to vector<2x4x8x16xf32>
    %55 = tpu.transpose %54, [0, 2, 1, 3] : vector<2x4x8x16xf32> -> vector<2x8x4x16xf32>
    %56 = vector.shape_cast %55 : vector<2x8x4x16xf32> to vector<16x64xf32>
    %cst_34 = arith.constant dense<0.000000e+00> : vector<16x32xf32>
    %57 = tpu.matmul %56, %12, %cst_34 {dimension_numbers = #tpu.dot_dimension_numbers<[1], [0], [0], [1], [0, 0, 1, 1], [], []>} : vector<16x64xf32>, vector<64x32xf32>, vector<16x32xf32> -> vector<16x32xf32>
    %58 = arith.addf %0, %57 : vector<16x32xf32>
    %cst_35 = arith.constant dense<0.000000e+00> : vector<16xf32>
    %59 = vector.multi_reduction <add>, %58, %cst_35 [1] : vector<16x32xf32> to vector<16xf32>
    %60 = vector.shape_cast %59 : vector<16xf32> to vector<16x1xf32>
    %cst_36 = arith.constant 3.200000e+01 : f32
    %61 = vector.broadcast %cst_36 : f32 to vector<16x1xf32>
    %62 = arith.divf %60, %61 : vector<16x1xf32>
    %63 = vector.broadcast %62 : vector<16x1xf32> to vector<16x32xf32>
    %64 = arith.subf %58, %63 : vector<16x32xf32>
    %65 = arith.mulf %64, %64 : vector<16x32xf32>
    %cst_37 = arith.constant dense<0.000000e+00> : vector<16xf32>
    %66 = vector.multi_reduction <add>, %65, %cst_37 [1] : vector<16x32xf32> to vector<16xf32>
    %67 = vector.shape_cast %66 : vector<16xf32> to vector<16x1xf32>
    %cst_38 = arith.constant 3.200000e+01 : f32
    %68 = vector.broadcast %cst_38 : f32 to vector<16x1xf32>
    %69 = arith.divf %67, %68 : vector<16x1xf32>
    %70 = vector.broadcast %62 : vector<16x1xf32> to vector<16x32xf32>
    %71 = arith.subf %58, %70 : vector<16x32xf32>
    %cst_39 = arith.constant 9.99999974E-6 : f32
    %72 = vector.broadcast %cst_39 : f32 to vector<16x1xf32>
    %73 = arith.addf %69, %72 : vector<16x1xf32>
    %74 = math.rsqrt %73 : vector<16x1xf32>
    %75 = vector.broadcast %74 : vector<16x1xf32> to vector<16x32xf32>
    %76 = arith.mulf %71, %75 : vector<16x32xf32>
    %77 = vector.broadcast %21 : vector<1x32xf32> to vector<16x32xf32>
    %78 = arith.mulf %76, %77 : vector<16x32xf32>
    %79 = vector.broadcast %22 : vector<1x32xf32> to vector<16x32xf32>
    %80 = arith.addf %78, %79 : vector<16x32xf32>
    %cst_40 = arith.constant dense<0.000000e+00> : vector<32x64xf32>
    %81 = tpu.matmul %4, %8, %cst_40 {dimension_numbers = #tpu.dot_dimension_numbers<[1], [0], [0], [1], [0, 0, 1, 1], [], []>} : vector<32x32xf32>, vector<32x64xf32>, vector<32x64xf32> -> vector<32x64xf32>
    %cst_41 = arith.constant dense<0.000000e+00> : vector<32x64xf32>
    %82 = tpu.matmul %2, %10, %cst_41 {dimension_numbers = #tpu.dot_dimension_numbers<[1], [0], [0], [1], [0, 0, 1, 1], [], []>} : vector<32x32xf32>, vector<32x64xf32>, vector<32x64xf32> -> vector<32x64xf32>
    %83 = vector.shape_cast %30 : vector<16x64xf32> to vector<2x8x4x16xf32>
    %84 = tpu.transpose %83, [0, 2, 1, 3] : vector<2x8x4x16xf32> -> vector<2x4x8x16xf32>
    %85 = vector.shape_cast %84 : vector<2x4x8x16xf32> to vector<8x8x16xf32>
    %86 = vector.shape_cast %81 : vector<32x64xf32> to vector<2x16x4x16xf32>
    %87 = tpu.transpose %86, [0, 2, 1, 3] : vector<2x16x4x16xf32> -> vector<2x4x16x16xf32>
    %88 = vector.shape_cast %87 : vector<2x4x16x16xf32> to vector<8x16x16xf32>
    %89 = vector.shape_cast %82 : vector<32x64xf32> to vector<2x16x4x16xf32>
    %90 = tpu.transpose %89, [0, 2, 1, 3] : vector<2x16x4x16xf32> -> vector<2x4x16x16xf32>
    %91 = vector.shape_cast %90 : vector<2x4x16x16xf32> to vector<8x16x16xf32>
    "tpu.trace_start"() <{level = 10 : i32, message = "nqd,nkd->nqk"}> : () -> ()
    %cst_42 = arith.constant dense<0.000000e+00> : vector<8x8x16xf32>
    %92 = tpu.matmul %85, %88, %cst_42 {dimension_numbers = #tpu.dot_dimension_numbers<[2], [2], [1], [1], [0, 0, 0, 1, 1, 1], [0], [0]>} : vector<8x8x16xf32>, vector<8x16x16xf32>, vector<8x8x16xf32> -> vector<8x8x16xf32>
    "tpu.trace_stop"() : () -> ()
    %cst_43 = arith.constant dense<0xFF800000> : vector<8x8xf32>
    %93 = vector.multi_reduction <maximumf>, %92, %cst_43 [2] : vector<8x8x16xf32> to vector<8x8xf32>
    %94 = vector.shape_cast %93 : vector<8x8xf32> to vector<8x8x1xf32>
    %95 = vector.broadcast %94 : vector<8x8x1xf32> to vector<8x8x16xf32>
    %96 = arith.subf %92, %95 : vector<8x8x16xf32>
    %97 = math.exp %96 : vector<8x8x16xf32>
    %cst_44 = arith.constant dense<0.000000e+00> : vector<8x8xf32>
    %98 = vector.multi_reduction <add>, %97, %cst_44 [2] : vector<8x8x16xf32> to vector<8x8xf32>
    %99 = vector.shape_cast %98 : vector<8x8xf32> to vector<8x8x1xf32>
    %100 = tpu.reciprocal %99 {approx = true} : vector<8x8x1xf32> -> vector<8x8x1xf32>
    %101 = vector.broadcast %100 : vector<8x8x1xf32> to vector<8x8x16xf32>
    %102 = arith.mulf %97, %101 : vector<8x8x16xf32>
    "tpu.trace_start"() <{level = 10 : i32, message = "nqk,nkd->nqd"}> : () -> ()
    %cst_45 = arith.constant dense<0.000000e+00> : vector<8x8x16xf32>
    %103 = tpu.matmul %102, %91, %cst_45 {dimension_numbers = #tpu.dot_dimension_numbers<[2], [1], [1], [2], [0, 0, 0, 1, 1, 2], [0], [0]>} : vector<8x8x16xf32>, vector<8x16x16xf32>, vector<8x8x16xf32> -> vector<8x8x16xf32>
    "tpu.trace_stop"() : () -> ()
    %104 = vector.shape_cast %103 : vector<8x8x16xf32> to vector<2x4x8x16xf32>
    %105 = tpu.transpose %104, [0, 2, 1, 3] : vector<2x4x8x16xf32> -> vector<2x8x4x16xf32>
    %106 = vector.shape_cast %105 : vector<2x8x4x16xf32> to vector<16x64xf32>
    %cst_46 = arith.constant dense<0.000000e+00> : vector<16x32xf32>
    %107 = tpu.matmul %106, %12, %cst_46 {dimension_numbers = #tpu.dot_dimension_numbers<[1], [0], [0], [1], [0, 0, 1, 1], [], []>} : vector<16x64xf32>, vector<64x32xf32>, vector<16x32xf32> -> vector<16x32xf32>
    %108 = arith.addf %80, %107 : vector<16x32xf32>
    %cst_47 = arith.constant dense<0.000000e+00> : vector<16xf32>
    %109 = vector.multi_reduction <add>, %108, %cst_47 [1] : vector<16x32xf32> to vector<16xf32>
    %110 = vector.shape_cast %109 : vector<16xf32> to vector<16x1xf32>
    %cst_48 = arith.constant 3.200000e+01 : f32
    %111 = vector.broadcast %cst_48 : f32 to vector<16x1xf32>
    %112 = arith.divf %110, %111 : vector<16x1xf32>
    %113 = vector.broadcast %112 : vector<16x1xf32> to vector<16x32xf32>
    %114 = arith.subf %108, %113 : vector<16x32xf32>
    %115 = arith.mulf %114, %114 : vector<16x32xf32>
    %cst_49 = arith.constant dense<0.000000e+00> : vector<16xf32>
    %116 = vector.multi_reduction <add>, %115, %cst_49 [1] : vector<16x32xf32> to vector<16xf32>
    %117 = vector.shape_cast %116 : vector<16xf32> to vector<16x1xf32>
    %cst_50 = arith.constant 3.200000e+01 : f32
    %118 = vector.broadcast %cst_50 : f32 to vector<16x1xf32>
    %119 = arith.divf %117, %118 : vector<16x1xf32>
    %120 = vector.broadcast %112 : vector<16x1xf32> to vector<16x32xf32>
    %121 = arith.subf %108, %120 : vector<16x32xf32>
    %cst_51 = arith.constant 9.99999974E-6 : f32
    %122 = vector.broadcast %cst_51 : f32 to vector<16x1xf32>
    %123 = arith.addf %119, %122 : vector<16x1xf32>
    %124 = math.rsqrt %123 : vector<16x1xf32>
    %125 = vector.broadcast %124 : vector<16x1xf32> to vector<16x32xf32>
    %126 = arith.mulf %121, %125 : vector<16x32xf32>
    %127 = vector.broadcast %23 : vector<1x32xf32> to vector<16x32xf32>
    %128 = arith.mulf %126, %127 : vector<16x32xf32>
    %129 = vector.broadcast %24 : vector<1x32xf32> to vector<16x32xf32>
    %130 = arith.addf %128, %129 : vector<16x32xf32>
    %cst_52 = arith.constant dense<0.000000e+00> : vector<16x64xf32>
    %131 = tpu.matmul %130, %14, %cst_52 {dimension_numbers = #tpu.dot_dimension_numbers<[1], [0], [0], [1], [0, 0, 1, 1], [], []>} : vector<16x32xf32>, vector<32x64xf32>, vector<16x64xf32> -> vector<16x64xf32>
    %132 = vector.broadcast %19 : vector<1x64xf32> to vector<16x64xf32>
    %133 = arith.addf %131, %132 : vector<16x64xf32>
    %cst_53 = arith.constant 0.000000e+00 : f32
    %134 = vector.broadcast %cst_53 : f32 to vector<16x64xf32>
    %135 = arith.maximumf %133, %134 : vector<16x64xf32>
    %cst_54 = arith.constant dense<0.000000e+00> : vector<16x32xf32>
    %136 = tpu.matmul %135, %16, %cst_54 {dimension_numbers = #tpu.dot_dimension_numbers<[1], [0], [0], [1], [0, 0, 1, 1], [], []>} : vector<16x64xf32>, vector<64x32xf32>, vector<16x32xf32> -> vector<16x32xf32>
    %137 = vector.broadcast %20 : vector<1x32xf32> to vector<16x32xf32>
    %138 = arith.addf %136, %137 : vector<16x32xf32>
    %139 = arith.addf %130, %138 : vector<16x32xf32>
    %cst_55 = arith.constant dense<0.000000e+00> : vector<16xf32>
    %140 = vector.multi_reduction <add>, %139, %cst_55 [1] : vector<16x32xf32> to vector<16xf32>
    %141 = vector.shape_cast %140 : vector<16xf32> to vector<16x1xf32>
    %cst_56 = arith.constant 3.200000e+01 : f32
    %142 = vector.broadcast %cst_56 : f32 to vector<16x1xf32>
    %143 = arith.divf %141, %142 : vector<16x1xf32>
    %144 = vector.broadcast %143 : vector<16x1xf32> to vector<16x32xf32>
    %145 = arith.subf %139, %144 : vector<16x32xf32>
    %146 = arith.mulf %145, %145 : vector<16x32xf32>
    %cst_57 = arith.constant dense<0.000000e+00> : vector<16xf32>
    %147 = vector.multi_reduction <add>, %146, %cst_57 [1] : vector<16x32xf32> to vector<16xf32>
    %148 = vector.shape_cast %147 : vector<16xf32> to vector<16x1xf32>
    %cst_58 = arith.constant 3.200000e+01 : f32
    %149 = vector.broadcast %cst_58 : f32 to vector<16x1xf32>
    %150 = arith.divf %148, %149 : vector<16x1xf32>
    %151 = vector.broadcast %143 : vector<16x1xf32> to vector<16x32xf32>
    %152 = arith.subf %139, %151 : vector<16x32xf32>
    %cst_59 = arith.constant 9.99999974E-6 : f32
    %153 = vector.broadcast %cst_59 : f32 to vector<16x1xf32>
    %154 = arith.addf %150, %153 : vector<16x1xf32>
    %155 = math.rsqrt %154 : vector<16x1xf32>
    %156 = vector.broadcast %155 : vector<16x1xf32> to vector<16x32xf32>
    %157 = arith.mulf %152, %156 : vector<16x32xf32>
    %158 = vector.broadcast %25 : vector<1x32xf32> to vector<16x32xf32>
    %159 = arith.mulf %157, %158 : vector<16x32xf32>
    %160 = vector.broadcast %26 : vector<1x32xf32> to vector<16x32xf32>
    %161 = arith.addf %159, %160 : vector<16x32xf32>
    %cst_60 = arith.constant dense<0.000000e+00> : vector<16xf32>
    %162 = vector.multi_reduction <add>, %161, %cst_60 [1] : vector<16x32xf32> to vector<16xf32>
    %163 = vector.shape_cast %162 : vector<16xf32> to vector<16x1xf32>
    %cst_61 = arith.constant 3.200000e+01 : f32
    %164 = vector.broadcast %cst_61 : f32 to vector<16x1xf32>
    %165 = arith.divf %163, %164 : vector<16x1xf32>
    %166 = vector.broadcast %165 : vector<16x1xf32> to vector<16x32xf32>
    %167 = arith.subf %161, %166 : vector<16x32xf32>
    %168 = arith.mulf %167, %167 : vector<16x32xf32>
    %cst_62 = arith.constant dense<0.000000e+00> : vector<16xf32>
    %169 = vector.multi_reduction <add>, %168, %cst_62 [1] : vector<16x32xf32> to vector<16xf32>
    %170 = vector.shape_cast %169 : vector<16xf32> to vector<16x1xf32>
    %cst_63 = arith.constant 3.200000e+01 : f32
    %171 = vector.broadcast %cst_63 : f32 to vector<16x1xf32>
    %172 = arith.divf %170, %171 : vector<16x1xf32>
    %173 = vector.broadcast %165 : vector<16x1xf32> to vector<16x32xf32>
    %174 = arith.subf %161, %173 : vector<16x32xf32>
    %cst_64 = arith.constant 9.99999974E-6 : f32
    %175 = vector.broadcast %cst_64 : f32 to vector<16x1xf32>
    %176 = arith.addf %172, %175 : vector<16x1xf32>
    %177 = math.rsqrt %176 : vector<16x1xf32>
    %178 = vector.broadcast %177 : vector<16x1xf32> to vector<16x32xf32>
    %179 = arith.mulf %174, %178 : vector<16x32xf32>
    %180 = vector.broadcast %27 : vector<1x32xf32> to vector<16x32xf32>
    %181 = arith.mulf %179, %180 : vector<16x32xf32>
    %182 = vector.broadcast %28 : vector<1x32xf32> to vector<16x32xf32>
    %183 = arith.addf %181, %182 : vector<16x32xf32>
    %c1 = arith.constant 1 : index
    %c0_65 = arith.constant 0 : index
    %c0_66 = arith.constant 0 : index
    %184 = vector.load %arg4[%c1, %c0_65, %c0_66] : memref<2x32x64xf32, #tpu.memory_space<vmem>>, vector<1x32x64xf32>
    %185 = vector.shape_cast %184 : vector<1x32x64xf32> to vector<32x64xf32>
    %c1_67 = arith.constant 1 : index
    %c0_68 = arith.constant 0 : index
    %c0_69 = arith.constant 0 : index
    %186 = vector.load %arg5[%c1_67, %c0_68, %c0_69] : memref<2x32x64xf32, #tpu.memory_space<vmem>>, vector<1x32x64xf32>
    %187 = vector.shape_cast %186 : vector<1x32x64xf32> to vector<32x64xf32>
    %c1_70 = arith.constant 1 : index
    %c0_71 = arith.constant 0 : index
    %c0_72 = arith.constant 0 : index
    %188 = vector.load %arg6[%c1_70, %c0_71, %c0_72] : memref<2x32x64xf32, #tpu.memory_space<vmem>>, vector<1x32x64xf32>
    %189 = vector.shape_cast %188 : vector<1x32x64xf32> to vector<32x64xf32>
    %c1_73 = arith.constant 1 : index
    %c0_74 = arith.constant 0 : index
    %c0_75 = arith.constant 0 : index
    %190 = vector.load %arg7[%c1_73, %c0_74, %c0_75] : memref<2x64x32xf32, #tpu.memory_space<vmem>>, vector<1x64x32xf32>
    %191 = vector.shape_cast %190 : vector<1x64x32xf32> to vector<64x32xf32>
    %c1_76 = arith.constant 1 : index
    %c0_77 = arith.constant 0 : index
    %c0_78 = arith.constant 0 : index
    %192 = vector.load %arg8[%c1_76, %c0_77, %c0_78] : memref<2x32x64xf32, #tpu.memory_space<vmem>>, vector<1x32x64xf32>
    %193 = vector.shape_cast %192 : vector<1x32x64xf32> to vector<32x64xf32>
    %c1_79 = arith.constant 1 : index
    %c0_80 = arith.constant 0 : index
    %c0_81 = arith.constant 0 : index
    %194 = vector.load %arg9[%c1_79, %c0_80, %c0_81] : memref<2x64x32xf32, #tpu.memory_space<vmem>>, vector<1x64x32xf32>
    %195 = vector.shape_cast %194 : vector<1x64x32xf32> to vector<64x32xf32>
    %c1_82 = arith.constant 1 : index
    %c0_83 = arith.constant 0 : index
    %c0_84 = arith.constant 0 : index
    %196 = vector.load %arg10[%c1_82, %c0_83, %c0_84] : memref<2x10x64xf32, #tpu.memory_space<vmem>>, vector<1x10x64xf32>
    %197 = vector.shape_cast %196 : vector<1x10x64xf32> to vector<10x64xf32>
    %198 = vector.extract_strided_slice %197 {offsets = [0, 0], sizes = [1, 64], strides = [1, 1]} : vector<10x64xf32> to vector<1x64xf32>
    %199 = vector.extract_strided_slice %197 {offsets = [1, 0], sizes = [1, 32], strides = [1, 1]} : vector<10x64xf32> to vector<1x32xf32>
    %200 = vector.extract_strided_slice %197 {offsets = [2, 0], sizes = [1, 32], strides = [1, 1]} : vector<10x64xf32> to vector<1x32xf32>
    %201 = vector.extract_strided_slice %197 {offsets = [3, 0], sizes = [1, 32], strides = [1, 1]} : vector<10x64xf32> to vector<1x32xf32>
    %202 = vector.extract_strided_slice %197 {offsets = [4, 0], sizes = [1, 32], strides = [1, 1]} : vector<10x64xf32> to vector<1x32xf32>
    %203 = vector.extract_strided_slice %197 {offsets = [5, 0], sizes = [1, 32], strides = [1, 1]} : vector<10x64xf32> to vector<1x32xf32>
    %204 = vector.extract_strided_slice %197 {offsets = [6, 0], sizes = [1, 32], strides = [1, 1]} : vector<10x64xf32> to vector<1x32xf32>
    %205 = vector.extract_strided_slice %197 {offsets = [7, 0], sizes = [1, 32], strides = [1, 1]} : vector<10x64xf32> to vector<1x32xf32>
    %206 = vector.extract_strided_slice %197 {offsets = [8, 0], sizes = [1, 32], strides = [1, 1]} : vector<10x64xf32> to vector<1x32xf32>
    %207 = vector.extract_strided_slice %197 {offsets = [9, 0], sizes = [1, 32], strides = [1, 1]} : vector<10x64xf32> to vector<1x32xf32>
    %208 = arith.addf %161, %1 : vector<16x32xf32>
    %cst_85 = arith.constant dense<0.000000e+00> : vector<16x64xf32>
    %209 = tpu.matmul %208, %185, %cst_85 {dimension_numbers = #tpu.dot_dimension_numbers<[1], [0], [0], [1], [0, 0, 1, 1], [], []>} : vector<16x32xf32>, vector<32x64xf32>, vector<16x64xf32> -> vector<16x64xf32>
    %cst_86 = arith.constant dense<0.000000e+00> : vector<16x64xf32>
    %210 = tpu.matmul %208, %187, %cst_86 {dimension_numbers = #tpu.dot_dimension_numbers<[1], [0], [0], [1], [0, 0, 1, 1], [], []>} : vector<16x32xf32>, vector<32x64xf32>, vector<16x64xf32> -> vector<16x64xf32>
    %cst_87 = arith.constant dense<0.000000e+00> : vector<16x64xf32>
    %211 = tpu.matmul %161, %189, %cst_87 {dimension_numbers = #tpu.dot_dimension_numbers<[1], [0], [0], [1], [0, 0, 1, 1], [], []>} : vector<16x32xf32>, vector<32x64xf32>, vector<16x64xf32> -> vector<16x64xf32>
    %212 = vector.shape_cast %209 : vector<16x64xf32> to vector<2x8x4x16xf32>
    %213 = tpu.transpose %212, [0, 2, 1, 3] : vector<2x8x4x16xf32> -> vector<2x4x8x16xf32>
    %214 = vector.shape_cast %213 : vector<2x4x8x16xf32> to vector<8x8x16xf32>
    %215 = vector.shape_cast %210 : vector<16x64xf32> to vector<2x8x4x16xf32>
    %216 = tpu.transpose %215, [0, 2, 1, 3] : vector<2x8x4x16xf32> -> vector<2x4x8x16xf32>
    %217 = vector.shape_cast %216 : vector<2x4x8x16xf32> to vector<8x8x16xf32>
    %218 = vector.shape_cast %211 : vector<16x64xf32> to vector<2x8x4x16xf32>
    %219 = tpu.transpose %218, [0, 2, 1, 3] : vector<2x8x4x16xf32> -> vector<2x4x8x16xf32>
    %220 = vector.shape_cast %219 : vector<2x4x8x16xf32> to vector<8x8x16xf32>
    "tpu.trace_start"() <{level = 10 : i32, message = "nqd,nkd->nqk"}> : () -> ()
    %cst_88 = arith.constant dense<0.000000e+00> : vector<8x8x8xf32>
    %221 = tpu.matmul %214, %217, %cst_88 {dimension_numbers = #tpu.dot_dimension_numbers<[2], [2], [1], [1], [0, 0, 0, 1, 1, 1], [0], [0]>} : vector<8x8x16xf32>, vector<8x8x16xf32>, vector<8x8x8xf32> -> vector<8x8x8xf32>
    "tpu.trace_stop"() : () -> ()
    %cst_89 = arith.constant dense<0xFF800000> : vector<8x8xf32>
    %222 = vector.multi_reduction <maximumf>, %221, %cst_89 [2] : vector<8x8x8xf32> to vector<8x8xf32>
    %223 = vector.shape_cast %222 : vector<8x8xf32> to vector<8x8x1xf32>
    %224 = vector.broadcast %223 : vector<8x8x1xf32> to vector<8x8x8xf32>
    %225 = arith.subf %221, %224 : vector<8x8x8xf32>
    %226 = math.exp %225 : vector<8x8x8xf32>
    %cst_90 = arith.constant dense<0.000000e+00> : vector<8x8xf32>
    %227 = vector.multi_reduction <add>, %226, %cst_90 [2] : vector<8x8x8xf32> to vector<8x8xf32>
    %228 = vector.shape_cast %227 : vector<8x8xf32> to vector<8x8x1xf32>
    %229 = tpu.reciprocal %228 {approx = true} : vector<8x8x1xf32> -> vector<8x8x1xf32>
    %230 = vector.broadcast %229 : vector<8x8x1xf32> to vector<8x8x8xf32>
    %231 = arith.mulf %226, %230 : vector<8x8x8xf32>
    "tpu.trace_start"() <{level = 10 : i32, message = "nqk,nkd->nqd"}> : () -> ()
    %cst_91 = arith.constant dense<0.000000e+00> : vector<8x8x16xf32>
    %232 = tpu.matmul %231, %220, %cst_91 {dimension_numbers = #tpu.dot_dimension_numbers<[2], [1], [1], [2], [0, 0, 0, 1, 1, 2], [0], [0]>} : vector<8x8x8xf32>, vector<8x8x16xf32>, vector<8x8x16xf32> -> vector<8x8x16xf32>
    "tpu.trace_stop"() : () -> ()
    %233 = vector.shape_cast %232 : vector<8x8x16xf32> to vector<2x4x8x16xf32>
    %234 = tpu.transpose %233, [0, 2, 1, 3] : vector<2x4x8x16xf32> -> vector<2x8x4x16xf32>
    %235 = vector.shape_cast %234 : vector<2x8x4x16xf32> to vector<16x64xf32>
    %cst_92 = arith.constant dense<0.000000e+00> : vector<16x32xf32>
    %236 = tpu.matmul %235, %191, %cst_92 {dimension_numbers = #tpu.dot_dimension_numbers<[1], [0], [0], [1], [0, 0, 1, 1], [], []>} : vector<16x64xf32>, vector<64x32xf32>, vector<16x32xf32> -> vector<16x32xf32>
    %237 = arith.addf %161, %236 : vector<16x32xf32>
    %cst_93 = arith.constant dense<0.000000e+00> : vector<16xf32>
    %238 = vector.multi_reduction <add>, %237, %cst_93 [1] : vector<16x32xf32> to vector<16xf32>
    %239 = vector.shape_cast %238 : vector<16xf32> to vector<16x1xf32>
    %cst_94 = arith.constant 3.200000e+01 : f32
    %240 = vector.broadcast %cst_94 : f32 to vector<16x1xf32>
    %241 = arith.divf %239, %240 : vector<16x1xf32>
    %242 = vector.broadcast %241 : vector<16x1xf32> to vector<16x32xf32>
    %243 = arith.subf %237, %242 : vector<16x32xf32>
    %244 = arith.mulf %243, %243 : vector<16x32xf32>
    %cst_95 = arith.constant dense<0.000000e+00> : vector<16xf32>
    %245 = vector.multi_reduction <add>, %244, %cst_95 [1] : vector<16x32xf32> to vector<16xf32>
    %246 = vector.shape_cast %245 : vector<16xf32> to vector<16x1xf32>
    %cst_96 = arith.constant 3.200000e+01 : f32
    %247 = vector.broadcast %cst_96 : f32 to vector<16x1xf32>
    %248 = arith.divf %246, %247 : vector<16x1xf32>
    %249 = vector.broadcast %241 : vector<16x1xf32> to vector<16x32xf32>
    %250 = arith.subf %237, %249 : vector<16x32xf32>
    %cst_97 = arith.constant 9.99999974E-6 : f32
    %251 = vector.broadcast %cst_97 : f32 to vector<16x1xf32>
    %252 = arith.addf %248, %251 : vector<16x1xf32>
    %253 = math.rsqrt %252 : vector<16x1xf32>
    %254 = vector.broadcast %253 : vector<16x1xf32> to vector<16x32xf32>
    %255 = arith.mulf %250, %254 : vector<16x32xf32>
    %256 = vector.broadcast %200 : vector<1x32xf32> to vector<16x32xf32>
    %257 = arith.mulf %255, %256 : vector<16x32xf32>
    %258 = vector.broadcast %201 : vector<1x32xf32> to vector<16x32xf32>
    %259 = arith.addf %257, %258 : vector<16x32xf32>
    %cst_98 = arith.constant dense<0.000000e+00> : vector<32x64xf32>
    %260 = tpu.matmul %4, %187, %cst_98 {dimension_numbers = #tpu.dot_dimension_numbers<[1], [0], [0], [1], [0, 0, 1, 1], [], []>} : vector<32x32xf32>, vector<32x64xf32>, vector<32x64xf32> -> vector<32x64xf32>
    %cst_99 = arith.constant dense<0.000000e+00> : vector<32x64xf32>
    %261 = tpu.matmul %2, %189, %cst_99 {dimension_numbers = #tpu.dot_dimension_numbers<[1], [0], [0], [1], [0, 0, 1, 1], [], []>} : vector<32x32xf32>, vector<32x64xf32>, vector<32x64xf32> -> vector<32x64xf32>
    %262 = vector.shape_cast %209 : vector<16x64xf32> to vector<2x8x4x16xf32>
    %263 = tpu.transpose %262, [0, 2, 1, 3] : vector<2x8x4x16xf32> -> vector<2x4x8x16xf32>
    %264 = vector.shape_cast %263 : vector<2x4x8x16xf32> to vector<8x8x16xf32>
    %265 = vector.shape_cast %260 : vector<32x64xf32> to vector<2x16x4x16xf32>
    %266 = tpu.transpose %265, [0, 2, 1, 3] : vector<2x16x4x16xf32> -> vector<2x4x16x16xf32>
    %267 = vector.shape_cast %266 : vector<2x4x16x16xf32> to vector<8x16x16xf32>
    %268 = vector.shape_cast %261 : vector<32x64xf32> to vector<2x16x4x16xf32>
    %269 = tpu.transpose %268, [0, 2, 1, 3] : vector<2x16x4x16xf32> -> vector<2x4x16x16xf32>
    %270 = vector.shape_cast %269 : vector<2x4x16x16xf32> to vector<8x16x16xf32>
    "tpu.trace_start"() <{level = 10 : i32, message = "nqd,nkd->nqk"}> : () -> ()
    %cst_100 = arith.constant dense<0.000000e+00> : vector<8x8x16xf32>
    %271 = tpu.matmul %264, %267, %cst_100 {dimension_numbers = #tpu.dot_dimension_numbers<[2], [2], [1], [1], [0, 0, 0, 1, 1, 1], [0], [0]>} : vector<8x8x16xf32>, vector<8x16x16xf32>, vector<8x8x16xf32> -> vector<8x8x16xf32>
    "tpu.trace_stop"() : () -> ()
    %cst_101 = arith.constant dense<0xFF800000> : vector<8x8xf32>
    %272 = vector.multi_reduction <maximumf>, %271, %cst_101 [2] : vector<8x8x16xf32> to vector<8x8xf32>
    %273 = vector.shape_cast %272 : vector<8x8xf32> to vector<8x8x1xf32>
    %274 = vector.broadcast %273 : vector<8x8x1xf32> to vector<8x8x16xf32>
    %275 = arith.subf %271, %274 : vector<8x8x16xf32>
    %276 = math.exp %275 : vector<8x8x16xf32>
    %cst_102 = arith.constant dense<0.000000e+00> : vector<8x8xf32>
    %277 = vector.multi_reduction <add>, %276, %cst_102 [2] : vector<8x8x16xf32> to vector<8x8xf32>
    %278 = vector.shape_cast %277 : vector<8x8xf32> to vector<8x8x1xf32>
    %279 = tpu.reciprocal %278 {approx = true} : vector<8x8x1xf32> -> vector<8x8x1xf32>
    %280 = vector.broadcast %279 : vector<8x8x1xf32> to vector<8x8x16xf32>
    %281 = arith.mulf %276, %280 : vector<8x8x16xf32>
    "tpu.trace_start"() <{level = 10 : i32, message = "nqk,nkd->nqd"}> : () -> ()
    %cst_103 = arith.constant dense<0.000000e+00> : vector<8x8x16xf32>
    %282 = tpu.matmul %281, %270, %cst_103 {dimension_numbers = #tpu.dot_dimension_numbers<[2], [1], [1], [2], [0, 0, 0, 1, 1, 2], [0], [0]>} : vector<8x8x16xf32>, vector<8x16x16xf32>, vector<8x8x16xf32> -> vector<8x8x16xf32>
    "tpu.trace_stop"() : () -> ()
    %283 = vector.shape_cast %282 : vector<8x8x16xf32> to vector<2x4x8x16xf32>
    %284 = tpu.transpose %283, [0, 2, 1, 3] : vector<2x4x8x16xf32> -> vector<2x8x4x16xf32>
    %285 = vector.shape_cast %284 : vector<2x8x4x16xf32> to vector<16x64xf32>
    %cst_104 = arith.constant dense<0.000000e+00> : vector<16x32xf32>
    %286 = tpu.matmul %285, %191, %cst_104 {dimension_numbers = #tpu.dot_dimension_numbers<[1], [0], [0], [1], [0, 0, 1, 1], [], []>} : vector<16x64xf32>, vector<64x32xf32>, vector<16x32xf32> -> vector<16x32xf32>
    %287 = arith.addf %259, %286 : vector<16x32xf32>
    %cst_105 = arith.constant dense<0.000000e+00> : vector<16xf32>
    %288 = vector.multi_reduction <add>, %287, %cst_105 [1] : vector<16x32xf32> to vector<16xf32>
    %289 = vector.shape_cast %288 : vector<16xf32> to vector<16x1xf32>
    %cst_106 = arith.constant 3.200000e+01 : f32
    %290 = vector.broadcast %cst_106 : f32 to vector<16x1xf32>
    %291 = arith.divf %289, %290 : vector<16x1xf32>
    %292 = vector.broadcast %291 : vector<16x1xf32> to vector<16x32xf32>
    %293 = arith.subf %287, %292 : vector<16x32xf32>
    %294 = arith.mulf %293, %293 : vector<16x32xf32>
    %cst_107 = arith.constant dense<0.000000e+00> : vector<16xf32>
    %295 = vector.multi_reduction <add>, %294, %cst_107 [1] : vector<16x32xf32> to vector<16xf32>
    %296 = vector.shape_cast %295 : vector<16xf32> to vector<16x1xf32>
    %cst_108 = arith.constant 3.200000e+01 : f32
    %297 = vector.broadcast %cst_108 : f32 to vector<16x1xf32>
    %298 = arith.divf %296, %297 : vector<16x1xf32>
    %299 = vector.broadcast %291 : vector<16x1xf32> to vector<16x32xf32>
    %300 = arith.subf %287, %299 : vector<16x32xf32>
    %cst_109 = arith.constant 9.99999974E-6 : f32
    %301 = vector.broadcast %cst_109 : f32 to vector<16x1xf32>
    %302 = arith.addf %298, %301 : vector<16x1xf32>
    %303 = math.rsqrt %302 : vector<16x1xf32>
    %304 = vector.broadcast %303 : vector<16x1xf32> to vector<16x32xf32>
    %305 = arith.mulf %300, %304 : vector<16x32xf32>
    %306 = vector.broadcast %202 : vector<1x32xf32> to vector<16x32xf32>
    %307 = arith.mulf %305, %306 : vector<16x32xf32>
    %308 = vector.broadcast %203 : vector<1x32xf32> to vector<16x32xf32>
    %309 = arith.addf %307, %308 : vector<16x32xf32>
    %cst_110 = arith.constant dense<0.000000e+00> : vector<16x64xf32>
    %310 = tpu.matmul %309, %193, %cst_110 {dimension_numbers = #tpu.dot_dimension_numbers<[1], [0], [0], [1], [0, 0, 1, 1], [], []>} : vector<16x32xf32>, vector<32x64xf32>, vector<16x64xf32> -> vector<16x64xf32>
    %311 = vector.broadcast %198 : vector<1x64xf32> to vector<16x64xf32>
    %312 = arith.addf %310, %311 : vector<16x64xf32>
    %cst_111 = arith.constant 0.000000e+00 : f32
    %313 = vector.broadcast %cst_111 : f32 to vector<16x64xf32>
    %314 = arith.maximumf %312, %313 : vector<16x64xf32>
    %cst_112 = arith.constant dense<0.000000e+00> : vector<16x32xf32>
    %315 = tpu.matmul %314, %195, %cst_112 {dimension_numbers = #tpu.dot_dimension_numbers<[1], [0], [0], [1], [0, 0, 1, 1], [], []>} : vector<16x64xf32>, vector<64x32xf32>, vector<16x32xf32> -> vector<16x32xf32>
    %316 = vector.broadcast %199 : vector<1x32xf32> to vector<16x32xf32>
    %317 = arith.addf %315, %316 : vector<16x32xf32>
    %318 = arith.addf %309, %317 : vector<16x32xf32>
    %cst_113 = arith.constant dense<0.000000e+00> : vector<16xf32>
    %319 = vector.multi_reduction <add>, %318, %cst_113 [1] : vector<16x32xf32> to vector<16xf32>
    %320 = vector.shape_cast %319 : vector<16xf32> to vector<16x1xf32>
    %cst_114 = arith.constant 3.200000e+01 : f32
    %321 = vector.broadcast %cst_114 : f32 to vector<16x1xf32>
    %322 = arith.divf %320, %321 : vector<16x1xf32>
    %323 = vector.broadcast %322 : vector<16x1xf32> to vector<16x32xf32>
    %324 = arith.subf %318, %323 : vector<16x32xf32>
    %325 = arith.mulf %324, %324 : vector<16x32xf32>
    %cst_115 = arith.constant dense<0.000000e+00> : vector<16xf32>
    %326 = vector.multi_reduction <add>, %325, %cst_115 [1] : vector<16x32xf32> to vector<16xf32>
    %327 = vector.shape_cast %326 : vector<16xf32> to vector<16x1xf32>
    %cst_116 = arith.constant 3.200000e+01 : f32
    %328 = vector.broadcast %cst_116 : f32 to vector<16x1xf32>
    %329 = arith.divf %327, %328 : vector<16x1xf32>
    %330 = vector.broadcast %322 : vector<16x1xf32> to vector<16x32xf32>
    %331 = arith.subf %318, %330 : vector<16x32xf32>
    %cst_117 = arith.constant 9.99999974E-6 : f32
    %332 = vector.broadcast %cst_117 : f32 to vector<16x1xf32>
    %333 = arith.addf %329, %332 : vector<16x1xf32>
    %334 = math.rsqrt %333 : vector<16x1xf32>
    %335 = vector.broadcast %334 : vector<16x1xf32> to vector<16x32xf32>
    %336 = arith.mulf %331, %335 : vector<16x32xf32>
    %337 = vector.broadcast %204 : vector<1x32xf32> to vector<16x32xf32>
    %338 = arith.mulf %336, %337 : vector<16x32xf32>
    %339 = vector.broadcast %205 : vector<1x32xf32> to vector<16x32xf32>
    %340 = arith.addf %338, %339 : vector<16x32xf32>
    %cst_118 = arith.constant dense<0.000000e+00> : vector<16xf32>
    %341 = vector.multi_reduction <add>, %340, %cst_118 [1] : vector<16x32xf32> to vector<16xf32>
    %342 = vector.shape_cast %341 : vector<16xf32> to vector<16x1xf32>
    %cst_119 = arith.constant 3.200000e+01 : f32
    %343 = vector.broadcast %cst_119 : f32 to vector<16x1xf32>
    %344 = arith.divf %342, %343 : vector<16x1xf32>
    %345 = vector.broadcast %344 : vector<16x1xf32> to vector<16x32xf32>
    %346 = arith.subf %340, %345 : vector<16x32xf32>
    %347 = arith.mulf %346, %346 : vector<16x32xf32>
    %cst_120 = arith.constant dense<0.000000e+00> : vector<16xf32>
    %348 = vector.multi_reduction <add>, %347, %cst_120 [1] : vector<16x32xf32> to vector<16xf32>
    %349 = vector.shape_cast %348 : vector<16xf32> to vector<16x1xf32>
    %cst_121 = arith.constant 3.200000e+01 : f32
    %350 = vector.broadcast %cst_121 : f32 to vector<16x1xf32>
    %351 = arith.divf %349, %350 : vector<16x1xf32>
    %352 = vector.broadcast %344 : vector<16x1xf32> to vector<16x32xf32>
    %353 = arith.subf %340, %352 : vector<16x32xf32>
    %cst_122 = arith.constant 9.99999974E-6 : f32
    %354 = vector.broadcast %cst_122 : f32 to vector<16x1xf32>
    %355 = arith.addf %351, %354 : vector<16x1xf32>
    %356 = math.rsqrt %355 : vector<16x1xf32>
    %357 = vector.broadcast %356 : vector<16x1xf32> to vector<16x32xf32>
    %358 = arith.mulf %353, %357 : vector<16x32xf32>
    %359 = vector.broadcast %206 : vector<1x32xf32> to vector<16x32xf32>
    %360 = arith.mulf %358, %359 : vector<16x32xf32>
    %361 = vector.broadcast %207 : vector<1x32xf32> to vector<16x32xf32>
    %362 = arith.addf %360, %361 : vector<16x32xf32>
    %363 = tpu.concatenate %183, %362 in 1 : vector<16x32xf32>, vector<16x32xf32> -> vector<16x64xf32>
    %c0_123 = arith.constant 0 : index
    %c0_124 = arith.constant 0 : index
    %364 = vector.load %arg11[%c0_123, %c0_124] : memref<16x64xf32, #tpu.memory_space<vmem>>, vector<16x64xf32>
    tpu.vector_store %arg11[%c0_123, %c0_124], %363 {strides = array<i32>} : memref<16x64xf32, #tpu.memory_space<vmem>>, vector<16x64xf32>,
    return
  }
}

</mosaic_0001>

<llo_original>
// kernel: transformer_decoder.1
$region0: #{transformer_decoder.1}
  #allocation0 [shape = 'u32[]', space=smem, size = 0x4, offset = 0x4, fixed_abs, tag = 'smem constant byte address 0x4 - core index']
  #allocation1 [shape = 'u32[72,128]{1,0:T(1,128)}', space=vmem, size = 0x9000, scoped, tag = 'internal scratch']
  %s0 = inlined_call_operand.vmem [shape: f32[16,32], index: 0, kind: input, shape index: {}]
  %s1 = inlined_call_operand.vmem [shape: f32[16,32], index: 1, kind: input, shape index: {}]
  %s2 = inlined_call_operand.vmem [shape: f32[32,32], index: 2, kind: input, shape index: {}]
  %s3 = inlined_call_operand.vmem [shape: f32[32,32], index: 3, kind: input, shape index: {}]
  %s4 = inlined_call_operand.vmem [shape: f32[2,32,64], index: 4, kind: input, shape index: {}]
  %s5 = inlined_call_operand.vmem [shape: f32[2,32,64], index: 5, kind: input, shape index: {}]
  %s6 = inlined_call_operand.vmem [shape: f32[2,32,64], index: 6, kind: input, shape index: {}]
  %s7 = inlined_call_operand.vmem [shape: f32[2,64,32], index: 7, kind: input, shape index: {}]
  %s8 = inlined_call_operand.vmem [shape: f32[2,32,64], index: 8, kind: input, shape index: {}]
  %s9 = inlined_call_operand.vmem [shape: f32[2,64,32], index: 9, kind: input, shape index: {}]
  %s10 = inlined_call_operand.vmem [shape: f32[2,10,64], index: 10, kind: input, shape index: {}]
  %s11 = inlined_call_operand.vmem [shape: f32[16,64], index: 11, kind: output, shape index: {}]
  %s12 = sld [smem:[#allocation0]]
  $region54: #{transformer_decoder.1} parent=0
    _
  %s14 = ssub.s32 1, %s12
  %s15 = scalar_select 0, %s14, %s12
  // Predicated region
  $region2: #{transformer_decoder.1} parent=0 // pred_check
    _
  $region3: #{transformer_decoder.1} parent=0 // pred_check_branch
    %17 = sbr.rel (0) target = $region5
  $region4: #{transformer_decoder.1} parent=0 // pred_region
    _
  $region5: #{transformer_decoder.1} parent=0 // pred_fallthru
    _
  // Predicated region
  $region6: #{transformer_decoder.1} parent=0 // pred_check
    _
  $region7: #{transformer_decoder.1} parent=0 // pred_check_branch
    %19 = sbr.rel (0) target = $region9
  $region8: #{transformer_decoder.1} parent=0 // pred_region
    _
  $region9: #{transformer_decoder.1} parent=0 // pred_fallthru
    _
  // Predicated region
  $region10: #{transformer_decoder.1} parent=0 // pred_check
    _
  $region11: #{transformer_decoder.1} parent=0 // pred_check_branch
    %21 = sbr.rel (0) target = $region13
  $region12: #{transformer_decoder.1} parent=0 // pred_region
    _
  $region13: #{transformer_decoder.1} parent=0 // pred_fallthru
    _
  // Predicated region
  $region14: #{transformer_decoder.1} parent=0 // pred_check
    _
  $region15: #{transformer_decoder.1} parent=0 // pred_check_branch
    %23 = sbr.rel (0) target = $region17
  $region16: #{transformer_decoder.1} parent=0 // pred_region
    _
  $region17: #{transformer_decoder.1} parent=0 // pred_fallthru
    _
  // Predicated region
  $region18: #{transformer_decoder.1} parent=0 // pred_check
    _
  $region19: #{transformer_decoder.1} parent=0 // pred_check_branch
    %25 = sbr.rel (0) target = $region21
  $region20: #{transformer_decoder.1} parent=0 // pred_region
    _
  $region21: #{transformer_decoder.1} parent=0 // pred_fallthru
    _
  // Predicated region
  $region22: #{transformer_decoder.1} parent=0 // pred_check
    _
  $region23: #{transformer_decoder.1} parent=0 // pred_check_branch
    %27 = sbr.rel (0) target = $region25
  $region24: #{transformer_decoder.1} parent=0 // pred_region
    _
  $region25: #{transformer_decoder.1} parent=0 // pred_fallthru
    _
  // Predicated region
  $region26: #{transformer_decoder.1} parent=0 // pred_check
    _
  $region27: #{transformer_decoder.1} parent=0 // pred_check_branch
    %29 = sbr.rel (0) target = $region29
  $region28: #{transformer_decoder.1} parent=0 // pred_region
    _
  $region29: #{transformer_decoder.1} parent=0 // pred_fallthru
    _
  // Predicated region
  $region30: #{transformer_decoder.1} parent=0 // pred_check
    _
  $region31: #{transformer_decoder.1} parent=0 // pred_check_branch
    %31 = sbr.rel (0) target = $region33
  $region32: #{transformer_decoder.1} parent=0 // pred_region
    _
  $region33: #{transformer_decoder.1} parent=0 // pred_fallthru
    _
  // Predicated region
  $region34: #{transformer_decoder.1} parent=0 // pred_check
    _
  $region35: #{transformer_decoder.1} parent=0 // pred_check_branch
    %33 = sbr.rel (0) target = $region37
  $region36: #{transformer_decoder.1} parent=0 // pred_region
    _
  $region37: #{transformer_decoder.1} parent=0 // pred_fallthru
    _
  // Predicated region
  $region38: #{transformer_decoder.1} parent=0 // pred_check
    _
  $region39: #{transformer_decoder.1} parent=0 // pred_check_branch
    %35 = sbr.rel (0) target = $region41
  $region40: #{transformer_decoder.1} parent=0 // pred_region
    _
  $region41: #{transformer_decoder.1} parent=0 // pred_fallthru
    _
  // Predicated region
  $region42: #{transformer_decoder.1} parent=0 // pred_check
    _
  $region43: #{transformer_decoder.1} parent=0 // pred_check_branch
    %37 = sbr.rel (0) target = $region45
  $region44: #{transformer_decoder.1} parent=0 // pred_region
    _
  $region45: #{transformer_decoder.1} parent=0 // pred_fallthru
    _
  %v38 = vld [vmem:[%s0] sm:$0xff]
  %v39 = vld [vmem:[%s0 + $0x8] sm:$0xff]
  %v40 = vld [vmem:[%s1] sm:$0xff]
  %v41 = vld [vmem:[%s1 + $0x8] sm:$0xff]
  %v42 = vld [vmem:[%s2] sm:$0xff]
  %v43 = vld [vmem:[%s2 + $0x8] sm:$0xff]
  %v44 = vld [vmem:[%s2 + $0x10] sm:$0xff]
  %v45 = vld [vmem:[%s2 + $0x18] sm:$0xff]
  %v46 = vld [vmem:[%s3] sm:$0xff]
  %v47 = vld [vmem:[%s3 + $0x8] sm:$0xff]
  %v48 = vld [vmem:[%s3 + $0x10] sm:$0xff]
  %v49 = vld [vmem:[%s3 + $0x18] sm:$0xff]
  %v50 = vadd.f32 %v42, %v46
  %v51 = vadd.f32 %v43, %v47
  %v52 = vadd.f32 %v44, %v48
  %v53 = vadd.f32 %v45, %v49
  %v54 = vld [vmem:[%s4] sm:$0xff]
  %v55 = vld [vmem:[%s4 + $0x8] sm:$0xff]
  %v56 = vld [vmem:[%s4 + $0x10] sm:$0xff]
  %v57 = vld [vmem:[%s4 + $0x18] sm:$0xff]
  %v58 = vld [vmem:[%s5] sm:$0xff]
  %v59 = vld [vmem:[%s5 + $0x8] sm:$0xff]
  %v60 = vld [vmem:[%s5 + $0x10] sm:$0xff]
  %v61 = vld [vmem:[%s5 + $0x18] sm:$0xff]
  %v62 = vld [vmem:[%s6] sm:$0xff]
  %v63 = vld [vmem:[%s6 + $0x8] sm:$0xff]
  %v64 = vld [vmem:[%s6 + $0x10] sm:$0xff]
  %v65 = vld [vmem:[%s6 + $0x18] sm:$0xff]
  %v66 = vld [vmem:[%s7] sm:$0xff]
  %v67 = vld [vmem:[%s7 + $0x8] sm:$0xff]
  %v68 = vld [vmem:[%s7 + $0x10] sm:$0xff]
  %v69 = vld [vmem:[%s7 + $0x18] sm:$0xff]
  %v70 = vld [vmem:[%s7 + $0x20] sm:$0xff]
  %v71 = vld [vmem:[%s7 + $0x28] sm:$0xff]
  %v72 = vld [vmem:[%s7 + $0x30] sm:$0xff]
  %v73 = vld [vmem:[%s7 + $0x38] sm:$0xff]
  %v74 = vld [vmem:[%s8] sm:$0xff]
  %v75 = vld [vmem:[%s8 + $0x8] sm:$0xff]
  %v76 = vld [vmem:[%s8 + $0x10] sm:$0xff]
  %v77 = vld [vmem:[%s8 + $0x18] sm:$0xff]
  %v78 = vld [vmem:[%s9] sm:$0xff]
  %v79 = vld [vmem:[%s9 + $0x8] sm:$0xff]
  %v80 = vld [vmem:[%s9 + $0x10] sm:$0xff]
  %v81 = vld [vmem:[%s9 + $0x18] sm:$0xff]
  %v82 = vld [vmem:[%s9 + $0x20] sm:$0xff]
  %v83 = vld [vmem:[%s9 + $0x28] sm:$0xff]
  %v84 = vld [vmem:[%s9 + $0x30] sm:$0xff]
  %v85 = vld [vmem:[%s9 + $0x38] sm:$0xff]
  %v86 = vld [vmem:[%s10] sm:$0xff]
  %v87 = vld [vmem:[%s10 + $0x8] sm:$0x3]
  %v88 = vadd.f32 %v38, %v40
  %v89 = vadd.f32 %v39, %v41
  %vm90 = vcmask 261120
  %v92 = vsel %vm90, %v88, 0
  %v95 = vsel %vm90, %v89, 0
  %97 = vmatpush.msra.mxu0 0.0
  %98 = vmatpush.msra.mxu0 0.0
  %99 = vmatpush.msra.mxu0 0.0
  %100 = vmatpush.msra.mxu0 0.0
  %101 = vmatpush.msra.mxu0 0.0
  %102 = vmatpush.msra.mxu0 0.0
  %103 = vmatpush.msra.mxu0 0.0
  %104 = vmatpush.msra.mxu0 0.0
  %105 = vmatpush.msra.mxu0 0.0
  %106 = vmatpush.msra.mxu0 0.0
  %107 = vmatpush.msra.mxu0 0.0
  %108 = vmatpush.msra.mxu0 0.0
  %109 = vmatpush.msra.mxu0 %v57
  %110 = vmatpush.msra.mxu0 %v56
  %111 = vmatpush.msra.mxu0 %v55
  %112 = vmatpush.msra.mxu0 %v54
  %113 = vmatmul.f32.gmra.mxu0 %v92
  %v114 = vpop.f32.mrf.mxu0
  %v115 = vadd.f32 0.0, %v114
  %116 = vmatmul.f32.gmra.mxu0 %v95
  %v117 = vpop.f32.mrf.mxu0
  %v118 = vadd.f32 0.0, %v117
  %119 = vdwg.mxu0
  %120 = vmatpush.msra.mxu0 0.0
  %121 = vmatpush.msra.mxu0 0.0
  %122 = vmatpush.msra.mxu0 0.0
  %123 = vmatpush.msra.mxu0 0.0
  %124 = vmatpush.msra.mxu0 0.0
  %125 = vmatpush.msra.mxu0 0.0
  %126 = vmatpush.msra.mxu0 0.0
  %127 = vmatpush.msra.mxu0 0.0
  %128 = vmatpush.msra.mxu0 0.0
  %129 = vmatpush.msra.mxu0 0.0
  %130 = vmatpush.msra.mxu0 0.0
  %131 = vmatpush.msra.mxu0 0.0
  %132 = vmatpush.msra.mxu0 %v61
  %133 = vmatpush.msra.mxu0 %v60
  %134 = vmatpush.msra.mxu0 %v59
  %135 = vmatpush.msra.mxu0 %v58
  %136 = vmatmul.f32.gmra.mxu0 %v92
  %v137 = vpop.f32.mrf.mxu0
  %v138 = vadd.f32 0.0, %v137
  %139 = vmatmul.f32.gmra.mxu0 %v95
  %v140 = vpop.f32.mrf.mxu0
  %v141 = vadd.f32 0.0, %v140
  %142 = vdwg.mxu0
  %v144 = vsel %vm90, %v38, 0
  %v147 = vsel %vm90, %v39, 0
  %149 = vmatpush.msra.mxu0 0.0
  %150 = vmatpush.msra.mxu0 0.0
  %151 = vmatpush.msra.mxu0 0.0
  %152 = vmatpush.msra.mxu0 0.0
  %153 = vmatpush.msra.mxu0 0.0
  %154 = vmatpush.msra.mxu0 0.0
  %155 = vmatpush.msra.mxu0 0.0
  %156 = vmatpush.msra.mxu0 0.0
  %157 = vmatpush.msra.mxu0 0.0
  %158 = vmatpush.msra.mxu0 0.0
  %159 = vmatpush.msra.mxu0 0.0
  %160 = vmatpush.msra.mxu0 0.0
  %161 = vmatpush.msra.mxu0 %v65
  %162 = vmatpush.msra.mxu0 %v64
  %163 = vmatpush.msra.mxu0 %v63
  %164 = vmatpush.msra.mxu0 %v62
  %165 = vmatmul.f32.gmra.mxu0 %v144
  %v166 = vpop.f32.mrf.mxu0
  %v167 = vadd.f32 0.0, %v166
  %168 = vmatmul.f32.gmra.mxu0 %v147
  %v169 = vpop.f32.mrf.mxu0
  %v170 = vadd.f32 0.0, %v169
  %171 = vdwg.mxu0
  %174 = vrot.lane.b32.xlu0 %v115, 112
  %v175 = vpop.permute.xlu0 %174
  %176 = vrot.lane.b32.xlu0 %v118, 112
  %v177 = vpop.permute.xlu0 %176
  %180 = vrot.lane.b32.xlu0 %v115, 96
  %v181 = vpop.permute.xlu0 %180
  %182 = vrot.lane.b32.xlu0 %v118, 96
  %v183 = vpop.permute.xlu0 %182
  %186 = vrot.lane.b32.xlu0 %v115, 80
  %v187 = vpop.permute.xlu0 %186
  %188 = vrot.lane.b32.xlu0 %v118, 80
  %v189 = vpop.permute.xlu0 %188
  %v192 = vrot.slane %v181, 4
  %vm193 = vcmask 1047556
  %v194 = vsel %vm193, %v192, %v115
  %v195 = vrot.slane %v115, 4
  %v196 = vsel %vm193, %v181, %v195
  %v198 = vunpack.c.l.s4 1983009808
  %v199 = vunpack.c.0.s8 %v198
  %v200 = vperm.slane %v194, %v199
  %v202 = vunpack.c.l.s4 1983009808
  %v203 = vunpack.c.0.s8 %v202
  %v204 = vperm.slane %v196, %v203
  %v205 = vrot.slane %v187, 4
  %v206 = vsel %vm193, %v205, %v175
  %v207 = vrot.slane %v175, 4
  %v208 = vsel %vm193, %v187, %v207
  %v210 = vunpack.c.l.s4 1983009808
  %v211 = vunpack.c.0.s8 %v210
  %v212 = vperm.slane %v206, %v211
  %v214 = vunpack.c.l.s4 1983009808
  %v215 = vunpack.c.0.s8 %v214
  %v216 = vperm.slane %v208, %v215
  %v217 = vrot.slane %v212, 4
  %v218 = vsel %vm193, %v217, %v200
  %v219 = vrot.slane %v200, 4
  %v220 = vsel %vm193, %v212, %v219
  %v222 = vunpack.c.l.s4 1934713408
  %v223 = vunpack.c.0.s8 %v222
  %v224 = vperm.slane %v218, %v223
  %v226 = vunpack.c.l.s4 1934713408
  %v227 = vunpack.c.0.s8 %v226
  %v228 = vperm.slane %v220, %v227
  %v229 = vrot.slane %v216, 4
  %v230 = vsel %vm193, %v229, %v204
  %v231 = vrot.slane %v204, 4
  %v232 = vsel %vm193, %v216, %v231
  %v234 = vunpack.c.l.s4 1934713408
  %v235 = vunpack.c.0.s8 %v234
  %v236 = vperm.slane %v230, %v235
  %v238 = vunpack.c.l.s4 1934713408
  %v239 = vunpack.c.0.s8 %v238
  %v240 = vperm.slane %v232, %v239
  %v241 = vrot.slane %v224, 4
  %v242 = vsel %vm193, 0.0, %v241
  %v243 = vrot.slane %v228, 4
  %v244 = vsel %vm193, 0.0, %v243
  %v245 = vrot.slane %v236, 4
  %v246 = vsel %vm193, 0.0, %v245
  %v247 = vrot.slane %v240, 4
  %v248 = vsel %vm193, 0.0, %v247
  %v249 = vrot.slane %v183, 4
  %v250 = vsel %vm193, %v249, %v118
  %v251 = vrot.slane %v118, 4
  %v252 = vsel %vm193, %v183, %v251
  %v254 = vunpack.c.l.s4 1983009808
  %v255 = vunpack.c.0.s8 %v254
  %v256 = vperm.slane %v250, %v255
  %v258 = vunpack.c.l.s4 1983009808
  %v259 = vunpack.c.0.s8 %v258
  %v260 = vperm.slane %v252, %v259
  %v261 = vrot.slane %v189, 4
  %v262 = vsel %vm193, %v261, %v177
  %v263 = vrot.slane %v177, 4
  %v264 = vsel %vm193, %v189, %v263
  %v266 = vunpack.c.l.s4 1983009808
  %v267 = vunpack.c.0.s8 %v266
  %v268 = vperm.slane %v262, %v267
  %v270 = vunpack.c.l.s4 1983009808
  %v271 = vunpack.c.0.s8 %v270
  %v272 = vperm.slane %v264, %v271
  %v273 = vrot.slane %v268, 4
  %v274 = vsel %vm193, %v273, %v256
  %v275 = vrot.slane %v256, 4
  %v276 = vsel %vm193, %v268, %v275
  %v278 = vunpack.c.l.s4 1934713408
  %v279 = vunpack.c.0.s8 %v278
  %v280 = vperm.slane %v274, %v279
  %v282 = vunpack.c.l.s4 1934713408
  %v283 = vunpack.c.0.s8 %v282
  %v284 = vperm.slane %v276, %v283
  %v285 = vrot.slane %v272, 4
  %v286 = vsel %vm193, %v285, %v260
  %v287 = vrot.slane %v260, 4
  %v288 = vsel %vm193, %v272, %v287
  %v290 = vunpack.c.l.s4 1934713408
  %v291 = vunpack.c.0.s8 %v290
  %v292 = vperm.slane %v286, %v291
  %v294 = vunpack.c.l.s4 1934713408
  %v295 = vunpack.c.0.s8 %v294
  %v296 = vperm.slane %v288, %v295
  %v297 = vrot.slane %v280, 4
  %v298 = vsel %vm193, 0.0, %v297
  %v299 = vrot.slane %v284, 4
  %v300 = vsel %vm193, 0.0, %v299
  %v301 = vrot.slane %v292, 4
  %v302 = vsel %vm193, 0.0, %v301
  %v303 = vrot.slane %v296, 4
  %v304 = vsel %vm193, 0.0, %v303
  %v305 = vsel %vm193, %v243, %v224
  %v307 = vunpack.c.l.s4 1983009808
  %v308 = vunpack.c.0.s8 %v307
  %v309 = vperm.slane %v305, %v308
  %v310 = vrot.slane %v244, 4
  %v311 = vsel %vm193, %v310, %v242
  %v313 = vunpack.c.l.s4 1983009808
  %v314 = vunpack.c.0.s8 %v313
  %v315 = vperm.slane %v311, %v314
  %v316 = vsel %vm193, %v247, %v236
  %v318 = vunpack.c.l.s4 1983009808
  %v319 = vunpack.c.0.s8 %v318
  %v320 = vperm.slane %v316, %v319
  %v321 = vrot.slane %v248, 4
  %v322 = vsel %vm193, %v321, %v246
  %v324 = vunpack.c.l.s4 1983009808
  %v325 = vunpack.c.0.s8 %v324
  %v326 = vperm.slane %v322, %v325
  %v327 = vrot.slane %v315, 4
  %v328 = vsel %vm193, %v327, %v309
  %v329 = vrot.slane %v309, 4
  %v330 = vsel %vm193, %v315, %v329
  %v332 = vunpack.c.l.s4 1934713408
  %v333 = vunpack.c.0.s8 %v332
  %v334 = vperm.slane %v328, %v333
  %v336 = vunpack.c.l.s4 1934713408
  %v337 = vunpack.c.0.s8 %v336
  %v338 = vperm.slane %v330, %v337
  %v339 = vrot.slane %v326, 4
  %v340 = vsel %vm193, %v339, %v320
  %v341 = vrot.slane %v320, 4
  %v342 = vsel %vm193, %v326, %v341
  %v344 = vunpack.c.l.s4 1934713408
  %v345 = vunpack.c.0.s8 %v344
  %v346 = vperm.slane %v340, %v345
  %v348 = vunpack.c.l.s4 1934713408
  %v349 = vunpack.c.0.s8 %v348
  %v350 = vperm.slane %v342, %v349
  %v351 = vrot.slane %v346, 4
  %v352 = vsel %vm193, %v351, %v334
  %v353 = vrot.slane %v334, 4
  %v354 = vsel %vm193, %v346, %v353
  %v355 = vrot.slane %v350, 4
  %v356 = vsel %vm193, %v355, %v338
  %v357 = vrot.slane %v338, 4
  %v358 = vsel %vm193, %v350, %v357
  %v359 = vsel %vm193, %v299, %v280
  %v361 = vunpack.c.l.s4 1983009808
  %v362 = vunpack.c.0.s8 %v361
  %v363 = vperm.slane %v359, %v362
  %v364 = vrot.slane %v300, 4
  %v365 = vsel %vm193, %v364, %v298
  %v367 = vunpack.c.l.s4 1983009808
  %v368 = vunpack.c.0.s8 %v367
  %v369 = vperm.slane %v365, %v368
  %v370 = vsel %vm193, %v303, %v292
  %v372 = vunpack.c.l.s4 1983009808
  %v373 = vunpack.c.0.s8 %v372
  %v374 = vperm.slane %v370, %v373
  %v375 = vrot.slane %v304, 4
  %v376 = vsel %vm193, %v375, %v302
  %v378 = vunpack.c.l.s4 1983009808
  %v379 = vunpack.c.0.s8 %v378
  %v380 = vperm.slane %v376, %v379
  %v381 = vrot.slane %v369, 4
  %v382 = vsel %vm193, %v381, %v363
  %v383 = vrot.slane %v363, 4
  %v384 = vsel %vm193, %v369, %v383
  %v386 = vunpack.c.l.s4 1934713408
  %v387 = vunpack.c.0.s8 %v386
  %v388 = vperm.slane %v382, %v387
  %v390 = vunpack.c.l.s4 1934713408
  %v391 = vunpack.c.0.s8 %v390
  %v392 = vperm.slane %v384, %v391
  %v393 = vrot.slane %v380, 4
  %v394 = vsel %vm193, %v393, %v374
  %v395 = vrot.slane %v374, 4
  %v396 = vsel %vm193, %v380, %v395
  %v398 = vunpack.c.l.s4 1934713408
  %v399 = vunpack.c.0.s8 %v398
  %v400 = vperm.slane %v394, %v399
  %v402 = vunpack.c.l.s4 1934713408
  %v403 = vunpack.c.0.s8 %v402
  %v404 = vperm.slane %v396, %v403
  %v405 = vrot.slane %v400, 4
  %v406 = vsel %vm193, %v405, %v388
  %v407 = vrot.slane %v388, 4
  %v408 = vsel %vm193, %v400, %v407
  %v409 = vrot.slane %v404, 4
  %v410 = vsel %vm193, %v409, %v392
  %v411 = vrot.slane %v392, 4
  %v412 = vsel %vm193, %v404, %v411
  %415 = vrot.lane.b32.xlu0 %v138, 112
  %v416 = vpop.permute.xlu0 %415
  %417 = vrot.lane.b32.xlu0 %v141, 112
  %v418 = vpop.permute.xlu0 %417
  %421 = vrot.lane.b32.xlu0 %v138, 96
  %v422 = vpop.permute.xlu0 %421
  %423 = vrot.lane.b32.xlu0 %v141, 96
  %v424 = vpop.permute.xlu0 %423
  %427 = vrot.lane.b32.xlu0 %v138, 80
  %v428 = vpop.permute.xlu0 %427
  %429 = vrot.lane.b32.xlu0 %v141, 80
  %v430 = vpop.permute.xlu0 %429
  %v433 = vrot.slane %v422, 4
  %v434 = vsel %vm193, %v433, %v138
  %v435 = vrot.slane %v138, 4
  %v436 = vsel %vm193, %v422, %v435
  %v438 = vunpack.c.l.s4 1983009808
  %v439 = vunpack.c.0.s8 %v438
  %v440 = vperm.slane %v434, %v439
  %v442 = vunpack.c.l.s4 1983009808
  %v443 = vunpack.c.0.s8 %v442
  %v444 = vperm.slane %v436, %v443
  %v445 = vrot.slane %v428, 4
  %v446 = vsel %vm193, %v445, %v416
  %v447 = vrot.slane %v416, 4
  %v448 = vsel %vm193, %v428, %v447
  %v450 = vunpack.c.l.s4 1983009808
  %v451 = vunpack.c.0.s8 %v450
  %v452 = vperm.slane %v446, %v451
  %v454 = vunpack.c.l.s4 1983009808
  %v455 = vunpack.c.0.s8 %v454
  %v456 = vperm.slane %v448, %v455
  %v457 = vrot.slane %v452, 4
  %v458 = vsel %vm193, %v457, %v440
  %v459 = vrot.slane %v440, 4
  %v460 = vsel %vm193, %v452, %v459
  %v462 = vunpack.c.l.s4 1934713408
  %v463 = vunpack.c.0.s8 %v462
  %v464 = vperm.slane %v458, %v463
  %v466 = vunpack.c.l.s4 1934713408
  %v467 = vunpack.c.0.s8 %v466
  %v468 = vperm.slane %v460, %v467
  %v469 = vrot.slane %v456, 4
  %v470 = vsel %vm193, %v469, %v444
  %v471 = vrot.slane %v444, 4
  %v472 = vsel %vm193, %v456, %v471
  %v474 = vunpack.c.l.s4 1934713408
  %v475 = vunpack.c.0.s8 %v474
  %v476 = vperm.slane %v470, %v475
  %v478 = vunpack.c.l.s4 1934713408
  %v479 = vunpack.c.0.s8 %v478
  %v480 = vperm.slane %v472, %v479
  %v481 = vrot.slane %v464, 4
  %v482 = vsel %vm193, 0.0, %v481
  %v483 = vrot.slane %v468, 4
  %v484 = vsel %vm193, 0.0, %v483
  %v485 = vrot.slane %v476, 4
  %v486 = vsel %vm193, 0.0, %v485
  %v487 = vrot.slane %v480, 4
  %v488 = vsel %vm193, 0.0, %v487
  %v489 = vrot.slane %v424, 4
  %v490 = vsel %vm193, %v489, %v141
  %v491 = vrot.slane %v141, 4
  %v492 = vsel %vm193, %v424, %v491
  %v494 = vunpack.c.l.s4 1983009808
  %v495 = vunpack.c.0.s8 %v494
  %v496 = vperm.slane %v490, %v495
  %v498 = vunpack.c.l.s4 1983009808
  %v499 = vunpack.c.0.s8 %v498
  %v500 = vperm.slane %v492, %v499
  %v501 = vrot.slane %v430, 4
  %v502 = vsel %vm193, %v501, %v418
  %v503 = vrot.slane %v418, 4
  %v504 = vsel %vm193, %v430, %v503
  %v506 = vunpack.c.l.s4 1983009808
  %v507 = vunpack.c.0.s8 %v506
  %v508 = vperm.slane %v502, %v507
  %v510 = vunpack.c.l.s4 1983009808
  %v511 = vunpack.c.0.s8 %v510
  %v512 = vperm.slane %v504, %v511
  %v513 = vrot.slane %v508, 4
  %v514 = vsel %vm193, %v513, %v496
  %v515 = vrot.slane %v496, 4
  %v516 = vsel %vm193, %v508, %v515
  %v518 = vunpack.c.l.s4 1934713408
  %v519 = vunpack.c.0.s8 %v518
  %v520 = vperm.slane %v514, %v519
  %v522 = vunpack.c.l.s4 1934713408
  %v523 = vunpack.c.0.s8 %v522
  %v524 = vperm.slane %v516, %v523
  %v525 = vrot.slane %v512, 4
  %v526 = vsel %vm193, %v525, %v500
  %v527 = vrot.slane %v500, 4
  %v528 = vsel %vm193, %v512, %v527
  %v530 = vunpack.c.l.s4 1934713408
  %v531 = vunpack.c.0.s8 %v530
  %v532 = vperm.slane %v526, %v531
  %v534 = vunpack.c.l.s4 1934713408
  %v535 = vunpack.c.0.s8 %v534
  %v536 = vperm.slane %v528, %v535
  %v537 = vrot.slane %v520, 4
  %v538 = vsel %vm193, 0.0, %v537
  %v539 = vrot.slane %v524, 4
  %v540 = vsel %vm193, 0.0, %v539
  %v541 = vrot.slane %v532, 4
  %v542 = vsel %vm193, 0.0, %v541
  %v543 = vrot.slane %v536, 4
  %v544 = vsel %vm193, 0.0, %v543
  %v545 = vsel %vm193, %v483, %v464
  %v547 = vunpack.c.l.s4 1983009808
  %v548 = vunpack.c.0.s8 %v547
  %v549 = vperm.slane %v545, %v548
  %v550 = vrot.slane %v484, 4
  %v551 = vsel %vm193, %v550, %v482
  %v553 = vunpack.c.l.s4 1983009808
  %v554 = vunpack.c.0.s8 %v553
  %v555 = vperm.slane %v551, %v554
  %v556 = vsel %vm193, %v487, %v476
  %v558 = vunpack.c.l.s4 1983009808
  %v559 = vunpack.c.0.s8 %v558
  %v560 = vperm.slane %v556, %v559
  %v561 = vrot.slane %v488, 4
  %v562 = vsel %vm193, %v561, %v486
  %v564 = vunpack.c.l.s4 1983009808
  %v565 = vunpack.c.0.s8 %v564
  %v566 = vperm.slane %v562, %v565
  %v567 = vrot.slane %v555, 4
  %v568 = vsel %vm193, %v567, %v549
  %v569 = vrot.slane %v549, 4
  %v570 = vsel %vm193, %v555, %v569
  %v572 = vunpack.c.l.s4 1934713408
  %v573 = vunpack.c.0.s8 %v572
  %v574 = vperm.slane %v568, %v573
  %v576 = vunpack.c.l.s4 1934713408
  %v577 = vunpack.c.0.s8 %v576
  %v578 = vperm.slane %v570, %v577
  %v579 = vrot.slane %v566, 4
  %v580 = vsel %vm193, %v579, %v560
  %v581 = vrot.slane %v560, 4
  %v582 = vsel %vm193, %v566, %v581
  %v584 = vunpack.c.l.s4 1934713408
  %v585 = vunpack.c.0.s8 %v584
  %v586 = vperm.slane %v580, %v585
  %v588 = vunpack.c.l.s4 1934713408
  %v589 = vunpack.c.0.s8 %v588
  %v590 = vperm.slane %v582, %v589
  %v591 = vrot.slane %v586, 4
  %v592 = vsel %vm193, %v591, %v574
  %v593 = vrot.slane %v574, 4
  %v594 = vsel %vm193, %v586, %v593
  %v595 = vrot.slane %v590, 4
  %v596 = vsel %vm193, %v595, %v578
  %v597 = vrot.slane %v578, 4
  %v598 = vsel %vm193, %v590, %v597
  %v599 = vsel %vm193, %v539, %v520
  %v601 = vunpack.c.l.s4 1983009808
  %v602 = vunpack.c.0.s8 %v601
  %v603 = vperm.slane %v599, %v602
  %v604 = vrot.slane %v540, 4
  %v605 = vsel %vm193, %v604, %v538
  %v607 = vunpack.c.l.s4 1983009808
  %v608 = vunpack.c.0.s8 %v607
  %v609 = vperm.slane %v605, %v608
  %v610 = vsel %vm193, %v543, %v532
  %v612 = vunpack.c.l.s4 1983009808
  %v613 = vunpack.c.0.s8 %v612
  %v614 = vperm.slane %v610, %v613
  %v615 = vrot.slane %v544, 4
  %v616 = vsel %vm193, %v615, %v542
  %v618 = vunpack.c.l.s4 1983009808
  %v619 = vunpack.c.0.s8 %v618
  %v620 = vperm.slane %v616, %v619
  %v621 = vrot.slane %v609, 4
  %v622 = vsel %vm193, %v621, %v603
  %v623 = vrot.slane %v603, 4
  %v624 = vsel %vm193, %v609, %v623
  %v626 = vunpack.c.l.s4 1934713408
  %v627 = vunpack.c.0.s8 %v626
  %v628 = vperm.slane %v622, %v627
  %v630 = vunpack.c.l.s4 1934713408
  %v631 = vunpack.c.0.s8 %v630
  %v632 = vperm.slane %v624, %v631
  %v633 = vrot.slane %v620, 4
  %v634 = vsel %vm193, %v633, %v614
  %v635 = vrot.slane %v614, 4
  %v636 = vsel %vm193, %v620, %v635
  %v638 = vunpack.c.l.s4 1934713408
  %v639 = vunpack.c.0.s8 %v638
  %v640 = vperm.slane %v634, %v639
  %v642 = vunpack.c.l.s4 1934713408
  %v643 = vunpack.c.0.s8 %v642
  %v644 = vperm.slane %v636, %v643
  %v645 = vrot.slane %v640, 4
  %v646 = vsel %vm193, %v645, %v628
  %v647 = vrot.slane %v628, 4
  %v648 = vsel %vm193, %v640, %v647
  %v649 = vrot.slane %v644, 4
  %v650 = vsel %vm193, %v649, %v632
  %v651 = vrot.slane %v632, 4
  %v652 = vsel %vm193, %v644, %v651
  %655 = vrot.lane.b32.xlu0 %v167, 112
  %v656 = vpop.permute.xlu0 %655
  %657 = vrot.lane.b32.xlu0 %v170, 112
  %v658 = vpop.permute.xlu0 %657
  %661 = vrot.lane.b32.xlu0 %v167, 96
  %v662 = vpop.permute.xlu0 %661
  %663 = vrot.lane.b32.xlu0 %v170, 96
  %v664 = vpop.permute.xlu0 %663
  %667 = vrot.lane.b32.xlu0 %v167, 80
  %v668 = vpop.permute.xlu0 %667
  %669 = vrot.lane.b32.xlu0 %v170, 80
  %v670 = vpop.permute.xlu0 %669
  %v673 = vrot.slane %v662, 4
  %v674 = vsel %vm193, %v673, %v167
  %v675 = vrot.slane %v167, 4
  %v676 = vsel %vm193, %v662, %v675
  %v678 = vunpack.c.l.s4 1983009808
  %v679 = vunpack.c.0.s8 %v678
  %v680 = vperm.slane %v674, %v679
  %v682 = vunpack.c.l.s4 1983009808
  %v683 = vunpack.c.0.s8 %v682
  %v684 = vperm.slane %v676, %v683
  %v685 = vrot.slane %v668, 4
  %v686 = vsel %vm193, %v685, %v656
  %v687 = vrot.slane %v656, 4
  %v688 = vsel %vm193, %v668, %v687
  %v690 = vunpack.c.l.s4 1983009808
  %v691 = vunpack.c.0.s8 %v690
  %v692 = vperm.slane %v686, %v691
  %v694 = vunpack.c.l.s4 1983009808
  %v695 = vunpack.c.0.s8 %v694
  %v696 = vperm.slane %v688, %v695
  %v697 = vrot.slane %v692, 4
  %v698 = vsel %vm193, %v697, %v680
  %v699 = vrot.slane %v680, 4
  %v700 = vsel %vm193, %v692, %v699
  %v702 = vunpack.c.l.s4 1934713408
  %v703 = vunpack.c.0.s8 %v702
  %v704 = vperm.slane %v698, %v703
  %v706 = vunpack.c.l.s4 1934713408
  %v707 = vunpack.c.0.s8 %v706
  %v708 = vperm.slane %v700, %v707
  %v709 = vrot.slane %v696, 4
  %v710 = vsel %vm193, %v709, %v684
  %v711 = vrot.slane %v684, 4
  %v712 = vsel %vm193, %v696, %v711
  %v714 = vunpack.c.l.s4 1934713408
  %v715 = vunpack.c.0.s8 %v714
  %v716 = vperm.slane %v710, %v715
  %v718 = vunpack.c.l.s4 1934713408
  %v719 = vunpack.c.0.s8 %v718
  %v720 = vperm.slane %v712, %v719
  %v721 = vrot.slane %v704, 4
  %v722 = vsel %vm193, 0.0, %v721
  %v723 = vrot.slane %v708, 4
  %v724 = vsel %vm193, 0.0, %v723
  %v725 = vrot.slane %v716, 4
  %v726 = vsel %vm193, 0.0, %v725
  %v727 = vrot.slane %v720, 4
  %v728 = vsel %vm193, 0.0, %v727
  %v729 = vrot.slane %v664, 4
  %v730 = vsel %vm193, %v729, %v170
  %v731 = vrot.slane %v170, 4
  %v732 = vsel %vm193, %v664, %v731
  %v734 = vunpack.c.l.s4 1983009808
  %v735 = vunpack.c.0.s8 %v734
  %v736 = vperm.slane %v730, %v735
  %v738 = vunpack.c.l.s4 1983009808
  %v739 = vunpack.c.0.s8 %v738
  %v740 = vperm.slane %v732, %v739
  %v741 = vrot.slane %v670, 4
  %v742 = vsel %vm193, %v741, %v658
  %v743 = vrot.slane %v658, 4
  %v744 = vsel %vm193, %v670, %v743
  %v746 = vunpack.c.l.s4 1983009808
  %v747 = vunpack.c.0.s8 %v746
  %v748 = vperm.slane %v742, %v747
  %v750 = vunpack.c.l.s4 1983009808
  %v751 = vunpack.c.0.s8 %v750
  %v752 = vperm.slane %v744, %v751
  %v753 = vrot.slane %v748, 4
  %v754 = vsel %vm193, %v753, %v736
  %v755 = vrot.slane %v736, 4
  %v756 = vsel %vm193, %v748, %v755
  %v758 = vunpack.c.l.s4 1934713408
  %v759 = vunpack.c.0.s8 %v758
  %v760 = vperm.slane %v754, %v759
  %v762 = vunpack.c.l.s4 1934713408
  %v763 = vunpack.c.0.s8 %v762
  %v764 = vperm.slane %v756, %v763
  %v765 = vrot.slane %v752, 4
  %v766 = vsel %vm193, %v765, %v740
  %v767 = vrot.slane %v740, 4
  %v768 = vsel %vm193, %v752, %v767
  %v770 = vunpack.c.l.s4 1934713408
  %v771 = vunpack.c.0.s8 %v770
  %v772 = vperm.slane %v766, %v771
  %v774 = vunpack.c.l.s4 1934713408
  %v775 = vunpack.c.0.s8 %v774
  %v776 = vperm.slane %v768, %v775
  %v777 = vrot.slane %v760, 4
  %v778 = vsel %vm193, 0.0, %v777
  %v779 = vrot.slane %v764, 4
  %v780 = vsel %vm193, 0.0, %v779
  %v781 = vrot.slane %v772, 4
  %v782 = vsel %vm193, 0.0, %v781
  %v783 = vrot.slane %v776, 4
  %v784 = vsel %vm193, 0.0, %v783
  %v785 = vsel %vm193, %v723, %v704
  %v787 = vunpack.c.l.s4 1983009808
  %v788 = vunpack.c.0.s8 %v787
  %v789 = vperm.slane %v785, %v788
  %v790 = vrot.slane %v724, 4
  %v791 = vsel %vm193, %v790, %v722
  %v793 = vunpack.c.l.s4 1983009808
  %v794 = vunpack.c.0.s8 %v793
  %v795 = vperm.slane %v791, %v794
  %v796 = vsel %vm193, %v727, %v716
  %v798 = vunpack.c.l.s4 1983009808
  %v799 = vunpack.c.0.s8 %v798
  %v800 = vperm.slane %v796, %v799
  %v801 = vrot.slane %v728, 4
  %v802 = vsel %vm193, %v801, %v726
  %v804 = vunpack.c.l.s4 1983009808
  %v805 = vunpack.c.0.s8 %v804
  %v806 = vperm.slane %v802, %v805
  %v807 = vrot.slane %v795, 4
  %v808 = vsel %vm193, %v807, %v789
  %v809 = vrot.slane %v789, 4
  %v810 = vsel %vm193, %v795, %v809
  %v812 = vunpack.c.l.s4 1934713408
  %v813 = vunpack.c.0.s8 %v812
  %v814 = vperm.slane %v808, %v813
  %v816 = vunpack.c.l.s4 1934713408
  %v817 = vunpack.c.0.s8 %v816
  %v818 = vperm.slane %v810, %v817
  %v819 = vrot.slane %v806, 4
  %v820 = vsel %vm193, %v819, %v800
  %v821 = vrot.slane %v800, 4
  %v822 = vsel %vm193, %v806, %v821
  %v824 = vunpack.c.l.s4 1934713408
  %v825 = vunpack.c.0.s8 %v824
  %v826 = vperm.slane %v820, %v825
  %v828 = vunpack.c.l.s4 1934713408
  %v829 = vunpack.c.0.s8 %v828
  %v830 = vperm.slane %v822, %v829
  %v831 = vrot.slane %v826, 4
  %v832 = vsel %vm193, %v831, %v814
  %v833 = vrot.slane %v814, 4
  %v834 = vsel %vm193, %v826, %v833
  %v835 = vrot.slane %v830, 4
  %v836 = vsel %vm193, %v835, %v818
  %v837 = vrot.slane %v818, 4
  %v838 = vsel %vm193, %v830, %v837
  %v839 = vsel %vm193, %v779, %v760
  %v841 = vunpack.c.l.s4 1983009808
  %v842 = vunpack.c.0.s8 %v841
  %v843 = vperm.slane %v839, %v842
  %v844 = vrot.slane %v780, 4
  %v845 = vsel %vm193, %v844, %v778
  %v847 = vunpack.c.l.s4 1983009808
  %v848 = vunpack.c.0.s8 %v847
  %v849 = vperm.slane %v845, %v848
  %v850 = vsel %vm193, %v783, %v772
  %v852 = vunpack.c.l.s4 1983009808
  %v853 = vunpack.c.0.s8 %v852
  %v854 = vperm.slane %v850, %v853
  %v855 = vrot.slane %v784, 4
  %v856 = vsel %vm193, %v855, %v782
  %v858 = vunpack.c.l.s4 1983009808
  %v859 = vunpack.c.0.s8 %v858
  %v860 = vperm.slane %v856, %v859
  %v861 = vrot.slane %v849, 4
  %v862 = vsel %vm193, %v861, %v843
  %v863 = vrot.slane %v843, 4
  %v864 = vsel %vm193, %v849, %v863
  %v866 = vunpack.c.l.s4 1934713408
  %v867 = vunpack.c.0.s8 %v866
  %v868 = vperm.slane %v862, %v867
  %v870 = vunpack.c.l.s4 1934713408
  %v871 = vunpack.c.0.s8 %v870
  %v872 = vperm.slane %v864, %v871
  %v873 = vrot.slane %v860, 4
  %v874 = vsel %vm193, %v873, %v854
  %v875 = vrot.slane %v854, 4
  %v876 = vsel %vm193, %v860, %v875
  %v878 = vunpack.c.l.s4 1934713408
  %v879 = vunpack.c.0.s8 %v878
  %v880 = vperm.slane %v874, %v879
  %v882 = vunpack.c.l.s4 1934713408
  %v883 = vunpack.c.0.s8 %v882
  %v884 = vperm.slane %v876, %v883
  %v885 = vrot.slane %v880, 4
  %v886 = vsel %vm193, %v885, %v868
  %v887 = vrot.slane %v868, 4
  %v888 = vsel %vm193, %v880, %v887
  %v889 = vrot.slane %v884, 4
  %v890 = vsel %vm193, %v889, %v872
  %v891 = vrot.slane %v872, 4
  %v892 = vsel %vm193, %v884, %v891
  %vm893 = vcmask 130048
  %v895 = vsel %vm893, %v352, 0
  %v898 = vsel %vm893, %v592, 0
  %900 = vmatpush.xpose.msra.mxu0 0.0
  %901 = vmatpush.xpose.msra.mxu0 0.0
  %902 = vmatpush.xpose.msra.mxu0 0.0
  %903 = vmatpush.xpose.msra.mxu0 0.0
  %904 = vmatpush.xpose.msra.mxu0 0.0
  %905 = vmatpush.xpose.msra.mxu0 0.0
  %906 = vmatpush.xpose.msra.mxu0 0.0
  %907 = vmatpush.xpose.msra.mxu0 0.0
  %908 = vmatpush.xpose.msra.mxu0 0.0
  %909 = vmatpush.xpose.msra.mxu0 0.0
  %910 = vmatpush.xpose.msra.mxu0 0.0
  %911 = vmatpush.xpose.msra.mxu0 0.0
  %912 = vmatpush.xpose.msra.mxu0 0.0
  %913 = vmatpush.xpose.msra.mxu0 0.0
  %914 = vmatpush.xpose.msra.mxu0 0.0
  %915 = vmatpush.xpose.msra.mxu0 %v898
  %916 = vmatmul.f32.gmra.mxu0 %v895
  %v917 = vpop.f32.mrf.mxu0
  %v918 = vadd.f32 0.0, %v917
  %919 = vdwg.mxu0
  %v921 = vsel %vm893, %v354, 0
  %v924 = vsel %vm893, %v594, 0
  %926 = vmatpush.xpose.msra.mxu0 0.0
  %927 = vmatpush.xpose.msra.mxu0 0.0
  %928 = vmatpush.xpose.msra.mxu0 0.0
  %929 = vmatpush.xpose.msra.mxu0 0.0
  %930 = vmatpush.xpose.msra.mxu0 0.0
  %931 = vmatpush.xpose.msra.mxu0 0.0
  %932 = vmatpush.xpose.msra.mxu0 0.0
  %933 = vmatpush.xpose.msra.mxu0 0.0
  %934 = vmatpush.xpose.msra.mxu0 0.0
  %935 = vmatpush.xpose.msra.mxu0 0.0
  %936 = vmatpush.xpose.msra.mxu0 0.0
  %937 = vmatpush.xpose.msra.mxu0 0.0
  %938 = vmatpush.xpose.msra.mxu0 0.0
  %939 = vmatpush.xpose.msra.mxu0 0.0
  %940 = vmatpush.xpose.msra.mxu0 0.0
  %941 = vmatpush.xpose.msra.mxu0 %v924
  %942 = vmatmul.f32.gmra.mxu0 %v921
  %v943 = vpop.f32.mrf.mxu0
  %v944 = vadd.f32 0.0, %v943
  %945 = vdwg.mxu0
  %v947 = vsel %vm893, %v356, 0
  %v950 = vsel %vm893, %v596, 0
  %952 = vmatpush.xpose.msra.mxu0 0.0
  %953 = vmatpush.xpose.msra.mxu0 0.0
  %954 = vmatpush.xpose.msra.mxu0 0.0
  %955 = vmatpush.xpose.msra.mxu0 0.0
  %956 = vmatpush.xpose.msra.mxu0 0.0
  %957 = vmatpush.xpose.msra.mxu0 0.0
  %958 = vmatpush.xpose.msra.mxu0 0.0
  %959 = vmatpush.xpose.msra.mxu0 0.0
  %960 = vmatpush.xpose.msra.mxu0 0.0
  %961 = vmatpush.xpose.msra.mxu0 0.0
  %962 = vmatpush.xpose.msra.mxu0 0.0
  %963 = vmatpush.xpose.msra.mxu0 0.0
  %964 = vmatpush.xpose.msra.mxu0 0.0
  %965 = vmatpush.xpose.msra.mxu0 0.0
  %966 = vmatpush.xpose.msra.mxu0 0.0
  %967 = vmatpush.xpose.msra.mxu0 %v950
  %968 = vmatmul.f32.gmra.mxu0 %v947
  %v969 = vpop.f32.mrf.mxu0
  %v970 = vadd.f32 0.0, %v969
  %971 = vdwg.mxu0
  %v973 = vsel %vm893, %v358, 0
  %v976 = vsel %vm893, %v598, 0
  %978 = vmatpush.xpose.msra.mxu0 0.0
  %979 = vmatpush.xpose.msra.mxu0 0.0
  %980 = vmatpush.xpose.msra.mxu0 0.0
  %981 = vmatpush.xpose.msra.mxu0 0.0
  %982 = vmatpush.xpose.msra.mxu0 0.0
  %983 = vmatpush.xpose.msra.mxu0 0.0
  %984 = vmatpush.xpose.msra.mxu0 0.0
  %985 = vmatpush.xpose.msra.mxu0 0.0
  %986 = vmatpush.xpose.msra.mxu0 0.0
  %987 = vmatpush.xpose.msra.mxu0 0.0
  %988 = vmatpush.xpose.msra.mxu0 0.0
  %989 = vmatpush.xpose.msra.mxu0 0.0
  %990 = vmatpush.xpose.msra.mxu0 0.0
  %991 = vmatpush.xpose.msra.mxu0 0.0
  %992 = vmatpush.xpose.msra.mxu0 0.0
  %993 = vmatpush.xpose.msra.mxu0 %v976
  %994 = vmatmul.f32.gmra.mxu0 %v973
  %v995 = vpop.f32.mrf.mxu0
  %v996 = vadd.f32 0.0, %v995
  %997 = vdwg.mxu0
  %v999 = vsel %vm893, %v406, 0
  %v1002 = vsel %vm893, %v646, 0
  %1004 = vmatpush.xpose.msra.mxu0 0.0
  %1005 = vmatpush.xpose.msra.mxu0 0.0
  %1006 = vmatpush.xpose.msra.mxu0 0.0
  %1007 = vmatpush.xpose.msra.mxu0 0.0
  %1008 = vmatpush.xpose.msra.mxu0 0.0
  %1009 = vmatpush.xpose.msra.mxu0 0.0
  %1010 = vmatpush.xpose.msra.mxu0 0.0
  %1011 = vmatpush.xpose.msra.mxu0 0.0
  %1012 = vmatpush.xpose.msra.mxu0 0.0
  %1013 = vmatpush.xpose.msra.mxu0 0.0
  %1014 = vmatpush.xpose.msra.mxu0 0.0
  %1015 = vmatpush.xpose.msra.mxu0 0.0
  %1016 = vmatpush.xpose.msra.mxu0 0.0
  %1017 = vmatpush.xpose.msra.mxu0 0.0
  %1018 = vmatpush.xpose.msra.mxu0 0.0
  %1019 = vmatpush.xpose.msra.mxu0 %v1002
  %1020 = vmatmul.f32.gmra.mxu0 %v999
  %v1021 = vpop.f32.mrf.mxu0
  %v1022 = vadd.f32 0.0, %v1021
  %1023 = vdwg.mxu0
  %v1025 = vsel %vm893, %v408, 0
  %v1028 = vsel %vm893, %v648, 0
  %1030 = vmatpush.xpose.msra.mxu0 0.0
  %1031 = vmatpush.xpose.msra.mxu0 0.0
  %1032 = vmatpush.xpose.msra.mxu0 0.0
  %1033 = vmatpush.xpose.msra.mxu0 0.0
  %1034 = vmatpush.xpose.msra.mxu0 0.0
  %1035 = vmatpush.xpose.msra.mxu0 0.0
  %1036 = vmatpush.xpose.msra.mxu0 0.0
  %1037 = vmatpush.xpose.msra.mxu0 0.0
  %1038 = vmatpush.xpose.msra.mxu0 0.0
  %1039 = vmatpush.xpose.msra.mxu0 0.0
  %1040 = vmatpush.xpose.msra.mxu0 0.0
  %1041 = vmatpush.xpose.msra.mxu0 0.0
  %1042 = vmatpush.xpose.msra.mxu0 0.0
  %1043 = vmatpush.xpose.msra.mxu0 0.0
  %1044 = vmatpush.xpose.msra.mxu0 0.0
  %1045 = vmatpush.xpose.msra.mxu0 %v1028
  %1046 = vmatmul.f32.gmra.mxu0 %v1025
  %v1047 = vpop.f32.mrf.mxu0
  %v1048 = vadd.f32 0.0, %v1047
  %1049 = vdwg.mxu0
  %v1051 = vsel %vm893, %v410, 0
  %v1054 = vsel %vm893, %v650, 0
  %1056 = vmatpush.xpose.msra.mxu0 0.0
  %1057 = vmatpush.xpose.msra.mxu0 0.0
  %1058 = vmatpush.xpose.msra.mxu0 0.0
  %1059 = vmatpush.xpose.msra.mxu0 0.0
  %1060 = vmatpush.xpose.msra.mxu0 0.0
  %1061 = vmatpush.xpose.msra.mxu0 0.0
  %1062 = vmatpush.xpose.msra.mxu0 0.0
  %1063 = vmatpush.xpose.msra.mxu0 0.0
  %1064 = vmatpush.xpose.msra.mxu0 0.0
  %1065 = vmatpush.xpose.msra.mxu0 0.0
  %1066 = vmatpush.xpose.msra.mxu0 0.0
  %1067 = vmatpush.xpose.msra.mxu0 0.0
  %1068 = vmatpush.xpose.msra.mxu0 0.0
  %1069 = vmatpush.xpose.msra.mxu0 0.0
  %1070 = vmatpush.xpose.msra.mxu0 0.0
  %1071 = vmatpush.xpose.msra.mxu0 %v1054
  %1072 = vmatmul.f32.gmra.mxu0 %v1051
  %v1073 = vpop.f32.mrf.mxu0
  %v1074 = vadd.f32 0.0, %v1073
  %1075 = vdwg.mxu0
  %v1077 = vsel %vm893, %v412, 0
  %v1080 = vsel %vm893, %v652, 0
  %1082 = vmatpush.xpose.msra.mxu0 0.0
  %1083 = vmatpush.xpose.msra.mxu0 0.0
  %1084 = vmatpush.xpose.msra.mxu0 0.0
  %1085 = vmatpush.xpose.msra.mxu0 0.0
  %1086 = vmatpush.xpose.msra.mxu0 0.0
  %1087 = vmatpush.xpose.msra.mxu0 0.0
  %1088 = vmatpush.xpose.msra.mxu0 0.0
  %1089 = vmatpush.xpose.msra.mxu0 0.0
  %1090 = vmatpush.xpose.msra.mxu0 0.0
  %1091 = vmatpush.xpose.msra.mxu0 0.0
  %1092 = vmatpush.xpose.msra.mxu0 0.0
  %1093 = vmatpush.xpose.msra.mxu0 0.0
  %1094 = vmatpush.xpose.msra.mxu0 0.0
  %1095 = vmatpush.xpose.msra.mxu0 0.0
  %1096 = vmatpush.xpose.msra.mxu0 0.0
  %1097 = vmatpush.xpose.msra.mxu0 %v1080
  %1098 = vmatmul.f32.gmra.mxu0 %v1077
  %v1099 = vpop.f32.mrf.mxu0
  %v1100 = vadd.f32 0.0, %v1099
  %1101 = vdwg.mxu0
  %vm1102 = vcmask 64512
  %v1103 = vsel %vm1102, %v918, -inf
  %1104 = vmax.xlane.f32.xlu0 %v1103
  %v1105 = vpop.xlane.xlu0 %1104
  %v1106 = vsel %vm1102, %v944, -inf
  %1107 = vmax.xlane.f32.xlu0 %v1106
  %v1108 = vpop.xlane.xlu0 %1107
  %v1109 = vsel %vm1102, %v970, -inf
  %1110 = vmax.xlane.f32.xlu0 %v1109
  %v1111 = vpop.xlane.xlu0 %1110
  %v1112 = vsel %vm1102, %v996, -inf
  %1113 = vmax.xlane.f32.xlu0 %v1112
  %v1114 = vpop.xlane.xlu0 %1113
  %v1115 = vsel %vm1102, %v1022, -inf
  %1116 = vmax.xlane.f32.xlu0 %v1115
  %v1117 = vpop.xlane.xlu0 %1116
  %v1118 = vsel %vm1102, %v1048, -inf
  %1119 = vmax.xlane.f32.xlu0 %v1118
  %v1120 = vpop.xlane.xlu0 %1119
  %v1121 = vsel %vm1102, %v1074, -inf
  %1122 = vmax.xlane.f32.xlu0 %v1121
  %v1123 = vpop.xlane.xlu0 %1122
  %v1124 = vsel %vm1102, %v1100, -inf
  %1125 = vmax.xlane.f32.xlu0 %v1124
  %v1126 = vpop.xlane.xlu0 %1125
  %v1127 = vsub.f32 %v918, %v1105
  %v1128 = vsub.f32 %v944, %v1108
  %v1129 = vsub.f32 %v970, %v1111
  %v1130 = vsub.f32 %v996, %v1114
  %v1131 = vsub.f32 %v1022, %v1117
  %v1132 = vsub.f32 %v1048, %v1120
  %v1133 = vsub.f32 %v1074, %v1123
  %v1134 = vsub.f32 %v1100, %v1126
  %v1135 = vmul.f32 %v1127, 1.442695
  %v1136 = vpow.pop %v1135
  %v1137 = vmul.f32 %v1128, 1.442695
  %v1138 = vpow.pop %v1137
  %v1139 = vmul.f32 %v1129, 1.442695
  %v1140 = vpow.pop %v1139
  %v1141 = vmul.f32 %v1130, 1.442695
  %v1142 = vpow.pop %v1141
  %v1143 = vmul.f32 %v1131, 1.442695
  %v1144 = vpow.pop %v1143
  %v1145 = vmul.f32 %v1132, 1.442695
  %v1146 = vpow.pop %v1145
  %v1147 = vmul.f32 %v1133, 1.442695
  %v1148 = vpow.pop %v1147
  %v1149 = vmul.f32 %v1134, 1.442695
  %v1150 = vpow.pop %v1149
  %v1151 = vsel %vm1102, %v1136, 0.0
  %1152 = vadd.xlane.f32.xlu0 %v1151
  %v1153 = vpop.xlane.xlu0 %1152
  %v1154 = vsel %vm1102, %v1138, 0.0
  %1155 = vadd.xlane.f32.xlu0 %v1154
  %v1156 = vpop.xlane.xlu0 %1155
  %v1157 = vsel %vm1102, %v1140, 0.0
  %1158 = vadd.xlane.f32.xlu0 %v1157
  %v1159 = vpop.xlane.xlu0 %1158
  %v1160 = vsel %vm1102, %v1142, 0.0
  %1161 = vadd.xlane.f32.xlu0 %v1160
  %v1162 = vpop.xlane.xlu0 %1161
  %v1163 = vsel %vm1102, %v1144, 0.0
  %1164 = vadd.xlane.f32.xlu0 %v1163
  %v1165 = vpop.xlane.xlu0 %1164
  %v1166 = vsel %vm1102, %v1146, 0.0
  %1167 = vadd.xlane.f32.xlu0 %v1166
  %v1168 = vpop.xlane.xlu0 %1167
  %v1169 = vsel %vm1102, %v1148, 0.0
  %1170 = vadd.xlane.f32.xlu0 %v1169
  %v1171 = vpop.xlane.xlu0 %1170
  %v1172 = vsel %vm1102, %v1150, 0.0
  %1173 = vadd.xlane.f32.xlu0 %v1172
  %v1174 = vpop.xlane.xlu0 %1173
  %v1175 = vrcp.pop %v1153
  %v1176 = vrcp.pop %v1156
  %v1177 = vrcp.pop %v1159
  %v1178 = vrcp.pop %v1162
  %v1179 = vrcp.pop %v1165
  %v1180 = vrcp.pop %v1168
  %v1181 = vrcp.pop %v1171
  %v1182 = vrcp.pop %v1174
  %v1183 = vmul.f32 %v1136, %v1175
  %v1184 = vmul.f32 %v1138, %v1176
  %v1185 = vmul.f32 %v1140, %v1177
  %v1186 = vmul.f32 %v1142, %v1178
  %v1187 = vmul.f32 %v1144, %v1179
  %v1188 = vmul.f32 %v1146, %v1180
  %v1189 = vmul.f32 %v1148, %v1181
  %v1190 = vmul.f32 %v1150, %v1182
  %v1192 = vsel %vm1102, %v1183, 0
  %1194 = vmatpush.msra.mxu0 0.0
  %1195 = vmatpush.msra.mxu0 0.0
  %1196 = vmatpush.msra.mxu0 0.0
  %1197 = vmatpush.msra.mxu0 0.0
  %1198 = vmatpush.msra.mxu0 0.0
  %1199 = vmatpush.msra.mxu0 0.0
  %1200 = vmatpush.msra.mxu0 0.0
  %1201 = vmatpush.msra.mxu0 0.0
  %1202 = vmatpush.msra.mxu0 0.0
  %1203 = vmatpush.msra.mxu0 0.0
  %1204 = vmatpush.msra.mxu0 0.0
  %1205 = vmatpush.msra.mxu0 0.0
  %1206 = vmatpush.msra.mxu0 0.0
  %1207 = vmatpush.msra.mxu0 0.0
  %1208 = vmatpush.msra.mxu0 0.0
  %1209 = vmatpush.msra.mxu0 %v832
  %1210 = vmatmul.f32.gmra.mxu0 %v1192
  %v1211 = vpop.f32.mrf.mxu0
  %v1212 = vadd.f32 0.0, %v1211
  %1213 = vdwg.mxu0
  %v1215 = vsel %vm1102, %v1184, 0
  %1217 = vmatpush.msra.mxu0 0.0
  %1218 = vmatpush.msra.mxu0 0.0
  %1219 = vmatpush.msra.mxu0 0.0
  %1220 = vmatpush.msra.mxu0 0.0
  %1221 = vmatpush.msra.mxu0 0.0
  %1222 = vmatpush.msra.mxu0 0.0
  %1223 = vmatpush.msra.mxu0 0.0
  %1224 = vmatpush.msra.mxu0 0.0
  %1225 = vmatpush.msra.mxu0 0.0
  %1226 = vmatpush.msra.mxu0 0.0
  %1227 = vmatpush.msra.mxu0 0.0
  %1228 = vmatpush.msra.mxu0 0.0
  %1229 = vmatpush.msra.mxu0 0.0
  %1230 = vmatpush.msra.mxu0 0.0
  %1231 = vmatpush.msra.mxu0 0.0
  %1232 = vmatpush.msra.mxu0 %v834
  %1233 = vmatmul.f32.gmra.mxu0 %v1215
  %v1234 = vpop.f32.mrf.mxu0
  %v1235 = vadd.f32 0.0, %v1234
  %1236 = vdwg.mxu0
  %v1238 = vsel %vm1102, %v1185, 0
  %1240 = vmatpush.msra.mxu0 0.0
  %1241 = vmatpush.msra.mxu0 0.0
  %1242 = vmatpush.msra.mxu0 0.0
  %1243 = vmatpush.msra.mxu0 0.0
  %1244 = vmatpush.msra.mxu0 0.0
  %1245 = vmatpush.msra.mxu0 0.0
  %1246 = vmatpush.msra.mxu0 0.0
  %1247 = vmatpush.msra.mxu0 0.0
  %1248 = vmatpush.msra.mxu0 0.0
  %1249 = vmatpush.msra.mxu0 0.0
  %1250 = vmatpush.msra.mxu0 0.0
  %1251 = vmatpush.msra.mxu0 0.0
  %1252 = vmatpush.msra.mxu0 0.0
  %1253 = vmatpush.msra.mxu0 0.0
  %1254 = vmatpush.msra.mxu0 0.0
  %1255 = vmatpush.msra.mxu0 %v836
  %1256 = vmatmul.f32.gmra.mxu0 %v1238
  %v1257 = vpop.f32.mrf.mxu0
  %v1258 = vadd.f32 0.0, %v1257
  %1259 = vdwg.mxu0
  %v1261 = vsel %vm1102, %v1186, 0
  %1263 = vmatpush.msra.mxu0 0.0
  %1264 = vmatpush.msra.mxu0 0.0
  %1265 = vmatpush.msra.mxu0 0.0
  %1266 = vmatpush.msra.mxu0 0.0
  %1267 = vmatpush.msra.mxu0 0.0
  %1268 = vmatpush.msra.mxu0 0.0
  %1269 = vmatpush.msra.mxu0 0.0
  %1270 = vmatpush.msra.mxu0 0.0
  %1271 = vmatpush.msra.mxu0 0.0
  %1272 = vmatpush.msra.mxu0 0.0
  %1273 = vmatpush.msra.mxu0 0.0
  %1274 = vmatpush.msra.mxu0 0.0
  %1275 = vmatpush.msra.mxu0 0.0
  %1276 = vmatpush.msra.mxu0 0.0
  %1277 = vmatpush.msra.mxu0 0.0
  %1278 = vmatpush.msra.mxu0 %v838
  %1279 = vmatmul.f32.gmra.mxu0 %v1261
  %v1280 = vpop.f32.mrf.mxu0
  %v1281 = vadd.f32 0.0, %v1280
  %1282 = vdwg.mxu0
  %v1284 = vsel %vm1102, %v1187, 0
  %1286 = vmatpush.msra.mxu0 0.0
  %1287 = vmatpush.msra.mxu0 0.0
  %1288 = vmatpush.msra.mxu0 0.0
  %1289 = vmatpush.msra.mxu0 0.0
  %1290 = vmatpush.msra.mxu0 0.0
  %1291 = vmatpush.msra.mxu0 0.0
  %1292 = vmatpush.msra.mxu0 0.0
  %1293 = vmatpush.msra.mxu0 0.0
  %1294 = vmatpush.msra.mxu0 0.0
  %1295 = vmatpush.msra.mxu0 0.0
  %1296 = vmatpush.msra.mxu0 0.0
  %1297 = vmatpush.msra.mxu0 0.0
  %1298 = vmatpush.msra.mxu0 0.0
  %1299 = vmatpush.msra.mxu0 0.0
  %1300 = vmatpush.msra.mxu0 0.0
  %1301 = vmatpush.msra.mxu0 %v886
  %1302 = vmatmul.f32.gmra.mxu0 %v1284
  %v1303 = vpop.f32.mrf.mxu0
  %v1304 = vadd.f32 0.0, %v1303
  %1305 = vdwg.mxu0
  %v1307 = vsel %vm1102, %v1188, 0
  %1309 = vmatpush.msra.mxu0 0.0
  %1310 = vmatpush.msra.mxu0 0.0
  %1311 = vmatpush.msra.mxu0 0.0
  %1312 = vmatpush.msra.mxu0 0.0
  %1313 = vmatpush.msra.mxu0 0.0
  %1314 = vmatpush.msra.mxu0 0.0
  %1315 = vmatpush.msra.mxu0 0.0
  %1316 = vmatpush.msra.mxu0 0.0
  %1317 = vmatpush.msra.mxu0 0.0
  %1318 = vmatpush.msra.mxu0 0.0
  %1319 = vmatpush.msra.mxu0 0.0
  %1320 = vmatpush.msra.mxu0 0.0
  %1321 = vmatpush.msra.mxu0 0.0
  %1322 = vmatpush.msra.mxu0 0.0
  %1323 = vmatpush.msra.mxu0 0.0
  %1324 = vmatpush.msra.mxu0 %v888
  %1325 = vmatmul.f32.gmra.mxu0 %v1307
  %v1326 = vpop.f32.mrf.mxu0
  %v1327 = vadd.f32 0.0, %v1326
  %1328 = vdwg.mxu0
  %v1330 = vsel %vm1102, %v1189, 0
  %1332 = vmatpush.msra.mxu0 0.0
  %1333 = vmatpush.msra.mxu0 0.0
  %1334 = vmatpush.msra.mxu0 0.0
  %1335 = vmatpush.msra.mxu0 0.0
  %1336 = vmatpush.msra.mxu0 0.0
  %1337 = vmatpush.msra.mxu0 0.0
  %1338 = vmatpush.msra.mxu0 0.0
  %1339 = vmatpush.msra.mxu0 0.0
  %1340 = vmatpush.msra.mxu0 0.0
  %1341 = vmatpush.msra.mxu0 0.0
  %1342 = vmatpush.msra.mxu0 0.0
  %1343 = vmatpush.msra.mxu0 0.0
  %1344 = vmatpush.msra.mxu0 0.0
  %1345 = vmatpush.msra.mxu0 0.0
  %1346 = vmatpush.msra.mxu0 0.0
  %1347 = vmatpush.msra.mxu0 %v890
  %1348 = vmatmul.f32.gmra.mxu0 %v1330
  %v1349 = vpop.f32.mrf.mxu0
  %v1350 = vadd.f32 0.0, %v1349
  %1351 = vdwg.mxu0
  %v1353 = vsel %vm1102, %v1190, 0
  %1355 = vmatpush.msra.mxu0 0.0
  %1356 = vmatpush.msra.mxu0 0.0
  %1357 = vmatpush.msra.mxu0 0.0
  %1358 = vmatpush.msra.mxu0 0.0
  %1359 = vmatpush.msra.mxu0 0.0
  %1360 = vmatpush.msra.mxu0 0.0
  %1361 = vmatpush.msra.mxu0 0.0
  %1362 = vmatpush.msra.mxu0 0.0
  %1363 = vmatpush.msra.mxu0 0.0
  %1364 = vmatpush.msra.mxu0 0.0
  %1365 = vmatpush.msra.mxu0 0.0
  %1366 = vmatpush.msra.mxu0 0.0
  %1367 = vmatpush.msra.mxu0 0.0
  %1368 = vmatpush.msra.mxu0 0.0
  %1369 = vmatpush.msra.mxu0 0.0
  %1370 = vmatpush.msra.mxu0 %v892
  %1371 = vmatmul.f32.gmra.mxu0 %v1353
  %v1372 = vpop.f32.mrf.mxu0
  %v1373 = vadd.f32 0.0, %v1372
  %1374 = vdwg.mxu0
  %v1375 = vrot.slane %v1258, 4
  %v1376 = vsel %vm193, %v1375, %v1212
  %v1377 = vrot.slane %v1212, 4
  %v1378 = vsel %vm193, %v1258, %v1377
  %v1380 = vunpack.c.l.s4 1983009808
  %v1381 = vunpack.c.0.s8 %v1380
  %v1382 = vperm.slane %v1376, %v1381
  %v1384 = vunpack.c.l.s4 1983009808
  %v1385 = vunpack.c.0.s8 %v1384
  %v1386 = vperm.slane %v1378, %v1385
  %v1387 = vrot.slane %v1281, 4
  %v1388 = vsel %vm193, %v1387, %v1235
  %v1389 = vrot.slane %v1235, 4
  %v1390 = vsel %vm193, %v1281, %v1389
  %v1392 = vunpack.c.l.s4 1983009808
  %v1393 = vunpack.c.0.s8 %v1392
  %v1394 = vperm.slane %v1388, %v1393
  %v1396 = vunpack.c.l.s4 1983009808
  %v1397 = vunpack.c.0.s8 %v1396
  %v1398 = vperm.slane %v1390, %v1397
  %v1399 = vrot.slane %v1394, 4
  %v1400 = vsel %vm193, %v1399, %v1382
  %v1401 = vrot.slane %v1382, 4
  %v1402 = vsel %vm193, %v1394, %v1401
  %v1404 = vunpack.c.l.s4 1934713408
  %v1405 = vunpack.c.0.s8 %v1404
  %v1406 = vperm.slane %v1400, %v1405
  %v1408 = vunpack.c.l.s4 1934713408
  %v1409 = vunpack.c.0.s8 %v1408
  %v1410 = vperm.slane %v1402, %v1409
  %v1411 = vrot.slane %v1398, 4
  %v1412 = vsel %vm193, %v1411, %v1386
  %v1413 = vrot.slane %v1386, 4
  %v1414 = vsel %vm193, %v1398, %v1413
  %v1416 = vunpack.c.l.s4 1934713408
  %v1417 = vunpack.c.0.s8 %v1416
  %v1418 = vperm.slane %v1412, %v1417
  %v1420 = vunpack.c.l.s4 1934713408
  %v1421 = vunpack.c.0.s8 %v1420
  %v1422 = vperm.slane %v1414, %v1421
  %v1423 = vrot.slane %v1406, 4
  %v1424 = vsel %vm193, 0.0, %v1423
  %v1425 = vrot.slane %v1410, 4
  %v1426 = vsel %vm193, 0.0, %v1425
  %v1427 = vrot.slane %v1418, 4
  %v1428 = vsel %vm193, 0.0, %v1427
  %v1429 = vrot.slane %v1422, 4
  %v1430 = vsel %vm193, 0.0, %v1429
  %v1431 = vrot.slane %v1350, 4
  %v1432 = vsel %vm193, %v1431, %v1304
  %v1433 = vrot.slane %v1304, 4
  %v1434 = vsel %vm193, %v1350, %v1433
  %v1436 = vunpack.c.l.s4 1983009808
  %v1437 = vunpack.c.0.s8 %v1436
  %v1438 = vperm.slane %v1432, %v1437
  %v1440 = vunpack.c.l.s4 1983009808
  %v1441 = vunpack.c.0.s8 %v1440
  %v1442 = vperm.slane %v1434, %v1441
  %v1443 = vrot.slane %v1373, 4
  %v1444 = vsel %vm193, %v1443, %v1327
  %v1445 = vrot.slane %v1327, 4
  %v1446 = vsel %vm193, %v1373, %v1445
  %v1448 = vunpack.c.l.s4 1983009808
  %v1449 = vunpack.c.0.s8 %v1448
  %v1450 = vperm.slane %v1444, %v1449
  %v1452 = vunpack.c.l.s4 1983009808
  %v1453 = vunpack.c.0.s8 %v1452
  %v1454 = vperm.slane %v1446, %v1453
  %v1455 = vrot.slane %v1450, 4
  %v1456 = vsel %vm193, %v1455, %v1438
  %v1457 = vrot.slane %v1438, 4
  %v1458 = vsel %vm193, %v1450, %v1457
  %v1460 = vunpack.c.l.s4 1934713408
  %v1461 = vunpack.c.0.s8 %v1460
  %v1462 = vperm.slane %v1456, %v1461
  %v1464 = vunpack.c.l.s4 1934713408
  %v1465 = vunpack.c.0.s8 %v1464
  %v1466 = vperm.slane %v1458, %v1465
  %v1467 = vrot.slane %v1454, 4
  %v1468 = vsel %vm193, %v1467, %v1442
  %v1469 = vrot.slane %v1442, 4
  %v1470 = vsel %vm193, %v1454, %v1469
  %v1472 = vunpack.c.l.s4 1934713408
  %v1473 = vunpack.c.0.s8 %v1472
  %v1474 = vperm.slane %v1468, %v1473
  %v1476 = vunpack.c.l.s4 1934713408
  %v1477 = vunpack.c.0.s8 %v1476
  %v1478 = vperm.slane %v1470, %v1477
  %v1479 = vrot.slane %v1462, 4
  %v1480 = vsel %vm193, 0.0, %v1479
  %v1481 = vrot.slane %v1466, 4
  %v1482 = vsel %vm193, 0.0, %v1481
  %v1483 = vrot.slane %v1474, 4
  %v1484 = vsel %vm193, 0.0, %v1483
  %v1485 = vrot.slane %v1478, 4
  %v1486 = vsel %vm193, 0.0, %v1485
  %v1487 = vsel %vm193, %v1425, %v1406
  %v1489 = vunpack.c.l.s4 1983009808
  %v1490 = vunpack.c.0.s8 %v1489
  %v1491 = vperm.slane %v1487, %v1490
  %v1492 = vrot.slane %v1426, 4
  %v1493 = vsel %vm193, %v1492, %v1424
  %v1495 = vunpack.c.l.s4 1983009808
  %v1496 = vunpack.c.0.s8 %v1495
  %v1497 = vperm.slane %v1493, %v1496
  %v1498 = vsel %vm193, %v1429, %v1418
  %v1500 = vunpack.c.l.s4 1983009808
  %v1501 = vunpack.c.0.s8 %v1500
  %v1502 = vperm.slane %v1498, %v1501
  %v1503 = vrot.slane %v1430, 4
  %v1504 = vsel %vm193, %v1503, %v1428
  %v1506 = vunpack.c.l.s4 1983009808
  %v1507 = vunpack.c.0.s8 %v1506
  %v1508 = vperm.slane %v1504, %v1507
  %v1509 = vrot.slane %v1497, 4
  %v1510 = vsel %vm193, %v1509, %v1491
  %v1511 = vrot.slane %v1491, 4
  %v1512 = vsel %vm193, %v1497, %v1511
  %v1514 = vunpack.c.l.s4 1934713408
  %v1515 = vunpack.c.0.s8 %v1514
  %v1516 = vperm.slane %v1510, %v1515
  %v1518 = vunpack.c.l.s4 1934713408
  %v1519 = vunpack.c.0.s8 %v1518
  %v1520 = vperm.slane %v1512, %v1519
  %v1521 = vrot.slane %v1508, 4
  %v1522 = vsel %vm193, %v1521, %v1502
  %v1523 = vrot.slane %v1502, 4
  %v1524 = vsel %vm193, %v1508, %v1523
  %v1526 = vunpack.c.l.s4 1934713408
  %v1527 = vunpack.c.0.s8 %v1526
  %v1528 = vperm.slane %v1522, %v1527
  %v1530 = vunpack.c.l.s4 1934713408
  %v1531 = vunpack.c.0.s8 %v1530
  %v1532 = vperm.slane %v1524, %v1531
  %v1533 = vrot.slane %v1528, 4
  %v1534 = vsel %vm193, %v1533, %v1516
  %v1535 = vrot.slane %v1516, 4
  %v1536 = vsel %vm193, %v1528, %v1535
  %v1537 = vrot.slane %v1532, 4
  %v1538 = vsel %vm193, %v1537, %v1520
  %v1539 = vrot.slane %v1520, 4
  %v1540 = vsel %vm193, %v1532, %v1539
  %v1541 = vsel %vm193, %v1481, %v1462
  %v1543 = vunpack.c.l.s4 1983009808
  %v1544 = vunpack.c.0.s8 %v1543
  %v1545 = vperm.slane %v1541, %v1544
  %v1546 = vrot.slane %v1482, 4
  %v1547 = vsel %vm193, %v1546, %v1480
  %v1549 = vunpack.c.l.s4 1983009808
  %v1550 = vunpack.c.0.s8 %v1549
  %v1551 = vperm.slane %v1547, %v1550
  %v1552 = vsel %vm193, %v1485, %v1474
  %v1554 = vunpack.c.l.s4 1983009808
  %v1555 = vunpack.c.0.s8 %v1554
  %v1556 = vperm.slane %v1552, %v1555
  %v1557 = vrot.slane %v1486, 4
  %v1558 = vsel %vm193, %v1557, %v1484
  %v1560 = vunpack.c.l.s4 1983009808
  %v1561 = vunpack.c.0.s8 %v1560
  %v1562 = vperm.slane %v1558, %v1561
  %v1563 = vrot.slane %v1551, 4
  %v1564 = vsel %vm193, %v1563, %v1545
  %v1565 = vrot.slane %v1545, 4
  %v1566 = vsel %vm193, %v1551, %v1565
  %v1568 = vunpack.c.l.s4 1934713408
  %v1569 = vunpack.c.0.s8 %v1568
  %v1570 = vperm.slane %v1564, %v1569
  %v1572 = vunpack.c.l.s4 1934713408
  %v1573 = vunpack.c.0.s8 %v1572
  %v1574 = vperm.slane %v1566, %v1573
  %v1575 = vrot.slane %v1562, 4
  %v1576 = vsel %vm193, %v1575, %v1556
  %v1577 = vrot.slane %v1556, 4
  %v1578 = vsel %vm193, %v1562, %v1577
  %v1580 = vunpack.c.l.s4 1934713408
  %v1581 = vunpack.c.0.s8 %v1580
  %v1582 = vperm.slane %v1576, %v1581
  %v1584 = vunpack.c.l.s4 1934713408
  %v1585 = vunpack.c.0.s8 %v1584
  %v1586 = vperm.slane %v1578, %v1585
  %v1587 = vrot.slane %v1582, 4
  %v1588 = vsel %vm193, %v1587, %v1570
  %v1589 = vrot.slane %v1570, 4
  %v1590 = vsel %vm193, %v1582, %v1589
  %v1591 = vrot.slane %v1586, 4
  %v1592 = vsel %vm193, %v1591, %v1574
  %v1593 = vrot.slane %v1574, 4
  %v1594 = vsel %vm193, %v1586, %v1593
  %1597 = vrot.lane.b32.xlu0 %v1536, 16
  %v1598 = vpop.permute.xlu0 %1597
  %1599 = vrot.lane.b32.xlu0 %v1590, 16
  %v1600 = vpop.permute.xlu0 %1599
  %1605 = vrot.lane.b32.xlu0 %v1538, 32
  %v1606 = vpop.permute.xlu0 %1605
  %1607 = vrot.lane.b32.xlu0 %v1592, 32
  %v1608 = vpop.permute.xlu0 %1607
  %1613 = vrot.lane.b32.xlu0 %v1540, 48
  %v1614 = vpop.permute.xlu0 %1613
  %1615 = vrot.lane.b32.xlu0 %v1594, 48
  %v1616 = vpop.permute.xlu0 %1615
  %v1619 = vsel %vm893, %v1534, %v1598
  %v1620 = vsel %vm893, %v1588, %v1600
  %v1621 = vsel %vm90, %v1619, %v1606
  %v1622 = vsel %vm90, %v1620, %v1608
  %vm1623 = vcmask 392192
  %v1624 = vsel %vm1623, %v1621, %v1614
  %v1625 = vsel %vm1623, %v1622, %v1616
  %vm1626 = vcmask 523264
  %v1628 = vsel %vm1626, %v1624, 0
  %v1631 = vsel %vm1626, %v1625, 0
  %1633 = vmatpush.msra.mxu0 0.0
  %1634 = vmatpush.msra.mxu0 0.0
  %1635 = vmatpush.msra.mxu0 0.0
  %1636 = vmatpush.msra.mxu0 0.0
  %1637 = vmatpush.msra.mxu0 0.0
  %1638 = vmatpush.msra.mxu0 0.0
  %1639 = vmatpush.msra.mxu0 0.0
  %1640 = vmatpush.msra.mxu0 0.0
  %1641 = vmatpush.msra.mxu0 %v73
  %1642 = vmatpush.msra.mxu0 %v72
  %1643 = vmatpush.msra.mxu0 %v71
  %1644 = vmatpush.msra.mxu0 %v70
  %1645 = vmatpush.msra.mxu0 %v69
  %1646 = vmatpush.msra.mxu0 %v68
  %1647 = vmatpush.msra.mxu0 %v67
  %1648 = vmatpush.msra.mxu0 %v66
  %1649 = vmatmul.f32.gmra.mxu0 %v1628
  %v1650 = vpop.f32.mrf.mxu0
  %v1651 = vadd.f32 0.0, %v1650
  %1652 = vmatmul.f32.gmra.mxu0 %v1631
  %v1653 = vpop.f32.mrf.mxu0
  %v1654 = vadd.f32 0.0, %v1653
  %1655 = vdwg.mxu0
  %v1656 = vadd.f32 %v38, %v1651
  %v1657 = vadd.f32 %v39, %v1654
  %v1658 = vsel %vm90, %v1656, 0.0
  %1659 = vadd.xlane.f32.xlu0 %v1658
  %v1660 = vpop.xlane.xlu0 %1659
  %v1661 = vsel %vm90, %v1657, 0.0
  %1662 = vadd.xlane.f32.xlu0 %v1661
  %v1663 = vpop.xlane.xlu0 %1662
  %v1664 = vrcp.pop 32.0
  %v1665 = vmul.f32 32.0, %v1664
  %v1666 = vsub.f32 1.0, %v1665
  %v1667 = vmul.f32 %v1664, %v1666
  %v1668 = vadd.f32 %v1664, %v1667
  %vm1669 = vweird.f32 %v1664
  %v1670 = vsel %vm1669, %v1664, %v1668
  %v1671 = vmul.f32 %v1660, %v1670
  %v1672 = vmul.f32 %v1663, %v1670
  %v1673 = vsub.f32 %v1656, %v1671
  %v1674 = vsub.f32 %v1657, %v1672
  %v1675 = vmul.f32 %v1673, %v1673
  %v1676 = vmul.f32 %v1674, %v1674
  %v1677 = vsel %vm90, %v1675, 0.0
  %1678 = vadd.xlane.f32.xlu0 %v1677
  %v1679 = vpop.xlane.xlu0 %1678
  %v1680 = vsel %vm90, %v1676, 0.0
  %1681 = vadd.xlane.f32.xlu0 %v1680
  %v1682 = vpop.xlane.xlu0 %1681
  %v1683 = vmul.f32 %v1679, %v1670
  %v1684 = vmul.f32 %v1682, %v1670
  %v1685 = vadd.f32 %v1683, 1e-05
  %v1686 = vadd.f32 %v1684, 1e-05
  %v1687 = vrsqrt.pop %v1685
  %v1688 = vmul.f32 %v1687, %v1685
  %v1689 = vmul.f32 %v1688, %v1687
  %v1690 = vmul.f32 0.5, %v1689
  %v1691 = vsub.f32 1.5, %v1690
  %v1692 = vmul.f32 %v1687, %v1691
  %vm1693 = vweird.f32 %v1685
  %vm1694 = vweird.f32 %v1687
  %vm1695 = vmor %vm1693, %vm1694
  %v1696 = vsel %vm1695, %v1687, %v1692
  %v1697 = vrsqrt.pop %v1686
  %v1698 = vmul.f32 %v1697, %v1686
  %v1699 = vmul.f32 %v1698, %v1697
  %v1700 = vmul.f32 0.5, %v1699
  %v1701 = vsub.f32 1.5, %v1700
  %v1702 = vmul.f32 %v1697, %v1701
  %vm1703 = vweird.f32 %v1686
  %vm1704 = vweird.f32 %v1697
  %vm1705 = vmor %vm1703, %vm1704
  %v1706 = vsel %vm1705, %v1697, %v1702
  %v1707 = vmul.f32 %v1673, %v1696
  %v1708 = vmul.f32 %v1674, %v1706
  %v1709 = vperm.slane %v86, 2
  %v1710 = vmul.f32 %v1707, %v1709
  %v1711 = vmul.f32 %v1708, %v1709
  %v1712 = vperm.slane %v86, 3
  %v1713 = vadd.f32 %v1710, %v1712
  %v1714 = vadd.f32 %v1711, %v1712
  %v1716 = vsel %vm90, %v50, 0
  %v1719 = vsel %vm90, %v51, 0
  %v1722 = vsel %vm90, %v52, 0
  %v1725 = vsel %vm90, %v53, 0
  %1727 = vmatpush.msra.mxu0 0.0
  %1728 = vmatpush.msra.mxu0 0.0
  %1729 = vmatpush.msra.mxu0 0.0
  %1730 = vmatpush.msra.mxu0 0.0
  %1731 = vmatpush.msra.mxu0 0.0
  %1732 = vmatpush.msra.mxu0 0.0
  %1733 = vmatpush.msra.mxu0 0.0
  %1734 = vmatpush.msra.mxu0 0.0
  %1735 = vmatpush.msra.mxu0 0.0
  %1736 = vmatpush.msra.mxu0 0.0
  %1737 = vmatpush.msra.mxu0 0.0
  %1738 = vmatpush.msra.mxu0 0.0
  %1739 = vmatpush.msra.mxu0 %v61
  %1740 = vmatpush.msra.mxu0 %v60
  %1741 = vmatpush.msra.mxu0 %v59
  %1742 = vmatpush.msra.mxu0 %v58
  %1743 = vmatmul.f32.gmra.mxu0 %v1716
  %v1744 = vpop.f32.mrf.mxu0
  %v1745 = vadd.f32 0.0, %v1744
  %1746 = vmatmul.f32.gmra.mxu0 %v1719
  %v1747 = vpop.f32.mrf.mxu0
  %v1748 = vadd.f32 0.0, %v1747
  %1749 = vmatmul.f32.gmra.mxu0 %v1722
  %v1750 = vpop.f32.mrf.mxu0
  %v1751 = vadd.f32 0.0, %v1750
  %1752 = vmatmul.f32.gmra.mxu0 %v1725
  %v1753 = vpop.f32.mrf.mxu0
  %v1754 = vadd.f32 0.0, %v1753
  %1755 = vdwg.mxu0
  %v1757 = vsel %vm90, %v42, 0
  %v1760 = vsel %vm90, %v43, 0
  %v1763 = vsel %vm90, %v44, 0
  %v1766 = vsel %vm90, %v45, 0
  %1768 = vmatpush.msra.mxu0 0.0
  %1769 = vmatpush.msra.mxu0 0.0
  %1770 = vmatpush.msra.mxu0 0.0
  %1771 = vmatpush.msra.mxu0 0.0
  %1772 = vmatpush.msra.mxu0 0.0
  %1773 = vmatpush.msra.mxu0 0.0
  %1774 = vmatpush.msra.mxu0 0.0
  %1775 = vmatpush.msra.mxu0 0.0
  %1776 = vmatpush.msra.mxu0 0.0
  %1777 = vmatpush.msra.mxu0 0.0
  %1778 = vmatpush.msra.mxu0 0.0
  %1779 = vmatpush.msra.mxu0 0.0
  %1780 = vmatpush.msra.mxu0 %v65
  %1781 = vmatpush.msra.mxu0 %v64
  %1782 = vmatpush.msra.mxu0 %v63
  %1783 = vmatpush.msra.mxu0 %v62
  %1784 = vmatmul.f32.gmra.mxu0 %v1757
  %v1785 = vpop.f32.mrf.mxu0
  %v1786 = vadd.f32 0.0, %v1785
  %1787 = vmatmul.f32.gmra.mxu0 %v1760
  %v1788 = vpop.f32.mrf.mxu0
  %v1789 = vadd.f32 0.0, %v1788
  %1790 = vmatmul.f32.gmra.mxu0 %v1763
  %v1791 = vpop.f32.mrf.mxu0
  %v1792 = vadd.f32 0.0, %v1791
  %1793 = vmatmul.f32.gmra.mxu0 %v1766
  %v1794 = vpop.f32.mrf.mxu0
  %v1795 = vadd.f32 0.0, %v1794
  %1796 = vdwg.mxu0
  %1801 = vrot.lane.b32.xlu0 %v1745, 112
  %v1802 = vpop.permute.xlu0 %1801
  %1803 = vrot.lane.b32.xlu0 %v1748, 112
  %v1804 = vpop.permute.xlu0 %1803
  %1805 = vrot.lane.b32.xlu0 %v1751, 112
  %v1806 = vpop.permute.xlu0 %1805
  %1807 = vrot.lane.b32.xlu0 %v1754, 112
  %v1808 = vpop.permute.xlu0 %1807
  %1813 = vrot.lane.b32.xlu0 %v1745, 96
  %v1814 = vpop.permute.xlu0 %1813
  %1815 = vrot.lane.b32.xlu0 %v1748, 96
  %v1816 = vpop.permute.xlu0 %1815
  %1817 = vrot.lane.b32.xlu0 %v1751, 96
  %v1818 = vpop.permute.xlu0 %1817
  %1819 = vrot.lane.b32.xlu0 %v1754, 96
  %v1820 = vpop.permute.xlu0 %1819
  %1825 = vrot.lane.b32.xlu0 %v1745, 80
  %v1826 = vpop.permute.xlu0 %1825
  %1827 = vrot.lane.b32.xlu0 %v1748, 80
  %v1828 = vpop.permute.xlu0 %1827
  %1829 = vrot.lane.b32.xlu0 %v1751, 80
  %v1830 = vpop.permute.xlu0 %1829
  %1831 = vrot.lane.b32.xlu0 %v1754, 80
  %v1832 = vpop.permute.xlu0 %1831
  %v1837 = vrot.slane %v1814, 4
  %v1838 = vsel %vm193, %v1837, %v1745
  %v1839 = vrot.slane %v1745, 4
  %v1840 = vsel %vm193, %v1814, %v1839
  %v1842 = vunpack.c.l.s4 1983009808
  %v1843 = vunpack.c.0.s8 %v1842
  %v1844 = vperm.slane %v1838, %v1843
  %v1846 = vunpack.c.l.s4 1983009808
  %v1847 = vunpack.c.0.s8 %v1846
  %v1848 = vperm.slane %v1840, %v1847
  %v1849 = vrot.slane %v1826, 4
  %v1850 = vsel %vm193, %v1849, %v1802
  %v1851 = vrot.slane %v1802, 4
  %v1852 = vsel %vm193, %v1826, %v1851
  %v1854 = vunpack.c.l.s4 1983009808
  %v1855 = vunpack.c.0.s8 %v1854
  %v1856 = vperm.slane %v1850, %v1855
  %v1858 = vunpack.c.l.s4 1983009808
  %v1859 = vunpack.c.0.s8 %v1858
  %v1860 = vperm.slane %v1852, %v1859
  %v1861 = vrot.slane %v1856, 4
  %v1862 = vsel %vm193, %v1861, %v1844
  %v1863 = vrot.slane %v1844, 4
  %v1864 = vsel %vm193, %v1856, %v1863
  %v1866 = vunpack.c.l.s4 1934713408
  %v1867 = vunpack.c.0.s8 %v1866
  %v1868 = vperm.slane %v1862, %v1867
  %v1870 = vunpack.c.l.s4 1934713408
  %v1871 = vunpack.c.0.s8 %v1870
  %v1872 = vperm.slane %v1864, %v1871
  %v1873 = vrot.slane %v1860, 4
  %v1874 = vsel %vm193, %v1873, %v1848
  %v1875 = vrot.slane %v1848, 4
  %v1876 = vsel %vm193, %v1860, %v1875
  %v1878 = vunpack.c.l.s4 1934713408
  %v1879 = vunpack.c.0.s8 %v1878
  %v1880 = vperm.slane %v1874, %v1879
  %v1882 = vunpack.c.l.s4 1934713408
  %v1883 = vunpack.c.0.s8 %v1882
  %v1884 = vperm.slane %v1876, %v1883
  %v1885 = vrot.slane %v1868, 4
  %v1886 = vsel %vm193, 0.0, %v1885
  %v1887 = vrot.slane %v1872, 4
  %v1888 = vsel %vm193, 0.0, %v1887
  %v1889 = vrot.slane %v1880, 4
  %v1890 = vsel %vm193, 0.0, %v1889
  %v1891 = vrot.slane %v1884, 4
  %v1892 = vsel %vm193, 0.0, %v1891
  %v1893 = vrot.slane %v1816, 4
  %v1894 = vsel %vm193, %v1893, %v1748
  %v1895 = vrot.slane %v1748, 4
  %v1896 = vsel %vm193, %v1816, %v1895
  %v1898 = vunpack.c.l.s4 1983009808
  %v1899 = vunpack.c.0.s8 %v1898
  %v1900 = vperm.slane %v1894, %v1899
  %v1902 = vunpack.c.l.s4 1983009808
  %v1903 = vunpack.c.0.s8 %v1902
  %v1904 = vperm.slane %v1896, %v1903
  %v1905 = vrot.slane %v1828, 4
  %v1906 = vsel %vm193, %v1905, %v1804
  %v1907 = vrot.slane %v1804, 4
  %v1908 = vsel %vm193, %v1828, %v1907
  %v1910 = vunpack.c.l.s4 1983009808
  %v1911 = vunpack.c.0.s8 %v1910
  %v1912 = vperm.slane %v1906, %v1911
  %v1914 = vunpack.c.l.s4 1983009808
  %v1915 = vunpack.c.0.s8 %v1914
  %v1916 = vperm.slane %v1908, %v1915
  %v1917 = vrot.slane %v1912, 4
  %v1918 = vsel %vm193, %v1917, %v1900
  %v1919 = vrot.slane %v1900, 4
  %v1920 = vsel %vm193, %v1912, %v1919
  %v1922 = vunpack.c.l.s4 1934713408
  %v1923 = vunpack.c.0.s8 %v1922
  %v1924 = vperm.slane %v1918, %v1923
  %v1926 = vunpack.c.l.s4 1934713408
  %v1927 = vunpack.c.0.s8 %v1926
  %v1928 = vperm.slane %v1920, %v1927
  %v1929 = vrot.slane %v1916, 4
  %v1930 = vsel %vm193, %v1929, %v1904
  %v1931 = vrot.slane %v1904, 4
  %v1932 = vsel %vm193, %v1916, %v1931
  %v1934 = vunpack.c.l.s4 1934713408
  %v1935 = vunpack.c.0.s8 %v1934
  %v1936 = vperm.slane %v1930, %v1935
  %v1938 = vunpack.c.l.s4 1934713408
  %v1939 = vunpack.c.0.s8 %v1938
  %v1940 = vperm.slane %v1932, %v1939
  %v1941 = vrot.slane %v1924, 4
  %v1942 = vsel %vm193, 0.0, %v1941
  %v1943 = vrot.slane %v1928, 4
  %v1944 = vsel %vm193, 0.0, %v1943
  %v1945 = vrot.slane %v1936, 4
  %v1946 = vsel %vm193, 0.0, %v1945
  %v1947 = vrot.slane %v1940, 4
  %v1948 = vsel %vm193, 0.0, %v1947
  %v1949 = vrot.slane %v1818, 4
  %v1950 = vsel %vm193, %v1949, %v1751
  %v1951 = vrot.slane %v1751, 4
  %v1952 = vsel %vm193, %v1818, %v1951
  %v1954 = vunpack.c.l.s4 1983009808
  %v1955 = vunpack.c.0.s8 %v1954
  %v1956 = vperm.slane %v1950, %v1955
  %v1958 = vunpack.c.l.s4 1983009808
  %v1959 = vunpack.c.0.s8 %v1958
  %v1960 = vperm.slane %v1952, %v1959
  %v1961 = vrot.slane %v1830, 4
  %v1962 = vsel %vm193, %v1961, %v1806
  %v1963 = vrot.slane %v1806, 4
  %v1964 = vsel %vm193, %v1830, %v1963
  %v1966 = vunpack.c.l.s4 1983009808
  %v1967 = vunpack.c.0.s8 %v1966
  %v1968 = vperm.slane %v1962, %v1967
  %v1970 = vunpack.c.l.s4 1983009808
  %v1971 = vunpack.c.0.s8 %v1970
  %v1972 = vperm.slane %v1964, %v1971
  %v1973 = vrot.slane %v1968, 4
  %v1974 = vsel %vm193, %v1973, %v1956
  %v1975 = vrot.slane %v1956, 4
  %v1976 = vsel %vm193, %v1968, %v1975
  %v1978 = vunpack.c.l.s4 1934713408
  %v1979 = vunpack.c.0.s8 %v1978
  %v1980 = vperm.slane %v1974, %v1979
  %v1982 = vunpack.c.l.s4 1934713408
  %v1983 = vunpack.c.0.s8 %v1982
  %v1984 = vperm.slane %v1976, %v1983
  %v1985 = vrot.slane %v1972, 4
  %v1986 = vsel %vm193, %v1985, %v1960
  %v1987 = vrot.slane %v1960, 4
  %v1988 = vsel %vm193, %v1972, %v1987
  %v1990 = vunpack.c.l.s4 1934713408
  %v1991 = vunpack.c.0.s8 %v1990
  %v1992 = vperm.slane %v1986, %v1991
  %v1994 = vunpack.c.l.s4 1934713408
  %v1995 = vunpack.c.0.s8 %v1994
  %v1996 = vperm.slane %v1988, %v1995
  %v1997 = vrot.slane %v1980, 4
  %v1998 = vsel %vm193, 0.0, %v1997
  %v1999 = vrot.slane %v1984, 4
  %v2000 = vsel %vm193, 0.0, %v1999
  %v2001 = vrot.slane %v1992, 4
  %v2002 = vsel %vm193, 0.0, %v2001
  %v2003 = vrot.slane %v1996, 4
  %v2004 = vsel %vm193, 0.0, %v2003
  %v2005 = vrot.slane %v1820, 4
  %v2006 = vsel %vm193, %v2005, %v1754
  %v2007 = vrot.slane %v1754, 4
  %v2008 = vsel %vm193, %v1820, %v2007
  %v2010 = vunpack.c.l.s4 1983009808
  %v2011 = vunpack.c.0.s8 %v2010
  %v2012 = vperm.slane %v2006, %v2011
  %v2014 = vunpack.c.l.s4 1983009808
  %v2015 = vunpack.c.0.s8 %v2014
  %v2016 = vperm.slane %v2008, %v2015
  %v2017 = vrot.slane %v1832, 4
  %v2018 = vsel %vm193, %v2017, %v1808
  %v2019 = vrot.slane %v1808, 4
  %v2020 = vsel %vm193, %v1832, %v2019
  %v2022 = vunpack.c.l.s4 1983009808
  %v2023 = vunpack.c.0.s8 %v2022
  %v2024 = vperm.slane %v2018, %v2023
  %v2026 = vunpack.c.l.s4 1983009808
  %v2027 = vunpack.c.0.s8 %v2026
  %v2028 = vperm.slane %v2020, %v2027
  %v2029 = vrot.slane %v2024, 4
  %v2030 = vsel %vm193, %v2029, %v2012
  %v2031 = vrot.slane %v2012, 4
  %v2032 = vsel %vm193, %v2024, %v2031
  %v2034 = vunpack.c.l.s4 1934713408
  %v2035 = vunpack.c.0.s8 %v2034
  %v2036 = vperm.slane %v2030, %v2035
  %v2038 = vunpack.c.l.s4 1934713408
  %v2039 = vunpack.c.0.s8 %v2038
  %v2040 = vperm.slane %v2032, %v2039
  %v2041 = vrot.slane %v2028, 4
  %v2042 = vsel %vm193, %v2041, %v2016
  %v2043 = vrot.slane %v2016, 4
  %v2044 = vsel %vm193, %v2028, %v2043
  %v2046 = vunpack.c.l.s4 1934713408
  %v2047 = vunpack.c.0.s8 %v2046
  %v2048 = vperm.slane %v2042, %v2047
  %v2050 = vunpack.c.l.s4 1934713408
  %v2051 = vunpack.c.0.s8 %v2050
  %v2052 = vperm.slane %v2044, %v2051
  %v2053 = vrot.slane %v2036, 4
  %v2054 = vsel %vm193, 0.0, %v2053
  %v2055 = vrot.slane %v2040, 4
  %v2056 = vsel %vm193, 0.0, %v2055
  %v2057 = vrot.slane %v2048, 4
  %v2058 = vsel %vm193, 0.0, %v2057
  %v2059 = vrot.slane %v2052, 4
  %v2060 = vsel %vm193, 0.0, %v2059
  %v2061 = vsel %vm193, %v1887, %v1868
  %v2063 = vunpack.c.l.s4 1983009808
  %v2064 = vunpack.c.0.s8 %v2063
  %v2065 = vperm.slane %v2061, %v2064
  %v2066 = vrot.slane %v1888, 4
  %v2067 = vsel %vm193, %v2066, %v1886
  %v2069 = vunpack.c.l.s4 1983009808
  %v2070 = vunpack.c.0.s8 %v2069
  %v2071 = vperm.slane %v2067, %v2070
  %v2072 = vsel %vm193, %v1891, %v1880
  %v2074 = vunpack.c.l.s4 1983009808
  %v2075 = vunpack.c.0.s8 %v2074
  %v2076 = vperm.slane %v2072, %v2075
  %v2077 = vrot.slane %v1892, 4
  %v2078 = vsel %vm193, %v2077, %v1890
  %v2080 = vunpack.c.l.s4 1983009808
  %v2081 = vunpack.c.0.s8 %v2080
  %v2082 = vperm.slane %v2078, %v2081
  %v2083 = vrot.slane %v2071, 4
  %v2084 = vsel %vm193, %v2083, %v2065
  %v2085 = vrot.slane %v2065, 4
  %v2086 = vsel %vm193, %v2071, %v2085
  %v2088 = vunpack.c.l.s4 1934713408
  %v2089 = vunpack.c.0.s8 %v2088
  %v2090 = vperm.slane %v2084, %v2089
  %v2092 = vunpack.c.l.s4 1934713408
  %v2093 = vunpack.c.0.s8 %v2092
  %v2094 = vperm.slane %v2086, %v2093
  %v2095 = vrot.slane %v2082, 4
  %v2096 = vsel %vm193, %v2095, %v2076
  %v2097 = vrot.slane %v2076, 4
  %v2098 = vsel %vm193, %v2082, %v2097
  %v2100 = vunpack.c.l.s4 1934713408
  %v2101 = vunpack.c.0.s8 %v2100
  %v2102 = vperm.slane %v2096, %v2101
  %v2104 = vunpack.c.l.s4 1934713408
  %v2105 = vunpack.c.0.s8 %v2104
  %v2106 = vperm.slane %v2098, %v2105
  %v2107 = vrot.slane %v2102, 4
  %v2108 = vsel %vm193, %v2107, %v2090
  %v2109 = vrot.slane %v2090, 4
  %v2110 = vsel %vm193, %v2102, %v2109
  %v2111 = vrot.slane %v2106, 4
  %v2112 = vsel %vm193, %v2111, %v2094
  %v2113 = vrot.slane %v2094, 4
  %v2114 = vsel %vm193, %v2106, %v2113
  %v2115 = vsel %vm193, %v1943, %v1924
  %v2117 = vunpack.c.l.s4 1983009808
  %v2118 = vunpack.c.0.s8 %v2117
  %v2119 = vperm.slane %v2115, %v2118
  %v2120 = vrot.slane %v1944, 4
  %v2121 = vsel %vm193, %v2120, %v1942
  %v2123 = vunpack.c.l.s4 1983009808
  %v2124 = vunpack.c.0.s8 %v2123
  %v2125 = vperm.slane %v2121, %v2124
  %v2126 = vsel %vm193, %v1947, %v1936
  %v2128 = vunpack.c.l.s4 1983009808
  %v2129 = vunpack.c.0.s8 %v2128
  %v2130 = vperm.slane %v2126, %v2129
  %v2131 = vrot.slane %v1948, 4
  %v2132 = vsel %vm193, %v2131, %v1946
  %v2134 = vunpack.c.l.s4 1983009808
  %v2135 = vunpack.c.0.s8 %v2134
  %v2136 = vperm.slane %v2132, %v2135
  %v2137 = vrot.slane %v2125, 4
  %v2138 = vsel %vm193, %v2137, %v2119
  %v2139 = vrot.slane %v2119, 4
  %v2140 = vsel %vm193, %v2125, %v2139
  %v2142 = vunpack.c.l.s4 1934713408
  %v2143 = vunpack.c.0.s8 %v2142
  %v2144 = vperm.slane %v2138, %v2143
  %v2146 = vunpack.c.l.s4 1934713408
  %v2147 = vunpack.c.0.s8 %v2146
  %v2148 = vperm.slane %v2140, %v2147
  %v2149 = vrot.slane %v2136, 4
  %v2150 = vsel %vm193, %v2149, %v2130
  %v2151 = vrot.slane %v2130, 4
  %v2152 = vsel %vm193, %v2136, %v2151
  %v2154 = vunpack.c.l.s4 1934713408
  %v2155 = vunpack.c.0.s8 %v2154
  %v2156 = vperm.slane %v2150, %v2155
  %v2158 = vunpack.c.l.s4 1934713408
  %v2159 = vunpack.c.0.s8 %v2158
  %v2160 = vperm.slane %v2152, %v2159
  %v2161 = vrot.slane %v2156, 4
  %v2162 = vsel %vm193, %v2161, %v2144
  %v2163 = vrot.slane %v2144, 4
  %v2164 = vsel %vm193, %v2156, %v2163
  %v2165 = vrot.slane %v2160, 4
  %v2166 = vsel %vm193, %v2165, %v2148
  %v2167 = vrot.slane %v2148, 4
  %v2168 = vsel %vm193, %v2160, %v2167
  %v2169 = vsel %vm193, %v1999, %v1980
  %v2171 = vunpack.c.l.s4 1983009808
  %v2172 = vunpack.c.0.s8 %v2171
  %v2173 = vperm.slane %v2169, %v2172
  %v2174 = vrot.slane %v2000, 4
  %v2175 = vsel %vm193, %v2174, %v1998
  %v2177 = vunpack.c.l.s4 1983009808
  %v2178 = vunpack.c.0.s8 %v2177
  %v2179 = vperm.slane %v2175, %v2178
  %v2180 = vsel %vm193, %v2003, %v1992
  %v2182 = vunpack.c.l.s4 1983009808
  %v2183 = vunpack.c.0.s8 %v2182
  %v2184 = vperm.slane %v2180, %v2183
  %v2185 = vrot.slane %v2004, 4
  %v2186 = vsel %vm193, %v2185, %v2002
  %v2188 = vunpack.c.l.s4 1983009808
  %v2189 = vunpack.c.0.s8 %v2188
  %v2190 = vperm.slane %v2186, %v2189
  %v2191 = vrot.slane %v2179, 4
  %v2192 = vsel %vm193, %v2191, %v2173
  %v2193 = vrot.slane %v2173, 4
  %v2194 = vsel %vm193, %v2179, %v2193
  %v2196 = vunpack.c.l.s4 1934713408
  %v2197 = vunpack.c.0.s8 %v2196
  %v2198 = vperm.slane %v2192, %v2197
  %v2200 = vunpack.c.l.s4 1934713408
  %v2201 = vunpack.c.0.s8 %v2200
  %v2202 = vperm.slane %v2194, %v2201
  %v2203 = vrot.slane %v2190, 4
  %v2204 = vsel %vm193, %v2203, %v2184
  %v2205 = vrot.slane %v2184, 4
  %v2206 = vsel %vm193, %v2190, %v2205
  %v2208 = vunpack.c.l.s4 1934713408
  %v2209 = vunpack.c.0.s8 %v2208
  %v2210 = vperm.slane %v2204, %v2209
  %v2212 = vunpack.c.l.s4 1934713408
  %v2213 = vunpack.c.0.s8 %v2212
  %v2214 = vperm.slane %v2206, %v2213
  %v2215 = vrot.slane %v2210, 4
  %v2216 = vsel %vm193, %v2215, %v2198
  %v2217 = vrot.slane %v2198, 4
  %v2218 = vsel %vm193, %v2210, %v2217
  %v2219 = vrot.slane %v2214, 4
  %v2220 = vsel %vm193, %v2219, %v2202
  %v2221 = vrot.slane %v2202, 4
  %v2222 = vsel %vm193, %v2214, %v2221
  %v2223 = vsel %vm193, %v2055, %v2036
  %v2225 = vunpack.c.l.s4 1983009808
  %v2226 = vunpack.c.0.s8 %v2225
  %v2227 = vperm.slane %v2223, %v2226
  %v2228 = vrot.slane %v2056, 4
  %v2229 = vsel %vm193, %v2228, %v2054
  %v2231 = vunpack.c.l.s4 1983009808
  %v2232 = vunpack.c.0.s8 %v2231
  %v2233 = vperm.slane %v2229, %v2232
  %v2234 = vsel %vm193, %v2059, %v2048
  %v2236 = vunpack.c.l.s4 1983009808
  %v2237 = vunpack.c.0.s8 %v2236
  %v2238 = vperm.slane %v2234, %v2237
  %v2239 = vrot.slane %v2060, 4
  %v2240 = vsel %vm193, %v2239, %v2058
  %v2242 = vunpack.c.l.s4 1983009808
  %v2243 = vunpack.c.0.s8 %v2242
  %v2244 = vperm.slane %v2240, %v2243
  %v2245 = vrot.slane %v2233, 4
  %v2246 = vsel %vm193, %v2245, %v2227
  %v2247 = vrot.slane %v2227, 4
  %v2248 = vsel %vm193, %v2233, %v2247
  %v2250 = vunpack.c.l.s4 1934713408
  %v2251 = vunpack.c.0.s8 %v2250
  %v2252 = vperm.slane %v2246, %v2251
  %v2254 = vunpack.c.l.s4 1934713408
  %v2255 = vunpack.c.0.s8 %v2254
  %v2256 = vperm.slane %v2248, %v2255
  %v2257 = vrot.slane %v2244, 4
  %v2258 = vsel %vm193, %v2257, %v2238
  %v2259 = vrot.slane %v2238, 4
  %v2260 = vsel %vm193, %v2244, %v2259
  %v2262 = vunpack.c.l.s4 1934713408
  %v2263 = vunpack.c.0.s8 %v2262
  %v2264 = vperm.slane %v2258, %v2263
  %v2266 = vunpack.c.l.s4 1934713408
  %v2267 = vunpack.c.0.s8 %v2266
  %v2268 = vperm.slane %v2260, %v2267
  %v2269 = vrot.slane %v2264, 4
  %v2270 = vsel %vm193, %v2269, %v2252
  %v2271 = vrot.slane %v2252, 4
  %v2272 = vsel %vm193, %v2264, %v2271
  %v2273 = vrot.slane %v2268, 4
  %v2274 = vsel %vm193, %v2273, %v2256
  %v2275 = vrot.slane %v2256, 4
  %v2276 = vsel %vm193, %v2268, %v2275
  %2281 = vrot.lane.b32.xlu0 %v1786, 112
  %v2282 = vpop.permute.xlu0 %2281
  %2283 = vrot.lane.b32.xlu0 %v1789, 112
  %v2284 = vpop.permute.xlu0 %2283
  %2285 = vrot.lane.b32.xlu0 %v1792, 112
  %v2286 = vpop.permute.xlu0 %2285
  %2287 = vrot.lane.b32.xlu0 %v1795, 112
  %v2288 = vpop.permute.xlu0 %2287
  %2293 = vrot.lane.b32.xlu0 %v1786, 96
  %v2294 = vpop.permute.xlu0 %2293
  %2295 = vrot.lane.b32.xlu0 %v1789, 96
  %v2296 = vpop.permute.xlu0 %2295
  %2297 = vrot.lane.b32.xlu0 %v1792, 96
  %v2298 = vpop.permute.xlu0 %2297
  %2299 = vrot.lane.b32.xlu0 %v1795, 96
  %v2300 = vpop.permute.xlu0 %2299
  %2305 = vrot.lane.b32.xlu0 %v1786, 80
  %v2306 = vpop.permute.xlu0 %2305
  %2307 = vrot.lane.b32.xlu0 %v1789, 80
  %v2308 = vpop.permute.xlu0 %2307
  %2309 = vrot.lane.b32.xlu0 %v1792, 80
  %v2310 = vpop.permute.xlu0 %2309
  %2311 = vrot.lane.b32.xlu0 %v1795, 80
  %v2312 = vpop.permute.xlu0 %2311
  %v2317 = vrot.slane %v2294, 4
  %v2318 = vsel %vm193, %v2317, %v1786
  %v2319 = vrot.slane %v1786, 4
  %v2320 = vsel %vm193, %v2294, %v2319
  %v2322 = vunpack.c.l.s4 1983009808
  %v2323 = vunpack.c.0.s8 %v2322
  %v2324 = vperm.slane %v2318, %v2323
  %v2326 = vunpack.c.l.s4 1983009808
  %v2327 = vunpack.c.0.s8 %v2326
  %v2328 = vperm.slane %v2320, %v2327
  %v2329 = vrot.slane %v2306, 4
  %v2330 = vsel %vm193, %v2329, %v2282
  %v2331 = vrot.slane %v2282, 4
  %v2332 = vsel %vm193, %v2306, %v2331
  %v2334 = vunpack.c.l.s4 1983009808
  %v2335 = vunpack.c.0.s8 %v2334
  %v2336 = vperm.slane %v2330, %v2335
  %v2338 = vunpack.c.l.s4 1983009808
  %v2339 = vunpack.c.0.s8 %v2338
  %v2340 = vperm.slane %v2332, %v2339
  %v2341 = vrot.slane %v2336, 4
  %v2342 = vsel %vm193, %v2341, %v2324
  %v2343 = vrot.slane %v2324, 4
  %v2344 = vsel %vm193, %v2336, %v2343
  %v2346 = vunpack.c.l.s4 1934713408
  %v2347 = vunpack.c.0.s8 %v2346
  %v2348 = vperm.slane %v2342, %v2347
  %v2350 = vunpack.c.l.s4 1934713408
  %v2351 = vunpack.c.0.s8 %v2350
  %v2352 = vperm.slane %v2344, %v2351
  %v2353 = vrot.slane %v2340, 4
  %v2354 = vsel %vm193, %v2353, %v2328
  %v2355 = vrot.slane %v2328, 4
  %v2356 = vsel %vm193, %v2340, %v2355
  %v2358 = vunpack.c.l.s4 1934713408
  %v2359 = vunpack.c.0.s8 %v2358
  %v2360 = vperm.slane %v2354, %v2359
  %v2362 = vunpack.c.l.s4 1934713408
  %v2363 = vunpack.c.0.s8 %v2362
  %v2364 = vperm.slane %v2356, %v2363
  %v2365 = vrot.slane %v2348, 4
  %v2366 = vsel %vm193, 0.0, %v2365
  %v2367 = vrot.slane %v2352, 4
  %v2368 = vsel %vm193, 0.0, %v2367
  %v2369 = vrot.slane %v2360, 4
  %v2370 = vsel %vm193, 0.0, %v2369
  %v2371 = vrot.slane %v2364, 4
  %v2372 = vsel %vm193, 0.0, %v2371
  %v2373 = vrot.slane %v2296, 4
  %v2374 = vsel %vm193, %v2373, %v1789
  %v2375 = vrot.slane %v1789, 4
  %v2376 = vsel %vm193, %v2296, %v2375
  %v2378 = vunpack.c.l.s4 1983009808
  %v2379 = vunpack.c.0.s8 %v2378
  %v2380 = vperm.slane %v2374, %v2379
  %v2382 = vunpack.c.l.s4 1983009808
  %v2383 = vunpack.c.0.s8 %v2382
  %v2384 = vperm.slane %v2376, %v2383
  %v2385 = vrot.slane %v2308, 4
  %v2386 = vsel %vm193, %v2385, %v2284
  %v2387 = vrot.slane %v2284, 4
  %v2388 = vsel %vm193, %v2308, %v2387
  %v2390 = vunpack.c.l.s4 1983009808
  %v2391 = vunpack.c.0.s8 %v2390
  %v2392 = vperm.slane %v2386, %v2391
  %v2394 = vunpack.c.l.s4 1983009808
  %v2395 = vunpack.c.0.s8 %v2394
  %v2396 = vperm.slane %v2388, %v2395
  %v2397 = vrot.slane %v2392, 4
  %v2398 = vsel %vm193, %v2397, %v2380
  %v2399 = vrot.slane %v2380, 4
  %v2400 = vsel %vm193, %v2392, %v2399
  %v2402 = vunpack.c.l.s4 1934713408
  %v2403 = vunpack.c.0.s8 %v2402
  %v2404 = vperm.slane %v2398, %v2403
  %v2406 = vunpack.c.l.s4 1934713408
  %v2407 = vunpack.c.0.s8 %v2406
  %v2408 = vperm.slane %v2400, %v2407
  %v2409 = vrot.slane %v2396, 4
  %v2410 = vsel %vm193, %v2409, %v2384
  %v2411 = vrot.slane %v2384, 4
  %v2412 = vsel %vm193, %v2396, %v2411
  %v2414 = vunpack.c.l.s4 1934713408
  %v2415 = vunpack.c.0.s8 %v2414
  %v2416 = vperm.slane %v2410, %v2415
  %v2418 = vunpack.c.l.s4 1934713408
  %v2419 = vunpack.c.0.s8 %v2418
  %v2420 = vperm.slane %v2412, %v2419
  %v2421 = vrot.slane %v2404, 4
  %v2422 = vsel %vm193, 0.0, %v2421
  %v2423 = vrot.slane %v2408, 4
  %v2424 = vsel %vm193, 0.0, %v2423
  %v2425 = vrot.slane %v2416, 4
  %v2426 = vsel %vm193, 0.0, %v2425
  %v2427 = vrot.slane %v2420, 4
  %v2428 = vsel %vm193, 0.0, %v2427
  %v2429 = vrot.slane %v2298, 4
  %v2430 = vsel %vm193, %v2429, %v1792
  %v2431 = vrot.slane %v1792, 4
  %v2432 = vsel %vm193, %v2298, %v2431
  %v2434 = vunpack.c.l.s4 1983009808
  %v2435 = vunpack.c.0.s8 %v2434
  %v2436 = vperm.slane %v2430, %v2435
  %v2438 = vunpack.c.l.s4 1983009808
  %v2439 = vunpack.c.0.s8 %v2438
  %v2440 = vperm.slane %v2432, %v2439
  %v2441 = vrot.slane %v2310, 4
  %v2442 = vsel %vm193, %v2441, %v2286
  %v2443 = vrot.slane %v2286, 4
  %v2444 = vsel %vm193, %v2310, %v2443
  %v2446 = vunpack.c.l.s4 1983009808
  %v2447 = vunpack.c.0.s8 %v2446
  %v2448 = vperm.slane %v2442, %v2447
  %v2450 = vunpack.c.l.s4 1983009808
  %v2451 = vunpack.c.0.s8 %v2450
  %v2452 = vperm.slane %v2444, %v2451
  %v2453 = vrot.slane %v2448, 4
  %v2454 = vsel %vm193, %v2453, %v2436
  %v2455 = vrot.slane %v2436, 4
  %v2456 = vsel %vm193, %v2448, %v2455
  %v2458 = vunpack.c.l.s4 1934713408
  %v2459 = vunpack.c.0.s8 %v2458
  %v2460 = vperm.slane %v2454, %v2459
  %v2462 = vunpack.c.l.s4 1934713408
  %v2463 = vunpack.c.0.s8 %v2462
  %v2464 = vperm.slane %v2456, %v2463
  %v2465 = vrot.slane %v2452, 4
  %v2466 = vsel %vm193, %v2465, %v2440
  %v2467 = vrot.slane %v2440, 4
  %v2468 = vsel %vm193, %v2452, %v2467
  %v2470 = vunpack.c.l.s4 1934713408
  %v2471 = vunpack.c.0.s8 %v2470
  %v2472 = vperm.slane %v2466, %v2471
  %v2474 = vunpack.c.l.s4 1934713408
  %v2475 = vunpack.c.0.s8 %v2474
  %v2476 = vperm.slane %v2468, %v2475
  %v2477 = vrot.slane %v2460, 4
  %v2478 = vsel %vm193, 0.0, %v2477
  %v2479 = vrot.slane %v2464, 4
  %v2480 = vsel %vm193, 0.0, %v2479
  %v2481 = vrot.slane %v2472, 4
  %v2482 = vsel %vm193, 0.0, %v2481
  %v2483 = vrot.slane %v2476, 4
  %v2484 = vsel %vm193, 0.0, %v2483
  %v2485 = vrot.slane %v2300, 4
  %v2486 = vsel %vm193, %v2485, %v1795
  %v2487 = vrot.slane %v1795, 4
  %v2488 = vsel %vm193, %v2300, %v2487
  %v2490 = vunpack.c.l.s4 1983009808
  %v2491 = vunpack.c.0.s8 %v2490
  %v2492 = vperm.slane %v2486, %v2491
  %v2494 = vunpack.c.l.s4 1983009808
  %v2495 = vunpack.c.0.s8 %v2494
  %v2496 = vperm.slane %v2488, %v2495
  %v2497 = vrot.slane %v2312, 4
  %v2498 = vsel %vm193, %v2497, %v2288
  %v2499 = vrot.slane %v2288, 4
  %v2500 = vsel %vm193, %v2312, %v2499
  %v2502 = vunpack.c.l.s4 1983009808
  %v2503 = vunpack.c.0.s8 %v2502
  %v2504 = vperm.slane %v2498, %v2503
  %v2506 = vunpack.c.l.s4 1983009808
  %v2507 = vunpack.c.0.s8 %v2506
  %v2508 = vperm.slane %v2500, %v2507
  %v2509 = vrot.slane %v2504, 4
  %v2510 = vsel %vm193, %v2509, %v2492
  %v2511 = vrot.slane %v2492, 4
  %v2512 = vsel %vm193, %v2504, %v2511
  %v2514 = vunpack.c.l.s4 1934713408
  %v2515 = vunpack.c.0.s8 %v2514
  %v2516 = vperm.slane %v2510, %v2515
  %v2518 = vunpack.c.l.s4 1934713408
  %v2519 = vunpack.c.0.s8 %v2518
  %v2520 = vperm.slane %v2512, %v2519
  %v2521 = vrot.slane %v2508, 4
  %v2522 = vsel %vm193, %v2521, %v2496
  %v2523 = vrot.slane %v2496, 4
  %v2524 = vsel %vm193, %v2508, %v2523
  %v2526 = vunpack.c.l.s4 1934713408
  %v2527 = vunpack.c.0.s8 %v2526
  %v2528 = vperm.slane %v2522, %v2527
  %v2530 = vunpack.c.l.s4 1934713408
  %v2531 = vunpack.c.0.s8 %v2530
  %v2532 = vperm.slane %v2524, %v2531
  %v2533 = vrot.slane %v2516, 4
  %v2534 = vsel %vm193, 0.0, %v2533
  %v2535 = vrot.slane %v2520, 4
  %v2536 = vsel %vm193, 0.0, %v2535
  %v2537 = vrot.slane %v2528, 4
  %v2538 = vsel %vm193, 0.0, %v2537
  %v2539 = vrot.slane %v2532, 4
  %v2540 = vsel %vm193, 0.0, %v2539
  %v2541 = vsel %vm193, %v2367, %v2348
  %v2543 = vunpack.c.l.s4 1983009808
  %v2544 = vunpack.c.0.s8 %v2543
  %v2545 = vperm.slane %v2541, %v2544
  %v2546 = vrot.slane %v2368, 4
  %v2547 = vsel %vm193, %v2546, %v2366
  %v2549 = vunpack.c.l.s4 1983009808
  %v2550 = vunpack.c.0.s8 %v2549
  %v2551 = vperm.slane %v2547, %v2550
  %v2552 = vsel %vm193, %v2371, %v2360
  %v2554 = vunpack.c.l.s4 1983009808
  %v2555 = vunpack.c.0.s8 %v2554
  %v2556 = vperm.slane %v2552, %v2555
  %v2557 = vrot.slane %v2372, 4
  %v2558 = vsel %vm193, %v2557, %v2370
  %v2560 = vunpack.c.l.s4 1983009808
  %v2561 = vunpack.c.0.s8 %v2560
  %v2562 = vperm.slane %v2558, %v2561
  %v2563 = vrot.slane %v2551, 4
  %v2564 = vsel %vm193, %v2563, %v2545
  %v2565 = vrot.slane %v2545, 4
  %v2566 = vsel %vm193, %v2551, %v2565
  %v2568 = vunpack.c.l.s4 1934713408
  %v2569 = vunpack.c.0.s8 %v2568
  %v2570 = vperm.slane %v2564, %v2569
  %v2572 = vunpack.c.l.s4 1934713408
  %v2573 = vunpack.c.0.s8 %v2572
  %v2574 = vperm.slane %v2566, %v2573
  %v2575 = vrot.slane %v2562, 4
  %v2576 = vsel %vm193, %v2575, %v2556
  %v2577 = vrot.slane %v2556, 4
  %v2578 = vsel %vm193, %v2562, %v2577
  %v2580 = vunpack.c.l.s4 1934713408
  %v2581 = vunpack.c.0.s8 %v2580
  %v2582 = vperm.slane %v2576, %v2581
  %v2584 = vunpack.c.l.s4 1934713408
  %v2585 = vunpack.c.0.s8 %v2584
  %v2586 = vperm.slane %v2578, %v2585
  %v2587 = vrot.slane %v2582, 4
  %v2588 = vsel %vm193, %v2587, %v2570
  %v2589 = vrot.slane %v2570, 4
  %v2590 = vsel %vm193, %v2582, %v2589
  %v2591 = vrot.slane %v2586, 4
  %v2592 = vsel %vm193, %v2591, %v2574
  %v2593 = vrot.slane %v2574, 4
  %v2594 = vsel %vm193, %v2586, %v2593
  %v2595 = vsel %vm193, %v2423, %v2404
  %v2597 = vunpack.c.l.s4 1983009808
  %v2598 = vunpack.c.0.s8 %v2597
  %v2599 = vperm.slane %v2595, %v2598
  %v2600 = vrot.slane %v2424, 4
  %v2601 = vsel %vm193, %v2600, %v2422
  %v2603 = vunpack.c.l.s4 1983009808
  %v2604 = vunpack.c.0.s8 %v2603
  %v2605 = vperm.slane %v2601, %v2604
  %v2606 = vsel %vm193, %v2427, %v2416
  %v2608 = vunpack.c.l.s4 1983009808
  %v2609 = vunpack.c.0.s8 %v2608
  %v2610 = vperm.slane %v2606, %v2609
  %v2611 = vrot.slane %v2428, 4
  %v2612 = vsel %vm193, %v2611, %v2426
  %v2614 = vunpack.c.l.s4 1983009808
  %v2615 = vunpack.c.0.s8 %v2614
  %v2616 = vperm.slane %v2612, %v2615
  %v2617 = vrot.slane %v2605, 4
  %v2618 = vsel %vm193, %v2617, %v2599
  %v2619 = vrot.slane %v2599, 4
  %v2620 = vsel %vm193, %v2605, %v2619
  %v2622 = vunpack.c.l.s4 1934713408
  %v2623 = vunpack.c.0.s8 %v2622
  %v2624 = vperm.slane %v2618, %v2623
  %v2626 = vunpack.c.l.s4 1934713408
  %v2627 = vunpack.c.0.s8 %v2626
  %v2628 = vperm.slane %v2620, %v2627
  %v2629 = vrot.slane %v2616, 4
  %v2630 = vsel %vm193, %v2629, %v2610
  %v2631 = vrot.slane %v2610, 4
  %v2632 = vsel %vm193, %v2616, %v2631
  %v2634 = vunpack.c.l.s4 1934713408
  %v2635 = vunpack.c.0.s8 %v2634
  %v2636 = vperm.slane %v2630, %v2635
  %v2638 = vunpack.c.l.s4 1934713408
  %v2639 = vunpack.c.0.s8 %v2638
  %v2640 = vperm.slane %v2632, %v2639
  %v2641 = vrot.slane %v2636, 4
  %v2642 = vsel %vm193, %v2641, %v2624
  %v2643 = vrot.slane %v2624, 4
  %v2644 = vsel %vm193, %v2636, %v2643
  %v2645 = vrot.slane %v2640, 4
  %v2646 = vsel %vm193, %v2645, %v2628
  %v2647 = vrot.slane %v2628, 4
  %v2648 = vsel %vm193, %v2640, %v2647
  %v2649 = vsel %vm193, %v2479, %v2460
  %v2651 = vunpack.c.l.s4 1983009808
  %v2652 = vunpack.c.0.s8 %v2651
  %v2653 = vperm.slane %v2649, %v2652
  %v2654 = vrot.slane %v2480, 4
  %v2655 = vsel %vm193, %v2654, %v2478
  %v2657 = vunpack.c.l.s4 1983009808
  %v2658 = vunpack.c.0.s8 %v2657
  %v2659 = vperm.slane %v2655, %v2658
  %v2660 = vsel %vm193, %v2483, %v2472
  %v2662 = vunpack.c.l.s4 1983009808
  %v2663 = vunpack.c.0.s8 %v2662
  %v2664 = vperm.slane %v2660, %v2663
  %v2665 = vrot.slane %v2484, 4
  %v2666 = vsel %vm193, %v2665, %v2482
  %v2668 = vunpack.c.l.s4 1983009808
  %v2669 = vunpack.c.0.s8 %v2668
  %v2670 = vperm.slane %v2666, %v2669
  %v2671 = vrot.slane %v2659, 4
  %v2672 = vsel %vm193, %v2671, %v2653
  %v2673 = vrot.slane %v2653, 4
  %v2674 = vsel %vm193, %v2659, %v2673
  %v2676 = vunpack.c.l.s4 1934713408
  %v2677 = vunpack.c.0.s8 %v2676
  %v2678 = vperm.slane %v2672, %v2677
  %v2680 = vunpack.c.l.s4 1934713408
  %v2681 = vunpack.c.0.s8 %v2680
  %v2682 = vperm.slane %v2674, %v2681
  %v2683 = vrot.slane %v2670, 4
  %v2684 = vsel %vm193, %v2683, %v2664
  %v2685 = vrot.slane %v2664, 4
  %v2686 = vsel %vm193, %v2670, %v2685
  %v2688 = vunpack.c.l.s4 1934713408
  %v2689 = vunpack.c.0.s8 %v2688
  %v2690 = vperm.slane %v2684, %v2689
  %v2692 = vunpack.c.l.s4 1934713408
  %v2693 = vunpack.c.0.s8 %v2692
  %v2694 = vperm.slane %v2686, %v2693
  %v2695 = vrot.slane %v2690, 4
  %v2696 = vsel %vm193, %v2695, %v2678
  %v2697 = vrot.slane %v2678, 4
  %v2698 = vsel %vm193, %v2690, %v2697
  %v2699 = vrot.slane %v2694, 4
  %v2700 = vsel %vm193, %v2699, %v2682
  %v2701 = vrot.slane %v2682, 4
  %v2702 = vsel %vm193, %v2694, %v2701
  %v2703 = vsel %vm193, %v2535, %v2516
  %v2705 = vunpack.c.l.s4 1983009808
  %v2706 = vunpack.c.0.s8 %v2705
  %v2707 = vperm.slane %v2703, %v2706
  %v2708 = vrot.slane %v2536, 4
  %v2709 = vsel %vm193, %v2708, %v2534
  %v2711 = vunpack.c.l.s4 1983009808
  %v2712 = vunpack.c.0.s8 %v2711
  %v2713 = vperm.slane %v2709, %v2712
  %v2714 = vsel %vm193, %v2539, %v2528
  %v2716 = vunpack.c.l.s4 1983009808
  %v2717 = vunpack.c.0.s8 %v2716
  %v2718 = vperm.slane %v2714, %v2717
  %v2719 = vrot.slane %v2540, 4
  %v2720 = vsel %vm193, %v2719, %v2538
  %v2722 = vunpack.c.l.s4 1983009808
  %v2723 = vunpack.c.0.s8 %v2722
  %v2724 = vperm.slane %v2720, %v2723
  %v2725 = vrot.slane %v2713, 4
  %v2726 = vsel %vm193, %v2725, %v2707
  %v2727 = vrot.slane %v2707, 4
  %v2728 = vsel %vm193, %v2713, %v2727
  %v2730 = vunpack.c.l.s4 1934713408
  %v2731 = vunpack.c.0.s8 %v2730
  %v2732 = vperm.slane %v2726, %v2731
  %v2734 = vunpack.c.l.s4 1934713408
  %v2735 = vunpack.c.0.s8 %v2734
  %v2736 = vperm.slane %v2728, %v2735
  %v2737 = vrot.slane %v2724, 4
  %v2738 = vsel %vm193, %v2737, %v2718
  %v2739 = vrot.slane %v2718, 4
  %v2740 = vsel %vm193, %v2724, %v2739
  %v2742 = vunpack.c.l.s4 1934713408
  %v2743 = vunpack.c.0.s8 %v2742
  %v2744 = vperm.slane %v2738, %v2743
  %v2746 = vunpack.c.l.s4 1934713408
  %v2747 = vunpack.c.0.s8 %v2746
  %v2748 = vperm.slane %v2740, %v2747
  %v2749 = vrot.slane %v2744, 4
  %v2750 = vsel %vm193, %v2749, %v2732
  %v2751 = vrot.slane %v2732, 4
  %v2752 = vsel %vm193, %v2744, %v2751
  %v2753 = vrot.slane %v2748, 4
  %v2754 = vsel %vm193, %v2753, %v2736
  %v2755 = vrot.slane %v2736, 4
  %v2756 = vsel %vm193, %v2748, %v2755
  %v2758 = vsel %vm893, %v2108, 0
  %v2761 = vsel %vm893, %v2162, 0
  %2763 = vmatpush.xpose.msra.mxu0 0.0
  %2764 = vmatpush.xpose.msra.mxu0 0.0
  %2765 = vmatpush.xpose.msra.mxu0 0.0
  %2766 = vmatpush.xpose.msra.mxu0 0.0
  %2767 = vmatpush.xpose.msra.mxu0 0.0
  %2768 = vmatpush.xpose.msra.mxu0 0.0
  %2769 = vmatpush.xpose.msra.mxu0 0.0
  %2770 = vmatpush.xpose.msra.mxu0 0.0
  %2771 = vmatpush.xpose.msra.mxu0 0.0
  %2772 = vmatpush.xpose.msra.mxu0 0.0
  %2773 = vmatpush.xpose.msra.mxu0 0.0
  %2774 = vmatpush.xpose.msra.mxu0 0.0
  %2775 = vmatpush.xpose.msra.mxu0 0.0
  %2776 = vmatpush.xpose.msra.mxu0 0.0
  %2777 = vmatpush.xpose.msra.mxu0 %v2761
  %2778 = vmatpush.xpose.msra.mxu0 %v2758
  %2779 = vmatmul.f32.gmra.mxu0 %v895
  %v2780 = vpop.f32.mrf.mxu0
  %v2781 = vadd.f32 0.0, %v2780
  %2782 = vdwg.mxu0
  %v2784 = vsel %vm893, %v2110, 0
  %v2787 = vsel %vm893, %v2164, 0
  %2789 = vmatpush.xpose.msra.mxu0 0.0
  %2790 = vmatpush.xpose.msra.mxu0 0.0
  %2791 = vmatpush.xpose.msra.mxu0 0.0
  %2792 = vmatpush.xpose.msra.mxu0 0.0
  %2793 = vmatpush.xpose.msra.mxu0 0.0
  %2794 = vmatpush.xpose.msra.mxu0 0.0
  %2795 = vmatpush.xpose.msra.mxu0 0.0
  %2796 = vmatpush.xpose.msra.mxu0 0.0
  %2797 = vmatpush.xpose.msra.mxu0 0.0
  %2798 = vmatpush.xpose.msra.mxu0 0.0
  %2799 = vmatpush.xpose.msra.mxu0 0.0
  %2800 = vmatpush.xpose.msra.mxu0 0.0
  %2801 = vmatpush.xpose.msra.mxu0 0.0
  %2802 = vmatpush.xpose.msra.mxu0 0.0
  %2803 = vmatpush.xpose.msra.mxu0 %v2787
  %2804 = vmatpush.xpose.msra.mxu0 %v2784
  %2805 = vmatmul.f32.gmra.mxu0 %v921
  %v2806 = vpop.f32.mrf.mxu0
  %v2807 = vadd.f32 0.0, %v2806
  %2808 = vdwg.mxu0
  %v2810 = vsel %vm893, %v2112, 0
  %v2813 = vsel %vm893, %v2166, 0
  %2815 = vmatpush.xpose.msra.mxu0 0.0
  %2816 = vmatpush.xpose.msra.mxu0 0.0
  %2817 = vmatpush.xpose.msra.mxu0 0.0
  %2818 = vmatpush.xpose.msra.mxu0 0.0
  %2819 = vmatpush.xpose.msra.mxu0 0.0
  %2820 = vmatpush.xpose.msra.mxu0 0.0
  %2821 = vmatpush.xpose.msra.mxu0 0.0
  %2822 = vmatpush.xpose.msra.mxu0 0.0
  %2823 = vmatpush.xpose.msra.mxu0 0.0
  %2824 = vmatpush.xpose.msra.mxu0 0.0
  %2825 = vmatpush.xpose.msra.mxu0 0.0
  %2826 = vmatpush.xpose.msra.mxu0 0.0
  %2827 = vmatpush.xpose.msra.mxu0 0.0
  %2828 = vmatpush.xpose.msra.mxu0 0.0
  %2829 = vmatpush.xpose.msra.mxu0 %v2813
  %2830 = vmatpush.xpose.msra.mxu0 %v2810
  %2831 = vmatmul.f32.gmra.mxu0 %v947
  %v2832 = vpop.f32.mrf.mxu0
  %v2833 = vadd.f32 0.0, %v2832
  %2834 = vdwg.mxu0
  %v2836 = vsel %vm893, %v2114, 0
  %v2839 = vsel %vm893, %v2168, 0
  %2841 = vmatpush.xpose.msra.mxu0 0.0
  %2842 = vmatpush.xpose.msra.mxu0 0.0
  %2843 = vmatpush.xpose.msra.mxu0 0.0
  %2844 = vmatpush.xpose.msra.mxu0 0.0
  %2845 = vmatpush.xpose.msra.mxu0 0.0
  %2846 = vmatpush.xpose.msra.mxu0 0.0
  %2847 = vmatpush.xpose.msra.mxu0 0.0
  %2848 = vmatpush.xpose.msra.mxu0 0.0
  %2849 = vmatpush.xpose.msra.mxu0 0.0
  %2850 = vmatpush.xpose.msra.mxu0 0.0
  %2851 = vmatpush.xpose.msra.mxu0 0.0
  %2852 = vmatpush.xpose.msra.mxu0 0.0
  %2853 = vmatpush.xpose.msra.mxu0 0.0
  %2854 = vmatpush.xpose.msra.mxu0 0.0
  %2855 = vmatpush.xpose.msra.mxu0 %v2839
  %2856 = vmatpush.xpose.msra.mxu0 %v2836
  %2857 = vmatmul.f32.gmra.mxu0 %v973
  %v2858 = vpop.f32.mrf.mxu0
  %v2859 = vadd.f32 0.0, %v2858
  %2860 = vdwg.mxu0
  %v2862 = vsel %vm893, %v2216, 0
  %v2865 = vsel %vm893, %v2270, 0
  %2867 = vmatpush.xpose.msra.mxu0 0.0
  %2868 = vmatpush.xpose.msra.mxu0 0.0
  %2869 = vmatpush.xpose.msra.mxu0 0.0
  %2870 = vmatpush.xpose.msra.mxu0 0.0
  %2871 = vmatpush.xpose.msra.mxu0 0.0
  %2872 = vmatpush.xpose.msra.mxu0 0.0
  %2873 = vmatpush.xpose.msra.mxu0 0.0
  %2874 = vmatpush.xpose.msra.mxu0 0.0
  %2875 = vmatpush.xpose.msra.mxu0 0.0
  %2876 = vmatpush.xpose.msra.mxu0 0.0
  %2877 = vmatpush.xpose.msra.mxu0 0.0
  %2878 = vmatpush.xpose.msra.mxu0 0.0
  %2879 = vmatpush.xpose.msra.mxu0 0.0
  %2880 = vmatpush.xpose.msra.mxu0 0.0
  %2881 = vmatpush.xpose.msra.mxu0 %v2865
  %2882 = vmatpush.xpose.msra.mxu0 %v2862
  %2883 = vmatmul.f32.gmra.mxu0 %v999
  %v2884 = vpop.f32.mrf.mxu0
  %v2885 = vadd.f32 0.0, %v2884
  %2886 = vdwg.mxu0
  %v2888 = vsel %vm893, %v2218, 0
  %v2891 = vsel %vm893, %v2272, 0
  %2893 = vmatpush.xpose.msra.mxu0 0.0
  %2894 = vmatpush.xpose.msra.mxu0 0.0
  %2895 = vmatpush.xpose.msra.mxu0 0.0
  %2896 = vmatpush.xpose.msra.mxu0 0.0
  %2897 = vmatpush.xpose.msra.mxu0 0.0
  %2898 = vmatpush.xpose.msra.mxu0 0.0
  %2899 = vmatpush.xpose.msra.mxu0 0.0
  %2900 = vmatpush.xpose.msra.mxu0 0.0
  %2901 = vmatpush.xpose.msra.mxu0 0.0
  %2902 = vmatpush.xpose.msra.mxu0 0.0
  %2903 = vmatpush.xpose.msra.mxu0 0.0
  %2904 = vmatpush.xpose.msra.mxu0 0.0
  %2905 = vmatpush.xpose.msra.mxu0 0.0
  %2906 = vmatpush.xpose.msra.mxu0 0.0
  %2907 = vmatpush.xpose.msra.mxu0 %v2891
  %2908 = vmatpush.xpose.msra.mxu0 %v2888
  %2909 = vmatmul.f32.gmra.mxu0 %v1025
  %v2910 = vpop.f32.mrf.mxu0
  %v2911 = vadd.f32 0.0, %v2910
  %2912 = vdwg.mxu0
  %v2914 = vsel %vm893, %v2220, 0
  %v2917 = vsel %vm893, %v2274, 0
  %2919 = vmatpush.xpose.msra.mxu0 0.0
  %2920 = vmatpush.xpose.msra.mxu0 0.0
  %2921 = vmatpush.xpose.msra.mxu0 0.0
  %2922 = vmatpush.xpose.msra.mxu0 0.0
  %2923 = vmatpush.xpose.msra.mxu0 0.0
  %2924 = vmatpush.xpose.msra.mxu0 0.0
  %2925 = vmatpush.xpose.msra.mxu0 0.0
  %2926 = vmatpush.xpose.msra.mxu0 0.0
  %2927 = vmatpush.xpose.msra.mxu0 0.0
  %2928 = vmatpush.xpose.msra.mxu0 0.0
  %2929 = vmatpush.xpose.msra.mxu0 0.0
  %2930 = vmatpush.xpose.msra.mxu0 0.0
  %2931 = vmatpush.xpose.msra.mxu0 0.0
  %2932 = vmatpush.xpose.msra.mxu0 0.0
  %2933 = vmatpush.xpose.msra.mxu0 %v2917
  %2934 = vmatpush.xpose.msra.mxu0 %v2914
  %2935 = vmatmul.f32.gmra.mxu0 %v1051
  %v2936 = vpop.f32.mrf.mxu0
  %v2937 = vadd.f32 0.0, %v2936
  %2938 = vdwg.mxu0
  %v2940 = vsel %vm893, %v2222, 0
  %v2943 = vsel %vm893, %v2276, 0
  %2945 = vmatpush.xpose.msra.mxu0 0.0
  %2946 = vmatpush.xpose.msra.mxu0 0.0
  %2947 = vmatpush.xpose.msra.mxu0 0.0
  %2948 = vmatpush.xpose.msra.mxu0 0.0
  %2949 = vmatpush.xpose.msra.mxu0 0.0
  %2950 = vmatpush.xpose.msra.mxu0 0.0
  %2951 = vmatpush.xpose.msra.mxu0 0.0
  %2952 = vmatpush.xpose.msra.mxu0 0.0
  %2953 = vmatpush.xpose.msra.mxu0 0.0
  %2954 = vmatpush.xpose.msra.mxu0 0.0
  %2955 = vmatpush.xpose.msra.mxu0 0.0
  %2956 = vmatpush.xpose.msra.mxu0 0.0
  %2957 = vmatpush.xpose.msra.mxu0 0.0
  %2958 = vmatpush.xpose.msra.mxu0 0.0
  %2959 = vmatpush.xpose.msra.mxu0 %v2943
  %2960 = vmatpush.xpose.msra.mxu0 %v2940
  %2961 = vmatmul.f32.gmra.mxu0 %v1077
  %v2962 = vpop.f32.mrf.mxu0
  %v2963 = vadd.f32 0.0, %v2962
  %2964 = vdwg.mxu0
  %v2965 = vsel %vm893, %v2781, -inf
  %2966 = vmax.xlane.f32.xlu0 %v2965
  %v2967 = vpop.xlane.xlu0 %2966
  %v2968 = vsel %vm893, %v2807, -inf
  %2969 = vmax.xlane.f32.xlu0 %v2968
  %v2970 = vpop.xlane.xlu0 %2969
  %v2971 = vsel %vm893, %v2833, -inf
  %2972 = vmax.xlane.f32.xlu0 %v2971
  %v2973 = vpop.xlane.xlu0 %2972
  %v2974 = vsel %vm893, %v2859, -inf
  %2975 = vmax.xlane.f32.xlu0 %v2974
  %v2976 = vpop.xlane.xlu0 %2975
  %v2977 = vsel %vm893, %v2885, -inf
  %2978 = vmax.xlane.f32.xlu0 %v2977
  %v2979 = vpop.xlane.xlu0 %2978
  %v2980 = vsel %vm893, %v2911, -inf
  %2981 = vmax.xlane.f32.xlu0 %v2980
  %v2982 = vpop.xlane.xlu0 %2981
  %v2983 = vsel %vm893, %v2937, -inf
  %2984 = vmax.xlane.f32.xlu0 %v2983
  %v2985 = vpop.xlane.xlu0 %2984
  %v2986 = vsel %vm893, %v2963, -inf
  %2987 = vmax.xlane.f32.xlu0 %v2986
  %v2988 = vpop.xlane.xlu0 %2987
  %v2989 = vsub.f32 %v2781, %v2967
  %v2990 = vsub.f32 %v2807, %v2970
  %v2991 = vsub.f32 %v2833, %v2973
  %v2992 = vsub.f32 %v2859, %v2976
  %v2993 = vsub.f32 %v2885, %v2979
  %v2994 = vsub.f32 %v2911, %v2982
  %v2995 = vsub.f32 %v2937, %v2985
  %v2996 = vsub.f32 %v2963, %v2988
  %v2997 = vmul.f32 %v2989, 1.442695
  %v2998 = vpow.pop %v2997
  %v2999 = vmul.f32 %v2990, 1.442695
  %v3000 = vpow.pop %v2999
  %v3001 = vmul.f32 %v2991, 1.442695
  %v3002 = vpow.pop %v3001
  %v3003 = vmul.f32 %v2992, 1.442695
  %v3004 = vpow.pop %v3003
  %v3005 = vmul.f32 %v2993, 1.442695
  %v3006 = vpow.pop %v3005
  %v3007 = vmul.f32 %v2994, 1.442695
  %v3008 = vpow.pop %v3007
  %v3009 = vmul.f32 %v2995, 1.442695
  %v3010 = vpow.pop %v3009
  %v3011 = vmul.f32 %v2996, 1.442695
  %v3012 = vpow.pop %v3011
  %v3013 = vsel %vm893, %v2998, 0.0
  %3014 = vadd.xlane.f32.xlu0 %v3013
  %v3015 = vpop.xlane.xlu0 %3014
  %v3016 = vsel %vm893, %v3000, 0.0
  %3017 = vadd.xlane.f32.xlu0 %v3016
  %v3018 = vpop.xlane.xlu0 %3017
  %v3019 = vsel %vm893, %v3002, 0.0
  %3020 = vadd.xlane.f32.xlu0 %v3019
  %v3021 = vpop.xlane.xlu0 %3020
  %v3022 = vsel %vm893, %v3004, 0.0
  %3023 = vadd.xlane.f32.xlu0 %v3022
  %v3024 = vpop.xlane.xlu0 %3023
  %v3025 = vsel %vm893, %v3006, 0.0
  %3026 = vadd.xlane.f32.xlu0 %v3025
  %v3027 = vpop.xlane.xlu0 %3026
  %v3028 = vsel %vm893, %v3008, 0.0
  %3029 = vadd.xlane.f32.xlu0 %v3028
  %v3030 = vpop.xlane.xlu0 %3029
  %v3031 = vsel %vm893, %v3010, 0.0
  %3032 = vadd.xlane.f32.xlu0 %v3031
  %v3033 = vpop.xlane.xlu0 %3032
  %v3034 = vsel %vm893, %v3012, 0.0
  %3035 = vadd.xlane.f32.xlu0 %v3034
  %v3036 = vpop.xlane.xlu0 %3035
  %v3037 = vrcp.pop %v3015
  %v3038 = vrcp.pop %v3018
  %v3039 = vrcp.pop %v3021
  %v3040 = vrcp.pop %v3024
  %v3041 = vrcp.pop %v3027
  %v3042 = vrcp.pop %v3030
  %v3043 = vrcp.pop %v3033
  %v3044 = vrcp.pop %v3036
  %v3045 = vmul.f32 %v2998, %v3037
  %v3046 = vmul.f32 %v3000, %v3038
  %v3047 = vmul.f32 %v3002, %v3039
  %v3048 = vmul.f32 %v3004, %v3040
  %v3049 = vmul.f32 %v3006, %v3041
  %v3050 = vmul.f32 %v3008, %v3042
  %v3051 = vmul.f32 %v3010, %v3043
  %v3052 = vmul.f32 %v3012, %v3044
  %v3054 = vsel %vm893, %v3045, 0
  %3056 = vmatpush.msra.mxu0 0.0
  %3057 = vmatpush.msra.mxu0 0.0
  %3058 = vmatpush.msra.mxu0 0.0
  %3059 = vmatpush.msra.mxu0 0.0
  %3060 = vmatpush.msra.mxu0 0.0
  %3061 = vmatpush.msra.mxu0 0.0
  %3062 = vmatpush.msra.mxu0 0.0
  %3063 = vmatpush.msra.mxu0 0.0
  %3064 = vmatpush.msra.mxu0 0.0
  %3065 = vmatpush.msra.mxu0 0.0
  %3066 = vmatpush.msra.mxu0 0.0
  %3067 = vmatpush.msra.mxu0 0.0
  %3068 = vmatpush.msra.mxu0 0.0
  %3069 = vmatpush.msra.mxu0 0.0
  %3070 = vmatpush.msra.mxu0 %v2642
  %3071 = vmatpush.msra.mxu0 %v2588
  %3072 = vmatmul.f32.gmra.mxu0 %v3054
  %v3073 = vpop.f32.mrf.mxu0
  %v3074 = vadd.f32 0.0, %v3073
  %3075 = vdwg.mxu0
  %v3077 = vsel %vm893, %v3046, 0
  %3079 = vmatpush.msra.mxu0 0.0
  %3080 = vmatpush.msra.mxu0 0.0
  %3081 = vmatpush.msra.mxu0 0.0
  %3082 = vmatpush.msra.mxu0 0.0
  %3083 = vmatpush.msra.mxu0 0.0
  %3084 = vmatpush.msra.mxu0 0.0
  %3085 = vmatpush.msra.mxu0 0.0
  %3086 = vmatpush.msra.mxu0 0.0
  %3087 = vmatpush.msra.mxu0 0.0
  %3088 = vmatpush.msra.mxu0 0.0
  %3089 = vmatpush.msra.mxu0 0.0
  %3090 = vmatpush.msra.mxu0 0.0
  %3091 = vmatpush.msra.mxu0 0.0
  %3092 = vmatpush.msra.mxu0 0.0
  %3093 = vmatpush.msra.mxu0 %v2644
  %3094 = vmatpush.msra.mxu0 %v2590
  %3095 = vmatmul.f32.gmra.mxu0 %v3077
  %v3096 = vpop.f32.mrf.mxu0
  %v3097 = vadd.f32 0.0, %v3096
  %3098 = vdwg.mxu0
  %v3100 = vsel %vm893, %v3047, 0
  %3102 = vmatpush.msra.mxu0 0.0
  %3103 = vmatpush.msra.mxu0 0.0
  %3104 = vmatpush.msra.mxu0 0.0
  %3105 = vmatpush.msra.mxu0 0.0
  %3106 = vmatpush.msra.mxu0 0.0
  %3107 = vmatpush.msra.mxu0 0.0
  %3108 = vmatpush.msra.mxu0 0.0
  %3109 = vmatpush.msra.mxu0 0.0
  %3110 = vmatpush.msra.mxu0 0.0
  %3111 = vmatpush.msra.mxu0 0.0
  %3112 = vmatpush.msra.mxu0 0.0
  %3113 = vmatpush.msra.mxu0 0.0
  %3114 = vmatpush.msra.mxu0 0.0
  %3115 = vmatpush.msra.mxu0 0.0
  %3116 = vmatpush.msra.mxu0 %v2646
  %3117 = vmatpush.msra.mxu0 %v2592
  %3118 = vmatmul.f32.gmra.mxu0 %v3100
  %v3119 = vpop.f32.mrf.mxu0
  %v3120 = vadd.f32 0.0, %v3119
  %3121 = vdwg.mxu0
  %v3123 = vsel %vm893, %v3048, 0
  %3125 = vmatpush.msra.mxu0 0.0
  %3126 = vmatpush.msra.mxu0 0.0
  %3127 = vmatpush.msra.mxu0 0.0
  %3128 = vmatpush.msra.mxu0 0.0
  %3129 = vmatpush.msra.mxu0 0.0
  %3130 = vmatpush.msra.mxu0 0.0
  %3131 = vmatpush.msra.mxu0 0.0
  %3132 = vmatpush.msra.mxu0 0.0
  %3133 = vmatpush.msra.mxu0 0.0
  %3134 = vmatpush.msra.mxu0 0.0
  %3135 = vmatpush.msra.mxu0 0.0
  %3136 = vmatpush.msra.mxu0 0.0
  %3137 = vmatpush.msra.mxu0 0.0
  %3138 = vmatpush.msra.mxu0 0.0
  %3139 = vmatpush.msra.mxu0 %v2648
  %3140 = vmatpush.msra.mxu0 %v2594
  %3141 = vmatmul.f32.gmra.mxu0 %v3123
  %v3142 = vpop.f32.mrf.mxu0
  %v3143 = vadd.f32 0.0, %v3142
  %3144 = vdwg.mxu0
  %v3146 = vsel %vm893, %v3049, 0
  %3148 = vmatpush.msra.mxu0 0.0
  %3149 = vmatpush.msra.mxu0 0.0
  %3150 = vmatpush.msra.mxu0 0.0
  %3151 = vmatpush.msra.mxu0 0.0
  %3152 = vmatpush.msra.mxu0 0.0
  %3153 = vmatpush.msra.mxu0 0.0
  %3154 = vmatpush.msra.mxu0 0.0
  %3155 = vmatpush.msra.mxu0 0.0
  %3156 = vmatpush.msra.mxu0 0.0
  %3157 = vmatpush.msra.mxu0 0.0
  %3158 = vmatpush.msra.mxu0 0.0
  %3159 = vmatpush.msra.mxu0 0.0
  %3160 = vmatpush.msra.mxu0 0.0
  %3161 = vmatpush.msra.mxu0 0.0
  %3162 = vmatpush.msra.mxu0 %v2750
  %3163 = vmatpush.msra.mxu0 %v2696
  %3164 = vmatmul.f32.gmra.mxu0 %v3146
  %v3165 = vpop.f32.mrf.mxu0
  %v3166 = vadd.f32 0.0, %v3165
  %3167 = vdwg.mxu0
  %v3169 = vsel %vm893, %v3050, 0
  %3171 = vmatpush.msra.mxu0 0.0
  %3172 = vmatpush.msra.mxu0 0.0
  %3173 = vmatpush.msra.mxu0 0.0
  %3174 = vmatpush.msra.mxu0 0.0
  %3175 = vmatpush.msra.mxu0 0.0
  %3176 = vmatpush.msra.mxu0 0.0
  %3177 = vmatpush.msra.mxu0 0.0
  %3178 = vmatpush.msra.mxu0 0.0
  %3179 = vmatpush.msra.mxu0 0.0
  %3180 = vmatpush.msra.mxu0 0.0
  %3181 = vmatpush.msra.mxu0 0.0
  %3182 = vmatpush.msra.mxu0 0.0
  %3183 = vmatpush.msra.mxu0 0.0
  %3184 = vmatpush.msra.mxu0 0.0
  %3185 = vmatpush.msra.mxu0 %v2752
  %3186 = vmatpush.msra.mxu0 %v2698
  %3187 = vmatmul.f32.gmra.mxu0 %v3169
  %v3188 = vpop.f32.mrf.mxu0
  %v3189 = vadd.f32 0.0, %v3188
  %3190 = vdwg.mxu0
  %v3192 = vsel %vm893, %v3051, 0
  %3194 = vmatpush.msra.mxu0 0.0
  %3195 = vmatpush.msra.mxu0 0.0
  %3196 = vmatpush.msra.mxu0 0.0
  %3197 = vmatpush.msra.mxu0 0.0
  %3198 = vmatpush.msra.mxu0 0.0
  %3199 = vmatpush.msra.mxu0 0.0
  %3200 = vmatpush.msra.mxu0 0.0
  %3201 = vmatpush.msra.mxu0 0.0
  %3202 = vmatpush.msra.mxu0 0.0
  %3203 = vmatpush.msra.mxu0 0.0
  %3204 = vmatpush.msra.mxu0 0.0
  %3205 = vmatpush.msra.mxu0 0.0
  %3206 = vmatpush.msra.mxu0 0.0
  %3207 = vmatpush.msra.mxu0 0.0
  %3208 = vmatpush.msra.mxu0 %v2754
  %3209 = vmatpush.msra.mxu0 %v2700
  %3210 = vmatmul.f32.gmra.mxu0 %v3192
  %v3211 = vpop.f32.mrf.mxu0
  %v3212 = vadd.f32 0.0, %v3211
  %3213 = vdwg.mxu0
  %v3215 = vsel %vm893, %v3052, 0
  %3217 = vmatpush.msra.mxu0 0.0
  %3218 = vmatpush.msra.mxu0 0.0
  %3219 = vmatpush.msra.mxu0 0.0
  %3220 = vmatpush.msra.mxu0 0.0
  %3221 = vmatpush.msra.mxu0 0.0
  %3222 = vmatpush.msra.mxu0 0.0
  %3223 = vmatpush.msra.mxu0 0.0
  %3224 = vmatpush.msra.mxu0 0.0
  %3225 = vmatpush.msra.mxu0 0.0
  %3226 = vmatpush.msra.mxu0 0.0
  %3227 = vmatpush.msra.mxu0 0.0
  %3228 = vmatpush.msra.mxu0 0.0
  %3229 = vmatpush.msra.mxu0 0.0
  %3230 = vmatpush.msra.mxu0 0.0
  %3231 = vmatpush.msra.mxu0 %v2756
  %3232 = vmatpush.msra.mxu0 %v2702
  %3233 = vmatmul.f32.gmra.mxu0 %v3215
  %v3234 = vpop.f32.mrf.mxu0
  %v3235 = vadd.f32 0.0, %v3234
  %3236 = vdwg.mxu0
  %v3237 = vrot.slane %v3120, 4
  %v3238 = vsel %vm193, %v3237, %v3074
  %v3239 = vrot.slane %v3074, 4
  %v3240 = vsel %vm193, %v3120, %v3239
  %v3242 = vunpack.c.l.s4 1983009808
  %v3243 = vunpack.c.0.s8 %v3242
  %v3244 = vperm.slane %v3238, %v3243
  %v3246 = vunpack.c.l.s4 1983009808
  %v3247 = vunpack.c.0.s8 %v3246
  %v3248 = vperm.slane %v3240, %v3247
  %v3249 = vrot.slane %v3143, 4
  %v3250 = vsel %vm193, %v3249, %v3097
  %v3251 = vrot.slane %v3097, 4
  %v3252 = vsel %vm193, %v3143, %v3251
  %v3254 = vunpack.c.l.s4 1983009808
  %v3255 = vunpack.c.0.s8 %v3254
  %v3256 = vperm.slane %v3250, %v3255
  %v3258 = vunpack.c.l.s4 1983009808
  %v3259 = vunpack.c.0.s8 %v3258
  %v3260 = vperm.slane %v3252, %v3259
  %v3261 = vrot.slane %v3256, 4
  %v3262 = vsel %vm193, %v3261, %v3244
  %v3263 = vrot.slane %v3244, 4
  %v3264 = vsel %vm193, %v3256, %v3263
  %v3266 = vunpack.c.l.s4 1934713408
  %v3267 = vunpack.c.0.s8 %v3266
  %v3268 = vperm.slane %v3262, %v3267
  %v3270 = vunpack.c.l.s4 1934713408
  %v3271 = vunpack.c.0.s8 %v3270
  %v3272 = vperm.slane %v3264, %v3271
  %v3273 = vrot.slane %v3260, 4
  %v3274 = vsel %vm193, %v3273, %v3248
  %v3275 = vrot.slane %v3248, 4
  %v3276 = vsel %vm193, %v3260, %v3275
  %v3278 = vunpack.c.l.s4 1934713408
  %v3279 = vunpack.c.0.s8 %v3278
  %v3280 = vperm.slane %v3274, %v3279
  %v3282 = vunpack.c.l.s4 1934713408
  %v3283 = vunpack.c.0.s8 %v3282
  %v3284 = vperm.slane %v3276, %v3283
  %v3285 = vrot.slane %v3268, 4
  %v3286 = vsel %vm193, 0.0, %v3285
  %v3287 = vrot.slane %v3272, 4
  %v3288 = vsel %vm193, 0.0, %v3287
  %v3289 = vrot.slane %v3280, 4
  %v3290 = vsel %vm193, 0.0, %v3289
  %v3291 = vrot.slane %v3284, 4
  %v3292 = vsel %vm193, 0.0, %v3291
  %v3293 = vrot.slane %v3212, 4
  %v3294 = vsel %vm193, %v3293, %v3166
  %v3295 = vrot.slane %v3166, 4
  %v3296 = vsel %vm193, %v3212, %v3295
  %v3298 = vunpack.c.l.s4 1983009808
  %v3299 = vunpack.c.0.s8 %v3298
  %v3300 = vperm.slane %v3294, %v3299
  %v3302 = vunpack.c.l.s4 1983009808
  %v3303 = vunpack.c.0.s8 %v3302
  %v3304 = vperm.slane %v3296, %v3303
  %v3305 = vrot.slane %v3235, 4
  %v3306 = vsel %vm193, %v3305, %v3189
  %v3307 = vrot.slane %v3189, 4
  %v3308 = vsel %vm193, %v3235, %v3307
  %v3310 = vunpack.c.l.s4 1983009808
  %v3311 = vunpack.c.0.s8 %v3310
  %v3312 = vperm.slane %v3306, %v3311
  %v3314 = vunpack.c.l.s4 1983009808
  %v3315 = vunpack.c.0.s8 %v3314
  %v3316 = vperm.slane %v3308, %v3315
  %v3317 = vrot.slane %v3312, 4
  %v3318 = vsel %vm193, %v3317, %v3300
  %v3319 = vrot.slane %v3300, 4
  %v3320 = vsel %vm193, %v3312, %v3319
  %v3322 = vunpack.c.l.s4 1934713408
  %v3323 = vunpack.c.0.s8 %v3322
  %v3324 = vperm.slane %v3318, %v3323
  %v3326 = vunpack.c.l.s4 1934713408
  %v3327 = vunpack.c.0.s8 %v3326
  %v3328 = vperm.slane %v3320, %v3327
  %v3329 = vrot.slane %v3316, 4
  %v3330 = vsel %vm193, %v3329, %v3304
  %v3331 = vrot.slane %v3304, 4
  %v3332 = vsel %vm193, %v3316, %v3331
  %v3334 = vunpack.c.l.s4 1934713408
  %v3335 = vunpack.c.0.s8 %v3334
  %v3336 = vperm.slane %v3330, %v3335
  %v3338 = vunpack.c.l.s4 1934713408
  %v3339 = vunpack.c.0.s8 %v3338
  %v3340 = vperm.slane %v3332, %v3339
  %v3341 = vrot.slane %v3324, 4
  %v3342 = vsel %vm193, 0.0, %v3341
  %v3343 = vrot.slane %v3328, 4
  %v3344 = vsel %vm193, 0.0, %v3343
  %v3345 = vrot.slane %v3336, 4
  %v3346 = vsel %vm193, 0.0, %v3345
  %v3347 = vrot.slane %v3340, 4
  %v3348 = vsel %vm193, 0.0, %v3347
  %v3349 = vsel %vm193, %v3287, %v3268
  %v3351 = vunpack.c.l.s4 1983009808
  %v3352 = vunpack.c.0.s8 %v3351
  %v3353 = vperm.slane %v3349, %v3352
  %v3354 = vrot.slane %v3288, 4
  %v3355 = vsel %vm193, %v3354, %v3286
  %v3357 = vunpack.c.l.s4 1983009808
  %v3358 = vunpack.c.0.s8 %v3357
  %v3359 = vperm.slane %v3355, %v3358
  %v3360 = vsel %vm193, %v3291, %v3280
  %v3362 = vunpack.c.l.s4 1983009808
  %v3363 = vunpack.c.0.s8 %v3362
  %v3364 = vperm.slane %v3360, %v3363
  %v3365 = vrot.slane %v3292, 4
  %v3366 = vsel %vm193, %v3365, %v3290
  %v3368 = vunpack.c.l.s4 1983009808
  %v3369 = vunpack.c.0.s8 %v3368
  %v3370 = vperm.slane %v3366, %v3369
  %v3371 = vrot.slane %v3359, 4
  %v3372 = vsel %vm193, %v3371, %v3353
  %v3373 = vrot.slane %v3353, 4
  %v3374 = vsel %vm193, %v3359, %v3373
  %v3376 = vunpack.c.l.s4 1934713408
  %v3377 = vunpack.c.0.s8 %v3376
  %v3378 = vperm.slane %v3372, %v3377
  %v3380 = vunpack.c.l.s4 1934713408
  %v3381 = vunpack.c.0.s8 %v3380
  %v3382 = vperm.slane %v3374, %v3381
  %v3383 = vrot.slane %v3370, 4
  %v3384 = vsel %vm193, %v3383, %v3364
  %v3385 = vrot.slane %v3364, 4
  %v3386 = vsel %vm193, %v3370, %v3385
  %v3388 = vunpack.c.l.s4 1934713408
  %v3389 = vunpack.c.0.s8 %v3388
  %v3390 = vperm.slane %v3384, %v3389
  %v3392 = vunpack.c.l.s4 1934713408
  %v3393 = vunpack.c.0.s8 %v3392
  %v3394 = vperm.slane %v3386, %v3393
  %v3395 = vrot.slane %v3390, 4
  %v3396 = vsel %vm193, %v3395, %v3378
  %v3397 = vrot.slane %v3378, 4
  %v3398 = vsel %vm193, %v3390, %v3397
  %v3399 = vrot.slane %v3394, 4
  %v3400 = vsel %vm193, %v3399, %v3382
  %v3401 = vrot.slane %v3382, 4
  %v3402 = vsel %vm193, %v3394, %v3401
  %v3403 = vsel %vm193, %v3343, %v3324
  %v3405 = vunpack.c.l.s4 1983009808
  %v3406 = vunpack.c.0.s8 %v3405
  %v3407 = vperm.slane %v3403, %v3406
  %v3408 = vrot.slane %v3344, 4
  %v3409 = vsel %vm193, %v3408, %v3342
  %v3411 = vunpack.c.l.s4 1983009808
  %v3412 = vunpack.c.0.s8 %v3411
  %v3413 = vperm.slane %v3409, %v3412
  %v3414 = vsel %vm193, %v3347, %v3336
  %v3416 = vunpack.c.l.s4 1983009808
  %v3417 = vunpack.c.0.s8 %v3416
  %v3418 = vperm.slane %v3414, %v3417
  %v3419 = vrot.slane %v3348, 4
  %v3420 = vsel %vm193, %v3419, %v3346
  %v3422 = vunpack.c.l.s4 1983009808
  %v3423 = vunpack.c.0.s8 %v3422
  %v3424 = vperm.slane %v3420, %v3423
  %v3425 = vrot.slane %v3413, 4
  %v3426 = vsel %vm193, %v3425, %v3407
  %v3427 = vrot.slane %v3407, 4
  %v3428 = vsel %vm193, %v3413, %v3427
  %v3430 = vunpack.c.l.s4 1934713408
  %v3431 = vunpack.c.0.s8 %v3430
  %v3432 = vperm.slane %v3426, %v3431
  %v3434 = vunpack.c.l.s4 1934713408
  %v3435 = vunpack.c.0.s8 %v3434
  %v3436 = vperm.slane %v3428, %v3435
  %v3437 = vrot.slane %v3424, 4
  %v3438 = vsel %vm193, %v3437, %v3418
  %v3439 = vrot.slane %v3418, 4
  %v3440 = vsel %vm193, %v3424, %v3439
  %v3442 = vunpack.c.l.s4 1934713408
  %v3443 = vunpack.c.0.s8 %v3442
  %v3444 = vperm.slane %v3438, %v3443
  %v3446 = vunpack.c.l.s4 1934713408
  %v3447 = vunpack.c.0.s8 %v3446
  %v3448 = vperm.slane %v3440, %v3447
  %v3449 = vrot.slane %v3444, 4
  %v3450 = vsel %vm193, %v3449, %v3432
  %v3451 = vrot.slane %v3432, 4
  %v3452 = vsel %vm193, %v3444, %v3451
  %v3453 = vrot.slane %v3448, 4
  %v3454 = vsel %vm193, %v3453, %v3436
  %v3455 = vrot.slane %v3436, 4
  %v3456 = vsel %vm193, %v3448, %v3455
  %3459 = vrot.lane.b32.xlu0 %v3398, 16
  %v3460 = vpop.permute.xlu0 %3459
  %3461 = vrot.lane.b32.xlu0 %v3452, 16
  %v3462 = vpop.permute.xlu0 %3461
  %3467 = vrot.lane.b32.xlu0 %v3400, 32
  %v3468 = vpop.permute.xlu0 %3467
  %3469 = vrot.lane.b32.xlu0 %v3454, 32
  %v3470 = vpop.permute.xlu0 %3469
  %3475 = vrot.lane.b32.xlu0 %v3402, 48
  %v3476 = vpop.permute.xlu0 %3475
  %3477 = vrot.lane.b32.xlu0 %v3456, 48
  %v3478 = vpop.permute.xlu0 %3477
  %v3481 = vsel %vm893, %v3396, %v3460
  %v3482 = vsel %vm893, %v3450, %v3462
  %v3483 = vsel %vm90, %v3481, %v3468
  %v3484 = vsel %vm90, %v3482, %v3470
  %v3485 = vsel %vm1623, %v3483, %v3476
  %v3486 = vsel %vm1623, %v3484, %v3478
  %v3488 = vsel %vm1626, %v3485, 0
  %v3491 = vsel %vm1626, %v3486, 0
  %3493 = vmatpush.msra.mxu0 0.0
  %3494 = vmatpush.msra.mxu0 0.0
  %3495 = vmatpush.msra.mxu0 0.0
  %3496 = vmatpush.msra.mxu0 0.0
  %3497 = vmatpush.msra.mxu0 0.0
  %3498 = vmatpush.msra.mxu0 0.0
  %3499 = vmatpush.msra.mxu0 0.0
  %3500 = vmatpush.msra.mxu0 0.0
  %3501 = vmatpush.msra.mxu0 %v73
  %3502 = vmatpush.msra.mxu0 %v72
  %3503 = vmatpush.msra.mxu0 %v71
  %3504 = vmatpush.msra.mxu0 %v70
  %3505 = vmatpush.msra.mxu0 %v69
  %3506 = vmatpush.msra.mxu0 %v68
  %3507 = vmatpush.msra.mxu0 %v67
  %3508 = vmatpush.msra.mxu0 %v66
  %3509 = vmatmul.f32.gmra.mxu0 %v3488
  %v3510 = vpop.f32.mrf.mxu0
  %v3511 = vadd.f32 0.0, %v3510
  %3512 = vmatmul.f32.gmra.mxu0 %v3491
  %v3513 = vpop.f32.mrf.mxu0
  %v3514 = vadd.f32 0.0, %v3513
  %3515 = vdwg.mxu0
  %v3516 = vadd.f32 %v1713, %v3511
  %v3517 = vadd.f32 %v1714, %v3514
  %v3518 = vsel %vm90, %v3516, 0.0
  %3519 = vadd.xlane.f32.xlu0 %v3518
  %v3520 = vpop.xlane.xlu0 %3519
  %v3521 = vsel %vm90, %v3517, 0.0
  %3522 = vadd.xlane.f32.xlu0 %v3521
  %v3523 = vpop.xlane.xlu0 %3522
  %v3524 = vmul.f32 %v3520, %v1670
  %v3525 = vmul.f32 %v3523, %v1670
  %v3526 = vsub.f32 %v3516, %v3524
  %v3527 = vsub.f32 %v3517, %v3525
  %v3528 = vmul.f32 %v3526, %v3526
  %v3529 = vmul.f32 %v3527, %v3527
  %v3530 = vsel %vm90, %v3528, 0.0
  %3531 = vadd.xlane.f32.xlu0 %v3530
  %v3532 = vpop.xlane.xlu0 %3531
  %v3533 = vsel %vm90, %v3529, 0.0
  %3534 = vadd.xlane.f32.xlu0 %v3533
  %v3535 = vpop.xlane.xlu0 %3534
  %v3536 = vmul.f32 %v3532, %v1670
  %v3537 = vmul.f32 %v3535, %v1670
  %v3538 = vadd.f32 %v3536, 1e-05
  %v3539 = vadd.f32 %v3537, 1e-05
  %v3540 = vrsqrt.pop %v3538
  %v3541 = vmul.f32 %v3540, %v3538
  %v3542 = vmul.f32 %v3541, %v3540
  %v3543 = vmul.f32 0.5, %v3542
  %v3544 = vsub.f32 1.5, %v3543
  %v3545 = vmul.f32 %v3540, %v3544
  %vm3546 = vweird.f32 %v3538
  %vm3547 = vweird.f32 %v3540
  %vm3548 = vmor %vm3546, %vm3547
  %v3549 = vsel %vm3548, %v3540, %v3545
  %v3550 = vrsqrt.pop %v3539
  %v3551 = vmul.f32 %v3550, %v3539
  %v3552 = vmul.f32 %v3551, %v3550
  %v3553 = vmul.f32 0.5, %v3552
  %v3554 = vsub.f32 1.5, %v3553
  %v3555 = vmul.f32 %v3550, %v3554
  %vm3556 = vweird.f32 %v3539
  %vm3557 = vweird.f32 %v3550
  %vm3558 = vmor %vm3556, %vm3557
  %v3559 = vsel %vm3558, %v3550, %v3555
  %v3560 = vmul.f32 %v3526, %v3549
  %v3561 = vmul.f32 %v3527, %v3559
  %v3562 = vperm.slane %v86, 4
  %v3563 = vmul.f32 %v3560, %v3562
  %v3564 = vmul.f32 %v3561, %v3562
  %v3565 = vperm.slane %v86, 5
  %v3566 = vadd.f32 %v3563, %v3565
  %v3567 = vadd.f32 %v3564, %v3565
  %v3568 = vperm.slane %v86, 0
  %v3570 = vsel %vm90, %v3566, 0
  %v3573 = vsel %vm90, %v3567, 0
  %3575 = vmatpush.msra.mxu0 0.0
  %3576 = vmatpush.msra.mxu0 0.0
  %3577 = vmatpush.msra.mxu0 0.0
  %3578 = vmatpush.msra.mxu0 0.0
  %3579 = vmatpush.msra.mxu0 0.0
  %3580 = vmatpush.msra.mxu0 0.0
  %3581 = vmatpush.msra.mxu0 0.0
  %3582 = vmatpush.msra.mxu0 0.0
  %3583 = vmatpush.msra.mxu0 0.0
  %3584 = vmatpush.msra.mxu0 0.0
  %3585 = vmatpush.msra.mxu0 0.0
  %3586 = vmatpush.msra.mxu0 0.0
  %3587 = vmatpush.msra.mxu0 %v77
  %3588 = vmatpush.msra.mxu0 %v76
  %3589 = vmatpush.msra.mxu0 %v75
  %3590 = vmatpush.msra.mxu0 %v74
  %3591 = vmatmul.f32.gmra.mxu0 %v3570
  %v3592 = vpop.f32.mrf.mxu0
  %v3593 = vadd.f32 %v3568, %v3592
  %3594 = vmatmul.f32.gmra.mxu0 %v3573
  %v3595 = vpop.f32.mrf.mxu0
  %v3596 = vadd.f32 %v3568, %v3595
  %3597 = vdwg.mxu0
  %v3598 = vmax.f32 %v3593, 0.0
  %v3599 = vmax.f32 %v3596, 0.0
  %v3600 = vperm.slane %v86, 1
  %v3602 = vsel %vm1626, %v3598, 0
  %v3605 = vsel %vm1626, %v3599, 0
  %3607 = vmatpush.msra.mxu0 0.0
  %3608 = vmatpush.msra.mxu0 0.0
  %3609 = vmatpush.msra.mxu0 0.0
  %3610 = vmatpush.msra.mxu0 0.0
  %3611 = vmatpush.msra.mxu0 0.0
  %3612 = vmatpush.msra.mxu0 0.0
  %3613 = vmatpush.msra.mxu0 0.0
  %3614 = vmatpush.msra.mxu0 0.0
  %3615 = vmatpush.msra.mxu0 %v85
  %3616 = vmatpush.msra.mxu0 %v84
  %3617 = vmatpush.msra.mxu0 %v83
  %3618 = vmatpush.msra.mxu0 %v82
  %3619 = vmatpush.msra.mxu0 %v81
  %3620 = vmatpush.msra.mxu0 %v80
  %3621 = vmatpush.msra.mxu0 %v79
  %3622 = vmatpush.msra.mxu0 %v78
  %3623 = vmatmul.f32.gmra.mxu0 %v3602
  %v3624 = vpop.f32.mrf.mxu0
  %v3625 = vadd.f32 %v3600, %v3624
  %3626 = vmatmul.f32.gmra.mxu0 %v3605
  %v3627 = vpop.f32.mrf.mxu0
  %v3628 = vadd.f32 %v3600, %v3627
  %3629 = vdwg.mxu0
  %v3630 = vadd.f32 %v3566, %v3625
  %v3631 = vadd.f32 %v3567, %v3628
  %v3632 = vsel %vm90, %v3630, 0.0
  %3633 = vadd.xlane.f32.xlu0 %v3632
  %v3634 = vpop.xlane.xlu0 %3633
  %v3635 = vsel %vm90, %v3631, 0.0
  %3636 = vadd.xlane.f32.xlu0 %v3635
  %v3637 = vpop.xlane.xlu0 %3636
  %v3638 = vmul.f32 %v3634, %v1670
  %v3639 = vmul.f32 %v3637, %v1670
  %v3640 = vsub.f32 %v3630, %v3638
  %v3641 = vsub.f32 %v3631, %v3639
  %v3642 = vmul.f32 %v3640, %v3640
  %v3643 = vmul.f32 %v3641, %v3641
  %v3644 = vsel %vm90, %v3642, 0.0
  %3645 = vadd.xlane.f32.xlu0 %v3644
  %v3646 = vpop.xlane.xlu0 %3645
  %v3647 = vsel %vm90, %v3643, 0.0
  %3648 = vadd.xlane.f32.xlu0 %v3647
  %v3649 = vpop.xlane.xlu0 %3648
  %v3650 = vmul.f32 %v3646, %v1670
  %v3651 = vmul.f32 %v3649, %v1670
  %v3652 = vadd.f32 %v3650, 1e-05
  %v3653 = vadd.f32 %v3651, 1e-05
  %v3654 = vrsqrt.pop %v3652
  %v3655 = vmul.f32 %v3654, %v3652
  %v3656 = vmul.f32 %v3655, %v3654
  %v3657 = vmul.f32 0.5, %v3656
  %v3658 = vsub.f32 1.5, %v3657
  %v3659 = vmul.f32 %v3654, %v3658
  %vm3660 = vweird.f32 %v3652
  %vm3661 = vweird.f32 %v3654
  %vm3662 = vmor %vm3660, %vm3661
  %v3663 = vsel %vm3662, %v3654, %v3659
  %v3664 = vrsqrt.pop %v3653
  %v3665 = vmul.f32 %v3664, %v3653
  %v3666 = vmul.f32 %v3665, %v3664
  %v3667 = vmul.f32 0.5, %v3666
  %v3668 = vsub.f32 1.5, %v3667
  %v3669 = vmul.f32 %v3664, %v3668
  %vm3670 = vweird.f32 %v3653
  %vm3671 = vweird.f32 %v3664
  %vm3672 = vmor %vm3670, %vm3671
  %v3673 = vsel %vm3672, %v3664, %v3669
  %v3674 = vmul.f32 %v3640, %v3663
  %v3675 = vmul.f32 %v3641, %v3673
  %v3676 = vperm.slane %v86, 6
  %v3677 = vmul.f32 %v3674, %v3676
  %v3678 = vmul.f32 %v3675, %v3676
  %v3679 = vperm.slane %v86, 7
  %v3680 = vadd.f32 %v3677, %v3679
  %v3681 = vadd.f32 %v3678, %v3679
  %v3682 = vsel %vm90, %v3680, 0.0
  %3683 = vadd.xlane.f32.xlu0 %v3682
  %v3684 = vpop.xlane.xlu0 %3683
  %v3685 = vsel %vm90, %v3681, 0.0
  %3686 = vadd.xlane.f32.xlu0 %v3685
  %v3687 = vpop.xlane.xlu0 %3686
  %v3688 = vmul.f32 %v3684, %v1670
  %v3689 = vmul.f32 %v3687, %v1670
  %v3690 = vsub.f32 %v3680, %v3688
  %v3691 = vsub.f32 %v3681, %v3689
  %v3692 = vmul.f32 %v3690, %v3690
  %v3693 = vmul.f32 %v3691, %v3691
  %v3694 = vsel %vm90, %v3692, 0.0
  %3695 = vadd.xlane.f32.xlu0 %v3694
  %v3696 = vpop.xlane.xlu0 %3695
  %v3697 = vsel %vm90, %v3693, 0.0
  %3698 = vadd.xlane.f32.xlu0 %v3697
  %v3699 = vpop.xlane.xlu0 %3698
  %v3700 = vmul.f32 %v3696, %v1670
  %v3701 = vmul.f32 %v3699, %v1670
  %v3702 = vadd.f32 %v3700, 1e-05
  %v3703 = vadd.f32 %v3701, 1e-05
  %v3704 = vrsqrt.pop %v3702
  %v3705 = vmul.f32 %v3704, %v3702
  %v3706 = vmul.f32 %v3705, %v3704
  %v3707 = vmul.f32 0.5, %v3706
  %v3708 = vsub.f32 1.5, %v3707
  %v3709 = vmul.f32 %v3704, %v3708
  %vm3710 = vweird.f32 %v3702
  %vm3711 = vweird.f32 %v3704
  %vm3712 = vmor %vm3710, %vm3711
  %v3713 = vsel %vm3712, %v3704, %v3709
  %v3714 = vrsqrt.pop %v3703
  %v3715 = vmul.f32 %v3714, %v3703
  %v3716 = vmul.f32 %v3715, %v3714
  %v3717 = vmul.f32 0.5, %v3716
  %v3718 = vsub.f32 1.5, %v3717
  %v3719 = vmul.f32 %v3714, %v3718
  %vm3720 = vweird.f32 %v3703
  %vm3721 = vweird.f32 %v3714
  %vm3722 = vmor %vm3720, %vm3721
  %v3723 = vsel %vm3722, %v3714, %v3719
  %v3724 = vmul.f32 %v3690, %v3713
  %v3725 = vmul.f32 %v3691, %v3723
  %v3726 = vperm.slane %v87, 0
  %v3727 = vmul.f32 %v3724, %v3726
  %v3728 = vmul.f32 %v3725, %v3726
  %v3729 = vperm.slane %v87, 1
  %v3730 = vadd.f32 %v3727, %v3729
  %v3731 = vadd.f32 %v3728, %v3729
  %s3732 = scalar_lea.vmem %s4, 32
  %v3733 = vld [vmem:[%s3732] sm:$0xff]
  %v3734 = vld [vmem:[%s3732 + $0x8] sm:$0xff]
  %v3735 = vld [vmem:[%s3732 + $0x10] sm:$0xff]
  %v3736 = vld [vmem:[%s3732 + $0x18] sm:$0xff]
  %s3737 = scalar_lea.vmem %s5, 32
  %v3738 = vld [vmem:[%s3737] sm:$0xff]
  %v3739 = vld [vmem:[%s3737 + $0x8] sm:$0xff]
  %v3740 = vld [vmem:[%s3737 + $0x10] sm:$0xff]
  %v3741 = vld [vmem:[%s3737 + $0x18] sm:$0xff]
  %s3742 = scalar_lea.vmem %s6, 32
  %v3743 = vld [vmem:[%s3742] sm:$0xff]
  %v3744 = vld [vmem:[%s3742 + $0x8] sm:$0xff]
  %v3745 = vld [vmem:[%s3742 + $0x10] sm:$0xff]
  %v3746 = vld [vmem:[%s3742 + $0x18] sm:$0xff]
  %s3747 = scalar_lea.vmem %s7, 64
  %v3748 = vld [vmem:[%s3747] sm:$0xff]
  %v3749 = vld [vmem:[%s3747 + $0x8] sm:$0xff]
  %v3750 = vld [vmem:[%s3747 + $0x10] sm:$0xff]
  %v3751 = vld [vmem:[%s3747 + $0x18] sm:$0xff]
  %v3752 = vld [vmem:[%s3747 + $0x20] sm:$0xff]
  %v3753 = vld [vmem:[%s3747 + $0x28] sm:$0xff]
  %v3754 = vld [vmem:[%s3747 + $0x30] sm:$0xff]
  %v3755 = vld [vmem:[%s3747 + $0x38] sm:$0xff]
  %s3756 = scalar_lea.vmem %s8, 32
  %v3757 = vld [vmem:[%s3756] sm:$0xff]
  %v3758 = vld [vmem:[%s3756 + $0x8] sm:$0xff]
  %v3759 = vld [vmem:[%s3756 + $0x10] sm:$0xff]
  %v3760 = vld [vmem:[%s3756 + $0x18] sm:$0xff]
  %s3761 = scalar_lea.vmem %s9, 64
  %v3762 = vld [vmem:[%s3761] sm:$0xff]
  %v3763 = vld [vmem:[%s3761 + $0x8] sm:$0xff]
  %v3764 = vld [vmem:[%s3761 + $0x10] sm:$0xff]
  %v3765 = vld [vmem:[%s3761 + $0x18] sm:$0xff]
  %v3766 = vld [vmem:[%s3761 + $0x20] sm:$0xff]
  %v3767 = vld [vmem:[%s3761 + $0x28] sm:$0xff]
  %v3768 = vld [vmem:[%s3761 + $0x30] sm:$0xff]
  %v3769 = vld [vmem:[%s3761 + $0x38] sm:$0xff]
  %s3770 = scalar_lea.vmem %s10, 16
  %v3771 = vld [vmem:[%s3770] sm:$0xff]
  %v3772 = vld [vmem:[%s3770 + $0x8] sm:$0x3]
  %v3773 = vadd.f32 %v3680, %v40
  %v3774 = vadd.f32 %v3681, %v41
  %v3776 = vsel %vm90, %v3773, 0
  %v3779 = vsel %vm90, %v3774, 0
  %3781 = vmatpush.msra.mxu0 0.0
  %3782 = vmatpush.msra.mxu0 0.0
  %3783 = vmatpush.msra.mxu0 0.0
  %3784 = vmatpush.msra.mxu0 0.0
  %3785 = vmatpush.msra.mxu0 0.0
  %3786 = vmatpush.msra.mxu0 0.0
  %3787 = vmatpush.msra.mxu0 0.0
  %3788 = vmatpush.msra.mxu0 0.0
  %3789 = vmatpush.msra.mxu0 0.0
  %3790 = vmatpush.msra.mxu0 0.0
  %3791 = vmatpush.msra.mxu0 0.0
  %3792 = vmatpush.msra.mxu0 0.0
  %3793 = vmatpush.msra.mxu0 %v3736
  %3794 = vmatpush.msra.mxu0 %v3735
  %3795 = vmatpush.msra.mxu0 %v3734
  %3796 = vmatpush.msra.mxu0 %v3733
  %3797 = vmatmul.f32.gmra.mxu0 %v3776
  %v3798 = vpop.f32.mrf.mxu0
  %v3799 = vadd.f32 0.0, %v3798
  %3800 = vmatmul.f32.gmra.mxu0 %v3779
  %v3801 = vpop.f32.mrf.mxu0
  %v3802 = vadd.f32 0.0, %v3801
  %3803 = vdwg.mxu0
  %3804 = vmatpush.msra.mxu0 0.0
  %3805 = vmatpush.msra.mxu0 0.0
  %3806 = vmatpush.msra.mxu0 0.0
  %3807 = vmatpush.msra.mxu0 0.0
  %3808 = vmatpush.msra.mxu0 0.0
  %3809 = vmatpush.msra.mxu0 0.0
  %3810 = vmatpush.msra.mxu0 0.0
  %3811 = vmatpush.msra.mxu0 0.0
  %3812 = vmatpush.msra.mxu0 0.0
  %3813 = vmatpush.msra.mxu0 0.0
  %3814 = vmatpush.msra.mxu0 0.0
  %3815 = vmatpush.msra.mxu0 0.0
  %3816 = vmatpush.msra.mxu0 %v3741
  %3817 = vmatpush.msra.mxu0 %v3740
  %3818 = vmatpush.msra.mxu0 %v3739
  %3819 = vmatpush.msra.mxu0 %v3738
  %3820 = vmatmul.f32.gmra.mxu0 %v3776
  %v3821 = vpop.f32.mrf.mxu0
  %v3822 = vadd.f32 0.0, %v3821
  %3823 = vmatmul.f32.gmra.mxu0 %v3779
  %v3824 = vpop.f32.mrf.mxu0
  %v3825 = vadd.f32 0.0, %v3824
  %3826 = vdwg.mxu0
  %v3828 = vsel %vm90, %v3680, 0
  %v3831 = vsel %vm90, %v3681, 0
  %3833 = vmatpush.msra.mxu0 0.0
  %3834 = vmatpush.msra.mxu0 0.0
  %3835 = vmatpush.msra.mxu0 0.0
  %3836 = vmatpush.msra.mxu0 0.0
  %3837 = vmatpush.msra.mxu0 0.0
  %3838 = vmatpush.msra.mxu0 0.0
  %3839 = vmatpush.msra.mxu0 0.0
  %3840 = vmatpush.msra.mxu0 0.0
  %3841 = vmatpush.msra.mxu0 0.0
  %3842 = vmatpush.msra.mxu0 0.0
  %3843 = vmatpush.msra.mxu0 0.0
  %3844 = vmatpush.msra.mxu0 0.0
  %3845 = vmatpush.msra.mxu0 %v3746
  %3846 = vmatpush.msra.mxu0 %v3745
  %3847 = vmatpush.msra.mxu0 %v3744
  %3848 = vmatpush.msra.mxu0 %v3743
  %3849 = vmatmul.f32.gmra.mxu0 %v3828
  %v3850 = vpop.f32.mrf.mxu0
  %v3851 = vadd.f32 0.0, %v3850
  %3852 = vmatmul.f32.gmra.mxu0 %v3831
  %v3853 = vpop.f32.mrf.mxu0
  %v3854 = vadd.f32 0.0, %v3853
  %3855 = vdwg.mxu0
  %3858 = vrot.lane.b32.xlu0 %v3799, 112
  %v3859 = vpop.permute.xlu0 %3858
  %3860 = vrot.lane.b32.xlu0 %v3802, 112
  %v3861 = vpop.permute.xlu0 %3860
  %3864 = vrot.lane.b32.xlu0 %v3799, 96
  %v3865 = vpop.permute.xlu0 %3864
  %3866 = vrot.lane.b32.xlu0 %v3802, 96
  %v3867 = vpop.permute.xlu0 %3866
  %3870 = vrot.lane.b32.xlu0 %v3799, 80
  %v3871 = vpop.permute.xlu0 %3870
  %3872 = vrot.lane.b32.xlu0 %v3802, 80
  %v3873 = vpop.permute.xlu0 %3872
  %v3876 = vrot.slane %v3865, 4
  %v3877 = vsel %vm193, %v3876, %v3799
  %v3878 = vrot.slane %v3799, 4
  %v3879 = vsel %vm193, %v3865, %v3878
  %v3881 = vunpack.c.l.s4 1983009808
  %v3882 = vunpack.c.0.s8 %v3881
  %v3883 = vperm.slane %v3877, %v3882
  %v3885 = vunpack.c.l.s4 1983009808
  %v3886 = vunpack.c.0.s8 %v3885
  %v3887 = vperm.slane %v3879, %v3886
  %v3888 = vrot.slane %v3871, 4
  %v3889 = vsel %vm193, %v3888, %v3859
  %v3890 = vrot.slane %v3859, 4
  %v3891 = vsel %vm193, %v3871, %v3890
  %v3893 = vunpack.c.l.s4 1983009808
  %v3894 = vunpack.c.0.s8 %v3893
  %v3895 = vperm.slane %v3889, %v3894
  %v3897 = vunpack.c.l.s4 1983009808
  %v3898 = vunpack.c.0.s8 %v3897
  %v3899 = vperm.slane %v3891, %v3898
  %v3900 = vrot.slane %v3895, 4
  %v3901 = vsel %vm193, %v3900, %v3883
  %v3902 = vrot.slane %v3883, 4
  %v3903 = vsel %vm193, %v3895, %v3902
  %v3905 = vunpack.c.l.s4 1934713408
  %v3906 = vunpack.c.0.s8 %v3905
  %v3907 = vperm.slane %v3901, %v3906
  %v3909 = vunpack.c.l.s4 1934713408
  %v3910 = vunpack.c.0.s8 %v3909
  %v3911 = vperm.slane %v3903, %v3910
  %v3912 = vrot.slane %v3899, 4
  %v3913 = vsel %vm193, %v3912, %v3887
  %v3914 = vrot.slane %v3887, 4
  %v3915 = vsel %vm193, %v3899, %v3914
  %v3917 = vunpack.c.l.s4 1934713408
  %v3918 = vunpack.c.0.s8 %v3917
  %v3919 = vperm.slane %v3913, %v3918
  %v3921 = vunpack.c.l.s4 1934713408
  %v3922 = vunpack.c.0.s8 %v3921
  %v3923 = vperm.slane %v3915, %v3922
  %v3924 = vrot.slane %v3907, 4
  %v3925 = vsel %vm193, 0.0, %v3924
  %v3926 = vrot.slane %v3911, 4
  %v3927 = vsel %vm193, 0.0, %v3926
  %v3928 = vrot.slane %v3919, 4
  %v3929 = vsel %vm193, 0.0, %v3928
  %v3930 = vrot.slane %v3923, 4
  %v3931 = vsel %vm193, 0.0, %v3930
  %v3932 = vrot.slane %v3867, 4
  %v3933 = vsel %vm193, %v3932, %v3802
  %v3934 = vrot.slane %v3802, 4
  %v3935 = vsel %vm193, %v3867, %v3934
  %v3937 = vunpack.c.l.s4 1983009808
  %v3938 = vunpack.c.0.s8 %v3937
  %v3939 = vperm.slane %v3933, %v3938
  %v3941 = vunpack.c.l.s4 1983009808
  %v3942 = vunpack.c.0.s8 %v3941
  %v3943 = vperm.slane %v3935, %v3942
  %v3944 = vrot.slane %v3873, 4
  %v3945 = vsel %vm193, %v3944, %v3861
  %v3946 = vrot.slane %v3861, 4
  %v3947 = vsel %vm193, %v3873, %v3946
  %v3949 = vunpack.c.l.s4 1983009808
  %v3950 = vunpack.c.0.s8 %v3949
  %v3951 = vperm.slane %v3945, %v3950
  %v3953 = vunpack.c.l.s4 1983009808
  %v3954 = vunpack.c.0.s8 %v3953
  %v3955 = vperm.slane %v3947, %v3954
  %v3956 = vrot.slane %v3951, 4
  %v3957 = vsel %vm193, %v3956, %v3939
  %v3958 = vrot.slane %v3939, 4
  %v3959 = vsel %vm193, %v3951, %v3958
  %v3961 = vunpack.c.l.s4 1934713408
  %v3962 = vunpack.c.0.s8 %v3961
  %v3963 = vperm.slane %v3957, %v3962
  %v3965 = vunpack.c.l.s4 1934713408
  %v3966 = vunpack.c.0.s8 %v3965
  %v3967 = vperm.slane %v3959, %v3966
  %v3968 = vrot.slane %v3955, 4
  %v3969 = vsel %vm193, %v3968, %v3943
  %v3970 = vrot.slane %v3943, 4
  %v3971 = vsel %vm193, %v3955, %v3970
  %v3973 = vunpack.c.l.s4 1934713408
  %v3974 = vunpack.c.0.s8 %v3973
  %v3975 = vperm.slane %v3969, %v3974
  %v3977 = vunpack.c.l.s4 1934713408
  %v3978 = vunpack.c.0.s8 %v3977
  %v3979 = vperm.slane %v3971, %v3978
  %v3980 = vrot.slane %v3963, 4
  %v3981 = vsel %vm193, 0.0, %v3980
  %v3982 = vrot.slane %v3967, 4
  %v3983 = vsel %vm193, 0.0, %v3982
  %v3984 = vrot.slane %v3975, 4
  %v3985 = vsel %vm193, 0.0, %v3984
  %v3986 = vrot.slane %v3979, 4
  %v3987 = vsel %vm193, 0.0, %v3986
  %v3988 = vsel %vm193, %v3926, %v3907
  %v3990 = vunpack.c.l.s4 1983009808
  %v3991 = vunpack.c.0.s8 %v3990
  %v3992 = vperm.slane %v3988, %v3991
  %v3993 = vrot.slane %v3927, 4
  %v3994 = vsel %vm193, %v3993, %v3925
  %v3996 = vunpack.c.l.s4 1983009808
  %v3997 = vunpack.c.0.s8 %v3996
  %v3998 = vperm.slane %v3994, %v3997
  %v3999 = vsel %vm193, %v3930, %v3919
  %v4001 = vunpack.c.l.s4 1983009808
  %v4002 = vunpack.c.0.s8 %v4001
  %v4003 = vperm.slane %v3999, %v4002
  %v4004 = vrot.slane %v3931, 4
  %v4005 = vsel %vm193, %v4004, %v3929
  %v4007 = vunpack.c.l.s4 1983009808
  %v4008 = vunpack.c.0.s8 %v4007
  %v4009 = vperm.slane %v4005, %v4008
  %v4010 = vrot.slane %v3998, 4
  %v4011 = vsel %vm193, %v4010, %v3992
  %v4012 = vrot.slane %v3992, 4
  %v4013 = vsel %vm193, %v3998, %v4012
  %v4015 = vunpack.c.l.s4 1934713408
  %v4016 = vunpack.c.0.s8 %v4015
  %v4017 = vperm.slane %v4011, %v4016
  %v4019 = vunpack.c.l.s4 1934713408
  %v4020 = vunpack.c.0.s8 %v4019
  %v4021 = vperm.slane %v4013, %v4020
  %v4022 = vrot.slane %v4009, 4
  %v4023 = vsel %vm193, %v4022, %v4003
  %v4024 = vrot.slane %v4003, 4
  %v4025 = vsel %vm193, %v4009, %v4024
  %v4027 = vunpack.c.l.s4 1934713408
  %v4028 = vunpack.c.0.s8 %v4027
  %v4029 = vperm.slane %v4023, %v4028
  %v4031 = vunpack.c.l.s4 1934713408
  %v4032 = vunpack.c.0.s8 %v4031
  %v4033 = vperm.slane %v4025, %v4032
  %v4034 = vrot.slane %v4029, 4
  %v4035 = vsel %vm193, %v4034, %v4017
  %v4036 = vrot.slane %v4017, 4
  %v4037 = vsel %vm193, %v4029, %v4036
  %v4038 = vrot.slane %v4033, 4
  %v4039 = vsel %vm193, %v4038, %v4021
  %v4040 = vrot.slane %v4021, 4
  %v4041 = vsel %vm193, %v4033, %v4040
  %v4042 = vsel %vm193, %v3982, %v3963
  %v4044 = vunpack.c.l.s4 1983009808
  %v4045 = vunpack.c.0.s8 %v4044
  %v4046 = vperm.slane %v4042, %v4045
  %v4047 = vrot.slane %v3983, 4
  %v4048 = vsel %vm193, %v4047, %v3981
  %v4050 = vunpack.c.l.s4 1983009808
  %v4051 = vunpack.c.0.s8 %v4050
  %v4052 = vperm.slane %v4048, %v4051
  %v4053 = vsel %vm193, %v3986, %v3975
  %v4055 = vunpack.c.l.s4 1983009808
  %v4056 = vunpack.c.0.s8 %v4055
  %v4057 = vperm.slane %v4053, %v4056
  %v4058 = vrot.slane %v3987, 4
  %v4059 = vsel %vm193, %v4058, %v3985
  %v4061 = vunpack.c.l.s4 1983009808
  %v4062 = vunpack.c.0.s8 %v4061
  %v4063 = vperm.slane %v4059, %v4062
  %v4064 = vrot.slane %v4052, 4
  %v4065 = vsel %vm193, %v4064, %v4046
  %v4066 = vrot.slane %v4046, 4
  %v4067 = vsel %vm193, %v4052, %v4066
  %v4069 = vunpack.c.l.s4 1934713408
  %v4070 = vunpack.c.0.s8 %v4069
  %v4071 = vperm.slane %v4065, %v4070
  %v4073 = vunpack.c.l.s4 1934713408
  %v4074 = vunpack.c.0.s8 %v4073
  %v4075 = vperm.slane %v4067, %v4074
  %v4076 = vrot.slane %v4063, 4
  %v4077 = vsel %vm193, %v4076, %v4057
  %v4078 = vrot.slane %v4057, 4
  %v4079 = vsel %vm193, %v4063, %v4078
  %v4081 = vunpack.c.l.s4 1934713408
  %v4082 = vunpack.c.0.s8 %v4081
  %v4083 = vperm.slane %v4077, %v4082
  %v4085 = vunpack.c.l.s4 1934713408
  %v4086 = vunpack.c.0.s8 %v4085
  %v4087 = vperm.slane %v4079, %v4086
  %v4088 = vrot.slane %v4083, 4
  %v4089 = vsel %vm193, %v4088, %v4071
  %v4090 = vrot.slane %v4071, 4
  %v4091 = vsel %vm193, %v4083, %v4090
  %v4092 = vrot.slane %v4087, 4
  %v4093 = vsel %vm193, %v4092, %v4075
  %v4094 = vrot.slane %v4075, 4
  %v4095 = vsel %vm193, %v4087, %v4094
  %4098 = vrot.lane.b32.xlu0 %v3822, 112
  %v4099 = vpop.permute.xlu0 %4098
  %4100 = vrot.lane.b32.xlu0 %v3825, 112
  %v4101 = vpop.permute.xlu0 %4100
  %4104 = vrot.lane.b32.xlu0 %v3822, 96
  %v4105 = vpop.permute.xlu0 %4104
  %4106 = vrot.lane.b32.xlu0 %v3825, 96
  %v4107 = vpop.permute.xlu0 %4106
  %4110 = vrot.lane.b32.xlu0 %v3822, 80
  %v4111 = vpop.permute.xlu0 %4110
  %4112 = vrot.lane.b32.xlu0 %v3825, 80
  %v4113 = vpop.permute.xlu0 %4112
  %v4116 = vrot.slane %v4105, 4
  %v4117 = vsel %vm193, %v4116, %v3822
  %v4118 = vrot.slane %v3822, 4
  %v4119 = vsel %vm193, %v4105, %v4118
  %v4121 = vunpack.c.l.s4 1983009808
  %v4122 = vunpack.c.0.s8 %v4121
  %v4123 = vperm.slane %v4117, %v4122
  %v4125 = vunpack.c.l.s4 1983009808
  %v4126 = vunpack.c.0.s8 %v4125
  %v4127 = vperm.slane %v4119, %v4126
  %v4128 = vrot.slane %v4111, 4
  %v4129 = vsel %vm193, %v4128, %v4099
  %v4130 = vrot.slane %v4099, 4
  %v4131 = vsel %vm193, %v4111, %v4130
  %v4133 = vunpack.c.l.s4 1983009808
  %v4134 = vunpack.c.0.s8 %v4133
  %v4135 = vperm.slane %v4129, %v4134
  %v4137 = vunpack.c.l.s4 1983009808
  %v4138 = vunpack.c.0.s8 %v4137
  %v4139 = vperm.slane %v4131, %v4138
  %v4140 = vrot.slane %v4135, 4
  %v4141 = vsel %vm193, %v4140, %v4123
  %v4142 = vrot.slane %v4123, 4
  %v4143 = vsel %vm193, %v4135, %v4142
  %v4145 = vunpack.c.l.s4 1934713408
  %v4146 = vunpack.c.0.s8 %v4145
  %v4147 = vperm.slane %v4141, %v4146
  %v4149 = vunpack.c.l.s4 1934713408
  %v4150 = vunpack.c.0.s8 %v4149
  %v4151 = vperm.slane %v4143, %v4150
  %v4152 = vrot.slane %v4139, 4
  %v4153 = vsel %vm193, %v4152, %v4127
  %v4154 = vrot.slane %v4127, 4
  %v4155 = vsel %vm193, %v4139, %v4154
  %v4157 = vunpack.c.l.s4 1934713408
  %v4158 = vunpack.c.0.s8 %v4157
  %v4159 = vperm.slane %v4153, %v4158
  %v4161 = vunpack.c.l.s4 1934713408
  %v4162 = vunpack.c.0.s8 %v4161
  %v4163 = vperm.slane %v4155, %v4162
  %v4164 = vrot.slane %v4147, 4
  %v4165 = vsel %vm193, 0.0, %v4164
  %v4166 = vrot.slane %v4151, 4
  %v4167 = vsel %vm193, 0.0, %v4166
  %v4168 = vrot.slane %v4159, 4
  %v4169 = vsel %vm193, 0.0, %v4168
  %v4170 = vrot.slane %v4163, 4
  %v4171 = vsel %vm193, 0.0, %v4170
  %v4172 = vrot.slane %v4107, 4
  %v4173 = vsel %vm193, %v4172, %v3825
  %v4174 = vrot.slane %v3825, 4
  %v4175 = vsel %vm193, %v4107, %v4174
  %v4177 = vunpack.c.l.s4 1983009808
  %v4178 = vunpack.c.0.s8 %v4177
  %v4179 = vperm.slane %v4173, %v4178
  %v4181 = vunpack.c.l.s4 1983009808
  %v4182 = vunpack.c.0.s8 %v4181
  %v4183 = vperm.slane %v4175, %v4182
  %v4184 = vrot.slane %v4113, 4
  %v4185 = vsel %vm193, %v4184, %v4101
  %v4186 = vrot.slane %v4101, 4
  %v4187 = vsel %vm193, %v4113, %v4186
  %v4189 = vunpack.c.l.s4 1983009808
  %v4190 = vunpack.c.0.s8 %v4189
  %v4191 = vperm.slane %v4185, %v4190
  %v4193 = vunpack.c.l.s4 1983009808
  %v4194 = vunpack.c.0.s8 %v4193
  %v4195 = vperm.slane %v4187, %v4194
  %v4196 = vrot.slane %v4191, 4
  %v4197 = vsel %vm193, %v4196, %v4179
  %v4198 = vrot.slane %v4179, 4
  %v4199 = vsel %vm193, %v4191, %v4198
  %v4201 = vunpack.c.l.s4 1934713408
  %v4202 = vunpack.c.0.s8 %v4201
  %v4203 = vperm.slane %v4197, %v4202
  %v4205 = vunpack.c.l.s4 1934713408
  %v4206 = vunpack.c.0.s8 %v4205
  %v4207 = vperm.slane %v4199, %v4206
  %v4208 = vrot.slane %v4195, 4
  %v4209 = vsel %vm193, %v4208, %v4183
  %v4210 = vrot.slane %v4183, 4
  %v4211 = vsel %vm193, %v4195, %v4210
  %v4213 = vunpack.c.l.s4 1934713408
  %v4214 = vunpack.c.0.s8 %v4213
  %v4215 = vperm.slane %v4209, %v4214
  %v4217 = vunpack.c.l.s4 1934713408
  %v4218 = vunpack.c.0.s8 %v4217
  %v4219 = vperm.slane %v4211, %v4218
  %v4220 = vrot.slane %v4203, 4
  %v4221 = vsel %vm193, 0.0, %v4220
  %v4222 = vrot.slane %v4207, 4
  %v4223 = vsel %vm193, 0.0, %v4222
  %v4224 = vrot.slane %v4215, 4
  %v4225 = vsel %vm193, 0.0, %v4224
  %v4226 = vrot.slane %v4219, 4
  %v4227 = vsel %vm193, 0.0, %v4226
  %v4228 = vsel %vm193, %v4166, %v4147
  %v4230 = vunpack.c.l.s4 1983009808
  %v4231 = vunpack.c.0.s8 %v4230
  %v4232 = vperm.slane %v4228, %v4231
  %v4233 = vrot.slane %v4167, 4
  %v4234 = vsel %vm193, %v4233, %v4165
  %v4236 = vunpack.c.l.s4 1983009808
  %v4237 = vunpack.c.0.s8 %v4236
  %v4238 = vperm.slane %v4234, %v4237
  %v4239 = vsel %vm193, %v4170, %v4159
  %v4241 = vunpack.c.l.s4 1983009808
  %v4242 = vunpack.c.0.s8 %v4241
  %v4243 = vperm.slane %v4239, %v4242
  %v4244 = vrot.slane %v4171, 4
  %v4245 = vsel %vm193, %v4244, %v4169
  %v4247 = vunpack.c.l.s4 1983009808
  %v4248 = vunpack.c.0.s8 %v4247
  %v4249 = vperm.slane %v4245, %v4248
  %v4250 = vrot.slane %v4238, 4
  %v4251 = vsel %vm193, %v4250, %v4232
  %v4252 = vrot.slane %v4232, 4
  %v4253 = vsel %vm193, %v4238, %v4252
  %v4255 = vunpack.c.l.s4 1934713408
  %v4256 = vunpack.c.0.s8 %v4255
  %v4257 = vperm.slane %v4251, %v4256
  %v4259 = vunpack.c.l.s4 1934713408
  %v4260 = vunpack.c.0.s8 %v4259
  %v4261 = vperm.slane %v4253, %v4260
  %v4262 = vrot.slane %v4249, 4
  %v4263 = vsel %vm193, %v4262, %v4243
  %v4264 = vrot.slane %v4243, 4
  %v4265 = vsel %vm193, %v4249, %v4264
  %v4267 = vunpack.c.l.s4 1934713408
  %v4268 = vunpack.c.0.s8 %v4267
  %v4269 = vperm.slane %v4263, %v4268
  %v4271 = vunpack.c.l.s4 1934713408
  %v4272 = vunpack.c.0.s8 %v4271
  %v4273 = vperm.slane %v4265, %v4272
  %v4274 = vrot.slane %v4269, 4
  %v4275 = vsel %vm193, %v4274, %v4257
  %v4276 = vrot.slane %v4257, 4
  %v4277 = vsel %vm193, %v4269, %v4276
  %v4278 = vrot.slane %v4273, 4
  %v4279 = vsel %vm193, %v4278, %v4261
  %v4280 = vrot.slane %v4261, 4
  %v4281 = vsel %vm193, %v4273, %v4280
  %v4282 = vsel %vm193, %v4222, %v4203
  %v4284 = vunpack.c.l.s4 1983009808
  %v4285 = vunpack.c.0.s8 %v4284
  %v4286 = vperm.slane %v4282, %v4285
  %v4287 = vrot.slane %v4223, 4
  %v4288 = vsel %vm193, %v4287, %v4221
  %v4290 = vunpack.c.l.s4 1983009808
  %v4291 = vunpack.c.0.s8 %v4290
  %v4292 = vperm.slane %v4288, %v4291
  %v4293 = vsel %vm193, %v4226, %v4215
  %v4295 = vunpack.c.l.s4 1983009808
  %v4296 = vunpack.c.0.s8 %v4295
  %v4297 = vperm.slane %v4293, %v4296
  %v4298 = vrot.slane %v4227, 4
  %v4299 = vsel %vm193, %v4298, %v4225
  %v4301 = vunpack.c.l.s4 1983009808
  %v4302 = vunpack.c.0.s8 %v4301
  %v4303 = vperm.slane %v4299, %v4302
  %v4304 = vrot.slane %v4292, 4
  %v4305 = vsel %vm193, %v4304, %v4286
  %v4306 = vrot.slane %v4286, 4
  %v4307 = vsel %vm193, %v4292, %v4306
  %v4309 = vunpack.c.l.s4 1934713408
  %v4310 = vunpack.c.0.s8 %v4309
  %v4311 = vperm.slane %v4305, %v4310
  %v4313 = vunpack.c.l.s4 1934713408
  %v4314 = vunpack.c.0.s8 %v4313
  %v4315 = vperm.slane %v4307, %v4314
  %v4316 = vrot.slane %v4303, 4
  %v4317 = vsel %vm193, %v4316, %v4297
  %v4318 = vrot.slane %v4297, 4
  %v4319 = vsel %vm193, %v4303, %v4318
  %v4321 = vunpack.c.l.s4 1934713408
  %v4322 = vunpack.c.0.s8 %v4321
  %v4323 = vperm.slane %v4317, %v4322
  %v4325 = vunpack.c.l.s4 1934713408
  %v4326 = vunpack.c.0.s8 %v4325
  %v4327 = vperm.slane %v4319, %v4326
  %v4328 = vrot.slane %v4323, 4
  %v4329 = vsel %vm193, %v4328, %v4311
  %v4330 = vrot.slane %v4311, 4
  %v4331 = vsel %vm193, %v4323, %v4330
  %v4332 = vrot.slane %v4327, 4
  %v4333 = vsel %vm193, %v4332, %v4315
  %v4334 = vrot.slane %v4315, 4
  %v4335 = vsel %vm193, %v4327, %v4334
  %4338 = vrot.lane.b32.xlu0 %v3851, 112
  %v4339 = vpop.permute.xlu0 %4338
  %4340 = vrot.lane.b32.xlu0 %v3854, 112
  %v4341 = vpop.permute.xlu0 %4340
  %4344 = vrot.lane.b32.xlu0 %v3851, 96
  %v4345 = vpop.permute.xlu0 %4344
  %4346 = vrot.lane.b32.xlu0 %v3854, 96
  %v4347 = vpop.permute.xlu0 %4346
  %4350 = vrot.lane.b32.xlu0 %v3851, 80
  %v4351 = vpop.permute.xlu0 %4350
  %4352 = vrot.lane.b32.xlu0 %v3854, 80
  %v4353 = vpop.permute.xlu0 %4352
  %v4356 = vrot.slane %v4345, 4
  %v4357 = vsel %vm193, %v4356, %v3851
  %v4358 = vrot.slane %v3851, 4
  %v4359 = vsel %vm193, %v4345, %v4358
  %v4361 = vunpack.c.l.s4 1983009808
  %v4362 = vunpack.c.0.s8 %v4361
  %v4363 = vperm.slane %v4357, %v4362
  %v4365 = vunpack.c.l.s4 1983009808
  %v4366 = vunpack.c.0.s8 %v4365
  %v4367 = vperm.slane %v4359, %v4366
  %v4368 = vrot.slane %v4351, 4
  %v4369 = vsel %vm193, %v4368, %v4339
  %v4370 = vrot.slane %v4339, 4
  %v4371 = vsel %vm193, %v4351, %v4370
  %v4373 = vunpack.c.l.s4 1983009808
  %v4374 = vunpack.c.0.s8 %v4373
  %v4375 = vperm.slane %v4369, %v4374
  %v4377 = vunpack.c.l.s4 1983009808
  %v4378 = vunpack.c.0.s8 %v4377
  %v4379 = vperm.slane %v4371, %v4378
  %v4380 = vrot.slane %v4375, 4
  %v4381 = vsel %vm193, %v4380, %v4363
  %v4382 = vrot.slane %v4363, 4
  %v4383 = vsel %vm193, %v4375, %v4382
  %v4385 = vunpack.c.l.s4 1934713408
  %v4386 = vunpack.c.0.s8 %v4385
  %v4387 = vperm.slane %v4381, %v4386
  %v4389 = vunpack.c.l.s4 1934713408
  %v4390 = vunpack.c.0.s8 %v4389
  %v4391 = vperm.slane %v4383, %v4390
  %v4392 = vrot.slane %v4379, 4
  %v4393 = vsel %vm193, %v4392, %v4367
  %v4394 = vrot.slane %v4367, 4
  %v4395 = vsel %vm193, %v4379, %v4394
  %v4397 = vunpack.c.l.s4 1934713408
  %v4398 = vunpack.c.0.s8 %v4397
  %v4399 = vperm.slane %v4393, %v4398
  %v4401 = vunpack.c.l.s4 1934713408
  %v4402 = vunpack.c.0.s8 %v4401
  %v4403 = vperm.slane %v4395, %v4402
  %v4404 = vrot.slane %v4387, 4
  %v4405 = vsel %vm193, 0.0, %v4404
  %v4406 = vrot.slane %v4391, 4
  %v4407 = vsel %vm193, 0.0, %v4406
  %v4408 = vrot.slane %v4399, 4
  %v4409 = vsel %vm193, 0.0, %v4408
  %v4410 = vrot.slane %v4403, 4
  %v4411 = vsel %vm193, 0.0, %v4410
  %v4412 = vrot.slane %v4347, 4
  %v4413 = vsel %vm193, %v4412, %v3854
  %v4414 = vrot.slane %v3854, 4
  %v4415 = vsel %vm193, %v4347, %v4414
  %v4417 = vunpack.c.l.s4 1983009808
  %v4418 = vunpack.c.0.s8 %v4417
  %v4419 = vperm.slane %v4413, %v4418
  %v4421 = vunpack.c.l.s4 1983009808
  %v4422 = vunpack.c.0.s8 %v4421
  %v4423 = vperm.slane %v4415, %v4422
  %v4424 = vrot.slane %v4353, 4
  %v4425 = vsel %vm193, %v4424, %v4341
  %v4426 = vrot.slane %v4341, 4
  %v4427 = vsel %vm193, %v4353, %v4426
  %v4429 = vunpack.c.l.s4 1983009808
  %v4430 = vunpack.c.0.s8 %v4429
  %v4431 = vperm.slane %v4425, %v4430
  %v4433 = vunpack.c.l.s4 1983009808
  %v4434 = vunpack.c.0.s8 %v4433
  %v4435 = vperm.slane %v4427, %v4434
  %v4436 = vrot.slane %v4431, 4
  %v4437 = vsel %vm193, %v4436, %v4419
  %v4438 = vrot.slane %v4419, 4
  %v4439 = vsel %vm193, %v4431, %v4438
  %v4441 = vunpack.c.l.s4 1934713408
  %v4442 = vunpack.c.0.s8 %v4441
  %v4443 = vperm.slane %v4437, %v4442
  %v4445 = vunpack.c.l.s4 1934713408
  %v4446 = vunpack.c.0.s8 %v4445
  %v4447 = vperm.slane %v4439, %v4446
  %v4448 = vrot.slane %v4435, 4
  %v4449 = vsel %vm193, %v4448, %v4423
  %v4450 = vrot.slane %v4423, 4
  %v4451 = vsel %vm193, %v4435, %v4450
  %v4453 = vunpack.c.l.s4 1934713408
  %v4454 = vunpack.c.0.s8 %v4453
  %v4455 = vperm.slane %v4449, %v4454
  %v4457 = vunpack.c.l.s4 1934713408
  %v4458 = vunpack.c.0.s8 %v4457
  %v4459 = vperm.slane %v4451, %v4458
  %v4460 = vrot.slane %v4443, 4
  %v4461 = vsel %vm193, 0.0, %v4460
  %v4462 = vrot.slane %v4447, 4
  %v4463 = vsel %vm193, 0.0, %v4462
  %v4464 = vrot.slane %v4455, 4
  %v4465 = vsel %vm193, 0.0, %v4464
  %v4466 = vrot.slane %v4459, 4
  %v4467 = vsel %vm193, 0.0, %v4466
  %v4468 = vsel %vm193, %v4406, %v4387
  %v4470 = vunpack.c.l.s4 1983009808
  %v4471 = vunpack.c.0.s8 %v4470
  %v4472 = vperm.slane %v4468, %v4471
  %v4473 = vrot.slane %v4407, 4
  %v4474 = vsel %vm193, %v4473, %v4405
  %v4476 = vunpack.c.l.s4 1983009808
  %v4477 = vunpack.c.0.s8 %v4476
  %v4478 = vperm.slane %v4474, %v4477
  %v4479 = vsel %vm193, %v4410, %v4399
  %v4481 = vunpack.c.l.s4 1983009808
  %v4482 = vunpack.c.0.s8 %v4481
  %v4483 = vperm.slane %v4479, %v4482
  %v4484 = vrot.slane %v4411, 4
  %v4485 = vsel %vm193, %v4484, %v4409
  %v4487 = vunpack.c.l.s4 1983009808
  %v4488 = vunpack.c.0.s8 %v4487
  %v4489 = vperm.slane %v4485, %v4488
  %v4490 = vrot.slane %v4478, 4
  %v4491 = vsel %vm193, %v4490, %v4472
  %v4492 = vrot.slane %v4472, 4
  %v4493 = vsel %vm193, %v4478, %v4492
  %v4495 = vunpack.c.l.s4 1934713408
  %v4496 = vunpack.c.0.s8 %v4495
  %v4497 = vperm.slane %v4491, %v4496
  %v4499 = vunpack.c.l.s4 1934713408
  %v4500 = vunpack.c.0.s8 %v4499
  %v4501 = vperm.slane %v4493, %v4500
  %v4502 = vrot.slane %v4489, 4
  %v4503 = vsel %vm193, %v4502, %v4483
  %v4504 = vrot.slane %v4483, 4
  %v4505 = vsel %vm193, %v4489, %v4504
  %v4507 = vunpack.c.l.s4 1934713408
  %v4508 = vunpack.c.0.s8 %v4507
  %v4509 = vperm.slane %v4503, %v4508
  %v4511 = vunpack.c.l.s4 1934713408
  %v4512 = vunpack.c.0.s8 %v4511
  %v4513 = vperm.slane %v4505, %v4512
  %v4514 = vrot.slane %v4509, 4
  %v4515 = vsel %vm193, %v4514, %v4497
  %v4516 = vrot.slane %v4497, 4
  %v4517 = vsel %vm193, %v4509, %v4516
  %v4518 = vrot.slane %v4513, 4
  %v4519 = vsel %vm193, %v4518, %v4501
  %v4520 = vrot.slane %v4501, 4
  %v4521 = vsel %vm193, %v4513, %v4520
  %v4522 = vsel %vm193, %v4462, %v4443
  %v4524 = vunpack.c.l.s4 1983009808
  %v4525 = vunpack.c.0.s8 %v4524
  %v4526 = vperm.slane %v4522, %v4525
  %v4527 = vrot.slane %v4463, 4
  %v4528 = vsel %vm193, %v4527, %v4461
  %v4530 = vunpack.c.l.s4 1983009808
  %v4531 = vunpack.c.0.s8 %v4530
  %v4532 = vperm.slane %v4528, %v4531
  %v4533 = vsel %vm193, %v4466, %v4455
  %v4535 = vunpack.c.l.s4 1983009808
  %v4536 = vunpack.c.0.s8 %v4535
  %v4537 = vperm.slane %v4533, %v4536
  %v4538 = vrot.slane %v4467, 4
  %v4539 = vsel %vm193, %v4538, %v4465
  %v4541 = vunpack.c.l.s4 1983009808
  %v4542 = vunpack.c.0.s8 %v4541
  %v4543 = vperm.slane %v4539, %v4542
  %v4544 = vrot.slane %v4532, 4
  %v4545 = vsel %vm193, %v4544, %v4526
  %v4546 = vrot.slane %v4526, 4
  %v4547 = vsel %vm193, %v4532, %v4546
  %v4549 = vunpack.c.l.s4 1934713408
  %v4550 = vunpack.c.0.s8 %v4549
  %v4551 = vperm.slane %v4545, %v4550
  %v4553 = vunpack.c.l.s4 1934713408
  %v4554 = vunpack.c.0.s8 %v4553
  %v4555 = vperm.slane %v4547, %v4554
  %v4556 = vrot.slane %v4543, 4
  %v4557 = vsel %vm193, %v4556, %v4537
  %v4558 = vrot.slane %v4537, 4
  %v4559 = vsel %vm193, %v4543, %v4558
  %v4561 = vunpack.c.l.s4 1934713408
  %v4562 = vunpack.c.0.s8 %v4561
  %v4563 = vperm.slane %v4557, %v4562
  %v4565 = vunpack.c.l.s4 1934713408
  %v4566 = vunpack.c.0.s8 %v4565
  %v4567 = vperm.slane %v4559, %v4566
  %v4568 = vrot.slane %v4563, 4
  %v4569 = vsel %vm193, %v4568, %v4551
  %v4570 = vrot.slane %v4551, 4
  %v4571 = vsel %vm193, %v4563, %v4570
  %v4572 = vrot.slane %v4567, 4
  %v4573 = vsel %vm193, %v4572, %v4555
  %v4574 = vrot.slane %v4555, 4
  %v4575 = vsel %vm193, %v4567, %v4574
  %v4577 = vsel %vm893, %v4035, 0
  %v4580 = vsel %vm893, %v4275, 0
  %4582 = vmatpush.xpose.msra.mxu0 0.0
  %4583 = vmatpush.xpose.msra.mxu0 0.0
  %4584 = vmatpush.xpose.msra.mxu0 0.0
  %4585 = vmatpush.xpose.msra.mxu0 0.0
  %4586 = vmatpush.xpose.msra.mxu0 0.0
  %4587 = vmatpush.xpose.msra.mxu0 0.0
  %4588 = vmatpush.xpose.msra.mxu0 0.0
  %4589 = vmatpush.xpose.msra.mxu0 0.0
  %4590 = vmatpush.xpose.msra.mxu0 0.0
  %4591 = vmatpush.xpose.msra.mxu0 0.0
  %4592 = vmatpush.xpose.msra.mxu0 0.0
  %4593 = vmatpush.xpose.msra.mxu0 0.0
  %4594 = vmatpush.xpose.msra.mxu0 0.0
  %4595 = vmatpush.xpose.msra.mxu0 0.0
  %4596 = vmatpush.xpose.msra.mxu0 0.0
  %4597 = vmatpush.xpose.msra.mxu0 %v4580
  %4598 = vmatmul.f32.gmra.mxu0 %v4577
  %v4599 = vpop.f32.mrf.mxu0
  %v4600 = vadd.f32 0.0, %v4599
  %4601 = vdwg.mxu0
  %v4603 = vsel %vm893, %v4037, 0
  %v4606 = vsel %vm893, %v4277, 0
  %4608 = vmatpush.xpose.msra.mxu0 0.0
  %4609 = vmatpush.xpose.msra.mxu0 0.0
  %4610 = vmatpush.xpose.msra.mxu0 0.0
  %4611 = vmatpush.xpose.msra.mxu0 0.0
  %4612 = vmatpush.xpose.msra.mxu0 0.0
  %4613 = vmatpush.xpose.msra.mxu0 0.0
  %4614 = vmatpush.xpose.msra.mxu0 0.0
  %4615 = vmatpush.xpose.msra.mxu0 0.0
  %4616 = vmatpush.xpose.msra.mxu0 0.0
  %4617 = vmatpush.xpose.msra.mxu0 0.0
  %4618 = vmatpush.xpose.msra.mxu0 0.0
  %4619 = vmatpush.xpose.msra.mxu0 0.0
  %4620 = vmatpush.xpose.msra.mxu0 0.0
  %4621 = vmatpush.xpose.msra.mxu0 0.0
  %4622 = vmatpush.xpose.msra.mxu0 0.0
  %4623 = vmatpush.xpose.msra.mxu0 %v4606
  %4624 = vmatmul.f32.gmra.mxu0 %v4603
  %v4625 = vpop.f32.mrf.mxu0
  %v4626 = vadd.f32 0.0, %v4625
  %4627 = vdwg.mxu0
  %v4629 = vsel %vm893, %v4039, 0
  %v4632 = vsel %vm893, %v4279, 0
  %4634 = vmatpush.xpose.msra.mxu0 0.0
  %4635 = vmatpush.xpose.msra.mxu0 0.0
  %4636 = vmatpush.xpose.msra.mxu0 0.0
  %4637 = vmatpush.xpose.msra.mxu0 0.0
  %4638 = vmatpush.xpose.msra.mxu0 0.0
  %4639 = vmatpush.xpose.msra.mxu0 0.0
  %4640 = vmatpush.xpose.msra.mxu0 0.0
  %4641 = vmatpush.xpose.msra.mxu0 0.0
  %4642 = vmatpush.xpose.msra.mxu0 0.0
  %4643 = vmatpush.xpose.msra.mxu0 0.0
  %4644 = vmatpush.xpose.msra.mxu0 0.0
  %4645 = vmatpush.xpose.msra.mxu0 0.0
  %4646 = vmatpush.xpose.msra.mxu0 0.0
  %4647 = vmatpush.xpose.msra.mxu0 0.0
  %4648 = vmatpush.xpose.msra.mxu0 0.0
  %4649 = vmatpush.xpose.msra.mxu0 %v4632
  %4650 = vmatmul.f32.gmra.mxu0 %v4629
  %v4651 = vpop.f32.mrf.mxu0
  %v4652 = vadd.f32 0.0, %v4651
  %4653 = vdwg.mxu0
  %v4655 = vsel %vm893, %v4041, 0
  %v4658 = vsel %vm893, %v4281, 0
  %4660 = vmatpush.xpose.msra.mxu0 0.0
  %4661 = vmatpush.xpose.msra.mxu0 0.0
  %4662 = vmatpush.xpose.msra.mxu0 0.0
  %4663 = vmatpush.xpose.msra.mxu0 0.0
  %4664 = vmatpush.xpose.msra.mxu0 0.0
  %4665 = vmatpush.xpose.msra.mxu0 0.0
  %4666 = vmatpush.xpose.msra.mxu0 0.0
  %4667 = vmatpush.xpose.msra.mxu0 0.0
  %4668 = vmatpush.xpose.msra.mxu0 0.0
  %4669 = vmatpush.xpose.msra.mxu0 0.0
  %4670 = vmatpush.xpose.msra.mxu0 0.0
  %4671 = vmatpush.xpose.msra.mxu0 0.0
  %4672 = vmatpush.xpose.msra.mxu0 0.0
  %4673 = vmatpush.xpose.msra.mxu0 0.0
  %4674 = vmatpush.xpose.msra.mxu0 0.0
  %4675 = vmatpush.xpose.msra.mxu0 %v4658
  %4676 = vmatmul.f32.gmra.mxu0 %v4655
  %v4677 = vpop.f32.mrf.mxu0
  %v4678 = vadd.f32 0.0, %v4677
  %4679 = vdwg.mxu0
  %v4681 = vsel %vm893, %v4089, 0
  %v4684 = vsel %vm893, %v4329, 0
  %4686 = vmatpush.xpose.msra.mxu0 0.0
  %4687 = vmatpush.xpose.msra.mxu0 0.0
  %4688 = vmatpush.xpose.msra.mxu0 0.0
  %4689 = vmatpush.xpose.msra.mxu0 0.0
  %4690 = vmatpush.xpose.msra.mxu0 0.0
  %4691 = vmatpush.xpose.msra.mxu0 0.0
  %4692 = vmatpush.xpose.msra.mxu0 0.0
  %4693 = vmatpush.xpose.msra.mxu0 0.0
  %4694 = vmatpush.xpose.msra.mxu0 0.0
  %4695 = vmatpush.xpose.msra.mxu0 0.0
  %4696 = vmatpush.xpose.msra.mxu0 0.0
  %4697 = vmatpush.xpose.msra.mxu0 0.0
  %4698 = vmatpush.xpose.msra.mxu0 0.0
  %4699 = vmatpush.xpose.msra.mxu0 0.0
  %4700 = vmatpush.xpose.msra.mxu0 0.0
  %4701 = vmatpush.xpose.msra.mxu0 %v4684
  %4702 = vmatmul.f32.gmra.mxu0 %v4681
  %v4703 = vpop.f32.mrf.mxu0
  %v4704 = vadd.f32 0.0, %v4703
  %4705 = vdwg.mxu0
  %v4707 = vsel %vm893, %v4091, 0
  %v4710 = vsel %vm893, %v4331, 0
  %4712 = vmatpush.xpose.msra.mxu0 0.0
  %4713 = vmatpush.xpose.msra.mxu0 0.0
  %4714 = vmatpush.xpose.msra.mxu0 0.0
  %4715 = vmatpush.xpose.msra.mxu0 0.0
  %4716 = vmatpush.xpose.msra.mxu0 0.0
  %4717 = vmatpush.xpose.msra.mxu0 0.0
  %4718 = vmatpush.xpose.msra.mxu0 0.0
  %4719 = vmatpush.xpose.msra.mxu0 0.0
  %4720 = vmatpush.xpose.msra.mxu0 0.0
  %4721 = vmatpush.xpose.msra.mxu0 0.0
  %4722 = vmatpush.xpose.msra.mxu0 0.0
  %4723 = vmatpush.xpose.msra.mxu0 0.0
  %4724 = vmatpush.xpose.msra.mxu0 0.0
  %4725 = vmatpush.xpose.msra.mxu0 0.0
  %4726 = vmatpush.xpose.msra.mxu0 0.0
  %4727 = vmatpush.xpose.msra.mxu0 %v4710
  %4728 = vmatmul.f32.gmra.mxu0 %v4707
  %v4729 = vpop.f32.mrf.mxu0
  %v4730 = vadd.f32 0.0, %v4729
  %4731 = vdwg.mxu0
  %v4733 = vsel %vm893, %v4093, 0
  %v4736 = vsel %vm893, %v4333, 0
  %4738 = vmatpush.xpose.msra.mxu0 0.0
  %4739 = vmatpush.xpose.msra.mxu0 0.0
  %4740 = vmatpush.xpose.msra.mxu0 0.0
  %4741 = vmatpush.xpose.msra.mxu0 0.0
  %4742 = vmatpush.xpose.msra.mxu0 0.0
  %4743 = vmatpush.xpose.msra.mxu0 0.0
  %4744 = vmatpush.xpose.msra.mxu0 0.0
  %4745 = vmatpush.xpose.msra.mxu0 0.0
  %4746 = vmatpush.xpose.msra.mxu0 0.0
  %4747 = vmatpush.xpose.msra.mxu0 0.0
  %4748 = vmatpush.xpose.msra.mxu0 0.0
  %4749 = vmatpush.xpose.msra.mxu0 0.0
  %4750 = vmatpush.xpose.msra.mxu0 0.0
  %4751 = vmatpush.xpose.msra.mxu0 0.0
  %4752 = vmatpush.xpose.msra.mxu0 0.0
  %4753 = vmatpush.xpose.msra.mxu0 %v4736
  %4754 = vmatmul.f32.gmra.mxu0 %v4733
  %v4755 = vpop.f32.mrf.mxu0
  %v4756 = vadd.f32 0.0, %v4755
  %4757 = vdwg.mxu0
  %v4759 = vsel %vm893, %v4095, 0
  %v4762 = vsel %vm893, %v4335, 0
  %4764 = vmatpush.xpose.msra.mxu0 0.0
  %4765 = vmatpush.xpose.msra.mxu0 0.0
  %4766 = vmatpush.xpose.msra.mxu0 0.0
  %4767 = vmatpush.xpose.msra.mxu0 0.0
  %4768 = vmatpush.xpose.msra.mxu0 0.0
  %4769 = vmatpush.xpose.msra.mxu0 0.0
  %4770 = vmatpush.xpose.msra.mxu0 0.0
  %4771 = vmatpush.xpose.msra.mxu0 0.0
  %4772 = vmatpush.xpose.msra.mxu0 0.0
  %4773 = vmatpush.xpose.msra.mxu0 0.0
  %4774 = vmatpush.xpose.msra.mxu0 0.0
  %4775 = vmatpush.xpose.msra.mxu0 0.0
  %4776 = vmatpush.xpose.msra.mxu0 0.0
  %4777 = vmatpush.xpose.msra.mxu0 0.0
  %4778 = vmatpush.xpose.msra.mxu0 0.0
  %4779 = vmatpush.xpose.msra.mxu0 %v4762
  %4780 = vmatmul.f32.gmra.mxu0 %v4759
  %v4781 = vpop.f32.mrf.mxu0
  %v4782 = vadd.f32 0.0, %v4781
  %4783 = vdwg.mxu0
  %v4784 = vsel %vm1102, %v4600, -inf
  %4785 = vmax.xlane.f32.xlu0 %v4784
  %v4786 = vpop.xlane.xlu0 %4785
  %v4787 = vsel %vm1102, %v4626, -inf
  %4788 = vmax.xlane.f32.xlu0 %v4787
  %v4789 = vpop.xlane.xlu0 %4788
  %v4790 = vsel %vm1102, %v4652, -inf
  %4791 = vmax.xlane.f32.xlu0 %v4790
  %v4792 = vpop.xlane.xlu0 %4791
  %v4793 = vsel %vm1102, %v4678, -inf
  %4794 = vmax.xlane.f32.xlu0 %v4793
  %v4795 = vpop.xlane.xlu0 %4794
  %v4796 = vsel %vm1102, %v4704, -inf
  %4797 = vmax.xlane.f32.xlu0 %v4796
  %v4798 = vpop.xlane.xlu0 %4797
  %v4799 = vsel %vm1102, %v4730, -inf
  %4800 = vmax.xlane.f32.xlu0 %v4799
  %v4801 = vpop.xlane.xlu0 %4800
  %v4802 = vsel %vm1102, %v4756, -inf
  %4803 = vmax.xlane.f32.xlu0 %v4802
  %v4804 = vpop.xlane.xlu0 %4803
  %v4805 = vsel %vm1102, %v4782, -inf
  %4806 = vmax.xlane.f32.xlu0 %v4805
  %v4807 = vpop.xlane.xlu0 %4806
  %v4808 = vsub.f32 %v4600, %v4786
  %v4809 = vsub.f32 %v4626, %v4789
  %v4810 = vsub.f32 %v4652, %v4792
  %v4811 = vsub.f32 %v4678, %v4795
  %v4812 = vsub.f32 %v4704, %v4798
  %v4813 = vsub.f32 %v4730, %v4801
  %v4814 = vsub.f32 %v4756, %v4804
  %v4815 = vsub.f32 %v4782, %v4807
  %v4816 = vmul.f32 %v4808, 1.442695
  %v4817 = vpow.pop %v4816
  %v4818 = vmul.f32 %v4809, 1.442695
  %v4819 = vpow.pop %v4818
  %v4820 = vmul.f32 %v4810, 1.442695
  %v4821 = vpow.pop %v4820
  %v4822 = vmul.f32 %v4811, 1.442695
  %v4823 = vpow.pop %v4822
  %v4824 = vmul.f32 %v4812, 1.442695
  %v4825 = vpow.pop %v4824
  %v4826 = vmul.f32 %v4813, 1.442695
  %v4827 = vpow.pop %v4826
  %v4828 = vmul.f32 %v4814, 1.442695
  %v4829 = vpow.pop %v4828
  %v4830 = vmul.f32 %v4815, 1.442695
  %v4831 = vpow.pop %v4830
  %v4832 = vsel %vm1102, %v4817, 0.0
  %4833 = vadd.xlane.f32.xlu0 %v4832
  %v4834 = vpop.xlane.xlu0 %4833
  %v4835 = vsel %vm1102, %v4819, 0.0
  %4836 = vadd.xlane.f32.xlu0 %v4835
  %v4837 = vpop.xlane.xlu0 %4836
  %v4838 = vsel %vm1102, %v4821, 0.0
  %4839 = vadd.xlane.f32.xlu0 %v4838
  %v4840 = vpop.xlane.xlu0 %4839
  %v4841 = vsel %vm1102, %v4823, 0.0
  %4842 = vadd.xlane.f32.xlu0 %v4841
  %v4843 = vpop.xlane.xlu0 %4842
  %v4844 = vsel %vm1102, %v4825, 0.0
  %4845 = vadd.xlane.f32.xlu0 %v4844
  %v4846 = vpop.xlane.xlu0 %4845
  %v4847 = vsel %vm1102, %v4827, 0.0
  %4848 = vadd.xlane.f32.xlu0 %v4847
  %v4849 = vpop.xlane.xlu0 %4848
  %v4850 = vsel %vm1102, %v4829, 0.0
  %4851 = vadd.xlane.f32.xlu0 %v4850
  %v4852 = vpop.xlane.xlu0 %4851
  %v4853 = vsel %vm1102, %v4831, 0.0
  %4854 = vadd.xlane.f32.xlu0 %v4853
  %v4855 = vpop.xlane.xlu0 %4854
  %v4856 = vrcp.pop %v4834
  %v4857 = vrcp.pop %v4837
  %v4858 = vrcp.pop %v4840
  %v4859 = vrcp.pop %v4843
  %v4860 = vrcp.pop %v4846
  %v4861 = vrcp.pop %v4849
  %v4862 = vrcp.pop %v4852
  %v4863 = vrcp.pop %v4855
  %v4864 = vmul.f32 %v4817, %v4856
  %v4865 = vmul.f32 %v4819, %v4857
  %v4866 = vmul.f32 %v4821, %v4858
  %v4867 = vmul.f32 %v4823, %v4859
  %v4868 = vmul.f32 %v4825, %v4860
  %v4869 = vmul.f32 %v4827, %v4861
  %v4870 = vmul.f32 %v4829, %v4862
  %v4871 = vmul.f32 %v4831, %v4863
  %v4873 = vsel %vm1102, %v4864, 0
  %4875 = vmatpush.msra.mxu0 0.0
  %4876 = vmatpush.msra.mxu0 0.0
  %4877 = vmatpush.msra.mxu0 0.0
  %4878 = vmatpush.msra.mxu0 0.0
  %4879 = vmatpush.msra.mxu0 0.0
  %4880 = vmatpush.msra.mxu0 0.0
  %4881 = vmatpush.msra.mxu0 0.0
  %4882 = vmatpush.msra.mxu0 0.0
  %4883 = vmatpush.msra.mxu0 0.0
  %4884 = vmatpush.msra.mxu0 0.0
  %4885 = vmatpush.msra.mxu0 0.0
  %4886 = vmatpush.msra.mxu0 0.0
  %4887 = vmatpush.msra.mxu0 0.0
  %4888 = vmatpush.msra.mxu0 0.0
  %4889 = vmatpush.msra.mxu0 0.0
  %4890 = vmatpush.msra.mxu0 %v4515
  %4891 = vmatmul.f32.gmra.mxu0 %v4873
  %v4892 = vpop.f32.mrf.mxu0
  %v4893 = vadd.f32 0.0, %v4892
  %4894 = vdwg.mxu0
  %v4896 = vsel %vm1102, %v4865, 0
  %4898 = vmatpush.msra.mxu0 0.0
  %4899 = vmatpush.msra.mxu0 0.0
  %4900 = vmatpush.msra.mxu0 0.0
  %4901 = vmatpush.msra.mxu0 0.0
  %4902 = vmatpush.msra.mxu0 0.0
  %4903 = vmatpush.msra.mxu0 0.0
  %4904 = vmatpush.msra.mxu0 0.0
  %4905 = vmatpush.msra.mxu0 0.0
  %4906 = vmatpush.msra.mxu0 0.0
  %4907 = vmatpush.msra.mxu0 0.0
  %4908 = vmatpush.msra.mxu0 0.0
  %4909 = vmatpush.msra.mxu0 0.0
  %4910 = vmatpush.msra.mxu0 0.0
  %4911 = vmatpush.msra.mxu0 0.0
  %4912 = vmatpush.msra.mxu0 0.0
  %4913 = vmatpush.msra.mxu0 %v4517
  %4914 = vmatmul.f32.gmra.mxu0 %v4896
  %v4915 = vpop.f32.mrf.mxu0
  %v4916 = vadd.f32 0.0, %v4915
  %4917 = vdwg.mxu0
  %v4919 = vsel %vm1102, %v4866, 0
  %4921 = vmatpush.msra.mxu0 0.0
  %4922 = vmatpush.msra.mxu0 0.0
  %4923 = vmatpush.msra.mxu0 0.0
  %4924 = vmatpush.msra.mxu0 0.0
  %4925 = vmatpush.msra.mxu0 0.0
  %4926 = vmatpush.msra.mxu0 0.0
  %4927 = vmatpush.msra.mxu0 0.0
  %4928 = vmatpush.msra.mxu0 0.0
  %4929 = vmatpush.msra.mxu0 0.0
  %4930 = vmatpush.msra.mxu0 0.0
  %4931 = vmatpush.msra.mxu0 0.0
  %4932 = vmatpush.msra.mxu0 0.0
  %4933 = vmatpush.msra.mxu0 0.0
  %4934 = vmatpush.msra.mxu0 0.0
  %4935 = vmatpush.msra.mxu0 0.0
  %4936 = vmatpush.msra.mxu0 %v4519
  %4937 = vmatmul.f32.gmra.mxu0 %v4919
  %v4938 = vpop.f32.mrf.mxu0
  %v4939 = vadd.f32 0.0, %v4938
  %4940 = vdwg.mxu0
  %v4942 = vsel %vm1102, %v4867, 0
  %4944 = vmatpush.msra.mxu0 0.0
  %4945 = vmatpush.msra.mxu0 0.0
  %4946 = vmatpush.msra.mxu0 0.0
  %4947 = vmatpush.msra.mxu0 0.0
  %4948 = vmatpush.msra.mxu0 0.0
  %4949 = vmatpush.msra.mxu0 0.0
  %4950 = vmatpush.msra.mxu0 0.0
  %4951 = vmatpush.msra.mxu0 0.0
  %4952 = vmatpush.msra.mxu0 0.0
  %4953 = vmatpush.msra.mxu0 0.0
  %4954 = vmatpush.msra.mxu0 0.0
  %4955 = vmatpush.msra.mxu0 0.0
  %4956 = vmatpush.msra.mxu0 0.0
  %4957 = vmatpush.msra.mxu0 0.0
  %4958 = vmatpush.msra.mxu0 0.0
  %4959 = vmatpush.msra.mxu0 %v4521
  %4960 = vmatmul.f32.gmra.mxu0 %v4942
  %v4961 = vpop.f32.mrf.mxu0
  %v4962 = vadd.f32 0.0, %v4961
  %4963 = vdwg.mxu0
  %v4965 = vsel %vm1102, %v4868, 0
  %4967 = vmatpush.msra.mxu0 0.0
  %4968 = vmatpush.msra.mxu0 0.0
  %4969 = vmatpush.msra.mxu0 0.0
  %4970 = vmatpush.msra.mxu0 0.0
  %4971 = vmatpush.msra.mxu0 0.0
  %4972 = vmatpush.msra.mxu0 0.0
  %4973 = vmatpush.msra.mxu0 0.0
  %4974 = vmatpush.msra.mxu0 0.0
  %4975 = vmatpush.msra.mxu0 0.0
  %4976 = vmatpush.msra.mxu0 0.0
  %4977 = vmatpush.msra.mxu0 0.0
  %4978 = vmatpush.msra.mxu0 0.0
  %4979 = vmatpush.msra.mxu0 0.0
  %4980 = vmatpush.msra.mxu0 0.0
  %4981 = vmatpush.msra.mxu0 0.0
  %4982 = vmatpush.msra.mxu0 %v4569
  %4983 = vmatmul.f32.gmra.mxu0 %v4965
  %v4984 = vpop.f32.mrf.mxu0
  %v4985 = vadd.f32 0.0, %v4984
  %4986 = vdwg.mxu0
  %v4988 = vsel %vm1102, %v4869, 0
  %4990 = vmatpush.msra.mxu0 0.0
  %4991 = vmatpush.msra.mxu0 0.0
  %4992 = vmatpush.msra.mxu0 0.0
  %4993 = vmatpush.msra.mxu0 0.0
  %4994 = vmatpush.msra.mxu0 0.0
  %4995 = vmatpush.msra.mxu0 0.0
  %4996 = vmatpush.msra.mxu0 0.0
  %4997 = vmatpush.msra.mxu0 0.0
  %4998 = vmatpush.msra.mxu0 0.0
  %4999 = vmatpush.msra.mxu0 0.0
  %5000 = vmatpush.msra.mxu0 0.0
  %5001 = vmatpush.msra.mxu0 0.0
  %5002 = vmatpush.msra.mxu0 0.0
  %5003 = vmatpush.msra.mxu0 0.0
  %5004 = vmatpush.msra.mxu0 0.0
  %5005 = vmatpush.msra.mxu0 %v4571
  %5006 = vmatmul.f32.gmra.mxu0 %v4988
  %v5007 = vpop.f32.mrf.mxu0
  %v5008 = vadd.f32 0.0, %v5007
  %5009 = vdwg.mxu0
  %v5011 = vsel %vm1102, %v4870, 0
  %5013 = vmatpush.msra.mxu0 0.0
  %5014 = vmatpush.msra.mxu0 0.0
  %5015 = vmatpush.msra.mxu0 0.0
  %5016 = vmatpush.msra.mxu0 0.0
  %5017 = vmatpush.msra.mxu0 0.0
  %5018 = vmatpush.msra.mxu0 0.0
  %5019 = vmatpush.msra.mxu0 0.0
  %5020 = vmatpush.msra.mxu0 0.0
  %5021 = vmatpush.msra.mxu0 0.0
  %5022 = vmatpush.msra.mxu0 0.0
  %5023 = vmatpush.msra.mxu0 0.0
  %5024 = vmatpush.msra.mxu0 0.0
  %5025 = vmatpush.msra.mxu0 0.0
  %5026 = vmatpush.msra.mxu0 0.0
  %5027 = vmatpush.msra.mxu0 0.0
  %5028 = vmatpush.msra.mxu0 %v4573
  %5029 = vmatmul.f32.gmra.mxu0 %v5011
  %v5030 = vpop.f32.mrf.mxu0
  %v5031 = vadd.f32 0.0, %v5030
  %5032 = vdwg.mxu0
  %v5034 = vsel %vm1102, %v4871, 0
  %5036 = vmatpush.msra.mxu0 0.0
  %5037 = vmatpush.msra.mxu0 0.0
  %5038 = vmatpush.msra.mxu0 0.0
  %5039 = vmatpush.msra.mxu0 0.0
  %5040 = vmatpush.msra.mxu0 0.0
  %5041 = vmatpush.msra.mxu0 0.0
  %5042 = vmatpush.msra.mxu0 0.0
  %5043 = vmatpush.msra.mxu0 0.0
  %5044 = vmatpush.msra.mxu0 0.0
  %5045 = vmatpush.msra.mxu0 0.0
  %5046 = vmatpush.msra.mxu0 0.0
  %5047 = vmatpush.msra.mxu0 0.0
  %5048 = vmatpush.msra.mxu0 0.0
  %5049 = vmatpush.msra.mxu0 0.0
  %5050 = vmatpush.msra.mxu0 0.0
  %5051 = vmatpush.msra.mxu0 %v4575
  %5052 = vmatmul.f32.gmra.mxu0 %v5034
  %v5053 = vpop.f32.mrf.mxu0
  %v5054 = vadd.f32 0.0, %v5053
  %5055 = vdwg.mxu0
  %v5056 = vrot.slane %v4939, 4
  %v5057 = vsel %vm193, %v5056, %v4893
  %v5058 = vrot.slane %v4893, 4
  %v5059 = vsel %vm193, %v4939, %v5058
  %v5061 = vunpack.c.l.s4 1983009808
  %v5062 = vunpack.c.0.s8 %v5061
  %v5063 = vperm.slane %v5057, %v5062
  %v5065 = vunpack.c.l.s4 1983009808
  %v5066 = vunpack.c.0.s8 %v5065
  %v5067 = vperm.slane %v5059, %v5066
  %v5068 = vrot.slane %v4962, 4
  %v5069 = vsel %vm193, %v5068, %v4916
  %v5070 = vrot.slane %v4916, 4
  %v5071 = vsel %vm193, %v4962, %v5070
  %v5073 = vunpack.c.l.s4 1983009808
  %v5074 = vunpack.c.0.s8 %v5073
  %v5075 = vperm.slane %v5069, %v5074
  %v5077 = vunpack.c.l.s4 1983009808
  %v5078 = vunpack.c.0.s8 %v5077
  %v5079 = vperm.slane %v5071, %v5078
  %v5080 = vrot.slane %v5075, 4
  %v5081 = vsel %vm193, %v5080, %v5063
  %v5082 = vrot.slane %v5063, 4
  %v5083 = vsel %vm193, %v5075, %v5082
  %v5085 = vunpack.c.l.s4 1934713408
  %v5086 = vunpack.c.0.s8 %v5085
  %v5087 = vperm.slane %v5081, %v5086
  %v5089 = vunpack.c.l.s4 1934713408
  %v5090 = vunpack.c.0.s8 %v5089
  %v5091 = vperm.slane %v5083, %v5090
  %v5092 = vrot.slane %v5079, 4
  %v5093 = vsel %vm193, %v5092, %v5067
  %v5094 = vrot.slane %v5067, 4
  %v5095 = vsel %vm193, %v5079, %v5094
  %v5097 = vunpack.c.l.s4 1934713408
  %v5098 = vunpack.c.0.s8 %v5097
  %v5099 = vperm.slane %v5093, %v5098
  %v5101 = vunpack.c.l.s4 1934713408
  %v5102 = vunpack.c.0.s8 %v5101
  %v5103 = vperm.slane %v5095, %v5102
  %v5104 = vrot.slane %v5087, 4
  %v5105 = vsel %vm193, 0.0, %v5104
  %v5106 = vrot.slane %v5091, 4
  %v5107 = vsel %vm193, 0.0, %v5106
  %v5108 = vrot.slane %v5099, 4
  %v5109 = vsel %vm193, 0.0, %v5108
  %v5110 = vrot.slane %v5103, 4
  %v5111 = vsel %vm193, 0.0, %v5110
  %v5112 = vrot.slane %v5031, 4
  %v5113 = vsel %vm193, %v5112, %v4985
  %v5114 = vrot.slane %v4985, 4
  %v5115 = vsel %vm193, %v5031, %v5114
  %v5117 = vunpack.c.l.s4 1983009808
  %v5118 = vunpack.c.0.s8 %v5117
  %v5119 = vperm.slane %v5113, %v5118
  %v5121 = vunpack.c.l.s4 1983009808
  %v5122 = vunpack.c.0.s8 %v5121
  %v5123 = vperm.slane %v5115, %v5122
  %v5124 = vrot.slane %v5054, 4
  %v5125 = vsel %vm193, %v5124, %v5008
  %v5126 = vrot.slane %v5008, 4
  %v5127 = vsel %vm193, %v5054, %v5126
  %v5129 = vunpack.c.l.s4 1983009808
  %v5130 = vunpack.c.0.s8 %v5129
  %v5131 = vperm.slane %v5125, %v5130
  %v5133 = vunpack.c.l.s4 1983009808
  %v5134 = vunpack.c.0.s8 %v5133
  %v5135 = vperm.slane %v5127, %v5134
  %v5136 = vrot.slane %v5131, 4
  %v5137 = vsel %vm193, %v5136, %v5119
  %v5138 = vrot.slane %v5119, 4
  %v5139 = vsel %vm193, %v5131, %v5138
  %v5141 = vunpack.c.l.s4 1934713408
  %v5142 = vunpack.c.0.s8 %v5141
  %v5143 = vperm.slane %v5137, %v5142
  %v5145 = vunpack.c.l.s4 1934713408
  %v5146 = vunpack.c.0.s8 %v5145
  %v5147 = vperm.slane %v5139, %v5146
  %v5148 = vrot.slane %v5135, 4
  %v5149 = vsel %vm193, %v5148, %v5123
  %v5150 = vrot.slane %v5123, 4
  %v5151 = vsel %vm193, %v5135, %v5150
  %v5153 = vunpack.c.l.s4 1934713408
  %v5154 = vunpack.c.0.s8 %v5153
  %v5155 = vperm.slane %v5149, %v5154
  %v5157 = vunpack.c.l.s4 1934713408
  %v5158 = vunpack.c.0.s8 %v5157
  %v5159 = vperm.slane %v5151, %v5158
  %v5160 = vrot.slane %v5143, 4
  %v5161 = vsel %vm193, 0.0, %v5160
  %v5162 = vrot.slane %v5147, 4
  %v5163 = vsel %vm193, 0.0, %v5162
  %v5164 = vrot.slane %v5155, 4
  %v5165 = vsel %vm193, 0.0, %v5164
  %v5166 = vrot.slane %v5159, 4
  %v5167 = vsel %vm193, 0.0, %v5166
  %v5168 = vsel %vm193, %v5106, %v5087
  %v5170 = vunpack.c.l.s4 1983009808
  %v5171 = vunpack.c.0.s8 %v5170
  %v5172 = vperm.slane %v5168, %v5171
  %v5173 = vrot.slane %v5107, 4
  %v5174 = vsel %vm193, %v5173, %v5105
  %v5176 = vunpack.c.l.s4 1983009808
  %v5177 = vunpack.c.0.s8 %v5176
  %v5178 = vperm.slane %v5174, %v5177
  %v5179 = vsel %vm193, %v5110, %v5099
  %v5181 = vunpack.c.l.s4 1983009808
  %v5182 = vunpack.c.0.s8 %v5181
  %v5183 = vperm.slane %v5179, %v5182
  %v5184 = vrot.slane %v5111, 4
  %v5185 = vsel %vm193, %v5184, %v5109
  %v5187 = vunpack.c.l.s4 1983009808
  %v5188 = vunpack.c.0.s8 %v5187
  %v5189 = vperm.slane %v5185, %v5188
  %v5190 = vrot.slane %v5178, 4
  %v5191 = vsel %vm193, %v5190, %v5172
  %v5192 = vrot.slane %v5172, 4
  %v5193 = vsel %vm193, %v5178, %v5192
  %v5195 = vunpack.c.l.s4 1934713408
  %v5196 = vunpack.c.0.s8 %v5195
  %v5197 = vperm.slane %v5191, %v5196
  %v5199 = vunpack.c.l.s4 1934713408
  %v5200 = vunpack.c.0.s8 %v5199
  %v5201 = vperm.slane %v5193, %v5200
  %v5202 = vrot.slane %v5189, 4
  %v5203 = vsel %vm193, %v5202, %v5183
  %v5204 = vrot.slane %v5183, 4
  %v5205 = vsel %vm193, %v5189, %v5204
  %v5207 = vunpack.c.l.s4 1934713408
  %v5208 = vunpack.c.0.s8 %v5207
  %v5209 = vperm.slane %v5203, %v5208
  %v5211 = vunpack.c.l.s4 1934713408
  %v5212 = vunpack.c.0.s8 %v5211
  %v5213 = vperm.slane %v5205, %v5212
  %v5214 = vrot.slane %v5209, 4
  %v5215 = vsel %vm193, %v5214, %v5197
  %v5216 = vrot.slane %v5197, 4
  %v5217 = vsel %vm193, %v5209, %v5216
  %v5218 = vrot.slane %v5213, 4
  %v5219 = vsel %vm193, %v5218, %v5201
  %v5220 = vrot.slane %v5201, 4
  %v5221 = vsel %vm193, %v5213, %v5220
  %v5222 = vsel %vm193, %v5162, %v5143
  %v5224 = vunpack.c.l.s4 1983009808
  %v5225 = vunpack.c.0.s8 %v5224
  %v5226 = vperm.slane %v5222, %v5225
  %v5227 = vrot.slane %v5163, 4
  %v5228 = vsel %vm193, %v5227, %v5161
  %v5230 = vunpack.c.l.s4 1983009808
  %v5231 = vunpack.c.0.s8 %v5230
  %v5232 = vperm.slane %v5228, %v5231
  %v5233 = vsel %vm193, %v5166, %v5155
  %v5235 = vunpack.c.l.s4 1983009808
  %v5236 = vunpack.c.0.s8 %v5235
  %v5237 = vperm.slane %v5233, %v5236
  %v5238 = vrot.slane %v5167, 4
  %v5239 = vsel %vm193, %v5238, %v5165
  %v5241 = vunpack.c.l.s4 1983009808
  %v5242 = vunpack.c.0.s8 %v5241
  %v5243 = vperm.slane %v5239, %v5242
  %v5244 = vrot.slane %v5232, 4
  %v5245 = vsel %vm193, %v5244, %v5226
  %v5246 = vrot.slane %v5226, 4
  %v5247 = vsel %vm193, %v5232, %v5246
  %v5249 = vunpack.c.l.s4 1934713408
  %v5250 = vunpack.c.0.s8 %v5249
  %v5251 = vperm.slane %v5245, %v5250
  %v5253 = vunpack.c.l.s4 1934713408
  %v5254 = vunpack.c.0.s8 %v5253
  %v5255 = vperm.slane %v5247, %v5254
  %v5256 = vrot.slane %v5243, 4
  %v5257 = vsel %vm193, %v5256, %v5237
  %v5258 = vrot.slane %v5237, 4
  %v5259 = vsel %vm193, %v5243, %v5258
  %v5261 = vunpack.c.l.s4 1934713408
  %v5262 = vunpack.c.0.s8 %v5261
  %v5263 = vperm.slane %v5257, %v5262
  %v5265 = vunpack.c.l.s4 1934713408
  %v5266 = vunpack.c.0.s8 %v5265
  %v5267 = vperm.slane %v5259, %v5266
  %v5268 = vrot.slane %v5263, 4
  %v5269 = vsel %vm193, %v5268, %v5251
  %v5270 = vrot.slane %v5251, 4
  %v5271 = vsel %vm193, %v5263, %v5270
  %v5272 = vrot.slane %v5267, 4
  %v5273 = vsel %vm193, %v5272, %v5255
  %v5274 = vrot.slane %v5255, 4
  %v5275 = vsel %vm193, %v5267, %v5274
  %5278 = vrot.lane.b32.xlu0 %v5217, 16
  %v5279 = vpop.permute.xlu0 %5278
  %5280 = vrot.lane.b32.xlu0 %v5271, 16
  %v5281 = vpop.permute.xlu0 %5280
  %5286 = vrot.lane.b32.xlu0 %v5219, 32
  %v5287 = vpop.permute.xlu0 %5286
  %5288 = vrot.lane.b32.xlu0 %v5273, 32
  %v5289 = vpop.permute.xlu0 %5288
  %5294 = vrot.lane.b32.xlu0 %v5221, 48
  %v5295 = vpop.permute.xlu0 %5294
  %5296 = vrot.lane.b32.xlu0 %v5275, 48
  %v5297 = vpop.permute.xlu0 %5296
  %v5300 = vsel %vm893, %v5215, %v5279
  %v5301 = vsel %vm893, %v5269, %v5281
  %v5302 = vsel %vm90, %v5300, %v5287
  %v5303 = vsel %vm90, %v5301, %v5289
  %v5304 = vsel %vm1623, %v5302, %v5295
  %v5305 = vsel %vm1623, %v5303, %v5297
  %v5307 = vsel %vm1626, %v5304, 0
  %v5310 = vsel %vm1626, %v5305, 0
  %5312 = vmatpush.msra.mxu0 0.0
  %5313 = vmatpush.msra.mxu0 0.0
  %5314 = vmatpush.msra.mxu0 0.0
  %5315 = vmatpush.msra.mxu0 0.0
  %5316 = vmatpush.msra.mxu0 0.0
  %5317 = vmatpush.msra.mxu0 0.0
  %5318 = vmatpush.msra.mxu0 0.0
  %5319 = vmatpush.msra.mxu0 0.0
  %5320 = vmatpush.msra.mxu0 %v3755
  %5321 = vmatpush.msra.mxu0 %v3754
  %5322 = vmatpush.msra.mxu0 %v3753
  %5323 = vmatpush.msra.mxu0 %v3752
  %5324 = vmatpush.msra.mxu0 %v3751
  %5325 = vmatpush.msra.mxu0 %v3750
  %5326 = vmatpush.msra.mxu0 %v3749
  %5327 = vmatpush.msra.mxu0 %v3748
  %5328 = vmatmul.f32.gmra.mxu0 %v5307
  %v5329 = vpop.f32.mrf.mxu0
  %v5330 = vadd.f32 0.0, %v5329
  %5331 = vmatmul.f32.gmra.mxu0 %v5310
  %v5332 = vpop.f32.mrf.mxu0
  %v5333 = vadd.f32 0.0, %v5332
  %5334 = vdwg.mxu0
  %v5335 = vadd.f32 %v3680, %v5330
  %v5336 = vadd.f32 %v3681, %v5333
  %v5337 = vsel %vm90, %v5335, 0.0
  %5338 = vadd.xlane.f32.xlu0 %v5337
  %v5339 = vpop.xlane.xlu0 %5338
  %v5340 = vsel %vm90, %v5336, 0.0
  %5341 = vadd.xlane.f32.xlu0 %v5340
  %v5342 = vpop.xlane.xlu0 %5341
  %v5343 = vmul.f32 %v5339, %v1670
  %v5344 = vmul.f32 %v5342, %v1670
  %v5345 = vsub.f32 %v5335, %v5343
  %v5346 = vsub.f32 %v5336, %v5344
  %v5347 = vmul.f32 %v5345, %v5345
  %v5348 = vmul.f32 %v5346, %v5346
  %v5349 = vsel %vm90, %v5347, 0.0
  %5350 = vadd.xlane.f32.xlu0 %v5349
  %v5351 = vpop.xlane.xlu0 %5350
  %v5352 = vsel %vm90, %v5348, 0.0
  %5353 = vadd.xlane.f32.xlu0 %v5352
  %v5354 = vpop.xlane.xlu0 %5353
  %v5355 = vmul.f32 %v5351, %v1670
  %v5356 = vmul.f32 %v5354, %v1670
  %v5357 = vadd.f32 %v5355, 1e-05
  %v5358 = vadd.f32 %v5356, 1e-05
  %v5359 = vrsqrt.pop %v5357
  %v5360 = vmul.f32 %v5359, %v5357
  %v5361 = vmul.f32 %v5360, %v5359
  %v5362 = vmul.f32 0.5, %v5361
  %v5363 = vsub.f32 1.5, %v5362
  %v5364 = vmul.f32 %v5359, %v5363
  %vm5365 = vweird.f32 %v5357
  %vm5366 = vweird.f32 %v5359
  %vm5367 = vmor %vm5365, %vm5366
  %v5368 = vsel %vm5367, %v5359, %v5364
  %v5369 = vrsqrt.pop %v5358
  %v5370 = vmul.f32 %v5369, %v5358
  %v5371 = vmul.f32 %v5370, %v5369
  %v5372 = vmul.f32 0.5, %v5371
  %v5373 = vsub.f32 1.5, %v5372
  %v5374 = vmul.f32 %v5369, %v5373
  %vm5375 = vweird.f32 %v5358
  %vm5376 = vweird.f32 %v5369
  %vm5377 = vmor %vm5375, %vm5376
  %v5378 = vsel %vm5377, %v5369, %v5374
  %v5379 = vmul.f32 %v5345, %v5368
  %v5380 = vmul.f32 %v5346, %v5378
  %v5381 = vperm.slane %v3771, 2
  %v5382 = vmul.f32 %v5379, %v5381
  %v5383 = vmul.f32 %v5380, %v5381
  %v5384 = vperm.slane %v3771, 3
  %v5385 = vadd.f32 %v5382, %v5384
  %v5386 = vadd.f32 %v5383, %v5384
  %5387 = vmatpush.msra.mxu0 0.0
  %5388 = vmatpush.msra.mxu0 0.0
  %5389 = vmatpush.msra.mxu0 0.0
  %5390 = vmatpush.msra.mxu0 0.0
  %5391 = vmatpush.msra.mxu0 0.0
  %5392 = vmatpush.msra.mxu0 0.0
  %5393 = vmatpush.msra.mxu0 0.0
  %5394 = vmatpush.msra.mxu0 0.0
  %5395 = vmatpush.msra.mxu0 0.0
  %5396 = vmatpush.msra.mxu0 0.0
  %5397 = vmatpush.msra.mxu0 0.0
  %5398 = vmatpush.msra.mxu0 0.0
  %5399 = vmatpush.msra.mxu0 %v3741
  %5400 = vmatpush.msra.mxu0 %v3740
  %5401 = vmatpush.msra.mxu0 %v3739
  %5402 = vmatpush.msra.mxu0 %v3738
  %5403 = vmatmul.f32.gmra.mxu0 %v1716
  %v5404 = vpop.f32.mrf.mxu0
  %v5405 = vadd.f32 0.0, %v5404
  %5406 = vmatmul.f32.gmra.mxu0 %v1719
  %v5407 = vpop.f32.mrf.mxu0
  %v5408 = vadd.f32 0.0, %v5407
  %5409 = vmatmul.f32.gmra.mxu0 %v1722
  %v5410 = vpop.f32.mrf.mxu0
  %v5411 = vadd.f32 0.0, %v5410
  %5412 = vmatmul.f32.gmra.mxu0 %v1725
  %v5413 = vpop.f32.mrf.mxu0
  %v5414 = vadd.f32 0.0, %v5413
  %5415 = vdwg.mxu0
  %5416 = vmatpush.msra.mxu0 0.0
  %5417 = vmatpush.msra.mxu0 0.0
  %5418 = vmatpush.msra.mxu0 0.0
  %5419 = vmatpush.msra.mxu0 0.0
  %5420 = vmatpush.msra.mxu0 0.0
  %5421 = vmatpush.msra.mxu0 0.0
  %5422 = vmatpush.msra.mxu0 0.0
  %5423 = vmatpush.msra.mxu0 0.0
  %5424 = vmatpush.msra.mxu0 0.0
  %5425 = vmatpush.msra.mxu0 0.0
  %5426 = vmatpush.msra.mxu0 0.0
  %5427 = vmatpush.msra.mxu0 0.0
  %5428 = vmatpush.msra.mxu0 %v3746
  %5429 = vmatpush.msra.mxu0 %v3745
  %5430 = vmatpush.msra.mxu0 %v3744
  %5431 = vmatpush.msra.mxu0 %v3743
  %5432 = vmatmul.f32.gmra.mxu0 %v1757
  %v5433 = vpop.f32.mrf.mxu0
  %v5434 = vadd.f32 0.0, %v5433
  %5435 = vmatmul.f32.gmra.mxu0 %v1760
  %v5436 = vpop.f32.mrf.mxu0
  %v5437 = vadd.f32 0.0, %v5436
  %5438 = vmatmul.f32.gmra.mxu0 %v1763
  %v5439 = vpop.f32.mrf.mxu0
  %v5440 = vadd.f32 0.0, %v5439
  %5441 = vmatmul.f32.gmra.mxu0 %v1766
  %v5442 = vpop.f32.mrf.mxu0
  %v5443 = vadd.f32 0.0, %v5442
  %5444 = vdwg.mxu0
  %5449 = vrot.lane.b32.xlu0 %v5405, 112
  %v5450 = vpop.permute.xlu0 %5449
  %5451 = vrot.lane.b32.xlu0 %v5408, 112
  %v5452 = vpop.permute.xlu0 %5451
  %5453 = vrot.lane.b32.xlu0 %v5411, 112
  %v5454 = vpop.permute.xlu0 %5453
  %5455 = vrot.lane.b32.xlu0 %v5414, 112
  %v5456 = vpop.permute.xlu0 %5455
  %5461 = vrot.lane.b32.xlu0 %v5405, 96
  %v5462 = vpop.permute.xlu0 %5461
  %5463 = vrot.lane.b32.xlu0 %v5408, 96
  %v5464 = vpop.permute.xlu0 %5463
  %5465 = vrot.lane.b32.xlu0 %v5411, 96
  %v5466 = vpop.permute.xlu0 %5465
  %5467 = vrot.lane.b32.xlu0 %v5414, 96
  %v5468 = vpop.permute.xlu0 %5467
  %5473 = vrot.lane.b32.xlu0 %v5405, 80
  %v5474 = vpop.permute.xlu0 %5473
  %5475 = vrot.lane.b32.xlu0 %v5408, 80
  %v5476 = vpop.permute.xlu0 %5475
  %5477 = vrot.lane.b32.xlu0 %v5411, 80
  %v5478 = vpop.permute.xlu0 %5477
  %5479 = vrot.lane.b32.xlu0 %v5414, 80
  %v5480 = vpop.permute.xlu0 %5479
  %v5485 = vrot.slane %v5462, 4
  %v5486 = vsel %vm193, %v5485, %v5405
  %v5487 = vrot.slane %v5405, 4
  %v5488 = vsel %vm193, %v5462, %v5487
  %v5490 = vunpack.c.l.s4 1983009808
  %v5491 = vunpack.c.0.s8 %v5490
  %v5492 = vperm.slane %v5486, %v5491
  %v5494 = vunpack.c.l.s4 1983009808
  %v5495 = vunpack.c.0.s8 %v5494
  %v5496 = vperm.slane %v5488, %v5495
  %v5497 = vrot.slane %v5474, 4
  %v5498 = vsel %vm193, %v5497, %v5450
  %v5499 = vrot.slane %v5450, 4
  %v5500 = vsel %vm193, %v5474, %v5499
  %v5502 = vunpack.c.l.s4 1983009808
  %v5503 = vunpack.c.0.s8 %v5502
  %v5504 = vperm.slane %v5498, %v5503
  %v5506 = vunpack.c.l.s4 1983009808
  %v5507 = vunpack.c.0.s8 %v5506
  %v5508 = vperm.slane %v5500, %v5507
  %v5509 = vrot.slane %v5504, 4
  %v5510 = vsel %vm193, %v5509, %v5492
  %v5511 = vrot.slane %v5492, 4
  %v5512 = vsel %vm193, %v5504, %v5511
  %v5514 = vunpack.c.l.s4 1934713408
  %v5515 = vunpack.c.0.s8 %v5514
  %v5516 = vperm.slane %v5510, %v5515
  %v5518 = vunpack.c.l.s4 1934713408
  %v5519 = vunpack.c.0.s8 %v5518
  %v5520 = vperm.slane %v5512, %v5519
  %v5521 = vrot.slane %v5508, 4
  %v5522 = vsel %vm193, %v5521, %v5496
  %v5523 = vrot.slane %v5496, 4
  %v5524 = vsel %vm193, %v5508, %v5523
  %v5526 = vunpack.c.l.s4 1934713408
  %v5527 = vunpack.c.0.s8 %v5526
  %v5528 = vperm.slane %v5522, %v5527
  %v5530 = vunpack.c.l.s4 1934713408
  %v5531 = vunpack.c.0.s8 %v5530
  %v5532 = vperm.slane %v5524, %v5531
  %v5533 = vrot.slane %v5516, 4
  %v5534 = vsel %vm193, 0.0, %v5533
  %v5535 = vrot.slane %v5520, 4
  %v5536 = vsel %vm193, 0.0, %v5535
  %v5537 = vrot.slane %v5528, 4
  %v5538 = vsel %vm193, 0.0, %v5537
  %v5539 = vrot.slane %v5532, 4
  %v5540 = vsel %vm193, 0.0, %v5539
  %v5541 = vrot.slane %v5464, 4
  %v5542 = vsel %vm193, %v5541, %v5408
  %v5543 = vrot.slane %v5408, 4
  %v5544 = vsel %vm193, %v5464, %v5543
  %v5546 = vunpack.c.l.s4 1983009808
  %v5547 = vunpack.c.0.s8 %v5546
  %v5548 = vperm.slane %v5542, %v5547
  %v5550 = vunpack.c.l.s4 1983009808
  %v5551 = vunpack.c.0.s8 %v5550
  %v5552 = vperm.slane %v5544, %v5551
  %v5553 = vrot.slane %v5476, 4
  %v5554 = vsel %vm193, %v5553, %v5452
  %v5555 = vrot.slane %v5452, 4
  %v5556 = vsel %vm193, %v5476, %v5555
  %v5558 = vunpack.c.l.s4 1983009808
  %v5559 = vunpack.c.0.s8 %v5558
  %v5560 = vperm.slane %v5554, %v5559
  %v5562 = vunpack.c.l.s4 1983009808
  %v5563 = vunpack.c.0.s8 %v5562
  %v5564 = vperm.slane %v5556, %v5563
  %v5565 = vrot.slane %v5560, 4
  %v5566 = vsel %vm193, %v5565, %v5548
  %v5567 = vrot.slane %v5548, 4
  %v5568 = vsel %vm193, %v5560, %v5567
  %v5570 = vunpack.c.l.s4 1934713408
  %v5571 = vunpack.c.0.s8 %v5570
  %v5572 = vperm.slane %v5566, %v5571
  %v5574 = vunpack.c.l.s4 1934713408
  %v5575 = vunpack.c.0.s8 %v5574
  %v5576 = vperm.slane %v5568, %v5575
  %v5577 = vrot.slane %v5564, 4
  %v5578 = vsel %vm193, %v5577, %v5552
  %v5579 = vrot.slane %v5552, 4
  %v5580 = vsel %vm193, %v5564, %v5579
  %v5582 = vunpack.c.l.s4 1934713408
  %v5583 = vunpack.c.0.s8 %v5582
  %v5584 = vperm.slane %v5578, %v5583
  %v5586 = vunpack.c.l.s4 1934713408
  %v5587 = vunpack.c.0.s8 %v5586
  %v5588 = vperm.slane %v5580, %v5587
  %v5589 = vrot.slane %v5572, 4
  %v5590 = vsel %vm193, 0.0, %v5589
  %v5591 = vrot.slane %v5576, 4
  %v5592 = vsel %vm193, 0.0, %v5591
  %v5593 = vrot.slane %v5584, 4
  %v5594 = vsel %vm193, 0.0, %v5593
  %v5595 = vrot.slane %v5588, 4
  %v5596 = vsel %vm193, 0.0, %v5595
  %v5597 = vrot.slane %v5466, 4
  %v5598 = vsel %vm193, %v5597, %v5411
  %v5599 = vrot.slane %v5411, 4
  %v5600 = vsel %vm193, %v5466, %v5599
  %v5602 = vunpack.c.l.s4 1983009808
  %v5603 = vunpack.c.0.s8 %v5602
  %v5604 = vperm.slane %v5598, %v5603
  %v5606 = vunpack.c.l.s4 1983009808
  %v5607 = vunpack.c.0.s8 %v5606
  %v5608 = vperm.slane %v5600, %v5607
  %v5609 = vrot.slane %v5478, 4
  %v5610 = vsel %vm193, %v5609, %v5454
  %v5611 = vrot.slane %v5454, 4
  %v5612 = vsel %vm193, %v5478, %v5611
  %v5614 = vunpack.c.l.s4 1983009808
  %v5615 = vunpack.c.0.s8 %v5614
  %v5616 = vperm.slane %v5610, %v5615
  %v5618 = vunpack.c.l.s4 1983009808
  %v5619 = vunpack.c.0.s8 %v5618
  %v5620 = vperm.slane %v5612, %v5619
  %v5621 = vrot.slane %v5616, 4
  %v5622 = vsel %vm193, %v5621, %v5604
  %v5623 = vrot.slane %v5604, 4
  %v5624 = vsel %vm193, %v5616, %v5623
  %v5626 = vunpack.c.l.s4 1934713408
  %v5627 = vunpack.c.0.s8 %v5626
  %v5628 = vperm.slane %v5622, %v5627
  %v5630 = vunpack.c.l.s4 1934713408
  %v5631 = vunpack.c.0.s8 %v5630
  %v5632 = vperm.slane %v5624, %v5631
  %v5633 = vrot.slane %v5620, 4
  %v5634 = vsel %vm193, %v5633, %v5608
  %v5635 = vrot.slane %v5608, 4
  %v5636 = vsel %vm193, %v5620, %v5635
  %v5638 = vunpack.c.l.s4 1934713408
  %v5639 = vunpack.c.0.s8 %v5638
  %v5640 = vperm.slane %v5634, %v5639
  %v5642 = vunpack.c.l.s4 1934713408
  %v5643 = vunpack.c.0.s8 %v5642
  %v5644 = vperm.slane %v5636, %v5643
  %v5645 = vrot.slane %v5628, 4
  %v5646 = vsel %vm193, 0.0, %v5645
  %v5647 = vrot.slane %v5632, 4
  %v5648 = vsel %vm193, 0.0, %v5647
  %v5649 = vrot.slane %v5640, 4
  %v5650 = vsel %vm193, 0.0, %v5649
  %v5651 = vrot.slane %v5644, 4
  %v5652 = vsel %vm193, 0.0, %v5651
  %v5653 = vrot.slane %v5468, 4
  %v5654 = vsel %vm193, %v5653, %v5414
  %v5655 = vrot.slane %v5414, 4
  %v5656 = vsel %vm193, %v5468, %v5655
  %v5658 = vunpack.c.l.s4 1983009808
  %v5659 = vunpack.c.0.s8 %v5658
  %v5660 = vperm.slane %v5654, %v5659
  %v5662 = vunpack.c.l.s4 1983009808
  %v5663 = vunpack.c.0.s8 %v5662
  %v5664 = vperm.slane %v5656, %v5663
  %v5665 = vrot.slane %v5480, 4
  %v5666 = vsel %vm193, %v5665, %v5456
  %v5667 = vrot.slane %v5456, 4
  %v5668 = vsel %vm193, %v5480, %v5667
  %v5670 = vunpack.c.l.s4 1983009808
  %v5671 = vunpack.c.0.s8 %v5670
  %v5672 = vperm.slane %v5666, %v5671
  %v5674 = vunpack.c.l.s4 1983009808
  %v5675 = vunpack.c.0.s8 %v5674
  %v5676 = vperm.slane %v5668, %v5675
  %v5677 = vrot.slane %v5672, 4
  %v5678 = vsel %vm193, %v5677, %v5660
  %v5679 = vrot.slane %v5660, 4
  %v5680 = vsel %vm193, %v5672, %v5679
  %v5682 = vunpack.c.l.s4 1934713408
  %v5683 = vunpack.c.0.s8 %v5682
  %v5684 = vperm.slane %v5678, %v5683
  %v5686 = vunpack.c.l.s4 1934713408
  %v5687 = vunpack.c.0.s8 %v5686
  %v5688 = vperm.slane %v5680, %v5687
  %v5689 = vrot.slane %v5676, 4
  %v5690 = vsel %vm193, %v5689, %v5664
  %v5691 = vrot.slane %v5664, 4
  %v5692 = vsel %vm193, %v5676, %v5691
  %v5694 = vunpack.c.l.s4 1934713408
  %v5695 = vunpack.c.0.s8 %v5694
  %v5696 = vperm.slane %v5690, %v5695
  %v5698 = vunpack.c.l.s4 1934713408
  %v5699 = vunpack.c.0.s8 %v5698
  %v5700 = vperm.slane %v5692, %v5699
  %v5701 = vrot.slane %v5684, 4
  %v5702 = vsel %vm193, 0.0, %v5701
  %v5703 = vrot.slane %v5688, 4
  %v5704 = vsel %vm193, 0.0, %v5703
  %v5705 = vrot.slane %v5696, 4
  %v5706 = vsel %vm193, 0.0, %v5705
  %v5707 = vrot.slane %v5700, 4
  %v5708 = vsel %vm193, 0.0, %v5707
  %v5709 = vsel %vm193, %v5535, %v5516
  %v5711 = vunpack.c.l.s4 1983009808
  %v5712 = vunpack.c.0.s8 %v5711
  %v5713 = vperm.slane %v5709, %v5712
  %v5714 = vrot.slane %v5536, 4
  %v5715 = vsel %vm193, %v5714, %v5534
  %v5717 = vunpack.c.l.s4 1983009808
  %v5718 = vunpack.c.0.s8 %v5717
  %v5719 = vperm.slane %v5715, %v5718
  %v5720 = vsel %vm193, %v5539, %v5528
  %v5722 = vunpack.c.l.s4 1983009808
  %v5723 = vunpack.c.0.s8 %v5722
  %v5724 = vperm.slane %v5720, %v5723
  %v5725 = vrot.slane %v5540, 4
  %v5726 = vsel %vm193, %v5725, %v5538
  %v5728 = vunpack.c.l.s4 1983009808
  %v5729 = vunpack.c.0.s8 %v5728
  %v5730 = vperm.slane %v5726, %v5729
  %v5731 = vrot.slane %v5719, 4
  %v5732 = vsel %vm193, %v5731, %v5713
  %v5733 = vrot.slane %v5713, 4
  %v5734 = vsel %vm193, %v5719, %v5733
  %v5736 = vunpack.c.l.s4 1934713408
  %v5737 = vunpack.c.0.s8 %v5736
  %v5738 = vperm.slane %v5732, %v5737
  %v5740 = vunpack.c.l.s4 1934713408
  %v5741 = vunpack.c.0.s8 %v5740
  %v5742 = vperm.slane %v5734, %v5741
  %v5743 = vrot.slane %v5730, 4
  %v5744 = vsel %vm193, %v5743, %v5724
  %v5745 = vrot.slane %v5724, 4
  %v5746 = vsel %vm193, %v5730, %v5745
  %v5748 = vunpack.c.l.s4 1934713408
  %v5749 = vunpack.c.0.s8 %v5748
  %v5750 = vperm.slane %v5744, %v5749
  %v5752 = vunpack.c.l.s4 1934713408
  %v5753 = vunpack.c.0.s8 %v5752
  %v5754 = vperm.slane %v5746, %v5753
  %v5755 = vrot.slane %v5750, 4
  %v5756 = vsel %vm193, %v5755, %v5738
  %v5757 = vrot.slane %v5738, 4
  %v5758 = vsel %vm193, %v5750, %v5757
  %v5759 = vrot.slane %v5754, 4
  %v5760 = vsel %vm193, %v5759, %v5742
  %v5761 = vrot.slane %v5742, 4
  %v5762 = vsel %vm193, %v5754, %v5761
  %v5763 = vsel %vm193, %v5591, %v5572
  %v5765 = vunpack.c.l.s4 1983009808
  %v5766 = vunpack.c.0.s8 %v5765
  %v5767 = vperm.slane %v5763, %v5766
  %v5768 = vrot.slane %v5592, 4
  %v5769 = vsel %vm193, %v5768, %v5590
  %v5771 = vunpack.c.l.s4 1983009808
  %v5772 = vunpack.c.0.s8 %v5771
  %v5773 = vperm.slane %v5769, %v5772
  %v5774 = vsel %vm193, %v5595, %v5584
  %v5776 = vunpack.c.l.s4 1983009808
  %v5777 = vunpack.c.0.s8 %v5776
  %v5778 = vperm.slane %v5774, %v5777
  %v5779 = vrot.slane %v5596, 4
  %v5780 = vsel %vm193, %v5779, %v5594
  %v5782 = vunpack.c.l.s4 1983009808
  %v5783 = vunpack.c.0.s8 %v5782
  %v5784 = vperm.slane %v5780, %v5783
  %v5785 = vrot.slane %v5773, 4
  %v5786 = vsel %vm193, %v5785, %v5767
  %v5787 = vrot.slane %v5767, 4
  %v5788 = vsel %vm193, %v5773, %v5787
  %v5790 = vunpack.c.l.s4 1934713408
  %v5791 = vunpack.c.0.s8 %v5790
  %v5792 = vperm.slane %v5786, %v5791
  %v5794 = vunpack.c.l.s4 1934713408
  %v5795 = vunpack.c.0.s8 %v5794
  %v5796 = vperm.slane %v5788, %v5795
  %v5797 = vrot.slane %v5784, 4
  %v5798 = vsel %vm193, %v5797, %v5778
  %v5799 = vrot.slane %v5778, 4
  %v5800 = vsel %vm193, %v5784, %v5799
  %v5802 = vunpack.c.l.s4 1934713408
  %v5803 = vunpack.c.0.s8 %v5802
  %v5804 = vperm.slane %v5798, %v5803
  %v5806 = vunpack.c.l.s4 1934713408
  %v5807 = vunpack.c.0.s8 %v5806
  %v5808 = vperm.slane %v5800, %v5807
  %v5809 = vrot.slane %v5804, 4
  %v5810 = vsel %vm193, %v5809, %v5792
  %v5811 = vrot.slane %v5792, 4
  %v5812 = vsel %vm193, %v5804, %v5811
  %v5813 = vrot.slane %v5808, 4
  %v5814 = vsel %vm193, %v5813, %v5796
  %v5815 = vrot.slane %v5796, 4
  %v5816 = vsel %vm193, %v5808, %v5815
  %v5817 = vsel %vm193, %v5647, %v5628
  %v5819 = vunpack.c.l.s4 1983009808
  %v5820 = vunpack.c.0.s8 %v5819
  %v5821 = vperm.slane %v5817, %v5820
  %v5822 = vrot.slane %v5648, 4
  %v5823 = vsel %vm193, %v5822, %v5646
  %v5825 = vunpack.c.l.s4 1983009808
  %v5826 = vunpack.c.0.s8 %v5825
  %v5827 = vperm.slane %v5823, %v5826
  %v5828 = vsel %vm193, %v5651, %v5640
  %v5830 = vunpack.c.l.s4 1983009808
  %v5831 = vunpack.c.0.s8 %v5830
  %v5832 = vperm.slane %v5828, %v5831
  %v5833 = vrot.slane %v5652, 4
  %v5834 = vsel %vm193, %v5833, %v5650
  %v5836 = vunpack.c.l.s4 1983009808
  %v5837 = vunpack.c.0.s8 %v5836
  %v5838 = vperm.slane %v5834, %v5837
  %v5839 = vrot.slane %v5827, 4
  %v5840 = vsel %vm193, %v5839, %v5821
  %v5841 = vrot.slane %v5821, 4
  %v5842 = vsel %vm193, %v5827, %v5841
  %v5844 = vunpack.c.l.s4 1934713408
  %v5845 = vunpack.c.0.s8 %v5844
  %v5846 = vperm.slane %v5840, %v5845
  %v5848 = vunpack.c.l.s4 1934713408
  %v5849 = vunpack.c.0.s8 %v5848
  %v5850 = vperm.slane %v5842, %v5849
  %v5851 = vrot.slane %v5838, 4
  %v5852 = vsel %vm193, %v5851, %v5832
  %v5853 = vrot.slane %v5832, 4
  %v5854 = vsel %vm193, %v5838, %v5853
  %v5856 = vunpack.c.l.s4 1934713408
  %v5857 = vunpack.c.0.s8 %v5856
  %v5858 = vperm.slane %v5852, %v5857
  %v5860 = vunpack.c.l.s4 1934713408
  %v5861 = vunpack.c.0.s8 %v5860
  %v5862 = vperm.slane %v5854, %v5861
  %v5863 = vrot.slane %v5858, 4
  %v5864 = vsel %vm193, %v5863, %v5846
  %v5865 = vrot.slane %v5846, 4
  %v5866 = vsel %vm193, %v5858, %v5865
  %v5867 = vrot.slane %v5862, 4
  %v5868 = vsel %vm193, %v5867, %v5850
  %v5869 = vrot.slane %v5850, 4
  %v5870 = vsel %vm193, %v5862, %v5869
  %v5871 = vsel %vm193, %v5703, %v5684
  %v5873 = vunpack.c.l.s4 1983009808
  %v5874 = vunpack.c.0.s8 %v5873
  %v5875 = vperm.slane %v5871, %v5874
  %v5876 = vrot.slane %v5704, 4
  %v5877 = vsel %vm193, %v5876, %v5702
  %v5879 = vunpack.c.l.s4 1983009808
  %v5880 = vunpack.c.0.s8 %v5879
  %v5881 = vperm.slane %v5877, %v5880
  %v5882 = vsel %vm193, %v5707, %v5696
  %v5884 = vunpack.c.l.s4 1983009808
  %v5885 = vunpack.c.0.s8 %v5884
  %v5886 = vperm.slane %v5882, %v5885
  %v5887 = vrot.slane %v5708, 4
  %v5888 = vsel %vm193, %v5887, %v5706
  %v5890 = vunpack.c.l.s4 1983009808
  %v5891 = vunpack.c.0.s8 %v5890
  %v5892 = vperm.slane %v5888, %v5891
  %v5893 = vrot.slane %v5881, 4
  %v5894 = vsel %vm193, %v5893, %v5875
  %v5895 = vrot.slane %v5875, 4
  %v5896 = vsel %vm193, %v5881, %v5895
  %v5898 = vunpack.c.l.s4 1934713408
  %v5899 = vunpack.c.0.s8 %v5898
  %v5900 = vperm.slane %v5894, %v5899
  %v5902 = vunpack.c.l.s4 1934713408
  %v5903 = vunpack.c.0.s8 %v5902
  %v5904 = vperm.slane %v5896, %v5903
  %v5905 = vrot.slane %v5892, 4
  %v5906 = vsel %vm193, %v5905, %v5886
  %v5907 = vrot.slane %v5886, 4
  %v5908 = vsel %vm193, %v5892, %v5907
  %v5910 = vunpack.c.l.s4 1934713408
  %v5911 = vunpack.c.0.s8 %v5910
  %v5912 = vperm.slane %v5906, %v5911
  %v5914 = vunpack.c.l.s4 1934713408
  %v5915 = vunpack.c.0.s8 %v5914
  %v5916 = vperm.slane %v5908, %v5915
  %v5917 = vrot.slane %v5912, 4
  %v5918 = vsel %vm193, %v5917, %v5900
  %v5919 = vrot.slane %v5900, 4
  %v5920 = vsel %vm193, %v5912, %v5919
  %v5921 = vrot.slane %v5916, 4
  %v5922 = vsel %vm193, %v5921, %v5904
  %v5923 = vrot.slane %v5904, 4
  %v5924 = vsel %vm193, %v5916, %v5923
  %5929 = vrot.lane.b32.xlu0 %v5434, 112
  %v5930 = vpop.permute.xlu0 %5929
  %5931 = vrot.lane.b32.xlu0 %v5437, 112
  %v5932 = vpop.permute.xlu0 %5931
  %5933 = vrot.lane.b32.xlu0 %v5440, 112
  %v5934 = vpop.permute.xlu0 %5933
  %5935 = vrot.lane.b32.xlu0 %v5443, 112
  %v5936 = vpop.permute.xlu0 %5935
  %5941 = vrot.lane.b32.xlu0 %v5434, 96
  %v5942 = vpop.permute.xlu0 %5941
  %5943 = vrot.lane.b32.xlu0 %v5437, 96
  %v5944 = vpop.permute.xlu0 %5943
  %5945 = vrot.lane.b32.xlu0 %v5440, 96
  %v5946 = vpop.permute.xlu0 %5945
  %5947 = vrot.lane.b32.xlu0 %v5443, 96
  %v5948 = vpop.permute.xlu0 %5947
  %5953 = vrot.lane.b32.xlu0 %v5434, 80
  %v5954 = vpop.permute.xlu0 %5953
  %5955 = vrot.lane.b32.xlu0 %v5437, 80
  %v5956 = vpop.permute.xlu0 %5955
  %5957 = vrot.lane.b32.xlu0 %v5440, 80
  %v5958 = vpop.permute.xlu0 %5957
  %5959 = vrot.lane.b32.xlu0 %v5443, 80
  %v5960 = vpop.permute.xlu0 %5959
  %v5965 = vrot.slane %v5942, 4
  %v5966 = vsel %vm193, %v5965, %v5434
  %v5967 = vrot.slane %v5434, 4
  %v5968 = vsel %vm193, %v5942, %v5967
  %v5970 = vunpack.c.l.s4 1983009808
  %v5971 = vunpack.c.0.s8 %v5970
  %v5972 = vperm.slane %v5966, %v5971
  %v5974 = vunpack.c.l.s4 1983009808
  %v5975 = vunpack.c.0.s8 %v5974
  %v5976 = vperm.slane %v5968, %v5975
  %v5977 = vrot.slane %v5954, 4
  %v5978 = vsel %vm193, %v5977, %v5930
  %v5979 = vrot.slane %v5930, 4
  %v5980 = vsel %vm193, %v5954, %v5979
  %v5982 = vunpack.c.l.s4 1983009808
  %v5983 = vunpack.c.0.s8 %v5982
  %v5984 = vperm.slane %v5978, %v5983
  %v5986 = vunpack.c.l.s4 1983009808
  %v5987 = vunpack.c.0.s8 %v5986
  %v5988 = vperm.slane %v5980, %v5987
  %v5989 = vrot.slane %v5984, 4
  %v5990 = vsel %vm193, %v5989, %v5972
  %v5991 = vrot.slane %v5972, 4
  %v5992 = vsel %vm193, %v5984, %v5991
  %v5994 = vunpack.c.l.s4 1934713408
  %v5995 = vunpack.c.0.s8 %v5994
  %v5996 = vperm.slane %v5990, %v5995
  %v5998 = vunpack.c.l.s4 1934713408
  %v5999 = vunpack.c.0.s8 %v5998
  %v6000 = vperm.slane %v5992, %v5999
  %v6001 = vrot.slane %v5988, 4
  %v6002 = vsel %vm193, %v6001, %v5976
  %v6003 = vrot.slane %v5976, 4
  %v6004 = vsel %vm193, %v5988, %v6003
  %v6006 = vunpack.c.l.s4 1934713408
  %v6007 = vunpack.c.0.s8 %v6006
  %v6008 = vperm.slane %v6002, %v6007
  %v6010 = vunpack.c.l.s4 1934713408
  %v6011 = vunpack.c.0.s8 %v6010
  %v6012 = vperm.slane %v6004, %v6011
  %v6013 = vrot.slane %v5996, 4
  %v6014 = vsel %vm193, 0.0, %v6013
  %v6015 = vrot.slane %v6000, 4
  %v6016 = vsel %vm193, 0.0, %v6015
  %v6017 = vrot.slane %v6008, 4
  %v6018 = vsel %vm193, 0.0, %v6017
  %v6019 = vrot.slane %v6012, 4
  %v6020 = vsel %vm193, 0.0, %v6019
  %v6021 = vrot.slane %v5944, 4
  %v6022 = vsel %vm193, %v6021, %v5437
  %v6023 = vrot.slane %v5437, 4
  %v6024 = vsel %vm193, %v5944, %v6023
  %v6026 = vunpack.c.l.s4 1983009808
  %v6027 = vunpack.c.0.s8 %v6026
  %v6028 = vperm.slane %v6022, %v6027
  %v6030 = vunpack.c.l.s4 1983009808
  %v6031 = vunpack.c.0.s8 %v6030
  %v6032 = vperm.slane %v6024, %v6031
  %v6033 = vrot.slane %v5956, 4
  %v6034 = vsel %vm193, %v6033, %v5932
  %v6035 = vrot.slane %v5932, 4
  %v6036 = vsel %vm193, %v5956, %v6035
  %v6038 = vunpack.c.l.s4 1983009808
  %v6039 = vunpack.c.0.s8 %v6038
  %v6040 = vperm.slane %v6034, %v6039
  %v6042 = vunpack.c.l.s4 1983009808
  %v6043 = vunpack.c.0.s8 %v6042
  %v6044 = vperm.slane %v6036, %v6043
  %v6045 = vrot.slane %v6040, 4
  %v6046 = vsel %vm193, %v6045, %v6028
  %v6047 = vrot.slane %v6028, 4
  %v6048 = vsel %vm193, %v6040, %v6047
  %v6050 = vunpack.c.l.s4 1934713408
  %v6051 = vunpack.c.0.s8 %v6050
  %v6052 = vperm.slane %v6046, %v6051
  %v6054 = vunpack.c.l.s4 1934713408
  %v6055 = vunpack.c.0.s8 %v6054
  %v6056 = vperm.slane %v6048, %v6055
  %v6057 = vrot.slane %v6044, 4
  %v6058 = vsel %vm193, %v6057, %v6032
  %v6059 = vrot.slane %v6032, 4
  %v6060 = vsel %vm193, %v6044, %v6059
  %v6062 = vunpack.c.l.s4 1934713408
  %v6063 = vunpack.c.0.s8 %v6062
  %v6064 = vperm.slane %v6058, %v6063
  %v6066 = vunpack.c.l.s4 1934713408
  %v6067 = vunpack.c.0.s8 %v6066
  %v6068 = vperm.slane %v6060, %v6067
  %v6069 = vrot.slane %v6052, 4
  %v6070 = vsel %vm193, 0.0, %v6069
  %v6071 = vrot.slane %v6056, 4
  %v6072 = vsel %vm193, 0.0, %v6071
  %v6073 = vrot.slane %v6064, 4
  %v6074 = vsel %vm193, 0.0, %v6073
  %v6075 = vrot.slane %v6068, 4
  %v6076 = vsel %vm193, 0.0, %v6075
  %v6077 = vrot.slane %v5946, 4
  %v6078 = vsel %vm193, %v6077, %v5440
  %v6079 = vrot.slane %v5440, 4
  %v6080 = vsel %vm193, %v5946, %v6079
  %v6082 = vunpack.c.l.s4 1983009808
  %v6083 = vunpack.c.0.s8 %v6082
  %v6084 = vperm.slane %v6078, %v6083
  %v6086 = vunpack.c.l.s4 1983009808
  %v6087 = vunpack.c.0.s8 %v6086
  %v6088 = vperm.slane %v6080, %v6087
  %v6089 = vrot.slane %v5958, 4
  %v6090 = vsel %vm193, %v6089, %v5934
  %v6091 = vrot.slane %v5934, 4
  %v6092 = vsel %vm193, %v5958, %v6091
  %v6094 = vunpack.c.l.s4 1983009808
  %v6095 = vunpack.c.0.s8 %v6094
  %v6096 = vperm.slane %v6090, %v6095
  %v6098 = vunpack.c.l.s4 1983009808
  %v6099 = vunpack.c.0.s8 %v6098
  %v6100 = vperm.slane %v6092, %v6099
  %v6101 = vrot.slane %v6096, 4
  %v6102 = vsel %vm193, %v6101, %v6084
  %v6103 = vrot.slane %v6084, 4
  %v6104 = vsel %vm193, %v6096, %v6103
  %v6106 = vunpack.c.l.s4 1934713408
  %v6107 = vunpack.c.0.s8 %v6106
  %v6108 = vperm.slane %v6102, %v6107
  %v6110 = vunpack.c.l.s4 1934713408
  %v6111 = vunpack.c.0.s8 %v6110
  %v6112 = vperm.slane %v6104, %v6111
  %v6113 = vrot.slane %v6100, 4
  %v6114 = vsel %vm193, %v6113, %v6088
  %v6115 = vrot.slane %v6088, 4
  %v6116 = vsel %vm193, %v6100, %v6115
  %v6118 = vunpack.c.l.s4 1934713408
  %v6119 = vunpack.c.0.s8 %v6118
  %v6120 = vperm.slane %v6114, %v6119
  %v6122 = vunpack.c.l.s4 1934713408
  %v6123 = vunpack.c.0.s8 %v6122
  %v6124 = vperm.slane %v6116, %v6123
  %v6125 = vrot.slane %v6108, 4
  %v6126 = vsel %vm193, 0.0, %v6125
  %v6127 = vrot.slane %v6112, 4
  %v6128 = vsel %vm193, 0.0, %v6127
  %v6129 = vrot.slane %v6120, 4
  %v6130 = vsel %vm193, 0.0, %v6129
  %v6131 = vrot.slane %v6124, 4
  %v6132 = vsel %vm193, 0.0, %v6131
  %v6133 = vrot.slane %v5948, 4
  %v6134 = vsel %vm193, %v6133, %v5443
  %v6135 = vrot.slane %v5443, 4
  %v6136 = vsel %vm193, %v5948, %v6135
  %v6138 = vunpack.c.l.s4 1983009808
  %v6139 = vunpack.c.0.s8 %v6138
  %v6140 = vperm.slane %v6134, %v6139
  %v6142 = vunpack.c.l.s4 1983009808
  %v6143 = vunpack.c.0.s8 %v6142
  %v6144 = vperm.slane %v6136, %v6143
  %v6145 = vrot.slane %v5960, 4
  %v6146 = vsel %vm193, %v6145, %v5936
  %v6147 = vrot.slane %v5936, 4
  %v6148 = vsel %vm193, %v5960, %v6147
  %v6150 = vunpack.c.l.s4 1983009808
  %v6151 = vunpack.c.0.s8 %v6150
  %v6152 = vperm.slane %v6146, %v6151
  %v6154 = vunpack.c.l.s4 1983009808
  %v6155 = vunpack.c.0.s8 %v6154
  %v6156 = vperm.slane %v6148, %v6155
  %v6157 = vrot.slane %v6152, 4
  %v6158 = vsel %vm193, %v6157, %v6140
  %v6159 = vrot.slane %v6140, 4
  %v6160 = vsel %vm193, %v6152, %v6159
  %v6162 = vunpack.c.l.s4 1934713408
  %v6163 = vunpack.c.0.s8 %v6162
  %v6164 = vperm.slane %v6158, %v6163
  %v6166 = vunpack.c.l.s4 1934713408
  %v6167 = vunpack.c.0.s8 %v6166
  %v6168 = vperm.slane %v6160, %v6167
  %v6169 = vrot.slane %v6156, 4
  %v6170 = vsel %vm193, %v6169, %v6144
  %v6171 = vrot.slane %v6144, 4
  %v6172 = vsel %vm193, %v6156, %v6171
  %v6174 = vunpack.c.l.s4 1934713408
  %v6175 = vunpack.c.0.s8 %v6174
  %v6176 = vperm.slane %v6170, %v6175
  %v6178 = vunpack.c.l.s4 1934713408
  %v6179 = vunpack.c.0.s8 %v6178
  %v6180 = vperm.slane %v6172, %v6179
  %v6181 = vrot.slane %v6164, 4
  %v6182 = vsel %vm193, 0.0, %v6181
  %v6183 = vrot.slane %v6168, 4
  %v6184 = vsel %vm193, 0.0, %v6183
  %v6185 = vrot.slane %v6176, 4
  %v6186 = vsel %vm193, 0.0, %v6185
  %v6187 = vrot.slane %v6180, 4
  %v6188 = vsel %vm193, 0.0, %v6187
  %v6189 = vsel %vm193, %v6015, %v5996
  %v6191 = vunpack.c.l.s4 1983009808
  %v6192 = vunpack.c.0.s8 %v6191
  %v6193 = vperm.slane %v6189, %v6192
  %v6194 = vrot.slane %v6016, 4
  %v6195 = vsel %vm193, %v6194, %v6014
  %v6197 = vunpack.c.l.s4 1983009808
  %v6198 = vunpack.c.0.s8 %v6197
  %v6199 = vperm.slane %v6195, %v6198
  %v6200 = vsel %vm193, %v6019, %v6008
  %v6202 = vunpack.c.l.s4 1983009808
  %v6203 = vunpack.c.0.s8 %v6202
  %v6204 = vperm.slane %v6200, %v6203
  %v6205 = vrot.slane %v6020, 4
  %v6206 = vsel %vm193, %v6205, %v6018
  %v6208 = vunpack.c.l.s4 1983009808
  %v6209 = vunpack.c.0.s8 %v6208
  %v6210 = vperm.slane %v6206, %v6209
  %v6211 = vrot.slane %v6199, 4
  %v6212 = vsel %vm193, %v6211, %v6193
  %v6213 = vrot.slane %v6193, 4
  %v6214 = vsel %vm193, %v6199, %v6213
  %v6216 = vunpack.c.l.s4 1934713408
  %v6217 = vunpack.c.0.s8 %v6216
  %v6218 = vperm.slane %v6212, %v6217
  %v6220 = vunpack.c.l.s4 1934713408
  %v6221 = vunpack.c.0.s8 %v6220
  %v6222 = vperm.slane %v6214, %v6221
  %v6223 = vrot.slane %v6210, 4
  %v6224 = vsel %vm193, %v6223, %v6204
  %v6225 = vrot.slane %v6204, 4
  %v6226 = vsel %vm193, %v6210, %v6225
  %v6228 = vunpack.c.l.s4 1934713408
  %v6229 = vunpack.c.0.s8 %v6228
  %v6230 = vperm.slane %v6224, %v6229
  %v6232 = vunpack.c.l.s4 1934713408
  %v6233 = vunpack.c.0.s8 %v6232
  %v6234 = vperm.slane %v6226, %v6233
  %v6235 = vrot.slane %v6230, 4
  %v6236 = vsel %vm193, %v6235, %v6218
  %v6237 = vrot.slane %v6218, 4
  %v6238 = vsel %vm193, %v6230, %v6237
  %v6239 = vrot.slane %v6234, 4
  %v6240 = vsel %vm193, %v6239, %v6222
  %v6241 = vrot.slane %v6222, 4
  %v6242 = vsel %vm193, %v6234, %v6241
  %v6243 = vsel %vm193, %v6071, %v6052
  %v6245 = vunpack.c.l.s4 1983009808
  %v6246 = vunpack.c.0.s8 %v6245
  %v6247 = vperm.slane %v6243, %v6246
  %v6248 = vrot.slane %v6072, 4
  %v6249 = vsel %vm193, %v6248, %v6070
  %v6251 = vunpack.c.l.s4 1983009808
  %v6252 = vunpack.c.0.s8 %v6251
  %v6253 = vperm.slane %v6249, %v6252
  %v6254 = vsel %vm193, %v6075, %v6064
  %v6256 = vunpack.c.l.s4 1983009808
  %v6257 = vunpack.c.0.s8 %v6256
  %v6258 = vperm.slane %v6254, %v6257
  %v6259 = vrot.slane %v6076, 4
  %v6260 = vsel %vm193, %v6259, %v6074
  %v6262 = vunpack.c.l.s4 1983009808
  %v6263 = vunpack.c.0.s8 %v6262
  %v6264 = vperm.slane %v6260, %v6263
  %v6265 = vrot.slane %v6253, 4
  %v6266 = vsel %vm193, %v6265, %v6247
  %v6267 = vrot.slane %v6247, 4
  %v6268 = vsel %vm193, %v6253, %v6267
  %v6270 = vunpack.c.l.s4 1934713408
  %v6271 = vunpack.c.0.s8 %v6270
  %v6272 = vperm.slane %v6266, %v6271
  %v6274 = vunpack.c.l.s4 1934713408
  %v6275 = vunpack.c.0.s8 %v6274
  %v6276 = vperm.slane %v6268, %v6275
  %v6277 = vrot.slane %v6264, 4
  %v6278 = vsel %vm193, %v6277, %v6258
  %v6279 = vrot.slane %v6258, 4
  %v6280 = vsel %vm193, %v6264, %v6279
  %v6282 = vunpack.c.l.s4 1934713408
  %v6283 = vunpack.c.0.s8 %v6282
  %v6284 = vperm.slane %v6278, %v6283
  %v6286 = vunpack.c.l.s4 1934713408
  %v6287 = vunpack.c.0.s8 %v6286
  %v6288 = vperm.slane %v6280, %v6287
  %v6289 = vrot.slane %v6284, 4
  %v6290 = vsel %vm193, %v6289, %v6272
  %v6291 = vrot.slane %v6272, 4
  %v6292 = vsel %vm193, %v6284, %v6291
  %v6293 = vrot.slane %v6288, 4
  %v6294 = vsel %vm193, %v6293, %v6276
  %v6295 = vrot.slane %v6276, 4
  %v6296 = vsel %vm193, %v6288, %v6295
  %v6297 = vsel %vm193, %v6127, %v6108
  %v6299 = vunpack.c.l.s4 1983009808
  %v6300 = vunpack.c.0.s8 %v6299
  %v6301 = vperm.slane %v6297, %v6300
  %v6302 = vrot.slane %v6128, 4
  %v6303 = vsel %vm193, %v6302, %v6126
  %v6305 = vunpack.c.l.s4 1983009808
  %v6306 = vunpack.c.0.s8 %v6305
  %v6307 = vperm.slane %v6303, %v6306
  %v6308 = vsel %vm193, %v6131, %v6120
  %v6310 = vunpack.c.l.s4 1983009808
  %v6311 = vunpack.c.0.s8 %v6310
  %v6312 = vperm.slane %v6308, %v6311
  %v6313 = vrot.slane %v6132, 4
  %v6314 = vsel %vm193, %v6313, %v6130
  %v6316 = vunpack.c.l.s4 1983009808
  %v6317 = vunpack.c.0.s8 %v6316
  %v6318 = vperm.slane %v6314, %v6317
  %v6319 = vrot.slane %v6307, 4
  %v6320 = vsel %vm193, %v6319, %v6301
  %v6321 = vrot.slane %v6301, 4
  %v6322 = vsel %vm193, %v6307, %v6321
  %v6324 = vunpack.c.l.s4 1934713408
  %v6325 = vunpack.c.0.s8 %v6324
  %v6326 = vperm.slane %v6320, %v6325
  %v6328 = vunpack.c.l.s4 1934713408
  %v6329 = vunpack.c.0.s8 %v6328
  %v6330 = vperm.slane %v6322, %v6329
  %v6331 = vrot.slane %v6318, 4
  %v6332 = vsel %vm193, %v6331, %v6312
  %v6333 = vrot.slane %v6312, 4
  %v6334 = vsel %vm193, %v6318, %v6333
  %v6336 = vunpack.c.l.s4 1934713408
  %v6337 = vunpack.c.0.s8 %v6336
  %v6338 = vperm.slane %v6332, %v6337
  %v6340 = vunpack.c.l.s4 1934713408
  %v6341 = vunpack.c.0.s8 %v6340
  %v6342 = vperm.slane %v6334, %v6341
  %v6343 = vrot.slane %v6338, 4
  %v6344 = vsel %vm193, %v6343, %v6326
  %v6345 = vrot.slane %v6326, 4
  %v6346 = vsel %vm193, %v6338, %v6345
  %v6347 = vrot.slane %v6342, 4
  %v6348 = vsel %vm193, %v6347, %v6330
  %v6349 = vrot.slane %v6330, 4
  %v6350 = vsel %vm193, %v6342, %v6349
  %v6351 = vsel %vm193, %v6183, %v6164
  %v6353 = vunpack.c.l.s4 1983009808
  %v6354 = vunpack.c.0.s8 %v6353
  %v6355 = vperm.slane %v6351, %v6354
  %v6356 = vrot.slane %v6184, 4
  %v6357 = vsel %vm193, %v6356, %v6182
  %v6359 = vunpack.c.l.s4 1983009808
  %v6360 = vunpack.c.0.s8 %v6359
  %v6361 = vperm.slane %v6357, %v6360
  %v6362 = vsel %vm193, %v6187, %v6176
  %v6364 = vunpack.c.l.s4 1983009808
  %v6365 = vunpack.c.0.s8 %v6364
  %v6366 = vperm.slane %v6362, %v6365
  %v6367 = vrot.slane %v6188, 4
  %v6368 = vsel %vm193, %v6367, %v6186
  %v6370 = vunpack.c.l.s4 1983009808
  %v6371 = vunpack.c.0.s8 %v6370
  %v6372 = vperm.slane %v6368, %v6371
  %v6373 = vrot.slane %v6361, 4
  %v6374 = vsel %vm193, %v6373, %v6355
  %v6375 = vrot.slane %v6355, 4
  %v6376 = vsel %vm193, %v6361, %v6375
  %v6378 = vunpack.c.l.s4 1934713408
  %v6379 = vunpack.c.0.s8 %v6378
  %v6380 = vperm.slane %v6374, %v6379
  %v6382 = vunpack.c.l.s4 1934713408
  %v6383 = vunpack.c.0.s8 %v6382
  %v6384 = vperm.slane %v6376, %v6383
  %v6385 = vrot.slane %v6372, 4
  %v6386 = vsel %vm193, %v6385, %v6366
  %v6387 = vrot.slane %v6366, 4
  %v6388 = vsel %vm193, %v6372, %v6387
  %v6390 = vunpack.c.l.s4 1934713408
  %v6391 = vunpack.c.0.s8 %v6390
  %v6392 = vperm.slane %v6386, %v6391
  %v6394 = vunpack.c.l.s4 1934713408
  %v6395 = vunpack.c.0.s8 %v6394
  %v6396 = vperm.slane %v6388, %v6395
  %v6397 = vrot.slane %v6392, 4
  %v6398 = vsel %vm193, %v6397, %v6380
  %v6399 = vrot.slane %v6380, 4
  %v6400 = vsel %vm193, %v6392, %v6399
  %v6401 = vrot.slane %v6396, 4
  %v6402 = vsel %vm193, %v6401, %v6384
  %v6403 = vrot.slane %v6384, 4
  %v6404 = vsel %vm193, %v6396, %v6403
  %v6406 = vsel %vm893, %v5756, 0
  %v6409 = vsel %vm893, %v5810, 0
  %6411 = vmatpush.xpose.msra.mxu0 0.0
  %6412 = vmatpush.xpose.msra.mxu0 0.0
  %6413 = vmatpush.xpose.msra.mxu0 0.0
  %6414 = vmatpush.xpose.msra.mxu0 0.0
  %6415 = vmatpush.xpose.msra.mxu0 0.0
  %6416 = vmatpush.xpose.msra.mxu0 0.0
  %6417 = vmatpush.xpose.msra.mxu0 0.0
  %6418 = vmatpush.xpose.msra.mxu0 0.0
  %6419 = vmatpush.xpose.msra.mxu0 0.0
  %6420 = vmatpush.xpose.msra.mxu0 0.0
  %6421 = vmatpush.xpose.msra.mxu0 0.0
  %6422 = vmatpush.xpose.msra.mxu0 0.0
  %6423 = vmatpush.xpose.msra.mxu0 0.0
  %6424 = vmatpush.xpose.msra.mxu0 0.0
  %6425 = vmatpush.xpose.msra.mxu0 %v6409
  %6426 = vmatpush.xpose.msra.mxu0 %v6406
  %6427 = vmatmul.f32.gmra.mxu0 %v4577
  %v6428 = vpop.f32.mrf.mxu0
  %v6429 = vadd.f32 0.0, %v6428
  %6430 = vdwg.mxu0
  %v6432 = vsel %vm893, %v5758, 0
  %v6435 = vsel %vm893, %v5812, 0
  %6437 = vmatpush.xpose.msra.mxu0 0.0
  %6438 = vmatpush.xpose.msra.mxu0 0.0
  %6439 = vmatpush.xpose.msra.mxu0 0.0
  %6440 = vmatpush.xpose.msra.mxu0 0.0
  %6441 = vmatpush.xpose.msra.mxu0 0.0
  %6442 = vmatpush.xpose.msra.mxu0 0.0
  %6443 = vmatpush.xpose.msra.mxu0 0.0
  %6444 = vmatpush.xpose.msra.mxu0 0.0
  %6445 = vmatpush.xpose.msra.mxu0 0.0
  %6446 = vmatpush.xpose.msra.mxu0 0.0
  %6447 = vmatpush.xpose.msra.mxu0 0.0
  %6448 = vmatpush.xpose.msra.mxu0 0.0
  %6449 = vmatpush.xpose.msra.mxu0 0.0
  %6450 = vmatpush.xpose.msra.mxu0 0.0
  %6451 = vmatpush.xpose.msra.mxu0 %v6435
  %6452 = vmatpush.xpose.msra.mxu0 %v6432
  %6453 = vmatmul.f32.gmra.mxu0 %v4603
  %v6454 = vpop.f32.mrf.mxu0
  %v6455 = vadd.f32 0.0, %v6454
  %6456 = vdwg.mxu0
  %v6458 = vsel %vm893, %v5760, 0
  %v6461 = vsel %vm893, %v5814, 0
  %6463 = vmatpush.xpose.msra.mxu0 0.0
  %6464 = vmatpush.xpose.msra.mxu0 0.0
  %6465 = vmatpush.xpose.msra.mxu0 0.0
  %6466 = vmatpush.xpose.msra.mxu0 0.0
  %6467 = vmatpush.xpose.msra.mxu0 0.0
  %6468 = vmatpush.xpose.msra.mxu0 0.0
  %6469 = vmatpush.xpose.msra.mxu0 0.0
  %6470 = vmatpush.xpose.msra.mxu0 0.0
  %6471 = vmatpush.xpose.msra.mxu0 0.0
  %6472 = vmatpush.xpose.msra.mxu0 0.0
  %6473 = vmatpush.xpose.msra.mxu0 0.0
  %6474 = vmatpush.xpose.msra.mxu0 0.0
  %6475 = vmatpush.xpose.msra.mxu0 0.0
  %6476 = vmatpush.xpose.msra.mxu0 0.0
  %6477 = vmatpush.xpose.msra.mxu0 %v6461
  %6478 = vmatpush.xpose.msra.mxu0 %v6458
  %6479 = vmatmul.f32.gmra.mxu0 %v4629
  %v6480 = vpop.f32.mrf.mxu0
  %v6481 = vadd.f32 0.0, %v6480
  %6482 = vdwg.mxu0
  %v6484 = vsel %vm893, %v5762, 0
  %v6487 = vsel %vm893, %v5816, 0
  %6489 = vmatpush.xpose.msra.mxu0 0.0
  %6490 = vmatpush.xpose.msra.mxu0 0.0
  %6491 = vmatpush.xpose.msra.mxu0 0.0
  %6492 = vmatpush.xpose.msra.mxu0 0.0
  %6493 = vmatpush.xpose.msra.mxu0 0.0
  %6494 = vmatpush.xpose.msra.mxu0 0.0
  %6495 = vmatpush.xpose.msra.mxu0 0.0
  %6496 = vmatpush.xpose.msra.mxu0 0.0
  %6497 = vmatpush.xpose.msra.mxu0 0.0
  %6498 = vmatpush.xpose.msra.mxu0 0.0
  %6499 = vmatpush.xpose.msra.mxu0 0.0
  %6500 = vmatpush.xpose.msra.mxu0 0.0
  %6501 = vmatpush.xpose.msra.mxu0 0.0
  %6502 = vmatpush.xpose.msra.mxu0 0.0
  %6503 = vmatpush.xpose.msra.mxu0 %v6487
  %6504 = vmatpush.xpose.msra.mxu0 %v6484
  %6505 = vmatmul.f32.gmra.mxu0 %v4655
  %v6506 = vpop.f32.mrf.mxu0
  %v6507 = vadd.f32 0.0, %v6506
  %6508 = vdwg.mxu0
  %v6510 = vsel %vm893, %v5864, 0
  %v6513 = vsel %vm893, %v5918, 0
  %6515 = vmatpush.xpose.msra.mxu0 0.0
  %6516 = vmatpush.xpose.msra.mxu0 0.0
  %6517 = vmatpush.xpose.msra.mxu0 0.0
  %6518 = vmatpush.xpose.msra.mxu0 0.0
  %6519 = vmatpush.xpose.msra.mxu0 0.0
  %6520 = vmatpush.xpose.msra.mxu0 0.0
  %6521 = vmatpush.xpose.msra.mxu0 0.0
  %6522 = vmatpush.xpose.msra.mxu0 0.0
  %6523 = vmatpush.xpose.msra.mxu0 0.0
  %6524 = vmatpush.xpose.msra.mxu0 0.0
  %6525 = vmatpush.xpose.msra.mxu0 0.0
  %6526 = vmatpush.xpose.msra.mxu0 0.0
  %6527 = vmatpush.xpose.msra.mxu0 0.0
  %6528 = vmatpush.xpose.msra.mxu0 0.0
  %6529 = vmatpush.xpose.msra.mxu0 %v6513
  %6530 = vmatpush.xpose.msra.mxu0 %v6510
  %6531 = vmatmul.f32.gmra.mxu0 %v4681
  %v6532 = vpop.f32.mrf.mxu0
  %v6533 = vadd.f32 0.0, %v6532
  %6534 = vdwg.mxu0
  %v6536 = vsel %vm893, %v5866, 0
  %v6539 = vsel %vm893, %v5920, 0
  %6541 = vmatpush.xpose.msra.mxu0 0.0
  %6542 = vmatpush.xpose.msra.mxu0 0.0
  %6543 = vmatpush.xpose.msra.mxu0 0.0
  %6544 = vmatpush.xpose.msra.mxu0 0.0
  %6545 = vmatpush.xpose.msra.mxu0 0.0
  %6546 = vmatpush.xpose.msra.mxu0 0.0
  %6547 = vmatpush.xpose.msra.mxu0 0.0
  %6548 = vmatpush.xpose.msra.mxu0 0.0
  %6549 = vmatpush.xpose.msra.mxu0 0.0
  %6550 = vmatpush.xpose.msra.mxu0 0.0
  %6551 = vmatpush.xpose.msra.mxu0 0.0
  %6552 = vmatpush.xpose.msra.mxu0 0.0
  %6553 = vmatpush.xpose.msra.mxu0 0.0
  %6554 = vmatpush.xpose.msra.mxu0 0.0
  %6555 = vmatpush.xpose.msra.mxu0 %v6539
  %6556 = vmatpush.xpose.msra.mxu0 %v6536
  %6557 = vmatmul.f32.gmra.mxu0 %v4707
  %v6558 = vpop.f32.mrf.mxu0
  %v6559 = vadd.f32 0.0, %v6558
  %6560 = vdwg.mxu0
  %v6562 = vsel %vm893, %v5868, 0
  %v6565 = vsel %vm893, %v5922, 0
  %6567 = vmatpush.xpose.msra.mxu0 0.0
  %6568 = vmatpush.xpose.msra.mxu0 0.0
  %6569 = vmatpush.xpose.msra.mxu0 0.0
  %6570 = vmatpush.xpose.msra.mxu0 0.0
  %6571 = vmatpush.xpose.msra.mxu0 0.0
  %6572 = vmatpush.xpose.msra.mxu0 0.0
  %6573 = vmatpush.xpose.msra.mxu0 0.0
  %6574 = vmatpush.xpose.msra.mxu0 0.0
  %6575 = vmatpush.xpose.msra.mxu0 0.0
  %6576 = vmatpush.xpose.msra.mxu0 0.0
  %6577 = vmatpush.xpose.msra.mxu0 0.0
  %6578 = vmatpush.xpose.msra.mxu0 0.0
  %6579 = vmatpush.xpose.msra.mxu0 0.0
  %6580 = vmatpush.xpose.msra.mxu0 0.0
  %6581 = vmatpush.xpose.msra.mxu0 %v6565
  %6582 = vmatpush.xpose.msra.mxu0 %v6562
  %6583 = vmatmul.f32.gmra.mxu0 %v4733
  %v6584 = vpop.f32.mrf.mxu0
  %v6585 = vadd.f32 0.0, %v6584
  %6586 = vdwg.mxu0
  %v6588 = vsel %vm893, %v5870, 0
  %v6591 = vsel %vm893, %v5924, 0
  %6593 = vmatpush.xpose.msra.mxu0 0.0
  %6594 = vmatpush.xpose.msra.mxu0 0.0
  %6595 = vmatpush.xpose.msra.mxu0 0.0
  %6596 = vmatpush.xpose.msra.mxu0 0.0
  %6597 = vmatpush.xpose.msra.mxu0 0.0
  %6598 = vmatpush.xpose.msra.mxu0 0.0
  %6599 = vmatpush.xpose.msra.mxu0 0.0
  %6600 = vmatpush.xpose.msra.mxu0 0.0
  %6601 = vmatpush.xpose.msra.mxu0 0.0
  %6602 = vmatpush.xpose.msra.mxu0 0.0
  %6603 = vmatpush.xpose.msra.mxu0 0.0
  %6604 = vmatpush.xpose.msra.mxu0 0.0
  %6605 = vmatpush.xpose.msra.mxu0 0.0
  %6606 = vmatpush.xpose.msra.mxu0 0.0
  %6607 = vmatpush.xpose.msra.mxu0 %v6591
  %6608 = vmatpush.xpose.msra.mxu0 %v6588
  %6609 = vmatmul.f32.gmra.mxu0 %v4759
  %v6610 = vpop.f32.mrf.mxu0
  %v6611 = vadd.f32 0.0, %v6610
  %6612 = vdwg.mxu0
  %v6613 = vsel %vm893, %v6429, -inf
  %6614 = vmax.xlane.f32.xlu0 %v6613
  %v6615 = vpop.xlane.xlu0 %6614
  %v6616 = vsel %vm893, %v6455, -inf
  %6617 = vmax.xlane.f32.xlu0 %v6616
  %v6618 = vpop.xlane.xlu0 %6617
  %v6619 = vsel %vm893, %v6481, -inf
  %6620 = vmax.xlane.f32.xlu0 %v6619
  %v6621 = vpop.xlane.xlu0 %6620
  %v6622 = vsel %vm893, %v6507, -inf
  %6623 = vmax.xlane.f32.xlu0 %v6622
  %v6624 = vpop.xlane.xlu0 %6623
  %v6625 = vsel %vm893, %v6533, -inf
  %6626 = vmax.xlane.f32.xlu0 %v6625
  %v6627 = vpop.xlane.xlu0 %6626
  %v6628 = vsel %vm893, %v6559, -inf
  %6629 = vmax.xlane.f32.xlu0 %v6628
  %v6630 = vpop.xlane.xlu0 %6629
  %v6631 = vsel %vm893, %v6585, -inf
  %6632 = vmax.xlane.f32.xlu0 %v6631
  %v6633 = vpop.xlane.xlu0 %6632
  %v6634 = vsel %vm893, %v6611, -inf
  %6635 = vmax.xlane.f32.xlu0 %v6634
  %v6636 = vpop.xlane.xlu0 %6635
  %v6637 = vsub.f32 %v6429, %v6615
  %v6638 = vsub.f32 %v6455, %v6618
  %v6639 = vsub.f32 %v6481, %v6621
  %v6640 = vsub.f32 %v6507, %v6624
  %v6641 = vsub.f32 %v6533, %v6627
  %v6642 = vsub.f32 %v6559, %v6630
  %v6643 = vsub.f32 %v6585, %v6633
  %v6644 = vsub.f32 %v6611, %v6636
  %v6645 = vmul.f32 %v6637, 1.442695
  %v6646 = vpow.pop %v6645
  %v6647 = vmul.f32 %v6638, 1.442695
  %v6648 = vpow.pop %v6647
  %v6649 = vmul.f32 %v6639, 1.442695
  %v6650 = vpow.pop %v6649
  %v6651 = vmul.f32 %v6640, 1.442695
  %v6652 = vpow.pop %v6651
  %v6653 = vmul.f32 %v6641, 1.442695
  %v6654 = vpow.pop %v6653
  %v6655 = vmul.f32 %v6642, 1.442695
  %v6656 = vpow.pop %v6655
  %v6657 = vmul.f32 %v6643, 1.442695
  %v6658 = vpow.pop %v6657
  %v6659 = vmul.f32 %v6644, 1.442695
  %v6660 = vpow.pop %v6659
  %v6661 = vsel %vm893, %v6646, 0.0
  %6662 = vadd.xlane.f32.xlu0 %v6661
  %v6663 = vpop.xlane.xlu0 %6662
  %v6664 = vsel %vm893, %v6648, 0.0
  %6665 = vadd.xlane.f32.xlu0 %v6664
  %v6666 = vpop.xlane.xlu0 %6665
  %v6667 = vsel %vm893, %v6650, 0.0
  %6668 = vadd.xlane.f32.xlu0 %v6667
  %v6669 = vpop.xlane.xlu0 %6668
  %v6670 = vsel %vm893, %v6652, 0.0
  %6671 = vadd.xlane.f32.xlu0 %v6670
  %v6672 = vpop.xlane.xlu0 %6671
  %v6673 = vsel %vm893, %v6654, 0.0
  %6674 = vadd.xlane.f32.xlu0 %v6673
  %v6675 = vpop.xlane.xlu0 %6674
  %v6676 = vsel %vm893, %v6656, 0.0
  %6677 = vadd.xlane.f32.xlu0 %v6676
  %v6678 = vpop.xlane.xlu0 %6677
  %v6679 = vsel %vm893, %v6658, 0.0
  %6680 = vadd.xlane.f32.xlu0 %v6679
  %v6681 = vpop.xlane.xlu0 %6680
  %v6682 = vsel %vm893, %v6660, 0.0
  %6683 = vadd.xlane.f32.xlu0 %v6682
  %v6684 = vpop.xlane.xlu0 %6683
  %v6685 = vrcp.pop %v6663
  %v6686 = vrcp.pop %v6666
  %v6687 = vrcp.pop %v6669
  %v6688 = vrcp.pop %v6672
  %v6689 = vrcp.pop %v6675
  %v6690 = vrcp.pop %v6678
  %v6691 = vrcp.pop %v6681
  %v6692 = vrcp.pop %v6684
  %v6693 = vmul.f32 %v6646, %v6685
  %v6694 = vmul.f32 %v6648, %v6686
  %v6695 = vmul.f32 %v6650, %v6687
  %v6696 = vmul.f32 %v6652, %v6688
  %v6697 = vmul.f32 %v6654, %v6689
  %v6698 = vmul.f32 %v6656, %v6690
  %v6699 = vmul.f32 %v6658, %v6691
  %v6700 = vmul.f32 %v6660, %v6692
  %v6702 = vsel %vm893, %v6693, 0
  %6704 = vmatpush.msra.mxu0 0.0
  %6705 = vmatpush.msra.mxu0 0.0
  %6706 = vmatpush.msra.mxu0 0.0
  %6707 = vmatpush.msra.mxu0 0.0
  %6708 = vmatpush.msra.mxu0 0.0
  %6709 = vmatpush.msra.mxu0 0.0
  %6710 = vmatpush.msra.mxu0 0.0
  %6711 = vmatpush.msra.mxu0 0.0
  %6712 = vmatpush.msra.mxu0 0.0
  %6713 = vmatpush.msra.mxu0 0.0
  %6714 = vmatpush.msra.mxu0 0.0
  %6715 = vmatpush.msra.mxu0 0.0
  %6716 = vmatpush.msra.mxu0 0.0
  %6717 = vmatpush.msra.mxu0 0.0
  %6718 = vmatpush.msra.mxu0 %v6290
  %6719 = vmatpush.msra.mxu0 %v6236
  %6720 = vmatmul.f32.gmra.mxu0 %v6702
  %v6721 = vpop.f32.mrf.mxu0
  %v6722 = vadd.f32 0.0, %v6721
  %6723 = vdwg.mxu0
  %v6725 = vsel %vm893, %v6694, 0
  %6727 = vmatpush.msra.mxu0 0.0
  %6728 = vmatpush.msra.mxu0 0.0
  %6729 = vmatpush.msra.mxu0 0.0
  %6730 = vmatpush.msra.mxu0 0.0
  %6731 = vmatpush.msra.mxu0 0.0
  %6732 = vmatpush.msra.mxu0 0.0
  %6733 = vmatpush.msra.mxu0 0.0
  %6734 = vmatpush.msra.mxu0 0.0
  %6735 = vmatpush.msra.mxu0 0.0
  %6736 = vmatpush.msra.mxu0 0.0
  %6737 = vmatpush.msra.mxu0 0.0
  %6738 = vmatpush.msra.mxu0 0.0
  %6739 = vmatpush.msra.mxu0 0.0
  %6740 = vmatpush.msra.mxu0 0.0
  %6741 = vmatpush.msra.mxu0 %v6292
  %6742 = vmatpush.msra.mxu0 %v6238
  %6743 = vmatmul.f32.gmra.mxu0 %v6725
  %v6744 = vpop.f32.mrf.mxu0
  %v6745 = vadd.f32 0.0, %v6744
  %6746 = vdwg.mxu0
  %v6748 = vsel %vm893, %v6695, 0
  %6750 = vmatpush.msra.mxu0 0.0
  %6751 = vmatpush.msra.mxu0 0.0
  %6752 = vmatpush.msra.mxu0 0.0
  %6753 = vmatpush.msra.mxu0 0.0
  %6754 = vmatpush.msra.mxu0 0.0
  %6755 = vmatpush.msra.mxu0 0.0
  %6756 = vmatpush.msra.mxu0 0.0
  %6757 = vmatpush.msra.mxu0 0.0
  %6758 = vmatpush.msra.mxu0 0.0
  %6759 = vmatpush.msra.mxu0 0.0
  %6760 = vmatpush.msra.mxu0 0.0
  %6761 = vmatpush.msra.mxu0 0.0
  %6762 = vmatpush.msra.mxu0 0.0
  %6763 = vmatpush.msra.mxu0 0.0
  %6764 = vmatpush.msra.mxu0 %v6294
  %6765 = vmatpush.msra.mxu0 %v6240
  %6766 = vmatmul.f32.gmra.mxu0 %v6748
  %v6767 = vpop.f32.mrf.mxu0
  %v6768 = vadd.f32 0.0, %v6767
  %6769 = vdwg.mxu0
  %v6771 = vsel %vm893, %v6696, 0
  %6773 = vmatpush.msra.mxu0 0.0
  %6774 = vmatpush.msra.mxu0 0.0
  %6775 = vmatpush.msra.mxu0 0.0
  %6776 = vmatpush.msra.mxu0 0.0
  %6777 = vmatpush.msra.mxu0 0.0
  %6778 = vmatpush.msra.mxu0 0.0
  %6779 = vmatpush.msra.mxu0 0.0
  %6780 = vmatpush.msra.mxu0 0.0
  %6781 = vmatpush.msra.mxu0 0.0
  %6782 = vmatpush.msra.mxu0 0.0
  %6783 = vmatpush.msra.mxu0 0.0
  %6784 = vmatpush.msra.mxu0 0.0
  %6785 = vmatpush.msra.mxu0 0.0
  %6786 = vmatpush.msra.mxu0 0.0
  %6787 = vmatpush.msra.mxu0 %v6296
  %6788 = vmatpush.msra.mxu0 %v6242
  %6789 = vmatmul.f32.gmra.mxu0 %v6771
  %v6790 = vpop.f32.mrf.mxu0
  %v6791 = vadd.f32 0.0, %v6790
  %6792 = vdwg.mxu0
  %v6794 = vsel %vm893, %v6697, 0
  %6796 = vmatpush.msra.mxu0 0.0
  %6797 = vmatpush.msra.mxu0 0.0
  %6798 = vmatpush.msra.mxu0 0.0
  %6799 = vmatpush.msra.mxu0 0.0
  %6800 = vmatpush.msra.mxu0 0.0
  %6801 = vmatpush.msra.mxu0 0.0
  %6802 = vmatpush.msra.mxu0 0.0
  %6803 = vmatpush.msra.mxu0 0.0
  %6804 = vmatpush.msra.mxu0 0.0
  %6805 = vmatpush.msra.mxu0 0.0
  %6806 = vmatpush.msra.mxu0 0.0
  %6807 = vmatpush.msra.mxu0 0.0
  %6808 = vmatpush.msra.mxu0 0.0
  %6809 = vmatpush.msra.mxu0 0.0
  %6810 = vmatpush.msra.mxu0 %v6398
  %6811 = vmatpush.msra.mxu0 %v6344
  %6812 = vmatmul.f32.gmra.mxu0 %v6794
  %v6813 = vpop.f32.mrf.mxu0
  %v6814 = vadd.f32 0.0, %v6813
  %6815 = vdwg.mxu0
  %v6817 = vsel %vm893, %v6698, 0
  %6819 = vmatpush.msra.mxu0 0.0
  %6820 = vmatpush.msra.mxu0 0.0
  %6821 = vmatpush.msra.mxu0 0.0
  %6822 = vmatpush.msra.mxu0 0.0
  %6823 = vmatpush.msra.mxu0 0.0
  %6824 = vmatpush.msra.mxu0 0.0
  %6825 = vmatpush.msra.mxu0 0.0
  %6826 = vmatpush.msra.mxu0 0.0
  %6827 = vmatpush.msra.mxu0 0.0
  %6828 = vmatpush.msra.mxu0 0.0
  %6829 = vmatpush.msra.mxu0 0.0
  %6830 = vmatpush.msra.mxu0 0.0
  %6831 = vmatpush.msra.mxu0 0.0
  %6832 = vmatpush.msra.mxu0 0.0
  %6833 = vmatpush.msra.mxu0 %v6400
  %6834 = vmatpush.msra.mxu0 %v6346
  %6835 = vmatmul.f32.gmra.mxu0 %v6817
  %v6836 = vpop.f32.mrf.mxu0
  %v6837 = vadd.f32 0.0, %v6836
  %6838 = vdwg.mxu0
  %v6840 = vsel %vm893, %v6699, 0
  %6842 = vmatpush.msra.mxu0 0.0
  %6843 = vmatpush.msra.mxu0 0.0
  %6844 = vmatpush.msra.mxu0 0.0
  %6845 = vmatpush.msra.mxu0 0.0
  %6846 = vmatpush.msra.mxu0 0.0
  %6847 = vmatpush.msra.mxu0 0.0
  %6848 = vmatpush.msra.mxu0 0.0
  %6849 = vmatpush.msra.mxu0 0.0
  %6850 = vmatpush.msra.mxu0 0.0
  %6851 = vmatpush.msra.mxu0 0.0
  %6852 = vmatpush.msra.mxu0 0.0
  %6853 = vmatpush.msra.mxu0 0.0
  %6854 = vmatpush.msra.mxu0 0.0
  %6855 = vmatpush.msra.mxu0 0.0
  %6856 = vmatpush.msra.mxu0 %v6402
  %6857 = vmatpush.msra.mxu0 %v6348
  %6858 = vmatmul.f32.gmra.mxu0 %v6840
  %v6859 = vpop.f32.mrf.mxu0
  %v6860 = vadd.f32 0.0, %v6859
  %6861 = vdwg.mxu0
  %v6863 = vsel %vm893, %v6700, 0
  %6865 = vmatpush.msra.mxu0 0.0
  %6866 = vmatpush.msra.mxu0 0.0
  %6867 = vmatpush.msra.mxu0 0.0
  %6868 = vmatpush.msra.mxu0 0.0
  %6869 = vmatpush.msra.mxu0 0.0
  %6870 = vmatpush.msra.mxu0 0.0
  %6871 = vmatpush.msra.mxu0 0.0
  %6872 = vmatpush.msra.mxu0 0.0
  %6873 = vmatpush.msra.mxu0 0.0
  %6874 = vmatpush.msra.mxu0 0.0
  %6875 = vmatpush.msra.mxu0 0.0
  %6876 = vmatpush.msra.mxu0 0.0
  %6877 = vmatpush.msra.mxu0 0.0
  %6878 = vmatpush.msra.mxu0 0.0
  %6879 = vmatpush.msra.mxu0 %v6404
  %6880 = vmatpush.msra.mxu0 %v6350
  %6881 = vmatmul.f32.gmra.mxu0 %v6863
  %v6882 = vpop.f32.mrf.mxu0
  %v6883 = vadd.f32 0.0, %v6882
  %6884 = vdwg.mxu0
  %v6885 = vrot.slane %v6768, 4
  %v6886 = vsel %vm193, %v6885, %v6722
  %v6887 = vrot.slane %v6722, 4
  %v6888 = vsel %vm193, %v6768, %v6887
  %v6890 = vunpack.c.l.s4 1983009808
  %v6891 = vunpack.c.0.s8 %v6890
  %v6892 = vperm.slane %v6886, %v6891
  %v6894 = vunpack.c.l.s4 1983009808
  %v6895 = vunpack.c.0.s8 %v6894
  %v6896 = vperm.slane %v6888, %v6895
  %v6897 = vrot.slane %v6791, 4
  %v6898 = vsel %vm193, %v6897, %v6745
  %v6899 = vrot.slane %v6745, 4
  %v6900 = vsel %vm193, %v6791, %v6899
  %v6902 = vunpack.c.l.s4 1983009808
  %v6903 = vunpack.c.0.s8 %v6902
  %v6904 = vperm.slane %v6898, %v6903
  %v6906 = vunpack.c.l.s4 1983009808
  %v6907 = vunpack.c.0.s8 %v6906
  %v6908 = vperm.slane %v6900, %v6907
  %v6909 = vrot.slane %v6904, 4
  %v6910 = vsel %vm193, %v6909, %v6892
  %v6911 = vrot.slane %v6892, 4
  %v6912 = vsel %vm193, %v6904, %v6911
  %v6914 = vunpack.c.l.s4 1934713408
  %v6915 = vunpack.c.0.s8 %v6914
  %v6916 = vperm.slane %v6910, %v6915
  %v6918 = vunpack.c.l.s4 1934713408
  %v6919 = vunpack.c.0.s8 %v6918
  %v6920 = vperm.slane %v6912, %v6919
  %v6921 = vrot.slane %v6908, 4
  %v6922 = vsel %vm193, %v6921, %v6896
  %v6923 = vrot.slane %v6896, 4
  %v6924 = vsel %vm193, %v6908, %v6923
  %v6926 = vunpack.c.l.s4 1934713408
  %v6927 = vunpack.c.0.s8 %v6926
  %v6928 = vperm.slane %v6922, %v6927
  %v6930 = vunpack.c.l.s4 1934713408
  %v6931 = vunpack.c.0.s8 %v6930
  %v6932 = vperm.slane %v6924, %v6931
  %v6933 = vrot.slane %v6916, 4
  %v6934 = vsel %vm193, 0.0, %v6933
  %v6935 = vrot.slane %v6920, 4
  %v6936 = vsel %vm193, 0.0, %v6935
  %v6937 = vrot.slane %v6928, 4
  %v6938 = vsel %vm193, 0.0, %v6937
  %v6939 = vrot.slane %v6932, 4
  %v6940 = vsel %vm193, 0.0, %v6939
  %v6941 = vrot.slane %v6860, 4
  %v6942 = vsel %vm193, %v6941, %v6814
  %v6943 = vrot.slane %v6814, 4
  %v6944 = vsel %vm193, %v6860, %v6943
  %v6946 = vunpack.c.l.s4 1983009808
  %v6947 = vunpack.c.0.s8 %v6946
  %v6948 = vperm.slane %v6942, %v6947
  %v6950 = vunpack.c.l.s4 1983009808
  %v6951 = vunpack.c.0.s8 %v6950
  %v6952 = vperm.slane %v6944, %v6951
  %v6953 = vrot.slane %v6883, 4
  %v6954 = vsel %vm193, %v6953, %v6837
  %v6955 = vrot.slane %v6837, 4
  %v6956 = vsel %vm193, %v6883, %v6955
  %v6958 = vunpack.c.l.s4 1983009808
  %v6959 = vunpack.c.0.s8 %v6958
  %v6960 = vperm.slane %v6954, %v6959
  %v6962 = vunpack.c.l.s4 1983009808
  %v6963 = vunpack.c.0.s8 %v6962
  %v6964 = vperm.slane %v6956, %v6963
  %v6965 = vrot.slane %v6960, 4
  %v6966 = vsel %vm193, %v6965, %v6948
  %v6967 = vrot.slane %v6948, 4
  %v6968 = vsel %vm193, %v6960, %v6967
  %v6970 = vunpack.c.l.s4 1934713408
  %v6971 = vunpack.c.0.s8 %v6970
  %v6972 = vperm.slane %v6966, %v6971
  %v6974 = vunpack.c.l.s4 1934713408
  %v6975 = vunpack.c.0.s8 %v6974
  %v6976 = vperm.slane %v6968, %v6975
  %v6977 = vrot.slane %v6964, 4
  %v6978 = vsel %vm193, %v6977, %v6952
  %v6979 = vrot.slane %v6952, 4
  %v6980 = vsel %vm193, %v6964, %v6979
  %v6982 = vunpack.c.l.s4 1934713408
  %v6983 = vunpack.c.0.s8 %v6982
  %v6984 = vperm.slane %v6978, %v6983
  %v6986 = vunpack.c.l.s4 1934713408
  %v6987 = vunpack.c.0.s8 %v6986
  %v6988 = vperm.slane %v6980, %v6987
  %v6989 = vrot.slane %v6972, 4
  %v6990 = vsel %vm193, 0.0, %v6989
  %v6991 = vrot.slane %v6976, 4
  %v6992 = vsel %vm193, 0.0, %v6991
  %v6993 = vrot.slane %v6984, 4
  %v6994 = vsel %vm193, 0.0, %v6993
  %v6995 = vrot.slane %v6988, 4
  %v6996 = vsel %vm193, 0.0, %v6995
  %v6997 = vsel %vm193, %v6935, %v6916
  %v6999 = vunpack.c.l.s4 1983009808
  %v7000 = vunpack.c.0.s8 %v6999
  %v7001 = vperm.slane %v6997, %v7000
  %v7002 = vrot.slane %v6936, 4
  %v7003 = vsel %vm193, %v7002, %v6934
  %v7005 = vunpack.c.l.s4 1983009808
  %v7006 = vunpack.c.0.s8 %v7005
  %v7007 = vperm.slane %v7003, %v7006
  %v7008 = vsel %vm193, %v6939, %v6928
  %v7010 = vunpack.c.l.s4 1983009808
  %v7011 = vunpack.c.0.s8 %v7010
  %v7012 = vperm.slane %v7008, %v7011
  %v7013 = vrot.slane %v6940, 4
  %v7014 = vsel %vm193, %v7013, %v6938
  %v7016 = vunpack.c.l.s4 1983009808
  %v7017 = vunpack.c.0.s8 %v7016
  %v7018 = vperm.slane %v7014, %v7017
  %v7019 = vrot.slane %v7007, 4
  %v7020 = vsel %vm193, %v7019, %v7001
  %v7021 = vrot.slane %v7001, 4
  %v7022 = vsel %vm193, %v7007, %v7021
  %v7024 = vunpack.c.l.s4 1934713408
  %v7025 = vunpack.c.0.s8 %v7024
  %v7026 = vperm.slane %v7020, %v7025
  %v7028 = vunpack.c.l.s4 1934713408
  %v7029 = vunpack.c.0.s8 %v7028
  %v7030 = vperm.slane %v7022, %v7029
  %v7031 = vrot.slane %v7018, 4
  %v7032 = vsel %vm193, %v7031, %v7012
  %v7033 = vrot.slane %v7012, 4
  %v7034 = vsel %vm193, %v7018, %v7033
  %v7036 = vunpack.c.l.s4 1934713408
  %v7037 = vunpack.c.0.s8 %v7036
  %v7038 = vperm.slane %v7032, %v7037
  %v7040 = vunpack.c.l.s4 1934713408
  %v7041 = vunpack.c.0.s8 %v7040
  %v7042 = vperm.slane %v7034, %v7041
  %v7043 = vrot.slane %v7038, 4
  %v7044 = vsel %vm193, %v7043, %v7026
  %v7045 = vrot.slane %v7026, 4
  %v7046 = vsel %vm193, %v7038, %v7045
  %v7047 = vrot.slane %v7042, 4
  %v7048 = vsel %vm193, %v7047, %v7030
  %v7049 = vrot.slane %v7030, 4
  %v7050 = vsel %vm193, %v7042, %v7049
  %v7051 = vsel %vm193, %v6991, %v6972
  %v7053 = vunpack.c.l.s4 1983009808
  %v7054 = vunpack.c.0.s8 %v7053
  %v7055 = vperm.slane %v7051, %v7054
  %v7056 = vrot.slane %v6992, 4
  %v7057 = vsel %vm193, %v7056, %v6990
  %v7059 = vunpack.c.l.s4 1983009808
  %v7060 = vunpack.c.0.s8 %v7059
  %v7061 = vperm.slane %v7057, %v7060
  %v7062 = vsel %vm193, %v6995, %v6984
  %v7064 = vunpack.c.l.s4 1983009808
  %v7065 = vunpack.c.0.s8 %v7064
  %v7066 = vperm.slane %v7062, %v7065
  %v7067 = vrot.slane %v6996, 4
  %v7068 = vsel %vm193, %v7067, %v6994
  %v7070 = vunpack.c.l.s4 1983009808
  %v7071 = vunpack.c.0.s8 %v7070
  %v7072 = vperm.slane %v7068, %v7071
  %v7073 = vrot.slane %v7061, 4
  %v7074 = vsel %vm193, %v7073, %v7055
  %v7075 = vrot.slane %v7055, 4
  %v7076 = vsel %vm193, %v7061, %v7075
  %v7078 = vunpack.c.l.s4 1934713408
  %v7079 = vunpack.c.0.s8 %v7078
  %v7080 = vperm.slane %v7074, %v7079
  %v7082 = vunpack.c.l.s4 1934713408
  %v7083 = vunpack.c.0.s8 %v7082
  %v7084 = vperm.slane %v7076, %v7083
  %v7085 = vrot.slane %v7072, 4
  %v7086 = vsel %vm193, %v7085, %v7066
  %v7087 = vrot.slane %v7066, 4
  %v7088 = vsel %vm193, %v7072, %v7087
  %v7090 = vunpack.c.l.s4 1934713408
  %v7091 = vunpack.c.0.s8 %v7090
  %v7092 = vperm.slane %v7086, %v7091
  %v7094 = vunpack.c.l.s4 1934713408
  %v7095 = vunpack.c.0.s8 %v7094
  %v7096 = vperm.slane %v7088, %v7095
  %v7097 = vrot.slane %v7092, 4
  %v7098 = vsel %vm193, %v7097, %v7080
  %v7099 = vrot.slane %v7080, 4
  %v7100 = vsel %vm193, %v7092, %v7099
  %v7101 = vrot.slane %v7096, 4
  %v7102 = vsel %vm193, %v7101, %v7084
  %v7103 = vrot.slane %v7084, 4
  %v7104 = vsel %vm193, %v7096, %v7103
  %7107 = vrot.lane.b32.xlu0 %v7046, 16
  %v7108 = vpop.permute.xlu0 %7107
  %7109 = vrot.lane.b32.xlu0 %v7100, 16
  %v7110 = vpop.permute.xlu0 %7109
  %7115 = vrot.lane.b32.xlu0 %v7048, 32
  %v7116 = vpop.permute.xlu0 %7115
  %7117 = vrot.lane.b32.xlu0 %v7102, 32
  %v7118 = vpop.permute.xlu0 %7117
  %7123 = vrot.lane.b32.xlu0 %v7050, 48
  %v7124 = vpop.permute.xlu0 %7123
  %7125 = vrot.lane.b32.xlu0 %v7104, 48
  %v7126 = vpop.permute.xlu0 %7125
  %v7129 = vsel %vm893, %v7044, %v7108
  %v7130 = vsel %vm893, %v7098, %v7110
  %v7131 = vsel %vm90, %v7129, %v7116
  %v7132 = vsel %vm90, %v7130, %v7118
  %v7133 = vsel %vm1623, %v7131, %v7124
  %v7134 = vsel %vm1623, %v7132, %v7126
  %v7136 = vsel %vm1626, %v7133, 0
  %v7139 = vsel %vm1626, %v7134, 0
  %7141 = vmatpush.msra.mxu0 0.0
  %7142 = vmatpush.msra.mxu0 0.0
  %7143 = vmatpush.msra.mxu0 0.0
  %7144 = vmatpush.msra.mxu0 0.0
  %7145 = vmatpush.msra.mxu0 0.0
  %7146 = vmatpush.msra.mxu0 0.0
  %7147 = vmatpush.msra.mxu0 0.0
  %7148 = vmatpush.msra.mxu0 0.0
  %7149 = vmatpush.msra.mxu0 %v3755
  %7150 = vmatpush.msra.mxu0 %v3754
  %7151 = vmatpush.msra.mxu0 %v3753
  %7152 = vmatpush.msra.mxu0 %v3752
  %7153 = vmatpush.msra.mxu0 %v3751
  %7154 = vmatpush.msra.mxu0 %v3750
  %7155 = vmatpush.msra.mxu0 %v3749
  %7156 = vmatpush.msra.mxu0 %v3748
  %7157 = vmatmul.f32.gmra.mxu0 %v7136
  %v7158 = vpop.f32.mrf.mxu0
  %v7159 = vadd.f32 0.0, %v7158
  %7160 = vmatmul.f32.gmra.mxu0 %v7139
  %v7161 = vpop.f32.mrf.mxu0
  %v7162 = vadd.f32 0.0, %v7161
  %7163 = vdwg.mxu0
  %v7164 = vadd.f32 %v5385, %v7159
  %v7165 = vadd.f32 %v5386, %v7162
  %v7166 = vsel %vm90, %v7164, 0.0
  %7167 = vadd.xlane.f32.xlu0 %v7166
  %v7168 = vpop.xlane.xlu0 %7167
  %v7169 = vsel %vm90, %v7165, 0.0
  %7170 = vadd.xlane.f32.xlu0 %v7169
  %v7171 = vpop.xlane.xlu0 %7170
  %v7172 = vmul.f32 %v7168, %v1670
  %v7173 = vmul.f32 %v7171, %v1670
  %v7174 = vsub.f32 %v7164, %v7172
  %v7175 = vsub.f32 %v7165, %v7173
  %v7176 = vmul.f32 %v7174, %v7174
  %v7177 = vmul.f32 %v7175, %v7175
  %v7178 = vsel %vm90, %v7176, 0.0
  %7179 = vadd.xlane.f32.xlu0 %v7178
  %v7180 = vpop.xlane.xlu0 %7179
  %v7181 = vsel %vm90, %v7177, 0.0
  %7182 = vadd.xlane.f32.xlu0 %v7181
  %v7183 = vpop.xlane.xlu0 %7182
  %v7184 = vmul.f32 %v7180, %v1670
  %v7185 = vmul.f32 %v7183, %v1670
  %v7186 = vadd.f32 %v7184, 1e-05
  %v7187 = vadd.f32 %v7185, 1e-05
  %v7188 = vrsqrt.pop %v7186
  %v7189 = vmul.f32 %v7188, %v7186
  %v7190 = vmul.f32 %v7189, %v7188
  %v7191 = vmul.f32 0.5, %v7190
  %v7192 = vsub.f32 1.5, %v7191
  %v7193 = vmul.f32 %v7188, %v7192
  %vm7194 = vweird.f32 %v7186
  %vm7195 = vweird.f32 %v7188
  %vm7196 = vmor %vm7194, %vm7195
  %v7197 = vsel %vm7196, %v7188, %v7193
  %v7198 = vrsqrt.pop %v7187
  %v7199 = vmul.f32 %v7198, %v7187
  %v7200 = vmul.f32 %v7199, %v7198
  %v7201 = vmul.f32 0.5, %v7200
  %v7202 = vsub.f32 1.5, %v7201
  %v7203 = vmul.f32 %v7198, %v7202
  %vm7204 = vweird.f32 %v7187
  %vm7205 = vweird.f32 %v7198
  %vm7206 = vmor %vm7204, %vm7205
  %v7207 = vsel %vm7206, %v7198, %v7203
  %v7208 = vmul.f32 %v7174, %v7197
  %v7209 = vmul.f32 %v7175, %v7207
  %v7210 = vperm.slane %v3771, 4
  %v7211 = vmul.f32 %v7208, %v7210
  %v7212 = vmul.f32 %v7209, %v7210
  %v7213 = vperm.slane %v3771, 5
  %v7214 = vadd.f32 %v7211, %v7213
  %v7215 = vadd.f32 %v7212, %v7213
  %v7216 = vperm.slane %v3771, 0
  %v7218 = vsel %vm90, %v7214, 0
  %v7221 = vsel %vm90, %v7215, 0
  %7223 = vmatpush.msra.mxu0 0.0
  %7224 = vmatpush.msra.mxu0 0.0
  %7225 = vmatpush.msra.mxu0 0.0
  %7226 = vmatpush.msra.mxu0 0.0
  %7227 = vmatpush.msra.mxu0 0.0
  %7228 = vmatpush.msra.mxu0 0.0
  %7229 = vmatpush.msra.mxu0 0.0
  %7230 = vmatpush.msra.mxu0 0.0
  %7231 = vmatpush.msra.mxu0 0.0
  %7232 = vmatpush.msra.mxu0 0.0
  %7233 = vmatpush.msra.mxu0 0.0
  %7234 = vmatpush.msra.mxu0 0.0
  %7235 = vmatpush.msra.mxu0 %v3760
  %7236 = vmatpush.msra.mxu0 %v3759
  %7237 = vmatpush.msra.mxu0 %v3758
  %7238 = vmatpush.msra.mxu0 %v3757
  %7239 = vmatmul.f32.gmra.mxu0 %v7218
  %v7240 = vpop.f32.mrf.mxu0
  %v7241 = vadd.f32 %v7216, %v7240
  %7242 = vmatmul.f32.gmra.mxu0 %v7221
  %v7243 = vpop.f32.mrf.mxu0
  %v7244 = vadd.f32 %v7216, %v7243
  %7245 = vdwg.mxu0
  %v7246 = vmax.f32 %v7241, 0.0
  %v7247 = vmax.f32 %v7244, 0.0
  %v7248 = vperm.slane %v3771, 1
  %v7250 = vsel %vm1626, %v7246, 0
  %v7253 = vsel %vm1626, %v7247, 0
  %7255 = vmatpush.msra.mxu0 0.0
  %7256 = vmatpush.msra.mxu0 0.0
  %7257 = vmatpush.msra.mxu0 0.0
  %7258 = vmatpush.msra.mxu0 0.0
  %7259 = vmatpush.msra.mxu0 0.0
  %7260 = vmatpush.msra.mxu0 0.0
  %7261 = vmatpush.msra.mxu0 0.0
  %7262 = vmatpush.msra.mxu0 0.0
  %7263 = vmatpush.msra.mxu0 %v3769
  %7264 = vmatpush.msra.mxu0 %v3768
  %7265 = vmatpush.msra.mxu0 %v3767
  %7266 = vmatpush.msra.mxu0 %v3766
  %7267 = vmatpush.msra.mxu0 %v3765
  %7268 = vmatpush.msra.mxu0 %v3764
  %7269 = vmatpush.msra.mxu0 %v3763
  %7270 = vmatpush.msra.mxu0 %v3762
  %7271 = vmatmul.f32.gmra.mxu0 %v7250
  %v7272 = vpop.f32.mrf.mxu0
  %v7273 = vadd.f32 %v7248, %v7272
  %7274 = vmatmul.f32.gmra.mxu0 %v7253
  %v7275 = vpop.f32.mrf.mxu0
  %v7276 = vadd.f32 %v7248, %v7275
  %7277 = vdwg.mxu0
  %v7278 = vadd.f32 %v7214, %v7273
  %v7279 = vadd.f32 %v7215, %v7276
  %v7280 = vsel %vm90, %v7278, 0.0
  %7281 = vadd.xlane.f32.xlu0 %v7280
  %v7282 = vpop.xlane.xlu0 %7281
  %v7283 = vsel %vm90, %v7279, 0.0
  %7284 = vadd.xlane.f32.xlu0 %v7283
  %v7285 = vpop.xlane.xlu0 %7284
  %v7286 = vmul.f32 %v7282, %v1670
  %v7287 = vmul.f32 %v7285, %v1670
  %v7288 = vsub.f32 %v7278, %v7286
  %v7289 = vsub.f32 %v7279, %v7287
  %v7290 = vmul.f32 %v7288, %v7288
  %v7291 = vmul.f32 %v7289, %v7289
  %v7292 = vsel %vm90, %v7290, 0.0
  %7293 = vadd.xlane.f32.xlu0 %v7292
  %v7294 = vpop.xlane.xlu0 %7293
  %v7295 = vsel %vm90, %v7291, 0.0
  %7296 = vadd.xlane.f32.xlu0 %v7295
  %v7297 = vpop.xlane.xlu0 %7296
  %v7298 = vmul.f32 %v7294, %v1670
  %v7299 = vmul.f32 %v7297, %v1670
  %v7300 = vadd.f32 %v7298, 1e-05
  %v7301 = vadd.f32 %v7299, 1e-05
  %v7302 = vrsqrt.pop %v7300
  %v7303 = vmul.f32 %v7302, %v7300
  %v7304 = vmul.f32 %v7303, %v7302
  %v7305 = vmul.f32 0.5, %v7304
  %v7306 = vsub.f32 1.5, %v7305
  %v7307 = vmul.f32 %v7302, %v7306
  %vm7308 = vweird.f32 %v7300
  %vm7309 = vweird.f32 %v7302
  %vm7310 = vmor %vm7308, %vm7309
  %v7311 = vsel %vm7310, %v7302, %v7307
  %v7312 = vrsqrt.pop %v7301
  %v7313 = vmul.f32 %v7312, %v7301
  %v7314 = vmul.f32 %v7313, %v7312
  %v7315 = vmul.f32 0.5, %v7314
  %v7316 = vsub.f32 1.5, %v7315
  %v7317 = vmul.f32 %v7312, %v7316
  %vm7318 = vweird.f32 %v7301
  %vm7319 = vweird.f32 %v7312
  %vm7320 = vmor %vm7318, %vm7319
  %v7321 = vsel %vm7320, %v7312, %v7317
  %v7322 = vmul.f32 %v7288, %v7311
  %v7323 = vmul.f32 %v7289, %v7321
  %v7324 = vperm.slane %v3771, 6
  %v7325 = vmul.f32 %v7322, %v7324
  %v7326 = vmul.f32 %v7323, %v7324
  %v7327 = vperm.slane %v3771, 7
  %v7328 = vadd.f32 %v7325, %v7327
  %v7329 = vadd.f32 %v7326, %v7327
  %v7330 = vsel %vm90, %v7328, 0.0
  %7331 = vadd.xlane.f32.xlu0 %v7330
  %v7332 = vpop.xlane.xlu0 %7331
  %v7333 = vsel %vm90, %v7329, 0.0
  %7334 = vadd.xlane.f32.xlu0 %v7333
  %v7335 = vpop.xlane.xlu0 %7334
  %v7336 = vmul.f32 %v7332, %v1670
  %v7337 = vmul.f32 %v7335, %v1670
  %v7338 = vsub.f32 %v7328, %v7336
  %v7339 = vsub.f32 %v7329, %v7337
  %v7340 = vmul.f32 %v7338, %v7338
  %v7341 = vmul.f32 %v7339, %v7339
  %v7342 = vsel %vm90, %v7340, 0.0
  %7343 = vadd.xlane.f32.xlu0 %v7342
  %v7344 = vpop.xlane.xlu0 %7343
  %v7345 = vsel %vm90, %v7341, 0.0
  %7346 = vadd.xlane.f32.xlu0 %v7345
  %v7347 = vpop.xlane.xlu0 %7346
  %v7348 = vmul.f32 %v7344, %v1670
  %v7349 = vmul.f32 %v7347, %v1670
  %v7350 = vadd.f32 %v7348, 1e-05
  %v7351 = vadd.f32 %v7349, 1e-05
  %v7352 = vrsqrt.pop %v7350
  %v7353 = vmul.f32 %v7352, %v7350
  %v7354 = vmul.f32 %v7353, %v7352
  %v7355 = vmul.f32 0.5, %v7354
  %v7356 = vsub.f32 1.5, %v7355
  %v7357 = vmul.f32 %v7352, %v7356
  %vm7358 = vweird.f32 %v7350
  %vm7359 = vweird.f32 %v7352
  %vm7360 = vmor %vm7358, %vm7359
  %v7361 = vsel %vm7360, %v7352, %v7357
  %v7362 = vrsqrt.pop %v7351
  %v7363 = vmul.f32 %v7362, %v7351
  %v7364 = vmul.f32 %v7363, %v7362
  %v7365 = vmul.f32 0.5, %v7364
  %v7366 = vsub.f32 1.5, %v7365
  %v7367 = vmul.f32 %v7362, %v7366
  %vm7368 = vweird.f32 %v7351
  %vm7369 = vweird.f32 %v7362
  %vm7370 = vmor %vm7368, %vm7369
  %v7371 = vsel %vm7370, %v7362, %v7367
  %v7372 = vmul.f32 %v7338, %v7361
  %v7373 = vmul.f32 %v7339, %v7371
  %v7374 = vperm.slane %v3772, 0
  %v7375 = vmul.f32 %v7372, %v7374
  %v7376 = vmul.f32 %v7373, %v7374
  %v7377 = vperm.slane %v3772, 1
  %v7378 = vadd.f32 %v7375, %v7377
  %v7379 = vadd.f32 %v7376, %v7377
  %7382 = vrot.lane.b32.xlu0 %v7378, 32
  %v7383 = vpop.permute.xlu0 %7382
  %7384 = vrot.lane.b32.xlu0 %v7379, 32
  %v7385 = vpop.permute.xlu0 %7384
  %v7388 = vsel %vm90, %v3730, %v7383
  %v7389 = vsel %vm90, %v3731, %v7385
  %7390 = vst.msk [vmem:[%s11] sm:$0xff] %vm1626, %v7388
  %7391 = vst.msk [vmem:[%s11 + $0x8] sm:$0xff] %vm1626, %v7389
  // Predicated region
  $region46: #{transformer_decoder.1} parent=0 // pred_check
    _
  $region47: #{transformer_decoder.1} parent=0 // pred_check_branch
    %7393 = sbr.rel (0) target = $region49
  $region48: #{transformer_decoder.1} parent=0 // pred_region
    _
  $region49: #{transformer_decoder.1} parent=0 // pred_fallthru
    _
  // Predicated region
  $region50: #{transformer_decoder.1} parent=0 // pred_check
    _
  $region51: #{transformer_decoder.1} parent=0 // pred_check_branch
    %7395 = sbr.rel (0) target = $region53
  $region52: #{transformer_decoder.1} parent=0 // pred_region
    _
  $region53: #{transformer_decoder.1} parent=0 // pred_fallthru
    _

</llo_original>
